<compile_context>
chip_gen: v7x
topology: tpu7x:2x2x1
jax: 0.10.0
libtpu: 0.0.40
codegen_flags: <defaults>
</compile_context>

<pallas_src>
import functools

import jax
import jax.numpy as jnp
from jax.experimental import pallas as pl
from jax.experimental.pallas import tpu as pltpu

LN_EPS = 1e-5  # torch.nn.LayerNorm default


def _round_up(n, m):
    return ((n + m - 1) // m) * m


def _erf_approx(x):
    # Abramowitz & Stegun 7.1.26 (|err| <= 1.5e-7): exp + polynomial only.
    p = 0.3275911
    a1, a2, a3, a4, a5 = (0.254829592, -0.284496736, 1.421413741,
                          -1.453152027, 1.061405429)
    sgn = jnp.where(x >= 0.0, 1.0, -1.0)
    ax = jnp.abs(x)
    t = 1.0 / (1.0 + p * ax)
    poly = t * (a1 + t * (a2 + t * (a3 + t * (a4 + t * a5))))
    return sgn * (1.0 - poly * jnp.exp(-ax * ax))


def _gelu_erf(x):
    # exact (erf-based) GELU, matching torch.nn.GELU() default
    return 0.5 * x * (1.0 + _erf_approx(x * 0.7071067811865476))


def _gelu_tanh(x):
    # tanh-approx GELU (torch GELU(approximate='tanh')); |err| vs exact ~3e-4.
    # Moves work from VALU (erf polynomial) to the EUP tanh slot.
    c = 0.7978845608028654  # sqrt(2/pi)
    return 0.5 * x * (1.0 + jnp.tanh(c * (x + 0.044715 * x * x * x)))


def _layernorm(x, gamma, beta):
    mu = jnp.mean(x, axis=-1, keepdims=True)
    var = jnp.mean(jnp.square(x - mu), axis=-1, keepdims=True)
    return (x - mu) * jax.lax.rsqrt(var + LN_EPS) * gamma + beta


def _focalnet_block_kernel(
    x_ref,                       # (1, L, C) f32   input tokens for this batch elt
    n1w_ref, n1b_ref,            # (1, C) f32      norm1
    fw_ref, fb_ref,              # (C, WF) bf16 / (1, WF) f32   fused f = [q|ctx|gates|pad]
    dw_ref,                      # (K*K, C) f32    depthwise conv weight, level 0
    hw_ref, hb_ref,              # (C, C) bf16 / (1, C) f32     1x1 conv h
    pw_ref, pb_ref,              # (C, C) bf16 / (1, C) f32     modulation.proj
    n2w_ref, n2b_ref,            # (1, C) f32      norm2
    f1w_ref, f1b_ref,            # (C, Ch) bf16 / (1, Ch) f32   mlp.fc1
    f2w_ref, f2b_ref,            # (Ch, C) bf16 / (1, C) f32    mlp.fc2
    out_ref,                     # (1, L, C) f32
    pad_ref,                     # scratch (PADV + L + PADV, C) f32 row-padded ctx
    *, H, W, C, K, WF, PADV, MLP_TILE,
):
    L = H * W
    PAD = K // 2                 # = 1 for focal_window=3
    bf16 = jnp.bfloat16

    x = x_ref[0]                 # (L, C) f32
    shortcut = x

    # ---- norm1 (pre-norm path, use_postln=False) ----
    xn = _layernorm(x, n1w_ref[...], n1b_ref[...])

    # ---- modulation.f : one fused bf16 MXU pass -> [q | ctx | gates | zero-pad] ----
    fused = jnp.dot(xn.astype(bf16), fw_ref[...],
                    preferred_element_type=jnp.float32) + fb_ref[...]
    q = fused[:, :C]
    ctx = fused[:, C:2 * C]
    gate0 = fused[:, 2 * C:2 * C + 1]          # focal level 0 gate
    gate1 = fused[:, 2 * C + 1:2 * C + 2]      # global-context gate (focal_level=1)

    # ---- focal level 0: depthwise KxK conv (zero padding) + GELU ----
    # ctx stays flat (L, C); taps are row shifts by dy*W + dx read from a
    # row-padded scratch.  Only the border rows are zeroed (every step, so the
    # kernel is safe when the batch grid axis is sharded across TensorCores).
    pad_ref[0:PADV, :] = jnp.zeros((PADV, C), jnp.float32)
    pad_ref[PADV + L:PADV + L + PADV, :] = jnp.zeros((PADV, C), jnp.float32)
    pad_ref[PADV:PADV + L, :] = ctx

    wcoord = jax.lax.broadcasted_iota(jnp.int32, (L, 1), 0) % W
    dwv = dw_ref[...]                          # (K*K, C), hoisted out of the loop
    acc = jnp.zeros((L, C), jnp.float32)
    for dx in range(-PAD, PAD + 1):
        part = jnp.zeros((L, C), jnp.float32)
        for dy in range(-PAD, PAD + 1):
            row = (dy + PAD) * K + (dx + PAD)
            start = PADV + dy * W + dx
            tap = pad_ref[start:start + L, :]              # row-shifted plane read
            part = part + tap * dwv[row:row + 1, :]
        # mask horizontal wrap-around of the flat layout (one mask per dx group)
        if dx > 0:
            part = jnp.where(wcoord < W - dx, part, 0.0)
        elif dx < 0:
            part = jnp.where(wcoord >= -dx, part, 0.0)
        acc = acc + part
    ctx_l = _gelu_erf(acc)                                  # (L, C)

    ctx_all = ctx_l * gate0

    # ---- global context (mean over H,W) ----
    ctx_global = _gelu_erf(jnp.mean(ctx_l, axis=0, keepdims=True))   # (1, C)
    ctx_all = ctx_all + ctx_global * gate1

    # ---- h (1x1 conv) -> modulator ; q * modulator ; proj ----
    modulator = jnp.dot(ctx_all.astype(bf16), hw_ref[...],
                        preferred_element_type=jnp.float32) + hb_ref[...]
    x_out = q * modulator
    x_out = jnp.dot(x_out.astype(bf16), pw_ref[...],
                    preferred_element_type=jnp.float32) + pb_ref[...]

    # ---- residual 1 (gamma_1 = 1, drop_path = identity) ----
    x1 = shortcut + x_out

    # ---- MLP branch, tiled over tokens: out = x1 + fc2(gelu(fc1(norm2(x1)))) ----
    n2w = n2w_ref[...]
    n2b = n2b_ref[...]
    f1w = f1w_ref[...]
    f1b = f1b_ref[...]
    f2w = f2w_ref[...]
    f2b = f2b_ref[...]
    for t0 in range(0, L, MLP_TILE):
        xt = x1[t0:t0 + MLP_TILE, :]
        xn2 = _layernorm(xt, n2w, n2b)
        h1 = _gelu_tanh(jnp.dot(xn2.astype(bf16), f1w,
                                preferred_element_type=jnp.float32) + f1b)
        mlp = jnp.dot(h1.astype(bf16), f2w,
                      preferred_element_type=jnp.float32) + f2b
        out_ref[0, t0:t0 + MLP_TILE, :] = (xt + mlp).astype(out_ref.dtype)
    # TODO(synk): nn.Dropout / DropPath with p=0.0 are identities and omitted.


def focalnet_block(x, kp, H, W, focal_level=1, focal_window=3):
    """x: (B, L, C) float32; kp: kernel-layout params (see to_kernel_params)."""
    B, L, C = x.shape
    assert L == H * W
    K = focal_window
    WF = kp["f_w_t"].shape[1]                # padded fused-f output width
    Chid = kp["fc1_b"].shape[1]
    PADV = _round_up((K // 2) * (W + 1), 8)  # row padding for the conv scratch

    # Token tile for the MLP stage (bounds the live (tile, 4C) hidden activation).
    if L > 512 and L % 512 == 0:
        mlp_tile = 512
    else:
        mlp_tile = L

    kernel = functools.partial(_focalnet_block_kernel, H=H, W=W, C=C, K=K,
                               WF=WF, PADV=PADV, MLP_TILE=mlp_tile)

    def full_spec(a):   # whole (small) parameter array, same block every step
        return pl.BlockSpec(a.shape, lambda b: (0, 0))

    in_arrays = [
        x,
        kp["n1_w"], kp["n1_b"],
        kp["f_w_t"], kp["f_b"],
        kp["dw_w_kc"],
        kp["h_w_t"], kp["h_b"],
        kp["proj_w_t"], kp["proj_b"],
        kp["n2_w"], kp["n2_b"],
        kp["fc1_w_t"], kp["fc1_b"],
        kp["fc2_w_t"], kp["fc2_b"],
    ]
    in_specs = ([pl.BlockSpec((1, L, C), lambda b: (b, 0, 0))]
                + [full_spec(a) for a in in_arrays[1:]])

    # Explicit scoped-VMEM limit derived from the shapes (with 2x headroom),
    # clamped to stay inside v7x's 64 MiB physical VMEM.
    param_bytes = sum(int(a.size) * a.dtype.itemsize for a in in_arrays[1:])
    f32b = 4
    est = (2 * 2 * L * C * f32b                 # in/out token blocks, double-buffered
           + 2 * param_bytes                    # weights/biases, double-buffered
           + (L + 2 * PADV) * C * f32b          # conv scratch
           + L * WF * f32b                      # fused f output
           + 12 * L * C * f32b                  # q/ctx/taps/acc/x1/... headroom
           + 3 * mlp_tile * Chid * f32b)        # MLP hidden tile
    vmem_limit = int(min(64 * 1024 * 1024, max(2 * est, 32 * 1024 * 1024)))

    return pl.pallas_call(
        kernel,
        out_shape=jax.ShapeDtypeStruct((B, L, C), x.dtype),
        grid_spec=pltpu.PrefetchScalarGridSpec(
            num_scalar_prefetch=0,
            grid=(B,),
            in_specs=in_specs,
            out_specs=pl.BlockSpec((1, L, C), lambda b: (b, 0, 0)),
            scratch_shapes=[
                pltpu.VMEM((PADV + L + PADV, C), jnp.float32)],
        ),
        compiler_params=pltpu.CompilerParams(
            dimension_semantics=("parallel",),     # batch elts are independent
            vmem_limit_bytes=vmem_limit),
    )(*in_arrays)


# ----------------------- parameter setup (plain JAX glue) -----------------------

def init_params(key, C, focal_level=1, focal_window=3, mlp_ratio=4.0):
    """Deterministic synthetic params in PyTorch shape conventions."""
    G = focal_level + 1
    K = focal_window
    Chid = int(C * mlp_ratio)
    ks = jax.random.split(key, 15)

    def nrm(k, shape, scale=0.05):
        return (scale * jax.random.normal(k, shape)).astype(jnp.float32)

    return dict(
        n1_w=(1.0 + nrm(ks[0], (C,), 0.1)), n1_b=nrm(ks[1], (C,)),
        f_w=nrm(ks[2], (2 * C + G, C)), f_b=nrm(ks[3], (2 * C + G,)),
        dw_w=nrm(ks[4], (C, 1, K, K), 0.2),           # depthwise, no bias
        h_w=nrm(ks[5], (C, C, 1, 1)), h_b=nrm(ks[6], (C,)),
        proj_w=nrm(ks[7], (C, C)), proj_b=nrm(ks[8], (C,)),
        n2_w=(1.0 + nrm(ks[9], (C,), 0.1)), n2_b=nrm(ks[10], (C,)),
        fc1_w=nrm(ks[11], (Chid, C)), fc1_b=nrm(ks[12], (Chid,)),
        fc2_w=nrm(ks[13], (C, Chid)), fc2_b=nrm(ks[14], (C,)),
    )


def to_kernel_params(p, C, focal_level=1, focal_window=3):
    """PyTorch (out,in)/NCHW weights -> kernel (in,out)/HWC layout, bf16 matmul weights."""
    K = focal_window
    G = focal_level + 1
    WF = _round_up(2 * C + G, 128)            # lane-aligned fused-f output width

    f_wt = p["f_w"].T                                        # (C, 2C+G)
    f_w_pad = jnp.zeros((C, WF), jnp.float32).at[:, :2 * C + G].set(f_wt)
    f_b_pad = jnp.zeros((WF,), jnp.float32).at[:2 * C + G].set(p["f_b"])

    def bf(a):
        return a.astype(jnp.bfloat16)

    return dict(
        n1_w=p["n1_w"][None, :], n1_b=p["n1_b"][None, :],
        f_w_t=bf(f_w_pad), f_b=f_b_pad[None, :],
        dw_w_kc=jnp.transpose(p["dw_w"][:, 0], (1, 2, 0)).reshape(K * K, C),
        h_w_t=bf(p["h_w"][:, :, 0, 0].T), h_b=p["h_b"][None, :],
        proj_w_t=bf(p["proj_w"].T), proj_b=p["proj_b"][None, :],
        n2_w=p["n2_w"][None, :], n2_b=p["n2_b"][None, :],
        fc1_w_t=bf(p["fc1_w"].T), fc1_b=p["fc1_b"][None, :],
        fc2_w_t=bf(p["fc2_w"].T), fc2_b=p["fc2_b"][None, :],
    )


# ----------------------- pure-JAX reference for verification -----------------------

def reference_forward(x, p, H, W, focal_level=1):
    B, L, C = x.shape

    def ln(v, g, b):
        mu = jnp.mean(v, axis=-1, keepdims=True)
        var = jnp.mean(jnp.square(v - mu), axis=-1, keepdims=True)
        return (v - mu) * jax.lax.rsqrt(var + LN_EPS) * g + b

    gelu = lambda v: jax.nn.gelu(v, approximate=False)

    shortcut = x
    xn = ln(x, p["n1_w"], p["n1_b"]).reshape(B, H, W, C)
    f_out = xn @ p["f_w"].T + p["f_b"]
    q = f_out[..., :C]
    ctx = f_out[..., C:2 * C]
    gates = f_out[..., 2 * C:]
    kern = jnp.transpose(p["dw_w"], (2, 3, 1, 0))       # (K, K, 1, C)
    ctx = jax.lax.conv_general_dilated(
        ctx, kern, window_strides=(1, 1), padding="SAME",
        dimension_numbers=("NHWC", "HWIO", "NHWC"), feature_group_count=C)
    ctx = gelu(ctx)
    ctx_all = ctx * gates[..., 0:1]
    ctx_global = gelu(jnp.mean(ctx, axis=(1, 2), keepdims=True))
    ctx_all = ctx_all + ctx_global * gates[..., focal_level:focal_level + 1]
    modulator = ctx_all @ p["h_w"][:, :, 0, 0].T + p["h_b"]
    x_out = (q * modulator) @ p["proj_w"].T + p["proj_b"]
    x1 = shortcut + x_out.reshape(B, L, C)
    xn2 = ln(x1, p["n2_w"], p["n2_b"])
    h1 = gelu(xn2 @ p["fc1_w"].T + p["fc1_b"])
    mlp = h1 @ p["fc2_w"].T + p["fc2_b"]
    return x1 + mlp


if __name__ == "__main__":
    B, H, W, C = 2, 16, 16, 32        # dim=32, input_resolution=(16,16)
    L = H * W
    key = jax.random.PRNGKey(0)
    kx, kp_key = jax.random.split(key)
    x = jax.random.normal(kx, (B, L, C), dtype=jnp.float32)

    params = init_params(kp_key, C)
    kparams = to_kernel_params(params, C)

    out = focalnet_block(x, kparams, H, W)
    out = jax.block_until_ready(out)

    ref = reference_forward(x, params, H, W)
    err = float(jnp.max(jnp.abs(out - ref)))
    assert out.shape == (B, L, C)
    # bf16 MXU inputs + tanh-GELU on the MLP hidden -> relaxed vs. pure-f32 ref.
    assert err < 2.5e-2, f"max abs err too large: {err}"
    print("KERNEL_OK")
</pallas_src>

<mosaic_0001>
module attributes {stable_mosaic.version = 11 : i64} {
  func.func @_focalnet_block_kernel(%arg0: i32, %arg1: memref<1x256x32xf32, #tpu.memory_space<vmem>>, %arg2: memref<1x32xf32, #tpu.memory_space<vmem>>, %arg3: memref<1x32xf32, #tpu.memory_space<vmem>>, %arg4: memref<32x128xbf16, #tpu.memory_space<vmem>>, %arg5: memref<1x128xf32, #tpu.memory_space<vmem>>, %arg6: memref<9x32xf32, #tpu.memory_space<vmem>>, %arg7: memref<32x32xbf16, #tpu.memory_space<vmem>>, %arg8: memref<1x32xf32, #tpu.memory_space<vmem>>, %arg9: memref<32x32xbf16, #tpu.memory_space<vmem>>, %arg10: memref<1x32xf32, #tpu.memory_space<vmem>>, %arg11: memref<1x32xf32, #tpu.memory_space<vmem>>, %arg12: memref<1x32xf32, #tpu.memory_space<vmem>>, %arg13: memref<32x128xbf16, #tpu.memory_space<vmem>>, %arg14: memref<1x128xf32, #tpu.memory_space<vmem>>, %arg15: memref<128x32xbf16, #tpu.memory_space<vmem>>, %arg16: memref<1x32xf32, #tpu.memory_space<vmem>>, %arg17: memref<1x256x32xf32, #tpu.memory_space<vmem>>, %arg18: memref<304x32xf32, #tpu.memory_space<vmem>>) attributes {dimension_semantics = [#tpu.dimension_semantics<parallel>], iteration_bounds = array<i64: 2>, scalar_prefetch = 0 : i64, scratch_operands = 1 : i64, tpu.core_type = #tpu.core_type<tc>, window_params = [{transform_indices = @transform_0, window_bounds = array<i64: 1, 256, 32>}, {pipeline_mode = #tpu.pipeline_mode<synchronous>, transform_indices = @transform_1, window_bounds = array<i64: 1, 32>}, {pipeline_mode = #tpu.pipeline_mode<synchronous>, transform_indices = @transform_2, window_bounds = array<i64: 1, 32>}, {pipeline_mode = #tpu.pipeline_mode<synchronous>, transform_indices = @transform_3, window_bounds = array<i64: 32, 128>}, {pipeline_mode = #tpu.pipeline_mode<synchronous>, transform_indices = @transform_4, window_bounds = array<i64: 1, 128>}, {pipeline_mode = #tpu.pipeline_mode<synchronous>, transform_indices = @transform_5, window_bounds = array<i64: 9, 32>}, {pipeline_mode = #tpu.pipeline_mode<synchronous>, transform_indices = @transform_6, window_bounds = array<i64: 32, 32>}, {pipeline_mode = #tpu.pipeline_mode<synchronous>, transform_indices = @transform_7, window_bounds = array<i64: 1, 32>}, {pipeline_mode = #tpu.pipeline_mode<synchronous>, transform_indices = @transform_8, window_bounds = array<i64: 32, 32>}, {pipeline_mode = #tpu.pipeline_mode<synchronous>, transform_indices = @transform_9, window_bounds = array<i64: 1, 32>}, {pipeline_mode = #tpu.pipeline_mode<synchronous>, transform_indices = @transform_10, window_bounds = array<i64: 1, 32>}, {pipeline_mode = #tpu.pipeline_mode<synchronous>, transform_indices = @transform_11, window_bounds = array<i64: 1, 32>}, {pipeline_mode = #tpu.pipeline_mode<synchronous>, transform_indices = @transform_12, window_bounds = array<i64: 32, 128>}, {pipeline_mode = #tpu.pipeline_mode<synchronous>, transform_indices = @transform_13, window_bounds = array<i64: 1, 128>}, {pipeline_mode = #tpu.pipeline_mode<synchronous>, transform_indices = @transform_14, window_bounds = array<i64: 128, 32>}, {pipeline_mode = #tpu.pipeline_mode<synchronous>, transform_indices = @transform_15, window_bounds = array<i64: 1, 32>}, {transform_indices = @transform_16, window_bounds = array<i64: 1, 256, 32>}]} {
    %c0 = arith.constant 0 : index
    %c0_0 = arith.constant 0 : index
    %c0_1 = arith.constant 0 : index
    %0 = vector.load %arg1[%c0, %c0_0, %c0_1] : memref<1x256x32xf32, #tpu.memory_space<vmem>>, vector<1x256x32xf32>
    %1 = vector.shape_cast %0 : vector<1x256x32xf32> to vector<256x32xf32>
    %c0_2 = arith.constant 0 : index
    %c0_3 = arith.constant 0 : index
    %2 = vector.load %arg2[%c0_2, %c0_3] : memref<1x32xf32, #tpu.memory_space<vmem>>, vector<1x32xf32>
    %c0_4 = arith.constant 0 : index
    %c0_5 = arith.constant 0 : index
    %3 = vector.load %arg3[%c0_4, %c0_5] : memref<1x32xf32, #tpu.memory_space<vmem>>, vector<1x32xf32>
    %cst = arith.constant dense<0.000000e+00> : vector<256xf32>
    %4 = vector.multi_reduction <add>, %1, %cst [1] : vector<256x32xf32> to vector<256xf32>
    %5 = vector.shape_cast %4 : vector<256xf32> to vector<256x1xf32>
    %cst_6 = arith.constant 3.200000e+01 : f32
    %6 = vector.broadcast %cst_6 : f32 to vector<256x1xf32>
    %7 = arith.divf %5, %6 : vector<256x1xf32>
    %8 = vector.broadcast %7 : vector<256x1xf32> to vector<256x32xf32>
    %9 = arith.subf %1, %8 : vector<256x32xf32>
    %10 = arith.mulf %9, %9 : vector<256x32xf32>
    %cst_7 = arith.constant dense<0.000000e+00> : vector<256xf32>
    %11 = vector.multi_reduction <add>, %10, %cst_7 [1] : vector<256x32xf32> to vector<256xf32>
    %12 = vector.shape_cast %11 : vector<256xf32> to vector<256x1xf32>
    %cst_8 = arith.constant 3.200000e+01 : f32
    %13 = vector.broadcast %cst_8 : f32 to vector<256x1xf32>
    %14 = arith.divf %12, %13 : vector<256x1xf32>
    %15 = vector.broadcast %7 : vector<256x1xf32> to vector<256x32xf32>
    %16 = arith.subf %1, %15 : vector<256x32xf32>
    %cst_9 = arith.constant 9.99999974E-6 : f32
    %17 = vector.broadcast %cst_9 : f32 to vector<256x1xf32>
    %18 = arith.addf %14, %17 : vector<256x1xf32>
    %19 = math.rsqrt %18 : vector<256x1xf32>
    %20 = vector.broadcast %19 : vector<256x1xf32> to vector<256x32xf32>
    %21 = arith.mulf %16, %20 : vector<256x32xf32>
    %22 = vector.broadcast %2 : vector<1x32xf32> to vector<256x32xf32>
    %23 = arith.mulf %21, %22 : vector<256x32xf32>
    %24 = vector.broadcast %3 : vector<1x32xf32> to vector<256x32xf32>
    %25 = arith.addf %23, %24 : vector<256x32xf32>
    %26 = arith.truncf %25 : vector<256x32xf32> to vector<256x32xbf16>
    %c0_10 = arith.constant 0 : index
    %c0_11 = arith.constant 0 : index
    %27 = vector.load %arg4[%c0_10, %c0_11] : memref<32x128xbf16, #tpu.memory_space<vmem>>, vector<32x128xbf16>
    %cst_12 = arith.constant dense<0.000000e+00> : vector<256x128xf32>
    %28 = tpu.matmul %26, %27, %cst_12 {dimension_numbers = #tpu.dot_dimension_numbers<[1], [0], [0], [1], [0, 0, 1, 1], [], []>} : vector<256x32xbf16>, vector<32x128xbf16>, vector<256x128xf32> -> vector<256x128xf32>
    %c0_13 = arith.constant 0 : index
    %c0_14 = arith.constant 0 : index
    %29 = vector.load %arg5[%c0_13, %c0_14] : memref<1x128xf32, #tpu.memory_space<vmem>>, vector<1x128xf32>
    %30 = vector.broadcast %29 : vector<1x128xf32> to vector<256x128xf32>
    %31 = arith.addf %28, %30 : vector<256x128xf32>
    %32 = vector.extract_strided_slice %31 {offsets = [0, 0], sizes = [256, 32], strides = [1, 1]} : vector<256x128xf32> to vector<256x32xf32>
    %33 = vector.extract_strided_slice %31 {offsets = [0, 32], sizes = [256, 32], strides = [1, 1]} : vector<256x128xf32> to vector<256x32xf32>
    %34 = vector.extract_strided_slice %31 {offsets = [0, 64], sizes = [256, 1], strides = [1, 1]} : vector<256x128xf32> to vector<256x1xf32>
    %35 = vector.extract_strided_slice %31 {offsets = [0, 65], sizes = [256, 1], strides = [1, 1]} : vector<256x128xf32> to vector<256x1xf32>
    %cst_15 = arith.constant 0.000000e+00 : f32
    %36 = vector.broadcast %cst_15 : f32 to vector<24x32xf32>
    %c0_16 = arith.constant 0 : index
    %c0_17 = arith.constant 0 : index
    %37 = vector.load %arg18[%c0_16, %c0_17] : memref<304x32xf32, #tpu.memory_space<vmem>>, vector<24x32xf32>
    tpu.vector_store %arg18[%c0_16, %c0_17], %36 {strides = array<i32>} : memref<304x32xf32, #tpu.memory_space<vmem>>, vector<24x32xf32>,
    %cst_18 = arith.constant 0.000000e+00 : f32
    %38 = vector.broadcast %cst_18 : f32 to vector<24x32xf32>
    %c280 = arith.constant 280 : index
    %c0_19 = arith.constant 0 : index
    %39 = vector.load %arg18[%c280, %c0_19] : memref<304x32xf32, #tpu.memory_space<vmem>>, vector<24x32xf32>
    tpu.vector_store %arg18[%c280, %c0_19], %38 {strides = array<i32>} : memref<304x32xf32, #tpu.memory_space<vmem>>, vector<24x32xf32>,
    %c24 = arith.constant 24 : index
    %c0_20 = arith.constant 0 : index
    %40 = vector.load %arg18[%c24, %c0_20] : memref<304x32xf32, #tpu.memory_space<vmem>>, vector<256x32xf32>
    tpu.vector_store %arg18[%c24, %c0_20], %33 {strides = array<i32>} : memref<304x32xf32, #tpu.memory_space<vmem>>, vector<256x32xf32>,
    %41 = tpu.iota {dimensions = array<i32: 0>} : vector<256x1xi32>
    %c16_i32 = arith.constant 16 : i32
    %c0_i32 = arith.constant 0 : i32
    %42 = arith.cmpi eq, %c16_i32, %c0_i32 : i32
    %c1_i32 = arith.constant 1 : i32
    %43 = arith.select %42, %c1_i32, %c16_i32 : i32
    %44 = vector.broadcast %43 : i32 to vector<256x1xi32>
    %45 = arith.remsi %41, %44 : vector<256x1xi32>
    %c0_i32_21 = arith.constant 0 : i32
    %46 = vector.broadcast %c0_i32_21 : i32 to vector<256x1xi32>
    %47 = arith.cmpi ne, %45, %46 : vector<256x1xi32>
    %c0_i32_22 = arith.constant 0 : i32
    %48 = vector.broadcast %c0_i32_22 : i32 to vector<256x1xi32>
    %49 = arith.cmpi slt, %45, %48 : vector<256x1xi32>
    %c0_i32_23 = arith.constant 0 : i32
    %50 = arith.cmpi slt, %43, %c0_i32_23 : i32
    %51 = vector.broadcast %50 : i1 to vector<256x1xi1>
    %52 = vector.broadcast %51 : vector<256x1xi1> to vector<256x1xi1>
    %53 = arith.xori %49, %52 : vector<256x1xi1>
    %54 = arith.andi %53, %47 : vector<256x1xi1>
    %55 = vector.broadcast %43 : i32 to vector<256x1xi32>
    %56 = arith.addi %45, %55 : vector<256x1xi32>
    %57 = arith.select %54, %56, %45 : vector<256x1xi1>, vector<256x1xi32>
    %c0_24 = arith.constant 0 : index
    %c0_25 = arith.constant 0 : index
    %58 = vector.load %arg6[%c0_24, %c0_25] : memref<9x32xf32, #tpu.memory_space<vmem>>, vector<9x32xf32>
    %cst_26 = arith.constant 0.000000e+00 : f32
    %59 = vector.broadcast %cst_26 : f32 to vector<256x32xf32>
    %cst_27 = arith.constant 0.000000e+00 : f32
    %60 = vector.broadcast %cst_27 : f32 to vector<256x32xf32>
    %c7 = arith.constant 7 : index
    %c0_28 = arith.constant 0 : index
    %61 = vector.load %arg18[%c7, %c0_28] : memref<304x32xf32, #tpu.memory_space<vmem>>, vector<256x32xf32>
    %62 = vector.extract_strided_slice %58 {offsets = [0, 0], sizes = [1, 32], strides = [1, 1]} : vector<9x32xf32> to vector<1x32xf32>
    %63 = vector.broadcast %62 : vector<1x32xf32> to vector<256x32xf32>
    %64 = arith.mulf %61, %63 : vector<256x32xf32>
    %65 = arith.addf %60, %64 : vector<256x32xf32>
    %c23 = arith.constant 23 : index
    %c0_29 = arith.constant 0 : index
    %66 = vector.load %arg18[%c23, %c0_29] : memref<304x32xf32, #tpu.memory_space<vmem>>, vector<256x32xf32>
    %67 = vector.extract_strided_slice %58 {offsets = [3, 0], sizes = [1, 32], strides = [1, 1]} : vector<9x32xf32> to vector<1x32xf32>
    %68 = vector.broadcast %67 : vector<1x32xf32> to vector<256x32xf32>
    %69 = arith.mulf %66, %68 : vector<256x32xf32>
    %70 = arith.addf %65, %69 : vector<256x32xf32>
    %c39 = arith.constant 39 : index
    %c0_30 = arith.constant 0 : index
    %71 = vector.load %arg18[%c39, %c0_30] : memref<304x32xf32, #tpu.memory_space<vmem>>, vector<256x32xf32>
    %72 = vector.extract_strided_slice %58 {offsets = [6, 0], sizes = [1, 32], strides = [1, 1]} : vector<9x32xf32> to vector<1x32xf32>
    %73 = vector.broadcast %72 : vector<1x32xf32> to vector<256x32xf32>
    %74 = arith.mulf %71, %73 : vector<256x32xf32>
    %75 = arith.addf %70, %74 : vector<256x32xf32>
    %c1_i32_31 = arith.constant 1 : i32
    %76 = vector.broadcast %c1_i32_31 : i32 to vector<256x1xi32>
    %77 = arith.cmpi sge, %57, %76 : vector<256x1xi32>
    %cst_32 = arith.constant 0.000000e+00 : f32
    %78 = vector.shape_cast %77 : vector<256x1xi1> to vector<256x1xi1>
    %79 = vector.broadcast %78 : vector<256x1xi1> to vector<256x32xi1>
    %80 = vector.broadcast %cst_32 : f32 to vector<256x32xf32>
    %81 = arith.select %79, %75, %80 : vector<256x32xi1>, vector<256x32xf32>
    %82 = arith.addf %59, %81 : vector<256x32xf32>
    %cst_33 = arith.constant 0.000000e+00 : f32
    %83 = vector.broadcast %cst_33 : f32 to vector<256x32xf32>
    %c8 = arith.constant 8 : index
    %c0_34 = arith.constant 0 : index
    %84 = vector.load %arg18[%c8, %c0_34] : memref<304x32xf32, #tpu.memory_space<vmem>>, vector<256x32xf32>
    %85 = vector.extract_strided_slice %58 {offsets = [1, 0], sizes = [1, 32], strides = [1, 1]} : vector<9x32xf32> to vector<1x32xf32>
    %86 = vector.broadcast %85 : vector<1x32xf32> to vector<256x32xf32>
    %87 = arith.mulf %84, %86 : vector<256x32xf32>
    %88 = arith.addf %83, %87 : vector<256x32xf32>
    %c24_35 = arith.constant 24 : index
    %c0_36 = arith.constant 0 : index
    %89 = vector.load %arg18[%c24_35, %c0_36] : memref<304x32xf32, #tpu.memory_space<vmem>>, vector<256x32xf32>
    %90 = vector.extract_strided_slice %58 {offsets = [4, 0], sizes = [1, 32], strides = [1, 1]} : vector<9x32xf32> to vector<1x32xf32>
    %91 = vector.broadcast %90 : vector<1x32xf32> to vector<256x32xf32>
    %92 = arith.mulf %89, %91 : vector<256x32xf32>
    %93 = arith.addf %88, %92 : vector<256x32xf32>
    %c40 = arith.constant 40 : index
    %c0_37 = arith.constant 0 : index
    %94 = vector.load %arg18[%c40, %c0_37] : memref<304x32xf32, #tpu.memory_space<vmem>>, vector<256x32xf32>
    %95 = vector.extract_strided_slice %58 {offsets = [7, 0], sizes = [1, 32], strides = [1, 1]} : vector<9x32xf32> to vector<1x32xf32>
    %96 = vector.broadcast %95 : vector<1x32xf32> to vector<256x32xf32>
    %97 = arith.mulf %94, %96 : vector<256x32xf32>
    %98 = arith.addf %93, %97 : vector<256x32xf32>
    %99 = arith.addf %82, %98 : vector<256x32xf32>
    %cst_38 = arith.constant 0.000000e+00 : f32
    %100 = vector.broadcast %cst_38 : f32 to vector<256x32xf32>
    %c9 = arith.constant 9 : index
    %c0_39 = arith.constant 0 : index
    %101 = vector.load %arg18[%c9, %c0_39] : memref<304x32xf32, #tpu.memory_space<vmem>>, vector<256x32xf32>
    %102 = vector.extract_strided_slice %58 {offsets = [2, 0], sizes = [1, 32], strides = [1, 1]} : vector<9x32xf32> to vector<1x32xf32>
    %103 = vector.broadcast %102 : vector<1x32xf32> to vector<256x32xf32>
    %104 = arith.mulf %101, %103 : vector<256x32xf32>
    %105 = arith.addf %100, %104 : vector<256x32xf32>
    %c25 = arith.constant 25 : index
    %c0_40 = arith.constant 0 : index
    %106 = vector.load %arg18[%c25, %c0_40] : memref<304x32xf32, #tpu.memory_space<vmem>>, vector<256x32xf32>
    %107 = vector.extract_strided_slice %58 {offsets = [5, 0], sizes = [1, 32], strides = [1, 1]} : vector<9x32xf32> to vector<1x32xf32>
    %108 = vector.broadcast %107 : vector<1x32xf32> to vector<256x32xf32>
    %109 = arith.mulf %106, %108 : vector<256x32xf32>
    %110 = arith.addf %105, %109 : vector<256x32xf32>
    %c41 = arith.constant 41 : index
    %c0_41 = arith.constant 0 : index
    %111 = vector.load %arg18[%c41, %c0_41] : memref<304x32xf32, #tpu.memory_space<vmem>>, vector<256x32xf32>
    %112 = vector.extract_strided_slice %58 {offsets = [8, 0], sizes = [1, 32], strides = [1, 1]} : vector<9x32xf32> to vector<1x32xf32>
    %113 = vector.broadcast %112 : vector<1x32xf32> to vector<256x32xf32>
    %114 = arith.mulf %111, %113 : vector<256x32xf32>
    %115 = arith.addf %110, %114 : vector<256x32xf32>
    %c15_i32 = arith.constant 15 : i32
    %116 = vector.broadcast %c15_i32 : i32 to vector<256x1xi32>
    %117 = arith.cmpi slt, %57, %116 : vector<256x1xi32>
    %cst_42 = arith.constant 0.000000e+00 : f32
    %118 = vector.shape_cast %117 : vector<256x1xi1> to vector<256x1xi1>
    %119 = vector.broadcast %118 : vector<256x1xi1> to vector<256x32xi1>
    %120 = vector.broadcast %cst_42 : f32 to vector<256x32xf32>
    %121 = arith.select %119, %115, %120 : vector<256x32xi1>, vector<256x32xf32>
    %122 = arith.addf %99, %121 : vector<256x32xf32>
    %cst_43 = arith.constant 5.000000e-01 : f32
    %123 = vector.broadcast %cst_43 : f32 to vector<256x32xf32>
    %124 = arith.mulf %123, %122 : vector<256x32xf32>
    %cst_44 = arith.constant 0.707106769 : f32
    %125 = vector.broadcast %cst_44 : f32 to vector<256x32xf32>
    %126 = arith.mulf %122, %125 : vector<256x32xf32>
    %cst_45 = arith.constant 0.000000e+00 : f32
    %127 = vector.broadcast %cst_45 : f32 to vector<256x32xf32>
    %128 = arith.cmpf oge, %126, %127 : vector<256x32xf32>
    %cst_46 = arith.constant 1.000000e+00 : f32
    %cst_47 = arith.constant -1.000000e+00 : f32
    %129 = vector.broadcast %cst_46 : f32 to vector<256x32xf32>
    %130 = vector.broadcast %cst_47 : f32 to vector<256x32xf32>
    %131 = arith.select %128, %129, %130 : vector<256x32xi1>, vector<256x32xf32>
    %132 = math.absf %126 : vector<256x32xf32>
    %cst_48 = arith.constant 0.327591091 : f32
    %133 = vector.broadcast %cst_48 : f32 to vector<256x32xf32>
    %134 = arith.mulf %133, %132 : vector<256x32xf32>
    %cst_49 = arith.constant 1.000000e+00 : f32
    %135 = vector.broadcast %cst_49 : f32 to vector<256x32xf32>
    %136 = arith.addf %135, %134 : vector<256x32xf32>
    %cst_50 = arith.constant 1.000000e+00 : f32
    %137 = vector.broadcast %cst_50 : f32 to vector<256x32xf32>
    %138 = arith.divf %137, %136 : vector<256x32xf32>
    %cst_51 = arith.constant 1.06140542 : f32
    %139 = vector.broadcast %cst_51 : f32 to vector<256x32xf32>
    %140 = arith.mulf %138, %139 : vector<256x32xf32>
    %cst_52 = arith.constant -1.45315206 : f32
    %141 = vector.broadcast %cst_52 : f32 to vector<256x32xf32>
    %142 = arith.addf %141, %140 : vector<256x32xf32>
    %143 = arith.mulf %138, %142 : vector<256x32xf32>
    %cst_53 = arith.constant 1.42141378 : f32
    %144 = vector.broadcast %cst_53 : f32 to vector<256x32xf32>
    %145 = arith.addf %144, %143 : vector<256x32xf32>
    %146 = arith.mulf %138, %145 : vector<256x32xf32>
    %cst_54 = arith.constant -0.284496725 : f32
    %147 = vector.broadcast %cst_54 : f32 to vector<256x32xf32>
    %148 = arith.addf %147, %146 : vector<256x32xf32>
    %149 = arith.mulf %138, %148 : vector<256x32xf32>
    %cst_55 = arith.constant 0.254829586 : f32
    %150 = vector.broadcast %cst_55 : f32 to vector<256x32xf32>
    %151 = arith.addf %150, %149 : vector<256x32xf32>
    %152 = arith.mulf %138, %151 : vector<256x32xf32>
    %cst_56 = arith.constant 0.000000e+00 : f32
    %153 = vector.broadcast %cst_56 : f32 to vector<256x32xf32>
    %154 = arith.subf %153, %132 : vector<256x32xf32>
    %155 = arith.mulf %154, %132 : vector<256x32xf32>
    %156 = math.exp %155 : vector<256x32xf32>
    %157 = arith.mulf %152, %156 : vector<256x32xf32>
    %cst_57 = arith.constant 1.000000e+00 : f32
    %158 = vector.broadcast %cst_57 : f32 to vector<256x32xf32>
    %159 = arith.subf %158, %157 : vector<256x32xf32>
    %160 = arith.mulf %131, %159 : vector<256x32xf32>
    %cst_58 = arith.constant 1.000000e+00 : f32
    %161 = vector.broadcast %cst_58 : f32 to vector<256x32xf32>
    %162 = arith.addf %161, %160 : vector<256x32xf32>
    %163 = arith.mulf %124, %162 : vector<256x32xf32>
    %164 = vector.broadcast %34 : vector<256x1xf32> to vector<256x32xf32>
    %165 = arith.mulf %163, %164 : vector<256x32xf32>
    %cst_59 = arith.constant dense<0.000000e+00> : vector<32xf32>
    %166 = vector.multi_reduction <add>, %163, %cst_59 [0] : vector<256x32xf32> to vector<32xf32>
    %167 = vector.shape_cast %166 : vector<32xf32> to vector<1x32xf32>
    %cst_60 = arith.constant 2.560000e+02 : f32
    %168 = vector.broadcast %cst_60 : f32 to vector<1x32xf32>
    %169 = arith.divf %167, %168 : vector<1x32xf32>
    %cst_61 = arith.constant 5.000000e-01 : f32
    %170 = vector.broadcast %cst_61 : f32 to vector<1x32xf32>
    %171 = arith.mulf %170, %169 : vector<1x32xf32>
    %cst_62 = arith.constant 0.707106769 : f32
    %172 = vector.broadcast %cst_62 : f32 to vector<1x32xf32>
    %173 = arith.mulf %169, %172 : vector<1x32xf32>
    %cst_63 = arith.constant 0.000000e+00 : f32
    %174 = vector.broadcast %cst_63 : f32 to vector<1x32xf32>
    %175 = arith.cmpf oge, %173, %174 : vector<1x32xf32>
    %cst_64 = arith.constant 1.000000e+00 : f32
    %cst_65 = arith.constant -1.000000e+00 : f32
    %176 = vector.broadcast %cst_64 : f32 to vector<1x32xf32>
    %177 = vector.broadcast %cst_65 : f32 to vector<1x32xf32>
    %178 = arith.select %175, %176, %177 : vector<1x32xi1>, vector<1x32xf32>
    %179 = math.absf %173 : vector<1x32xf32>
    %cst_66 = arith.constant 0.327591091 : f32
    %180 = vector.broadcast %cst_66 : f32 to vector<1x32xf32>
    %181 = arith.mulf %180, %179 : vector<1x32xf32>
    %cst_67 = arith.constant 1.000000e+00 : f32
    %182 = vector.broadcast %cst_67 : f32 to vector<1x32xf32>
    %183 = arith.addf %182, %181 : vector<1x32xf32>
    %cst_68 = arith.constant 1.000000e+00 : f32
    %184 = vector.broadcast %cst_68 : f32 to vector<1x32xf32>
    %185 = arith.divf %184, %183 : vector<1x32xf32>
    %cst_69 = arith.constant 1.06140542 : f32
    %186 = vector.broadcast %cst_69 : f32 to vector<1x32xf32>
    %187 = arith.mulf %185, %186 : vector<1x32xf32>
    %cst_70 = arith.constant -1.45315206 : f32
    %188 = vector.broadcast %cst_70 : f32 to vector<1x32xf32>
    %189 = arith.addf %188, %187 : vector<1x32xf32>
    %190 = arith.mulf %185, %189 : vector<1x32xf32>
    %cst_71 = arith.constant 1.42141378 : f32
    %191 = vector.broadcast %cst_71 : f32 to vector<1x32xf32>
    %192 = arith.addf %191, %190 : vector<1x32xf32>
    %193 = arith.mulf %185, %192 : vector<1x32xf32>
    %cst_72 = arith.constant -0.284496725 : f32
    %194 = vector.broadcast %cst_72 : f32 to vector<1x32xf32>
    %195 = arith.addf %194, %193 : vector<1x32xf32>
    %196 = arith.mulf %185, %195 : vector<1x32xf32>
    %cst_73 = arith.constant 0.254829586 : f32
    %197 = vector.broadcast %cst_73 : f32 to vector<1x32xf32>
    %198 = arith.addf %197, %196 : vector<1x32xf32>
    %199 = arith.mulf %185, %198 : vector<1x32xf32>
    %cst_74 = arith.constant 0.000000e+00 : f32
    %200 = vector.broadcast %cst_74 : f32 to vector<1x32xf32>
    %201 = arith.subf %200, %179 : vector<1x32xf32>
    %202 = arith.mulf %201, %179 : vector<1x32xf32>
    %203 = math.exp %202 : vector<1x32xf32>
    %204 = arith.mulf %199, %203 : vector<1x32xf32>
    %cst_75 = arith.constant 1.000000e+00 : f32
    %205 = vector.broadcast %cst_75 : f32 to vector<1x32xf32>
    %206 = arith.subf %205, %204 : vector<1x32xf32>
    %207 = arith.mulf %178, %206 : vector<1x32xf32>
    %cst_76 = arith.constant 1.000000e+00 : f32
    %208 = vector.broadcast %cst_76 : f32 to vector<1x32xf32>
    %209 = arith.addf %208, %207 : vector<1x32xf32>
    %210 = arith.mulf %171, %209 : vector<1x32xf32>
    %211 = vector.broadcast %210 : vector<1x32xf32> to vector<256x32xf32>
    %212 = vector.broadcast %35 : vector<256x1xf32> to vector<256x32xf32>
    %213 = arith.mulf %211, %212 : vector<256x32xf32>
    %214 = arith.addf %165, %213 : vector<256x32xf32>
    %215 = arith.truncf %214 : vector<256x32xf32> to vector<256x32xbf16>
    %c0_77 = arith.constant 0 : index
    %c0_78 = arith.constant 0 : index
    %216 = vector.load %arg7[%c0_77, %c0_78] : memref<32x32xbf16, #tpu.memory_space<vmem>>, vector<32x32xbf16>
    %cst_79 = arith.constant dense<0.000000e+00> : vector<256x32xf32>
    %217 = tpu.matmul %215, %216, %cst_79 {dimension_numbers = #tpu.dot_dimension_numbers<[1], [0], [0], [1], [0, 0, 1, 1], [], []>} : vector<256x32xbf16>, vector<32x32xbf16>, vector<256x32xf32> -> vector<256x32xf32>
    %c0_80 = arith.constant 0 : index
    %c0_81 = arith.constant 0 : index
    %218 = vector.load %arg8[%c0_80, %c0_81] : memref<1x32xf32, #tpu.memory_space<vmem>>, vector<1x32xf32>
    %219 = vector.broadcast %218 : vector<1x32xf32> to vector<256x32xf32>
    %220 = arith.addf %217, %219 : vector<256x32xf32>
    %221 = arith.mulf %32, %220 : vector<256x32xf32>
    %222 = arith.truncf %221 : vector<256x32xf32> to vector<256x32xbf16>
    %c0_82 = arith.constant 0 : index
    %c0_83 = arith.constant 0 : index
    %223 = vector.load %arg9[%c0_82, %c0_83] : memref<32x32xbf16, #tpu.memory_space<vmem>>, vector<32x32xbf16>
    %cst_84 = arith.constant dense<0.000000e+00> : vector<256x32xf32>
    %224 = tpu.matmul %222, %223, %cst_84 {dimension_numbers = #tpu.dot_dimension_numbers<[1], [0], [0], [1], [0, 0, 1, 1], [], []>} : vector<256x32xbf16>, vector<32x32xbf16>, vector<256x32xf32> -> vector<256x32xf32>
    %c0_85 = arith.constant 0 : index
    %c0_86 = arith.constant 0 : index
    %225 = vector.load %arg10[%c0_85, %c0_86] : memref<1x32xf32, #tpu.memory_space<vmem>>, vector<1x32xf32>
    %226 = vector.broadcast %225 : vector<1x32xf32> to vector<256x32xf32>
    %227 = arith.addf %224, %226 : vector<256x32xf32>
    %228 = arith.addf %1, %227 : vector<256x32xf32>
    %c0_87 = arith.constant 0 : index
    %c0_88 = arith.constant 0 : index
    %229 = vector.load %arg11[%c0_87, %c0_88] : memref<1x32xf32, #tpu.memory_space<vmem>>, vector<1x32xf32>
    %c0_89 = arith.constant 0 : index
    %c0_90 = arith.constant 0 : index
    %230 = vector.load %arg12[%c0_89, %c0_90] : memref<1x32xf32, #tpu.memory_space<vmem>>, vector<1x32xf32>
    %c0_91 = arith.constant 0 : index
    %c0_92 = arith.constant 0 : index
    %231 = vector.load %arg13[%c0_91, %c0_92] : memref<32x128xbf16, #tpu.memory_space<vmem>>, vector<32x128xbf16>
    %c0_93 = arith.constant 0 : index
    %c0_94 = arith.constant 0 : index
    %232 = vector.load %arg14[%c0_93, %c0_94] : memref<1x128xf32, #tpu.memory_space<vmem>>, vector<1x128xf32>
    %c0_95 = arith.constant 0 : index
    %c0_96 = arith.constant 0 : index
    %233 = vector.load %arg15[%c0_95, %c0_96] : memref<128x32xbf16, #tpu.memory_space<vmem>>, vector<128x32xbf16>
    %c0_97 = arith.constant 0 : index
    %c0_98 = arith.constant 0 : index
    %234 = vector.load %arg16[%c0_97, %c0_98] : memref<1x32xf32, #tpu.memory_space<vmem>>, vector<1x32xf32>
    %cst_99 = arith.constant dense<0.000000e+00> : vector<256xf32>
    %235 = vector.multi_reduction <add>, %228, %cst_99 [1] : vector<256x32xf32> to vector<256xf32>
    %236 = vector.shape_cast %235 : vector<256xf32> to vector<256x1xf32>
    %cst_100 = arith.constant 3.200000e+01 : f32
    %237 = vector.broadcast %cst_100 : f32 to vector<256x1xf32>
    %238 = arith.divf %236, %237 : vector<256x1xf32>
    %239 = vector.broadcast %238 : vector<256x1xf32> to vector<256x32xf32>
    %240 = arith.subf %228, %239 : vector<256x32xf32>
    %241 = arith.mulf %240, %240 : vector<256x32xf32>
    %cst_101 = arith.constant dense<0.000000e+00> : vector<256xf32>
    %242 = vector.multi_reduction <add>, %241, %cst_101 [1] : vector<256x32xf32> to vector<256xf32>
    %243 = vector.shape_cast %242 : vector<256xf32> to vector<256x1xf32>
    %cst_102 = arith.constant 3.200000e+01 : f32
    %244 = vector.broadcast %cst_102 : f32 to vector<256x1xf32>
    %245 = arith.divf %243, %244 : vector<256x1xf32>
    %246 = vector.broadcast %238 : vector<256x1xf32> to vector<256x32xf32>
    %247 = arith.subf %228, %246 : vector<256x32xf32>
    %cst_103 = arith.constant 9.99999974E-6 : f32
    %248 = vector.broadcast %cst_103 : f32 to vector<256x1xf32>
    %249 = arith.addf %245, %248 : vector<256x1xf32>
    %250 = math.rsqrt %249 : vector<256x1xf32>
    %251 = vector.broadcast %250 : vector<256x1xf32> to vector<256x32xf32>
    %252 = arith.mulf %247, %251 : vector<256x32xf32>
    %253 = vector.broadcast %229 : vector<1x32xf32> to vector<256x32xf32>
    %254 = arith.mulf %252, %253 : vector<256x32xf32>
    %255 = vector.broadcast %230 : vector<1x32xf32> to vector<256x32xf32>
    %256 = arith.addf %254, %255 : vector<256x32xf32>
    %257 = arith.truncf %256 : vector<256x32xf32> to vector<256x32xbf16>
    %cst_104 = arith.constant dense<0.000000e+00> : vector<256x128xf32>
    %258 = tpu.matmul %257, %231, %cst_104 {dimension_numbers = #tpu.dot_dimension_numbers<[1], [0], [0], [1], [0, 0, 1, 1], [], []>} : vector<256x32xbf16>, vector<32x128xbf16>, vector<256x128xf32> -> vector<256x128xf32>
    %259 = vector.broadcast %232 : vector<1x128xf32> to vector<256x128xf32>
    %260 = arith.addf %258, %259 : vector<256x128xf32>
    %cst_105 = arith.constant 5.000000e-01 : f32
    %261 = vector.broadcast %cst_105 : f32 to vector<256x128xf32>
    %262 = arith.mulf %261, %260 : vector<256x128xf32>
    %cst_106 = arith.constant 4.471500e-02 : f32
    %263 = vector.broadcast %cst_106 : f32 to vector<256x128xf32>
    %264 = arith.mulf %263, %260 : vector<256x128xf32>
    %265 = arith.mulf %264, %260 : vector<256x128xf32>
    %266 = arith.mulf %265, %260 : vector<256x128xf32>
    %267 = arith.addf %260, %266 : vector<256x128xf32>
    %cst_107 = arith.constant 0.797884583 : f32
    %268 = vector.broadcast %cst_107 : f32 to vector<256x128xf32>
    %269 = arith.mulf %268, %267 : vector<256x128xf32>
    %270 = math.tanh %269 : vector<256x128xf32>
    %cst_108 = arith.constant 1.000000e+00 : f32
    %271 = vector.broadcast %cst_108 : f32 to vector<256x128xf32>
    %272 = arith.addf %271, %270 : vector<256x128xf32>
    %273 = arith.mulf %262, %272 : vector<256x128xf32>
    %274 = arith.truncf %273 : vector<256x128xf32> to vector<256x128xbf16>
    %cst_109 = arith.constant dense<0.000000e+00> : vector<256x32xf32>
    %275 = tpu.matmul %274, %233, %cst_109 {dimension_numbers = #tpu.dot_dimension_numbers<[1], [0], [0], [1], [0, 0, 1, 1], [], []>} : vector<256x128xbf16>, vector<128x32xbf16>, vector<256x32xf32> -> vector<256x32xf32>
    %276 = vector.broadcast %234 : vector<1x32xf32> to vector<256x32xf32>
    %277 = arith.addf %275, %276 : vector<256x32xf32>
    %278 = arith.addf %228, %277 : vector<256x32xf32>
    %c0_110 = arith.constant 0 : index
    %c0_111 = arith.constant 0 : index
    %c0_112 = arith.constant 0 : index
    %279 = vector.load %arg17[%c0_110, %c0_111, %c0_112] : memref<1x256x32xf32, #tpu.memory_space<vmem>>, vector<1x256x32xf32>
    %280 = vector.shape_cast %279 : vector<1x256x32xf32> to vector<256x32xf32>
    %281 = vector.shape_cast %278 : vector<256x32xf32> to vector<1x256x32xf32>
    tpu.vector_store %arg17[%c0_110, %c0_111, %c0_112], %281 {strides = array<i32>} : memref<1x256x32xf32, #tpu.memory_space<vmem>>, vector<1x256x32xf32>,
    return
  }
  func.func @transform_0(%arg0: i32) -> (i32, i32, i32) {
    %c0_i32 = arith.constant 0 : i32
    %c0_i32_0 = arith.constant 0 : i32
    %c0_i32_1 = arith.constant 0 : i32
    return %arg0, %c0_i32, %c0_i32_0 : i32, i32, i32
  }
  func.func @transform_1(%arg0: i32) -> (i32, i32) {
    %c0_i32 = arith.constant 0 : i32
    %c0_i32_0 = arith.constant 0 : i32
    %c0_i32_1 = arith.constant 0 : i32
    return %c0_i32, %c0_i32_0 : i32, i32
  }
  func.func @transform_2(%arg0: i32) -> (i32, i32) {
    %c0_i32 = arith.constant 0 : i32
    %c0_i32_0 = arith.constant 0 : i32
    %c0_i32_1 = arith.constant 0 : i32
    return %c0_i32, %c0_i32_0 : i32, i32
  }
  func.func @transform_3(%arg0: i32) -> (i32, i32) {
    %c0_i32 = arith.constant 0 : i32
    %c0_i32_0 = arith.constant 0 : i32
    %c0_i32_1 = arith.constant 0 : i32
    return %c0_i32, %c0_i32_0 : i32, i32
  }
  func.func @transform_4(%arg0: i32) -> (i32, i32) {
    %c0_i32 = arith.constant 0 : i32
    %c0_i32_0 = arith.constant 0 : i32
    %c0_i32_1 = arith.constant 0 : i32
    return %c0_i32, %c0_i32_0 : i32, i32
  }
  func.func @transform_5(%arg0: i32) -> (i32, i32) {
    %c0_i32 = arith.constant 0 : i32
    %c0_i32_0 = arith.constant 0 : i32
    %c0_i32_1 = arith.constant 0 : i32
    return %c0_i32, %c0_i32_0 : i32, i32
  }
  func.func @transform_6(%arg0: i32) -> (i32, i32) {
    %c0_i32 = arith.constant 0 : i32
    %c0_i32_0 = arith.constant 0 : i32
    %c0_i32_1 = arith.constant 0 : i32
    return %c0_i32, %c0_i32_0 : i32, i32
  }
  func.func @transform_7(%arg0: i32) -> (i32, i32) {
    %c0_i32 = arith.constant 0 : i32
    %c0_i32_0 = arith.constant 0 : i32
    %c0_i32_1 = arith.constant 0 : i32
    return %c0_i32, %c0_i32_0 : i32, i32
  }
  func.func @transform_8(%arg0: i32) -> (i32, i32) {
    %c0_i32 = arith.constant 0 : i32
    %c0_i32_0 = arith.constant 0 : i32
    %c0_i32_1 = arith.constant 0 : i32
    return %c0_i32, %c0_i32_0 : i32, i32
  }
  func.func @transform_9(%arg0: i32) -> (i32, i32) {
    %c0_i32 = arith.constant 0 : i32
    %c0_i32_0 = arith.constant 0 : i32
    %c0_i32_1 = arith.constant 0 : i32
    return %c0_i32, %c0_i32_0 : i32, i32
  }
  func.func @transform_10(%arg0: i32) -> (i32, i32) {
    %c0_i32 = arith.constant 0 : i32
    %c0_i32_0 = arith.constant 0 : i32
    %c0_i32_1 = arith.constant 0 : i32
    return %c0_i32, %c0_i32_0 : i32, i32
  }
  func.func @transform_11(%arg0: i32) -> (i32, i32) {
    %c0_i32 = arith.constant 0 : i32
    %c0_i32_0 = arith.constant 0 : i32
    %c0_i32_1 = arith.constant 0 : i32
    return %c0_i32, %c0_i32_0 : i32, i32
  }
  func.func @transform_12(%arg0: i32) -> (i32, i32) {
    %c0_i32 = arith.constant 0 : i32
    %c0_i32_0 = arith.constant 0 : i32
    %c0_i32_1 = arith.constant 0 : i32
    return %c0_i32, %c0_i32_0 : i32, i32
  }
  func.func @transform_13(%arg0: i32) -> (i32, i32) {
    %c0_i32 = arith.constant 0 : i32
    %c0_i32_0 = arith.constant 0 : i32
    %c0_i32_1 = arith.constant 0 : i32
    return %c0_i32, %c0_i32_0 : i32, i32
  }
  func.func @transform_14(%arg0: i32) -> (i32, i32) {
    %c0_i32 = arith.constant 0 : i32
    %c0_i32_0 = arith.constant 0 : i32
    %c0_i32_1 = arith.constant 0 : i32
    return %c0_i32, %c0_i32_0 : i32, i32
  }
  func.func @transform_15(%arg0: i32) -> (i32, i32) {
    %c0_i32 = arith.constant 0 : i32
    %c0_i32_0 = arith.constant 0 : i32
    %c0_i32_1 = arith.constant 0 : i32
    return %c0_i32, %c0_i32_0 : i32, i32
  }
  func.func @transform_16(%arg0: i32) -> (i32, i32, i32) {
    %c0_i32 = arith.constant 0 : i32
    %c0_i32_0 = arith.constant 0 : i32
    %c0_i32_1 = arith.constant 0 : i32
    return %arg0, %c0_i32, %c0_i32_0 : i32, i32, i32
  }
}

</mosaic_0001>

<llo_original>
// kernel: tpu_custom_call.1
$region0: #{tpu_custom_call.1}
  #allocation0 [shape = 'u32[]', space=smem, size = 0x4, offset = 0x4, fixed_abs, tag = 'smem constant byte address 0x4 - core index']
  #allocation1 [shape = 'u32[144,128]{1,0:T(1,128)}', space=vmem, size = 0x12000, scoped, tag = 'internal scratch']
  #allocation2 [shape = 'f32[304,32]{1,0:T(8,128)}', space=vmem, size = 0x26000, scoped, tag = 'scratch operand']
  %s0 = inlined_call_operand.vmem [shape: f32[2,256,32], index: 0, kind: input, shape index: {}]
  %s1 = inlined_call_operand.vmem [shape: f32[1,32], index: 1, kind: input, shape index: {}]
  %s2 = inlined_call_operand.vmem [shape: f32[1,32], index: 2, kind: input, shape index: {}]
  %s3 = inlined_call_operand.vmem [shape: bf16[32,128], index: 3, kind: input, shape index: {}]
  %s4 = inlined_call_operand.vmem [shape: f32[1,128], index: 4, kind: input, shape index: {}]
  %s5 = inlined_call_operand.vmem [shape: f32[9,32], index: 5, kind: input, shape index: {}]
  %s6 = inlined_call_operand.vmem [shape: bf16[32,32], index: 6, kind: input, shape index: {}]
  %s7 = inlined_call_operand.vmem [shape: f32[1,32], index: 7, kind: input, shape index: {}]
  %s8 = inlined_call_operand.vmem [shape: bf16[32,32], index: 8, kind: input, shape index: {}]
  %s9 = inlined_call_operand.vmem [shape: f32[1,32], index: 9, kind: input, shape index: {}]
  %s10 = inlined_call_operand.vmem [shape: f32[1,32], index: 10, kind: input, shape index: {}]
  %s11 = inlined_call_operand.vmem [shape: f32[1,32], index: 11, kind: input, shape index: {}]
  %s12 = inlined_call_operand.vmem [shape: bf16[32,128], index: 12, kind: input, shape index: {}]
  %s13 = inlined_call_operand.vmem [shape: f32[1,128], index: 13, kind: input, shape index: {}]
  %s14 = inlined_call_operand.vmem [shape: bf16[128,32], index: 14, kind: input, shape index: {}]
  %s15 = inlined_call_operand.vmem [shape: f32[1,32], index: 15, kind: input, shape index: {}]
  %s16 = inlined_call_operand.vmem [shape: f32[2,256,32], index: 16, kind: output, shape index: {}]
  %s17 = sld [smem:[#allocation0]]
  $region97: #{tpu_custom_call.1} parent=0
    _
  %s19 = ssub.s32 1, %s17
  %s20 = scalar_select 0, %s19, %s17
  loop: start=0, step=1, limit=4
  $region2: #{tpu_custom_call.1} parent=0 // loop_pre_header
    _
  $region3: #{tpu_custom_call.1} parent=0 // loop_header
    %s22 = sphi 0, %s26
    %p23 = scmp.ge.s32.totalorder %s22, 4
    %s32 = sphi 0, %s34
    %s35 = sphi 0, %s32
    %s36 = sphi 0, %s35
    %s52 = sphi 0, %s36
    %s56 = sphi 0, %s56
    %s58 = sphi 0, %s56
    %s59 = sphi 0, %s58
    %s73 = sphi 0, %s59
    %s77 = sphi 0, %s77
    %s79 = sphi 0, %s77
    %s80 = sphi 0, %s79
    %s94 = sphi 0, %s80
    %s98 = sphi 0, %s98
    %s100 = sphi 0, %s98
    %s101 = sphi 0, %s100
    %s115 = sphi 0, %s101
    %s119 = sphi 0, %s119
    %s121 = sphi 0, %s119
    %s122 = sphi 0, %s121
    %s136 = sphi 0, %s122
    %s140 = sphi 0, %s140
    %s142 = sphi 0, %s140
    %s143 = sphi 0, %s142
    %s157 = sphi 0, %s143
    %s161 = sphi 0, %s161
    %s163 = sphi 0, %s161
    %s164 = sphi 0, %s163
    %s178 = sphi 0, %s164
    %s182 = sphi 0, %s182
    %s184 = sphi 0, %s182
    %s185 = sphi 0, %s184
    %s199 = sphi 0, %s185
    %s203 = sphi 0, %s203
    %s205 = sphi 0, %s203
    %s206 = sphi 0, %s205
    %s220 = sphi 0, %s206
    %s224 = sphi 0, %s224
    %s226 = sphi 0, %s224
    %s227 = sphi 0, %s226
    %s241 = sphi 0, %s227
    %s245 = sphi 0, %s245
    %s247 = sphi 0, %s245
    %s248 = sphi 0, %s247
    %s262 = sphi 0, %s248
    %s266 = sphi 0, %s266
    %s268 = sphi 0, %s266
    %s269 = sphi 0, %s268
    %s283 = sphi 0, %s269
    %s287 = sphi 0, %s287
    %s289 = sphi 0, %s287
    %s290 = sphi 0, %s289
    %s304 = sphi 0, %s290
    %s308 = sphi 0, %s308
    %s310 = sphi 0, %s308
    %s311 = sphi 0, %s310
    %s325 = sphi 0, %s311
    %s329 = sphi 0, %s329
    %s331 = sphi 0, %s329
    %s332 = sphi 0, %s331
    %s346 = sphi 0, %s332
    %s350 = sphi 0, %s350
    %s352 = sphi 0, %s350
    %s353 = sphi 0, %s352
    %s367 = sphi 0, %s353
    %s373 = sphi 0, %s375
    %s376 = sphi 0, %s373
    %s377 = sphi 0, %s376
    %s393 = sphi 0, %s377
  $region4: #{tpu_custom_call.1} parent=0 // loop_header_branch
    %25 = sbr.rel (%p23) target = $region8
  $region5: #{tpu_custom_call.1} parent=0 // loop_body
    %s27 = ssub.s32 %s22, 1
    %s28 = ssub.s32 %s22, 2
    %s29 = sadd.s32 %s22, 1
    %s30 = ssub.s32 %s22, %s29
    %p31 = scmp.eq.s32.totalorder %s30, 0
    %s33 = sadd.s32 %s32, 1
    %s34 = scalar_select %p31, %s32, %s33
    %p37 = pneg %p31
    %p38 = scmp.eq.s32.totalorder %s22, 1
    %p39 = por %p37, %p38
    %p40 = scmp.ne.s32.totalorder %s32, %s35
    %p41 = scmp.eq.s32.totalorder %s22, 0
    %p42 = por %p40, %p41
    %p43 = scmp.ne.s32.totalorder %s32, %s35
    %p44 = scmp.eq.s32.totalorder %s27, 1
    %p45 = por %p43, %p44
    %p46 = scmp.ne.s32.totalorder %s35, %s36
    %p47 = scmp.eq.s32.totalorder %s27, 0
    %p48 = por %p46, %p47
    %p49 = scmp.ne.s32.totalorder %s35, %s36
    %p50 = scmp.eq.s32.totalorder %s28, 1
    %p51 = por %p49, %p50
    %p53 = scmp.ne.s32.totalorder %s36, %s52
    %p54 = scmp.eq.s32.totalorder %s28, 0
    %p55 = por %p53, %p54
    %s57 = sadd.s32 %s56, 1
    %p60 = scmp.eq.s32.totalorder %s22, 1
    %p61 = scmp.ne.s32.totalorder %s56, %s58
    %p62 = scmp.eq.s32.totalorder %s22, 0
    %p63 = por %p61, %p62
    %p64 = scmp.ne.s32.totalorder %s56, %s58
    %p65 = scmp.eq.s32.totalorder %s27, 1
    %p66 = por %p64, %p65
    %p67 = scmp.ne.s32.totalorder %s58, %s59
    %p68 = scmp.eq.s32.totalorder %s27, 0
    %p69 = por %p67, %p68
    %p70 = scmp.ne.s32.totalorder %s58, %s59
    %p71 = scmp.eq.s32.totalorder %s28, 1
    %p72 = por %p70, %p71
    %p74 = scmp.ne.s32.totalorder %s59, %s73
    %p75 = scmp.eq.s32.totalorder %s28, 0
    %p76 = por %p74, %p75
    %s78 = sadd.s32 %s77, 1
    %p81 = scmp.eq.s32.totalorder %s22, 1
    %p82 = scmp.ne.s32.totalorder %s77, %s79
    %p83 = scmp.eq.s32.totalorder %s22, 0
    %p84 = por %p82, %p83
    %p85 = scmp.ne.s32.totalorder %s77, %s79
    %p86 = scmp.eq.s32.totalorder %s27, 1
    %p87 = por %p85, %p86
    %p88 = scmp.ne.s32.totalorder %s79, %s80
    %p89 = scmp.eq.s32.totalorder %s27, 0
    %p90 = por %p88, %p89
    %p91 = scmp.ne.s32.totalorder %s79, %s80
    %p92 = scmp.eq.s32.totalorder %s28, 1
    %p93 = por %p91, %p92
    %p95 = scmp.ne.s32.totalorder %s80, %s94
    %p96 = scmp.eq.s32.totalorder %s28, 0
    %p97 = por %p95, %p96
    %s99 = sadd.s32 %s98, 1
    %p102 = scmp.eq.s32.totalorder %s22, 1
    %p103 = scmp.ne.s32.totalorder %s98, %s100
    %p104 = scmp.eq.s32.totalorder %s22, 0
    %p105 = por %p103, %p104
    %p106 = scmp.ne.s32.totalorder %s98, %s100
    %p107 = scmp.eq.s32.totalorder %s27, 1
    %p108 = por %p106, %p107
    %p109 = scmp.ne.s32.totalorder %s100, %s101
    %p110 = scmp.eq.s32.totalorder %s27, 0
    %p111 = por %p109, %p110
    %p112 = scmp.ne.s32.totalorder %s100, %s101
    %p113 = scmp.eq.s32.totalorder %s28, 1
    %p114 = por %p112, %p113
    %p116 = scmp.ne.s32.totalorder %s101, %s115
    %p117 = scmp.eq.s32.totalorder %s28, 0
    %p118 = por %p116, %p117
    %s120 = sadd.s32 %s119, 1
    %p123 = scmp.eq.s32.totalorder %s22, 1
    %p124 = scmp.ne.s32.totalorder %s119, %s121
    %p125 = scmp.eq.s32.totalorder %s22, 0
    %p126 = por %p124, %p125
    %p127 = scmp.ne.s32.totalorder %s119, %s121
    %p128 = scmp.eq.s32.totalorder %s27, 1
    %p129 = por %p127, %p128
    %p130 = scmp.ne.s32.totalorder %s121, %s122
    %p131 = scmp.eq.s32.totalorder %s27, 0
    %p132 = por %p130, %p131
    %p133 = scmp.ne.s32.totalorder %s121, %s122
    %p134 = scmp.eq.s32.totalorder %s28, 1
    %p135 = por %p133, %p134
    %p137 = scmp.ne.s32.totalorder %s122, %s136
    %p138 = scmp.eq.s32.totalorder %s28, 0
    %p139 = por %p137, %p138
    %s141 = sadd.s32 %s140, 1
    %p144 = scmp.eq.s32.totalorder %s22, 1
    %p145 = scmp.ne.s32.totalorder %s140, %s142
    %p146 = scmp.eq.s32.totalorder %s22, 0
    %p147 = por %p145, %p146
    %p148 = scmp.ne.s32.totalorder %s140, %s142
    %p149 = scmp.eq.s32.totalorder %s27, 1
    %p150 = por %p148, %p149
    %p151 = scmp.ne.s32.totalorder %s142, %s143
    %p152 = scmp.eq.s32.totalorder %s27, 0
    %p153 = por %p151, %p152
    %p154 = scmp.ne.s32.totalorder %s142, %s143
    %p155 = scmp.eq.s32.totalorder %s28, 1
    %p156 = por %p154, %p155
    %p158 = scmp.ne.s32.totalorder %s143, %s157
    %p159 = scmp.eq.s32.totalorder %s28, 0
    %p160 = por %p158, %p159
    %s162 = sadd.s32 %s161, 1
    %p165 = scmp.eq.s32.totalorder %s22, 1
    %p166 = scmp.ne.s32.totalorder %s161, %s163
    %p167 = scmp.eq.s32.totalorder %s22, 0
    %p168 = por %p166, %p167
    %p169 = scmp.ne.s32.totalorder %s161, %s163
    %p170 = scmp.eq.s32.totalorder %s27, 1
    %p171 = por %p169, %p170
    %p172 = scmp.ne.s32.totalorder %s163, %s164
    %p173 = scmp.eq.s32.totalorder %s27, 0
    %p174 = por %p172, %p173
    %p175 = scmp.ne.s32.totalorder %s163, %s164
    %p176 = scmp.eq.s32.totalorder %s28, 1
    %p177 = por %p175, %p176
    %p179 = scmp.ne.s32.totalorder %s164, %s178
    %p180 = scmp.eq.s32.totalorder %s28, 0
    %p181 = por %p179, %p180
    %s183 = sadd.s32 %s182, 1
    %p186 = scmp.eq.s32.totalorder %s22, 1
    %p187 = scmp.ne.s32.totalorder %s182, %s184
    %p188 = scmp.eq.s32.totalorder %s22, 0
    %p189 = por %p187, %p188
    %p190 = scmp.ne.s32.totalorder %s182, %s184
    %p191 = scmp.eq.s32.totalorder %s27, 1
    %p192 = por %p190, %p191
    %p193 = scmp.ne.s32.totalorder %s184, %s185
    %p194 = scmp.eq.s32.totalorder %s27, 0
    %p195 = por %p193, %p194
    %p196 = scmp.ne.s32.totalorder %s184, %s185
    %p197 = scmp.eq.s32.totalorder %s28, 1
    %p198 = por %p196, %p197
    %p200 = scmp.ne.s32.totalorder %s185, %s199
    %p201 = scmp.eq.s32.totalorder %s28, 0
    %p202 = por %p200, %p201
    %s204 = sadd.s32 %s203, 1
    %p207 = scmp.eq.s32.totalorder %s22, 1
    %p208 = scmp.ne.s32.totalorder %s203, %s205
    %p209 = scmp.eq.s32.totalorder %s22, 0
    %p210 = por %p208, %p209
    %p211 = scmp.ne.s32.totalorder %s203, %s205
    %p212 = scmp.eq.s32.totalorder %s27, 1
    %p213 = por %p211, %p212
    %p214 = scmp.ne.s32.totalorder %s205, %s206
    %p215 = scmp.eq.s32.totalorder %s27, 0
    %p216 = por %p214, %p215
    %p217 = scmp.ne.s32.totalorder %s205, %s206
    %p218 = scmp.eq.s32.totalorder %s28, 1
    %p219 = por %p217, %p218
    %p221 = scmp.ne.s32.totalorder %s206, %s220
    %p222 = scmp.eq.s32.totalorder %s28, 0
    %p223 = por %p221, %p222
    %s225 = sadd.s32 %s224, 1
    %p228 = scmp.eq.s32.totalorder %s22, 1
    %p229 = scmp.ne.s32.totalorder %s224, %s226
    %p230 = scmp.eq.s32.totalorder %s22, 0
    %p231 = por %p229, %p230
    %p232 = scmp.ne.s32.totalorder %s224, %s226
    %p233 = scmp.eq.s32.totalorder %s27, 1
    %p234 = por %p232, %p233
    %p235 = scmp.ne.s32.totalorder %s226, %s227
    %p236 = scmp.eq.s32.totalorder %s27, 0
    %p237 = por %p235, %p236
    %p238 = scmp.ne.s32.totalorder %s226, %s227
    %p239 = scmp.eq.s32.totalorder %s28, 1
    %p240 = por %p238, %p239
    %p242 = scmp.ne.s32.totalorder %s227, %s241
    %p243 = scmp.eq.s32.totalorder %s28, 0
    %p244 = por %p242, %p243
    %s246 = sadd.s32 %s245, 1
    %p249 = scmp.eq.s32.totalorder %s22, 1
    %p250 = scmp.ne.s32.totalorder %s245, %s247
    %p251 = scmp.eq.s32.totalorder %s22, 0
    %p252 = por %p250, %p251
    %p253 = scmp.ne.s32.totalorder %s245, %s247
    %p254 = scmp.eq.s32.totalorder %s27, 1
    %p255 = por %p253, %p254
    %p256 = scmp.ne.s32.totalorder %s247, %s248
    %p257 = scmp.eq.s32.totalorder %s27, 0
    %p258 = por %p256, %p257
    %p259 = scmp.ne.s32.totalorder %s247, %s248
    %p260 = scmp.eq.s32.totalorder %s28, 1
    %p261 = por %p259, %p260
    %p263 = scmp.ne.s32.totalorder %s248, %s262
    %p264 = scmp.eq.s32.totalorder %s28, 0
    %p265 = por %p263, %p264
    %s267 = sadd.s32 %s266, 1
    %p270 = scmp.eq.s32.totalorder %s22, 1
    %p271 = scmp.ne.s32.totalorder %s266, %s268
    %p272 = scmp.eq.s32.totalorder %s22, 0
    %p273 = por %p271, %p272
    %p274 = scmp.ne.s32.totalorder %s266, %s268
    %p275 = scmp.eq.s32.totalorder %s27, 1
    %p276 = por %p274, %p275
    %p277 = scmp.ne.s32.totalorder %s268, %s269
    %p278 = scmp.eq.s32.totalorder %s27, 0
    %p279 = por %p277, %p278
    %p280 = scmp.ne.s32.totalorder %s268, %s269
    %p281 = scmp.eq.s32.totalorder %s28, 1
    %p282 = por %p280, %p281
    %p284 = scmp.ne.s32.totalorder %s269, %s283
    %p285 = scmp.eq.s32.totalorder %s28, 0
    %p286 = por %p284, %p285
    %s288 = sadd.s32 %s287, 1
    %p291 = scmp.eq.s32.totalorder %s22, 1
    %p292 = scmp.ne.s32.totalorder %s287, %s289
    %p293 = scmp.eq.s32.totalorder %s22, 0
    %p294 = por %p292, %p293
    %p295 = scmp.ne.s32.totalorder %s287, %s289
    %p296 = scmp.eq.s32.totalorder %s27, 1
    %p297 = por %p295, %p296
    %p298 = scmp.ne.s32.totalorder %s289, %s290
    %p299 = scmp.eq.s32.totalorder %s27, 0
    %p300 = por %p298, %p299
    %p301 = scmp.ne.s32.totalorder %s289, %s290
    %p302 = scmp.eq.s32.totalorder %s28, 1
    %p303 = por %p301, %p302
    %p305 = scmp.ne.s32.totalorder %s290, %s304
    %p306 = scmp.eq.s32.totalorder %s28, 0
    %p307 = por %p305, %p306
    %s309 = sadd.s32 %s308, 1
    %p312 = scmp.eq.s32.totalorder %s22, 1
    %p313 = scmp.ne.s32.totalorder %s308, %s310
    %p314 = scmp.eq.s32.totalorder %s22, 0
    %p315 = por %p313, %p314
    %p316 = scmp.ne.s32.totalorder %s308, %s310
    %p317 = scmp.eq.s32.totalorder %s27, 1
    %p318 = por %p316, %p317
    %p319 = scmp.ne.s32.totalorder %s310, %s311
    %p320 = scmp.eq.s32.totalorder %s27, 0
    %p321 = por %p319, %p320
    %p322 = scmp.ne.s32.totalorder %s310, %s311
    %p323 = scmp.eq.s32.totalorder %s28, 1
    %p324 = por %p322, %p323
    %p326 = scmp.ne.s32.totalorder %s311, %s325
    %p327 = scmp.eq.s32.totalorder %s28, 0
    %p328 = por %p326, %p327
    %s330 = sadd.s32 %s329, 1
    %p333 = scmp.eq.s32.totalorder %s22, 1
    %p334 = scmp.ne.s32.totalorder %s329, %s331
    %p335 = scmp.eq.s32.totalorder %s22, 0
    %p336 = por %p334, %p335
    %p337 = scmp.ne.s32.totalorder %s329, %s331
    %p338 = scmp.eq.s32.totalorder %s27, 1
    %p339 = por %p337, %p338
    %p340 = scmp.ne.s32.totalorder %s331, %s332
    %p341 = scmp.eq.s32.totalorder %s27, 0
    %p342 = por %p340, %p341
    %p343 = scmp.ne.s32.totalorder %s331, %s332
    %p344 = scmp.eq.s32.totalorder %s28, 1
    %p345 = por %p343, %p344
    %p347 = scmp.ne.s32.totalorder %s332, %s346
    %p348 = scmp.eq.s32.totalorder %s28, 0
    %p349 = por %p347, %p348
    %s351 = sadd.s32 %s350, 1
    %p354 = scmp.eq.s32.totalorder %s22, 1
    %p355 = scmp.ne.s32.totalorder %s350, %s352
    %p356 = scmp.eq.s32.totalorder %s22, 0
    %p357 = por %p355, %p356
    %p358 = scmp.ne.s32.totalorder %s350, %s352
    %p359 = scmp.eq.s32.totalorder %s27, 1
    %p360 = por %p358, %p359
    %p361 = scmp.ne.s32.totalorder %s352, %s353
    %p362 = scmp.eq.s32.totalorder %s27, 0
    %p363 = por %p361, %p362
    %p364 = scmp.ne.s32.totalorder %s352, %s353
    %p365 = scmp.eq.s32.totalorder %s28, 1
    %p366 = por %p364, %p365
    %p368 = scmp.ne.s32.totalorder %s353, %s367
    %p369 = scmp.eq.s32.totalorder %s28, 0
    %p370 = por %p368, %p369
    %s371 = ssub.s32 %s22, %s29
    %p372 = scmp.eq.s32.totalorder %s371, 0
    %s374 = sadd.s32 %s373, 1
    %s375 = scalar_select %p372, %s373, %s374
    %p378 = pneg %p372
    %p379 = scmp.eq.s32.totalorder %s22, 1
    %p380 = por %p378, %p379
    %p381 = scmp.ne.s32.totalorder %s373, %s376
    %p382 = scmp.eq.s32.totalorder %s22, 0
    %p383 = por %p381, %p382
    %p384 = scmp.ne.s32.totalorder %s373, %s376
    %p385 = scmp.eq.s32.totalorder %s27, 1
    %p386 = por %p384, %p385
    %p387 = scmp.ne.s32.totalorder %s376, %s377
    %p388 = scmp.eq.s32.totalorder %s27, 0
    %p389 = por %p387, %p388
    %p390 = scmp.ne.s32.totalorder %s376, %s377
    %p391 = scmp.eq.s32.totalorder %s28, 1
    %p392 = por %p390, %p391
    %p394 = scmp.ne.s32.totalorder %s377, %s393
    %p395 = scmp.eq.s32.totalorder %s28, 0
    %p396 = por %p394, %p395
    %p397 = scmp.le.s32.totalorder 1, %s22
    %p398 = scmp.lt.s32.totalorder %s22, 3
    %p399 = pnand %p397, %p398
    %p400 = pneg %p399
    // Predicated region
    $region9: #{tpu_custom_call.1} parent=5 // pred_check
      _
    $region10: #{tpu_custom_call.1} parent=5 // pred_check_branch
      %402 = sbr.rel (%p399) target = $region12
    $region11: #{tpu_custom_call.1} parent=5 // pred_region
      %s403 = ssub.s32 %s22, 1
      // Predicated region
      $region13: #{tpu_custom_call.1} parent=11 // pred_check
        %p404 = pneg %p69
      $region14: #{tpu_custom_call.1} parent=11 // pred_check_branch
        %406 = sbr.rel (%p404) target = $region16
      $region15: #{tpu_custom_call.1} parent=11 // pred_region
        _
      $region16: #{tpu_custom_call.1} parent=11 // pred_fallthru
        _
      // Predicated region
      $region17: #{tpu_custom_call.1} parent=11 // pred_check
        %p407 = pneg %p90
      $region18: #{tpu_custom_call.1} parent=11 // pred_check_branch
        %409 = sbr.rel (%p407) target = $region20
      $region19: #{tpu_custom_call.1} parent=11 // pred_region
        _
      $region20: #{tpu_custom_call.1} parent=11 // pred_fallthru
        _
      // Predicated region
      $region21: #{tpu_custom_call.1} parent=11 // pred_check
        %p410 = pneg %p111
      $region22: #{tpu_custom_call.1} parent=11 // pred_check_branch
        %412 = sbr.rel (%p410) target = $region24
      $region23: #{tpu_custom_call.1} parent=11 // pred_region
        _
      $region24: #{tpu_custom_call.1} parent=11 // pred_fallthru
        _
      // Predicated region
      $region25: #{tpu_custom_call.1} parent=11 // pred_check
        %p413 = pneg %p132
      $region26: #{tpu_custom_call.1} parent=11 // pred_check_branch
        %415 = sbr.rel (%p413) target = $region28
      $region27: #{tpu_custom_call.1} parent=11 // pred_region
        _
      $region28: #{tpu_custom_call.1} parent=11 // pred_fallthru
        _
      // Predicated region
      $region29: #{tpu_custom_call.1} parent=11 // pred_check
        %p416 = pneg %p153
      $region30: #{tpu_custom_call.1} parent=11 // pred_check_branch
        %418 = sbr.rel (%p416) target = $region32
      $region31: #{tpu_custom_call.1} parent=11 // pred_region
        _
      $region32: #{tpu_custom_call.1} parent=11 // pred_fallthru
        _
      // Predicated region
      $region33: #{tpu_custom_call.1} parent=11 // pred_check
        %p419 = pneg %p174
      $region34: #{tpu_custom_call.1} parent=11 // pred_check_branch
        %421 = sbr.rel (%p419) target = $region36
      $region35: #{tpu_custom_call.1} parent=11 // pred_region
        _
      $region36: #{tpu_custom_call.1} parent=11 // pred_fallthru
        _
      // Predicated region
      $region37: #{tpu_custom_call.1} parent=11 // pred_check
        %p422 = pneg %p195
      $region38: #{tpu_custom_call.1} parent=11 // pred_check_branch
        %424 = sbr.rel (%p422) target = $region40
      $region39: #{tpu_custom_call.1} parent=11 // pred_region
        _
      $region40: #{tpu_custom_call.1} parent=11 // pred_fallthru
        _
      // Predicated region
      $region41: #{tpu_custom_call.1} parent=11 // pred_check
        %p425 = pneg %p216
      $region42: #{tpu_custom_call.1} parent=11 // pred_check_branch
        %427 = sbr.rel (%p425) target = $region44
      $region43: #{tpu_custom_call.1} parent=11 // pred_region
        _
      $region44: #{tpu_custom_call.1} parent=11 // pred_fallthru
        _
      // Predicated region
      $region45: #{tpu_custom_call.1} parent=11 // pred_check
        %p428 = pneg %p237
      $region46: #{tpu_custom_call.1} parent=11 // pred_check_branch
        %430 = sbr.rel (%p428) target = $region48
      $region47: #{tpu_custom_call.1} parent=11 // pred_region
        _
      $region48: #{tpu_custom_call.1} parent=11 // pred_fallthru
        _
      // Predicated region
      $region49: #{tpu_custom_call.1} parent=11 // pred_check
        %p431 = pneg %p258
      $region50: #{tpu_custom_call.1} parent=11 // pred_check_branch
        %433 = sbr.rel (%p431) target = $region52
      $region51: #{tpu_custom_call.1} parent=11 // pred_region
        _
      $region52: #{tpu_custom_call.1} parent=11 // pred_fallthru
        _
      // Predicated region
      $region53: #{tpu_custom_call.1} parent=11 // pred_check
        %p434 = pneg %p279
      $region54: #{tpu_custom_call.1} parent=11 // pred_check_branch
        %436 = sbr.rel (%p434) target = $region56
      $region55: #{tpu_custom_call.1} parent=11 // pred_region
        _
      $region56: #{tpu_custom_call.1} parent=11 // pred_fallthru
        _
      // Predicated region
      $region57: #{tpu_custom_call.1} parent=11 // pred_check
        %p437 = pneg %p300
      $region58: #{tpu_custom_call.1} parent=11 // pred_check_branch
        %439 = sbr.rel (%p437) target = $region60
      $region59: #{tpu_custom_call.1} parent=11 // pred_region
        _
      $region60: #{tpu_custom_call.1} parent=11 // pred_fallthru
        _
      // Predicated region
      $region61: #{tpu_custom_call.1} parent=11 // pred_check
        %p440 = pneg %p321
      $region62: #{tpu_custom_call.1} parent=11 // pred_check_branch
        %442 = sbr.rel (%p440) target = $region64
      $region63: #{tpu_custom_call.1} parent=11 // pred_region
        _
      $region64: #{tpu_custom_call.1} parent=11 // pred_fallthru
        _
      // Predicated region
      $region65: #{tpu_custom_call.1} parent=11 // pred_check
        %p443 = pneg %p342
      $region66: #{tpu_custom_call.1} parent=11 // pred_check_branch
        %445 = sbr.rel (%p443) target = $region68
      $region67: #{tpu_custom_call.1} parent=11 // pred_region
        _
      $region68: #{tpu_custom_call.1} parent=11 // pred_fallthru
        _
      // Predicated region
      $region69: #{tpu_custom_call.1} parent=11 // pred_check
        %p446 = pneg %p363
      $region70: #{tpu_custom_call.1} parent=11 // pred_check_branch
        %448 = sbr.rel (%p446) target = $region72
      $region71: #{tpu_custom_call.1} parent=11 // pred_region
        _
      $region72: #{tpu_custom_call.1} parent=11 // pred_fallthru
        _
    $region12: #{tpu_custom_call.1} parent=5 // pred_fallthru
      _
    %p449 = scmp.lt.s32.totalorder %s22, 2
    // Predicated region
    $region73: #{tpu_custom_call.1} parent=5 // pred_check
      %p450 = pneg %p449
    $region74: #{tpu_custom_call.1} parent=5 // pred_check_branch
      %452 = sbr.rel (%p450) target = $region76
    $region75: #{tpu_custom_call.1} parent=5 // pred_region
      // Predicated region
      $region77: #{tpu_custom_call.1} parent=75 // pred_check
        %p453 = pneg %p42
      $region78: #{tpu_custom_call.1} parent=75 // pred_check_branch
        %455 = sbr.rel (%p453) target = $region80
      $region79: #{tpu_custom_call.1} parent=75 // pred_region
        %p456 = scmp.lt.s32.totalorder %s22, 1
        %s457 = scalar_select %p456, %s22, 1
        %s458 = smul.addr %s457, 32
        %s459 = smul.addr %s458, 8
        %s460 = scalar_lea.vmem %s0, %s459
      $region80: #{tpu_custom_call.1} parent=75 // pred_fallthru
        _
    $region76: #{tpu_custom_call.1} parent=5 // pred_fallthru
      _
    %p461 = scmp.le.s32.totalorder 1, %s22
    %p462 = scmp.lt.s32.totalorder %s22, 3
    %p463 = pnand %p461, %p462
    %p464 = pneg %p463
    // Predicated region
    $region81: #{tpu_custom_call.1} parent=5 // pred_check
      _
    $region82: #{tpu_custom_call.1} parent=5 // pred_check_branch
      %466 = sbr.rel (%p463) target = $region84
    $region83: #{tpu_custom_call.1} parent=5 // pred_region
      %s467 = ssub.s32 %s22, 1
      %p468 = scmp.lt.s32.totalorder %s27, 1
      %s469 = scalar_select %p468, %s27, 1
      %s470 = smul.addr %s469, 32
      %s471 = smul.addr %s470, 8
      %s472 = scalar_lea.vmem %s0, %s471
      %p473 = pneg %p48
      %p474 = pneg %p45
      %p475 = pneg %p69
      %p476 = pneg %p66
      %p477 = pneg %p90
      %p478 = pneg %p87
      %p479 = pneg %p111
      %p480 = pneg %p108
      %p481 = pneg %p132
      %p482 = pneg %p129
      %p483 = pneg %p153
      %p484 = pneg %p150
      %p485 = pneg %p174
      %p486 = pneg %p171
      %p487 = pneg %p195
      %p488 = pneg %p192
      %p489 = pneg %p216
      %p490 = pneg %p213
      %p491 = pneg %p237
      %p492 = pneg %p234
      %p493 = pneg %p258
      %p494 = pneg %p255
      %p495 = pneg %p279
      %p496 = pneg %p276
      %p497 = pneg %p300
      %p498 = pneg %p297
      %p499 = pneg %p321
      %p500 = pneg %p318
      %p501 = pneg %p342
      %p502 = pneg %p339
      %p503 = pneg %p363
      %p504 = pneg %p360
      %p505 = pneg %p389
      %p506 = pneg %p386
      %p507 = scmp.lt.s32.totalorder %s27, 1
      %s508 = scalar_select %p507, %s27, 1
      %s509 = smul.addr %s508, 32
      %s510 = smul.addr %s509, 8
      %s511 = scalar_lea.vmem %s16, %s510
      %p512 = scmp.lt.s32.totalorder %s27, 1
      %s513 = scalar_select %p512, %s27, 1
      %s514 = smul.addr %s513, 32
      %s515 = smul.addr %s514, 8
      %s516 = scalar_lea.vmem %s0, %s515
      %p517 = scmp.lt.s32.totalorder %s27, 1
      %s518 = scalar_select %p517, %s27, 1
      %s519 = smul.addr %s518, 32
      %s520 = smul.addr %s519, 8
      %s521 = scalar_lea.vmem %s16, %s520
      %v523 = vld [vmem:[%s516] sm:$0xff]
      %v524 = vld [vmem:[%s516 + $0x8] sm:$0xff]
      %v525 = vld [vmem:[%s516 + $0x10] sm:$0xff]
      %v526 = vld [vmem:[%s516 + $0x18] sm:$0xff]
      %v527 = vld [vmem:[%s516 + $0x20] sm:$0xff]
      %v528 = vld [vmem:[%s516 + $0x28] sm:$0xff]
      %v529 = vld [vmem:[%s516 + $0x30] sm:$0xff]
      %v530 = vld [vmem:[%s516 + $0x38] sm:$0xff]
      %v531 = vld [vmem:[%s516 + $0x40] sm:$0xff]
      %v532 = vld [vmem:[%s516 + $0x48] sm:$0xff]
      %v533 = vld [vmem:[%s516 + $0x50] sm:$0xff]
      %v534 = vld [vmem:[%s516 + $0x58] sm:$0xff]
      %v535 = vld [vmem:[%s516 + $0x60] sm:$0xff]
      %v536 = vld [vmem:[%s516 + $0x68] sm:$0xff]
      %v537 = vld [vmem:[%s516 + $0x70] sm:$0xff]
      %v538 = vld [vmem:[%s516 + $0x78] sm:$0xff]
      %v539 = vld [vmem:[%s516 + $0x80] sm:$0xff]
      %v540 = vld [vmem:[%s516 + $0x88] sm:$0xff]
      %v541 = vld [vmem:[%s516 + $0x90] sm:$0xff]
      %v542 = vld [vmem:[%s516 + $0x98] sm:$0xff]
      %v543 = vld [vmem:[%s516 + $0xa0] sm:$0xff]
      %v544 = vld [vmem:[%s516 + $0xa8] sm:$0xff]
      %v545 = vld [vmem:[%s516 + $0xb0] sm:$0xff]
      %v546 = vld [vmem:[%s516 + $0xb8] sm:$0xff]
      %v547 = vld [vmem:[%s516 + $0xc0] sm:$0xff]
      %v548 = vld [vmem:[%s516 + $0xc8] sm:$0xff]
      %v549 = vld [vmem:[%s516 + $0xd0] sm:$0xff]
      %v550 = vld [vmem:[%s516 + $0xd8] sm:$0xff]
      %v551 = vld [vmem:[%s516 + $0xe0] sm:$0xff]
      %v552 = vld [vmem:[%s516 + $0xe8] sm:$0xff]
      %v553 = vld [vmem:[%s516 + $0xf0] sm:$0xff]
      %v554 = vld [vmem:[%s516 + $0xf8] sm:$0xff]
      %v555 = vld [vmem:[%s1] sm:$0x1]
      %v556 = vld [vmem:[%s2] sm:$0x1]
      %vm557 = vcmask 261120
      %v558 = vsel %vm557, %v523, 0.0
      %559 = vadd.xlane.f32.xlu0 %v558
      %v560 = vpop.xlane.xlu0 %559
      %v561 = vsel %vm557, %v524, 0.0
      %562 = vadd.xlane.f32.xlu0 %v561
      %v563 = vpop.xlane.xlu0 %562
      %v564 = vsel %vm557, %v525, 0.0
      %565 = vadd.xlane.f32.xlu0 %v564
      %v566 = vpop.xlane.xlu0 %565
      %v567 = vsel %vm557, %v526, 0.0
      %568 = vadd.xlane.f32.xlu0 %v567
      %v569 = vpop.xlane.xlu0 %568
      %v570 = vsel %vm557, %v527, 0.0
      %571 = vadd.xlane.f32.xlu0 %v570
      %v572 = vpop.xlane.xlu0 %571
      %v573 = vsel %vm557, %v528, 0.0
      %574 = vadd.xlane.f32.xlu0 %v573
      %v575 = vpop.xlane.xlu0 %574
      %v576 = vsel %vm557, %v529, 0.0
      %577 = vadd.xlane.f32.xlu0 %v576
      %v578 = vpop.xlane.xlu0 %577
      %v579 = vsel %vm557, %v530, 0.0
      %580 = vadd.xlane.f32.xlu0 %v579
      %v581 = vpop.xlane.xlu0 %580
      %v582 = vsel %vm557, %v531, 0.0
      %583 = vadd.xlane.f32.xlu0 %v582
      %v584 = vpop.xlane.xlu0 %583
      %v585 = vsel %vm557, %v532, 0.0
      %586 = vadd.xlane.f32.xlu0 %v585
      %v587 = vpop.xlane.xlu0 %586
      %v588 = vsel %vm557, %v533, 0.0
      %589 = vadd.xlane.f32.xlu0 %v588
      %v590 = vpop.xlane.xlu0 %589
      %v591 = vsel %vm557, %v534, 0.0
      %592 = vadd.xlane.f32.xlu0 %v591
      %v593 = vpop.xlane.xlu0 %592
      %v594 = vsel %vm557, %v535, 0.0
      %595 = vadd.xlane.f32.xlu0 %v594
      %v596 = vpop.xlane.xlu0 %595
      %v597 = vsel %vm557, %v536, 0.0
      %598 = vadd.xlane.f32.xlu0 %v597
      %v599 = vpop.xlane.xlu0 %598
      %v600 = vsel %vm557, %v537, 0.0
      %601 = vadd.xlane.f32.xlu0 %v600
      %v602 = vpop.xlane.xlu0 %601
      %v603 = vsel %vm557, %v538, 0.0
      %604 = vadd.xlane.f32.xlu0 %v603
      %v605 = vpop.xlane.xlu0 %604
      %v606 = vsel %vm557, %v539, 0.0
      %607 = vadd.xlane.f32.xlu0 %v606
      %v608 = vpop.xlane.xlu0 %607
      %v609 = vsel %vm557, %v540, 0.0
      %610 = vadd.xlane.f32.xlu0 %v609
      %v611 = vpop.xlane.xlu0 %610
      %v612 = vsel %vm557, %v541, 0.0
      %613 = vadd.xlane.f32.xlu0 %v612
      %v614 = vpop.xlane.xlu0 %613
      %v615 = vsel %vm557, %v542, 0.0
      %616 = vadd.xlane.f32.xlu0 %v615
      %v617 = vpop.xlane.xlu0 %616
      %v618 = vsel %vm557, %v543, 0.0
      %619 = vadd.xlane.f32.xlu0 %v618
      %v620 = vpop.xlane.xlu0 %619
      %v621 = vsel %vm557, %v544, 0.0
      %622 = vadd.xlane.f32.xlu0 %v621
      %v623 = vpop.xlane.xlu0 %622
      %v624 = vsel %vm557, %v545, 0.0
      %625 = vadd.xlane.f32.xlu0 %v624
      %v626 = vpop.xlane.xlu0 %625
      %v627 = vsel %vm557, %v546, 0.0
      %628 = vadd.xlane.f32.xlu0 %v627
      %v629 = vpop.xlane.xlu0 %628
      %v630 = vsel %vm557, %v547, 0.0
      %631 = vadd.xlane.f32.xlu0 %v630
      %v632 = vpop.xlane.xlu0 %631
      %v633 = vsel %vm557, %v548, 0.0
      %634 = vadd.xlane.f32.xlu0 %v633
      %v635 = vpop.xlane.xlu0 %634
      %v636 = vsel %vm557, %v549, 0.0
      %637 = vadd.xlane.f32.xlu0 %v636
      %v638 = vpop.xlane.xlu0 %637
      %v639 = vsel %vm557, %v550, 0.0
      %640 = vadd.xlane.f32.xlu0 %v639
      %v641 = vpop.xlane.xlu0 %640
      %v642 = vsel %vm557, %v551, 0.0
      %643 = vadd.xlane.f32.xlu0 %v642
      %v644 = vpop.xlane.xlu0 %643
      %v645 = vsel %vm557, %v552, 0.0
      %646 = vadd.xlane.f32.xlu0 %v645
      %v647 = vpop.xlane.xlu0 %646
      %v648 = vsel %vm557, %v553, 0.0
      %649 = vadd.xlane.f32.xlu0 %v648
      %v650 = vpop.xlane.xlu0 %649
      %v651 = vsel %vm557, %v554, 0.0
      %652 = vadd.xlane.f32.xlu0 %v651
      %v653 = vpop.xlane.xlu0 %652
      %v654 = vrcp.pop 32.0
      %v655 = vmul.f32 %v560, %v654
      %v656 = vmul.f32 %v563, %v654
      %v657 = vmul.f32 %v566, %v654
      %v658 = vmul.f32 %v569, %v654
      %v659 = vmul.f32 %v572, %v654
      %v660 = vmul.f32 %v575, %v654
      %v661 = vmul.f32 %v578, %v654
      %v662 = vmul.f32 %v581, %v654
      %v663 = vmul.f32 %v584, %v654
      %v664 = vmul.f32 %v587, %v654
      %v665 = vmul.f32 %v590, %v654
      %v666 = vmul.f32 %v593, %v654
      %v667 = vmul.f32 %v596, %v654
      %v668 = vmul.f32 %v599, %v654
      %v669 = vmul.f32 %v602, %v654
      %v670 = vmul.f32 %v605, %v654
      %v671 = vmul.f32 %v608, %v654
      %v672 = vmul.f32 %v611, %v654
      %v673 = vmul.f32 %v614, %v654
      %v674 = vmul.f32 %v617, %v654
      %v675 = vmul.f32 %v620, %v654
      %v676 = vmul.f32 %v623, %v654
      %v677 = vmul.f32 %v626, %v654
      %v678 = vmul.f32 %v629, %v654
      %v679 = vmul.f32 %v632, %v654
      %v680 = vmul.f32 %v635, %v654
      %v681 = vmul.f32 %v638, %v654
      %v682 = vmul.f32 %v641, %v654
      %v683 = vmul.f32 %v644, %v654
      %v684 = vmul.f32 %v647, %v654
      %v685 = vmul.f32 %v650, %v654
      %v686 = vmul.f32 %v653, %v654
      %v687 = vsub.f32 %v523, %v655
      %v688 = vsub.f32 %v524, %v656
      %v689 = vsub.f32 %v525, %v657
      %v690 = vsub.f32 %v526, %v658
      %v691 = vsub.f32 %v527, %v659
      %v692 = vsub.f32 %v528, %v660
      %v693 = vsub.f32 %v529, %v661
      %v694 = vsub.f32 %v530, %v662
      %v695 = vsub.f32 %v531, %v663
      %v696 = vsub.f32 %v532, %v664
      %v697 = vsub.f32 %v533, %v665
      %v698 = vsub.f32 %v534, %v666
      %v699 = vsub.f32 %v535, %v667
      %v700 = vsub.f32 %v536, %v668
      %v701 = vsub.f32 %v537, %v669
      %v702 = vsub.f32 %v538, %v670
      %v703 = vsub.f32 %v539, %v671
      %v704 = vsub.f32 %v540, %v672
      %v705 = vsub.f32 %v541, %v673
      %v706 = vsub.f32 %v542, %v674
      %v707 = vsub.f32 %v543, %v675
      %v708 = vsub.f32 %v544, %v676
      %v709 = vsub.f32 %v545, %v677
      %v710 = vsub.f32 %v546, %v678
      %v711 = vsub.f32 %v547, %v679
      %v712 = vsub.f32 %v548, %v680
      %v713 = vsub.f32 %v549, %v681
      %v714 = vsub.f32 %v550, %v682
      %v715 = vsub.f32 %v551, %v683
      %v716 = vsub.f32 %v552, %v684
      %v717 = vsub.f32 %v553, %v685
      %v718 = vsub.f32 %v554, %v686
      %v719 = vmul.f32 %v687, %v687
      %v720 = vmul.f32 %v688, %v688
      %v721 = vmul.f32 %v689, %v689
      %v722 = vmul.f32 %v690, %v690
      %v723 = vmul.f32 %v691, %v691
      %v724 = vmul.f32 %v692, %v692
      %v725 = vmul.f32 %v693, %v693
      %v726 = vmul.f32 %v694, %v694
      %v727 = vmul.f32 %v695, %v695
      %v728 = vmul.f32 %v696, %v696
      %v729 = vmul.f32 %v697, %v697
      %v730 = vmul.f32 %v698, %v698
      %v731 = vmul.f32 %v699, %v699
      %v732 = vmul.f32 %v700, %v700
      %v733 = vmul.f32 %v701, %v701
      %v734 = vmul.f32 %v702, %v702
      %v735 = vmul.f32 %v703, %v703
      %v736 = vmul.f32 %v704, %v704
      %v737 = vmul.f32 %v705, %v705
      %v738 = vmul.f32 %v706, %v706
      %v739 = vmul.f32 %v707, %v707
      %v740 = vmul.f32 %v708, %v708
      %v741 = vmul.f32 %v709, %v709
      %v742 = vmul.f32 %v710, %v710
      %v743 = vmul.f32 %v711, %v711
      %v744 = vmul.f32 %v712, %v712
      %v745 = vmul.f32 %v713, %v713
      %v746 = vmul.f32 %v714, %v714
      %v747 = vmul.f32 %v715, %v715
      %v748 = vmul.f32 %v716, %v716
      %v749 = vmul.f32 %v717, %v717
      %v750 = vmul.f32 %v718, %v718
      %v751 = vsel %vm557, %v719, 0.0
      %752 = vadd.xlane.f32.xlu0 %v751
      %v753 = vpop.xlane.xlu0 %752
      %v754 = vsel %vm557, %v720, 0.0
      %755 = vadd.xlane.f32.xlu0 %v754
      %v756 = vpop.xlane.xlu0 %755
      %v757 = vsel %vm557, %v721, 0.0
      %758 = vadd.xlane.f32.xlu0 %v757
      %v759 = vpop.xlane.xlu0 %758
      %v760 = vsel %vm557, %v722, 0.0
      %761 = vadd.xlane.f32.xlu0 %v760
      %v762 = vpop.xlane.xlu0 %761
      %v763 = vsel %vm557, %v723, 0.0
      %764 = vadd.xlane.f32.xlu0 %v763
      %v765 = vpop.xlane.xlu0 %764
      %v766 = vsel %vm557, %v724, 0.0
      %767 = vadd.xlane.f32.xlu0 %v766
      %v768 = vpop.xlane.xlu0 %767
      %v769 = vsel %vm557, %v725, 0.0
      %770 = vadd.xlane.f32.xlu0 %v769
      %v771 = vpop.xlane.xlu0 %770
      %v772 = vsel %vm557, %v726, 0.0
      %773 = vadd.xlane.f32.xlu0 %v772
      %v774 = vpop.xlane.xlu0 %773
      %v775 = vsel %vm557, %v727, 0.0
      %776 = vadd.xlane.f32.xlu0 %v775
      %v777 = vpop.xlane.xlu0 %776
      %v778 = vsel %vm557, %v728, 0.0
      %779 = vadd.xlane.f32.xlu0 %v778
      %v780 = vpop.xlane.xlu0 %779
      %v781 = vsel %vm557, %v729, 0.0
      %782 = vadd.xlane.f32.xlu0 %v781
      %v783 = vpop.xlane.xlu0 %782
      %v784 = vsel %vm557, %v730, 0.0
      %785 = vadd.xlane.f32.xlu0 %v784
      %v786 = vpop.xlane.xlu0 %785
      %v787 = vsel %vm557, %v731, 0.0
      %788 = vadd.xlane.f32.xlu0 %v787
      %v789 = vpop.xlane.xlu0 %788
      %v790 = vsel %vm557, %v732, 0.0
      %791 = vadd.xlane.f32.xlu0 %v790
      %v792 = vpop.xlane.xlu0 %791
      %v793 = vsel %vm557, %v733, 0.0
      %794 = vadd.xlane.f32.xlu0 %v793
      %v795 = vpop.xlane.xlu0 %794
      %v796 = vsel %vm557, %v734, 0.0
      %797 = vadd.xlane.f32.xlu0 %v796
      %v798 = vpop.xlane.xlu0 %797
      %v799 = vsel %vm557, %v735, 0.0
      %800 = vadd.xlane.f32.xlu0 %v799
      %v801 = vpop.xlane.xlu0 %800
      %v802 = vsel %vm557, %v736, 0.0
      %803 = vadd.xlane.f32.xlu0 %v802
      %v804 = vpop.xlane.xlu0 %803
      %v805 = vsel %vm557, %v737, 0.0
      %806 = vadd.xlane.f32.xlu0 %v805
      %v807 = vpop.xlane.xlu0 %806
      %v808 = vsel %vm557, %v738, 0.0
      %809 = vadd.xlane.f32.xlu0 %v808
      %v810 = vpop.xlane.xlu0 %809
      %v811 = vsel %vm557, %v739, 0.0
      %812 = vadd.xlane.f32.xlu0 %v811
      %v813 = vpop.xlane.xlu0 %812
      %v814 = vsel %vm557, %v740, 0.0
      %815 = vadd.xlane.f32.xlu0 %v814
      %v816 = vpop.xlane.xlu0 %815
      %v817 = vsel %vm557, %v741, 0.0
      %818 = vadd.xlane.f32.xlu0 %v817
      %v819 = vpop.xlane.xlu0 %818
      %v820 = vsel %vm557, %v742, 0.0
      %821 = vadd.xlane.f32.xlu0 %v820
      %v822 = vpop.xlane.xlu0 %821
      %v823 = vsel %vm557, %v743, 0.0
      %824 = vadd.xlane.f32.xlu0 %v823
      %v825 = vpop.xlane.xlu0 %824
      %v826 = vsel %vm557, %v744, 0.0
      %827 = vadd.xlane.f32.xlu0 %v826
      %v828 = vpop.xlane.xlu0 %827
      %v829 = vsel %vm557, %v745, 0.0
      %830 = vadd.xlane.f32.xlu0 %v829
      %v831 = vpop.xlane.xlu0 %830
      %v832 = vsel %vm557, %v746, 0.0
      %833 = vadd.xlane.f32.xlu0 %v832
      %v834 = vpop.xlane.xlu0 %833
      %v835 = vsel %vm557, %v747, 0.0
      %836 = vadd.xlane.f32.xlu0 %v835
      %v837 = vpop.xlane.xlu0 %836
      %v838 = vsel %vm557, %v748, 0.0
      %839 = vadd.xlane.f32.xlu0 %v838
      %v840 = vpop.xlane.xlu0 %839
      %v841 = vsel %vm557, %v749, 0.0
      %842 = vadd.xlane.f32.xlu0 %v841
      %v843 = vpop.xlane.xlu0 %842
      %v844 = vsel %vm557, %v750, 0.0
      %845 = vadd.xlane.f32.xlu0 %v844
      %v846 = vpop.xlane.xlu0 %845
      %v847 = vmul.f32 %v753, %v654
      %v848 = vmul.f32 %v756, %v654
      %v849 = vmul.f32 %v759, %v654
      %v850 = vmul.f32 %v762, %v654
      %v851 = vmul.f32 %v765, %v654
      %v852 = vmul.f32 %v768, %v654
      %v853 = vmul.f32 %v771, %v654
      %v854 = vmul.f32 %v774, %v654
      %v855 = vmul.f32 %v777, %v654
      %v856 = vmul.f32 %v780, %v654
      %v857 = vmul.f32 %v783, %v654
      %v858 = vmul.f32 %v786, %v654
      %v859 = vmul.f32 %v789, %v654
      %v860 = vmul.f32 %v792, %v654
      %v861 = vmul.f32 %v795, %v654
      %v862 = vmul.f32 %v798, %v654
      %v863 = vmul.f32 %v801, %v654
      %v864 = vmul.f32 %v804, %v654
      %v865 = vmul.f32 %v807, %v654
      %v866 = vmul.f32 %v810, %v654
      %v867 = vmul.f32 %v813, %v654
      %v868 = vmul.f32 %v816, %v654
      %v869 = vmul.f32 %v819, %v654
      %v870 = vmul.f32 %v822, %v654
      %v871 = vmul.f32 %v825, %v654
      %v872 = vmul.f32 %v828, %v654
      %v873 = vmul.f32 %v831, %v654
      %v874 = vmul.f32 %v834, %v654
      %v875 = vmul.f32 %v837, %v654
      %v876 = vmul.f32 %v840, %v654
      %v877 = vmul.f32 %v843, %v654
      %v878 = vmul.f32 %v846, %v654
      %v879 = vadd.f32 %v847, 1e-05
      %v880 = vadd.f32 %v848, 1e-05
      %v881 = vadd.f32 %v849, 1e-05
      %v882 = vadd.f32 %v850, 1e-05
      %v883 = vadd.f32 %v851, 1e-05
      %v884 = vadd.f32 %v852, 1e-05
      %v885 = vadd.f32 %v853, 1e-05
      %v886 = vadd.f32 %v854, 1e-05
      %v887 = vadd.f32 %v855, 1e-05
      %v888 = vadd.f32 %v856, 1e-05
      %v889 = vadd.f32 %v857, 1e-05
      %v890 = vadd.f32 %v858, 1e-05
      %v891 = vadd.f32 %v859, 1e-05
      %v892 = vadd.f32 %v860, 1e-05
      %v893 = vadd.f32 %v861, 1e-05
      %v894 = vadd.f32 %v862, 1e-05
      %v895 = vadd.f32 %v863, 1e-05
      %v896 = vadd.f32 %v864, 1e-05
      %v897 = vadd.f32 %v865, 1e-05
      %v898 = vadd.f32 %v866, 1e-05
      %v899 = vadd.f32 %v867, 1e-05
      %v900 = vadd.f32 %v868, 1e-05
      %v901 = vadd.f32 %v869, 1e-05
      %v902 = vadd.f32 %v870, 1e-05
      %v903 = vadd.f32 %v871, 1e-05
      %v904 = vadd.f32 %v872, 1e-05
      %v905 = vadd.f32 %v873, 1e-05
      %v906 = vadd.f32 %v874, 1e-05
      %v907 = vadd.f32 %v875, 1e-05
      %v908 = vadd.f32 %v876, 1e-05
      %v909 = vadd.f32 %v877, 1e-05
      %v910 = vadd.f32 %v878, 1e-05
      %v911 = vrsqrt.pop %v879
      %v912 = vrsqrt.pop %v880
      %v913 = vrsqrt.pop %v881
      %v914 = vrsqrt.pop %v882
      %v915 = vrsqrt.pop %v883
      %v916 = vrsqrt.pop %v884
      %v917 = vrsqrt.pop %v885
      %v918 = vrsqrt.pop %v886
      %v919 = vrsqrt.pop %v887
      %v920 = vrsqrt.pop %v888
      %v921 = vrsqrt.pop %v889
      %v922 = vrsqrt.pop %v890
      %v923 = vrsqrt.pop %v891
      %v924 = vrsqrt.pop %v892
      %v925 = vrsqrt.pop %v893
      %v926 = vrsqrt.pop %v894
      %v927 = vrsqrt.pop %v895
      %v928 = vrsqrt.pop %v896
      %v929 = vrsqrt.pop %v897
      %v930 = vrsqrt.pop %v898
      %v931 = vrsqrt.pop %v899
      %v932 = vrsqrt.pop %v900
      %v933 = vrsqrt.pop %v901
      %v934 = vrsqrt.pop %v902
      %v935 = vrsqrt.pop %v903
      %v936 = vrsqrt.pop %v904
      %v937 = vrsqrt.pop %v905
      %v938 = vrsqrt.pop %v906
      %v939 = vrsqrt.pop %v907
      %v940 = vrsqrt.pop %v908
      %v941 = vrsqrt.pop %v909
      %v942 = vrsqrt.pop %v910
      %v943 = vmul.f32 %v687, %v911
      %v944 = vmul.f32 %v688, %v912
      %v945 = vmul.f32 %v689, %v913
      %v946 = vmul.f32 %v690, %v914
      %v947 = vmul.f32 %v691, %v915
      %v948 = vmul.f32 %v692, %v916
      %v949 = vmul.f32 %v693, %v917
      %v950 = vmul.f32 %v694, %v918
      %v951 = vmul.f32 %v695, %v919
      %v952 = vmul.f32 %v696, %v920
      %v953 = vmul.f32 %v697, %v921
      %v954 = vmul.f32 %v698, %v922
      %v955 = vmul.f32 %v699, %v923
      %v956 = vmul.f32 %v700, %v924
      %v957 = vmul.f32 %v701, %v925
      %v958 = vmul.f32 %v702, %v926
      %v959 = vmul.f32 %v703, %v927
      %v960 = vmul.f32 %v704, %v928
      %v961 = vmul.f32 %v705, %v929
      %v962 = vmul.f32 %v706, %v930
      %v963 = vmul.f32 %v707, %v931
      %v964 = vmul.f32 %v708, %v932
      %v965 = vmul.f32 %v709, %v933
      %v966 = vmul.f32 %v710, %v934
      %v967 = vmul.f32 %v711, %v935
      %v968 = vmul.f32 %v712, %v936
      %v969 = vmul.f32 %v713, %v937
      %v970 = vmul.f32 %v714, %v938
      %v971 = vmul.f32 %v715, %v939
      %v972 = vmul.f32 %v716, %v940
      %v973 = vmul.f32 %v717, %v941
      %v974 = vmul.f32 %v718, %v942
      %v976 = vlaneseq
      %v977 = vshrl.u32 %v976, 7
      %v978 = vsub.s32 0, %v977
      %v979 = vrot.slane %v555, %v978
      %v981 = vmul.f32 %v943, %v979
      %v982 = vmul.f32 %v944, %v979
      %v983 = vmul.f32 %v945, %v979
      %v984 = vmul.f32 %v946, %v979
      %v985 = vmul.f32 %v947, %v979
      %v986 = vmul.f32 %v948, %v979
      %v987 = vmul.f32 %v949, %v979
      %v988 = vmul.f32 %v950, %v979
      %v989 = vmul.f32 %v951, %v979
      %v990 = vmul.f32 %v952, %v979
      %v991 = vmul.f32 %v953, %v979
      %v992 = vmul.f32 %v954, %v979
      %v993 = vmul.f32 %v955, %v979
      %v994 = vmul.f32 %v956, %v979
      %v995 = vmul.f32 %v957, %v979
      %v996 = vmul.f32 %v958, %v979
      %v997 = vmul.f32 %v959, %v979
      %v998 = vmul.f32 %v960, %v979
      %v999 = vmul.f32 %v961, %v979
      %v1000 = vmul.f32 %v962, %v979
      %v1001 = vmul.f32 %v963, %v979
      %v1002 = vmul.f32 %v964, %v979
      %v1003 = vmul.f32 %v965, %v979
      %v1004 = vmul.f32 %v966, %v979
      %v1005 = vmul.f32 %v967, %v979
      %v1006 = vmul.f32 %v968, %v979
      %v1007 = vmul.f32 %v969, %v979
      %v1008 = vmul.f32 %v970, %v979
      %v1009 = vmul.f32 %v971, %v979
      %v1010 = vmul.f32 %v972, %v979
      %v1011 = vmul.f32 %v973, %v979
      %v1012 = vmul.f32 %v974, %v979
      %v1014 = vlaneseq
      %v1015 = vshrl.u32 %v1014, 7
      %v1016 = vsub.s32 0, %v1015
      %v1017 = vrot.slane %v556, %v1016
      %v1019 = vadd.f32 %v981, %v1017
      %v1020 = vadd.f32 %v982, %v1017
      %v1021 = vadd.f32 %v983, %v1017
      %v1022 = vadd.f32 %v984, %v1017
      %v1023 = vadd.f32 %v985, %v1017
      %v1024 = vadd.f32 %v986, %v1017
      %v1025 = vadd.f32 %v987, %v1017
      %v1026 = vadd.f32 %v988, %v1017
      %v1027 = vadd.f32 %v989, %v1017
      %v1028 = vadd.f32 %v990, %v1017
      %v1029 = vadd.f32 %v991, %v1017
      %v1030 = vadd.f32 %v992, %v1017
      %v1031 = vadd.f32 %v993, %v1017
      %v1032 = vadd.f32 %v994, %v1017
      %v1033 = vadd.f32 %v995, %v1017
      %v1034 = vadd.f32 %v996, %v1017
      %v1035 = vadd.f32 %v997, %v1017
      %v1036 = vadd.f32 %v998, %v1017
      %v1037 = vadd.f32 %v999, %v1017
      %v1038 = vadd.f32 %v1000, %v1017
      %v1039 = vadd.f32 %v1001, %v1017
      %v1040 = vadd.f32 %v1002, %v1017
      %v1041 = vadd.f32 %v1003, %v1017
      %v1042 = vadd.f32 %v1004, %v1017
      %v1043 = vadd.f32 %v1005, %v1017
      %v1044 = vadd.f32 %v1006, %v1017
      %v1045 = vadd.f32 %v1007, %v1017
      %v1046 = vadd.f32 %v1008, %v1017
      %v1047 = vadd.f32 %v1009, %v1017
      %v1048 = vadd.f32 %v1010, %v1017
      %v1049 = vadd.f32 %v1011, %v1017
      %v1050 = vadd.f32 %v1012, %v1017
      %v1051 = vpack.c.bf16 %v1020, %v1019
      %v1052 = vpack.c.bf16 %v1022, %v1021
      %v1053 = vpack.c.bf16 %v1024, %v1023
      %v1054 = vpack.c.bf16 %v1026, %v1025
      %v1055 = vpack.c.bf16 %v1028, %v1027
      %v1056 = vpack.c.bf16 %v1030, %v1029
      %v1057 = vpack.c.bf16 %v1032, %v1031
      %v1058 = vpack.c.bf16 %v1034, %v1033
      %v1059 = vpack.c.bf16 %v1036, %v1035
      %v1060 = vpack.c.bf16 %v1038, %v1037
      %v1061 = vpack.c.bf16 %v1040, %v1039
      %v1062 = vpack.c.bf16 %v1042, %v1041
      %v1063 = vpack.c.bf16 %v1044, %v1043
      %v1064 = vpack.c.bf16 %v1046, %v1045
      %v1065 = vpack.c.bf16 %v1048, %v1047
      %v1066 = vpack.c.bf16 %v1050, %v1049
      %v1067 = vld [vmem:[%s3] sm:$0xf]
      %v1068 = vld [vmem:[%s3 + $0x4] sm:$0xf]
      %v1069 = vld [vmem:[%s3 + $0x8] sm:$0xf]
      %v1070 = vld [vmem:[%s3 + $0xc] sm:$0xf]
      %v1071 = vld [vmem:[%s4] sm:$0x1]
      %v1073 = vlaneseq
      %v1074 = vshrl.u32 %v1073, 7
      %v1075 = vsub.s32 0, %v1074
      %v1076 = vrot.slane %v1071, %v1075
      %v1082 = vunpack.c.l.b16 %v1067
      %v1083 = vunpack.c.l.b16 %v1068
      %v1084 = vunpack.c.l.b16 %v1069
      %v1085 = vunpack.c.l.b16 %v1070
      %v1086 = vpack.c.b16 %v1083, %v1082
      %v1087 = vpack.c.b16 %v1085, %v1084
      %v1091 = vsel %vm557, %v1051, 0
      %v1094 = vsel %vm557, %v1052, 0
      %v1097 = vsel %vm557, %v1053, 0
      %v1100 = vsel %vm557, %v1054, 0
      %v1103 = vsel %vm557, %v1055, 0
      %v1106 = vsel %vm557, %v1056, 0
      %v1109 = vsel %vm557, %v1057, 0
      %v1112 = vsel %vm557, %v1058, 0
      %v1115 = vsel %vm557, %v1059, 0
      %v1118 = vsel %vm557, %v1060, 0
      %v1121 = vsel %vm557, %v1061, 0
      %v1124 = vsel %vm557, %v1062, 0
      %v1127 = vsel %vm557, %v1063, 0
      %v1130 = vsel %vm557, %v1064, 0
      %v1133 = vsel %vm557, %v1065, 0
      %v1136 = vsel %vm557, %v1066, 0
      %1138 = vmatprep.subr.bf16.mxu0 0
      %1139 = vmatpush1.bf16.msra.mxu0 %v1086
      %1140 = vmatprep.subr.bf16.mxu0 0
      %1141 = vmatpush1.bf16.msra.mxu0 %v1087
      %1142 = vmatprep.subr.bf16.mxu0 0
      %1143 = vmatpush1.bf16.msra.mxu0 0
      %1144 = vmatprep.subr.bf16.mxu0 0
      %1145 = vmatpush1.bf16.msra.mxu0 0
      %1146 = vmatprep.subr.bf16.mxu0 0
      %1147 = vmatpush1.bf16.msra.mxu0 0
      %1148 = vmatprep.subr.bf16.mxu0 0
      %1149 = vmatpush1.bf16.msra.mxu0 0
      %1150 = vmatprep.subr.bf16.mxu0 0
      %1151 = vmatpush1.bf16.msra.mxu0 0
      %1152 = vmatprep.subr.bf16.mxu0 0
      %1153 = vmatpush1.bf16.msra.mxu0 0
      %1154 = vmatprep.subr.bf16.mxu0 0
      %1155 = vmatpush1.bf16.msra.mxu0 0
      %1156 = vmatprep.subr.bf16.mxu0 0
      %1157 = vmatpush1.bf16.msra.mxu0 0
      %1158 = vmatprep.subr.bf16.mxu0 0
      %1159 = vmatpush1.bf16.msra.mxu0 0
      %1160 = vmatprep.subr.bf16.mxu0 0
      %1161 = vmatpush1.bf16.msra.mxu0 0
      %1162 = vmatprep.subr.bf16.mxu0 0
      %1163 = vmatpush1.bf16.msra.mxu0 0
      %1164 = vmatprep.subr.bf16.mxu0 0
      %1165 = vmatpush1.bf16.msra.mxu0 0
      %1166 = vmatprep.subr.bf16.mxu0 0
      %1167 = vmatpush1.bf16.msra.mxu0 0
      %1168 = vmatprep.subr.bf16.mxu0 0
      %1169 = vmatpush1.bf16.msra.mxu0 0
      %1170 = vmatprep.mubr.bf16.mxu0 0
      %1171 = vmatmul.mubr.bf16.gmra.mrb[0].mxu0 %v1091
      %v1172 = vpop.f32.mrb[0].mxu0
      %v1173 = vadd.f32 %v1076, %v1172
      %v1174 = vpop.f32.mrb[0].mxu0
      %v1175 = vpop.f32.mrb[0].mxu0
      %v1176 = vadd.f32 %v1076, %v1175
      %v1177 = vpop.f32.mrb[0].mxu0
      %1178 = vmatprep.mubr.bf16.mxu0 0
      %1179 = vmatmul.mubr.bf16.gmra.mrb[0].mxu0 %v1094
      %v1180 = vpop.f32.mrb[0].mxu0
      %v1181 = vadd.f32 %v1076, %v1180
      %v1182 = vpop.f32.mrb[0].mxu0
      %v1183 = vpop.f32.mrb[0].mxu0
      %v1184 = vadd.f32 %v1076, %v1183
      %v1185 = vpop.f32.mrb[0].mxu0
      %1186 = vmatprep.mubr.bf16.mxu0 0
      %1187 = vmatmul.mubr.bf16.gmra.mrb[0].mxu0 %v1097
      %v1188 = vpop.f32.mrb[0].mxu0
      %v1189 = vadd.f32 %v1076, %v1188
      %v1190 = vpop.f32.mrb[0].mxu0
      %v1191 = vpop.f32.mrb[0].mxu0
      %v1192 = vadd.f32 %v1076, %v1191
      %v1193 = vpop.f32.mrb[0].mxu0
      %1194 = vmatprep.mubr.bf16.mxu0 0
      %1195 = vmatmul.mubr.bf16.gmra.mrb[0].mxu0 %v1100
      %v1196 = vpop.f32.mrb[0].mxu0
      %v1197 = vadd.f32 %v1076, %v1196
      %v1198 = vpop.f32.mrb[0].mxu0
      %v1199 = vpop.f32.mrb[0].mxu0
      %v1200 = vadd.f32 %v1076, %v1199
      %v1201 = vpop.f32.mrb[0].mxu0
      %1202 = vmatprep.mubr.bf16.mxu0 0
      %1203 = vmatmul.mubr.bf16.gmra.mrb[0].mxu0 %v1103
      %v1204 = vpop.f32.mrb[0].mxu0
      %v1205 = vadd.f32 %v1076, %v1204
      %v1206 = vpop.f32.mrb[0].mxu0
      %v1207 = vpop.f32.mrb[0].mxu0
      %v1208 = vadd.f32 %v1076, %v1207
      %v1209 = vpop.f32.mrb[0].mxu0
      %1210 = vmatprep.mubr.bf16.mxu0 0
      %1211 = vmatmul.mubr.bf16.gmra.mrb[0].mxu0 %v1106
      %v1212 = vpop.f32.mrb[0].mxu0
      %v1213 = vadd.f32 %v1076, %v1212
      %v1214 = vpop.f32.mrb[0].mxu0
      %v1215 = vpop.f32.mrb[0].mxu0
      %v1216 = vadd.f32 %v1076, %v1215
      %v1217 = vpop.f32.mrb[0].mxu0
      %1218 = vmatprep.mubr.bf16.mxu0 0
      %1219 = vmatmul.mubr.bf16.gmra.mrb[0].mxu0 %v1109
      %v1220 = vpop.f32.mrb[0].mxu0
      %v1221 = vadd.f32 %v1076, %v1220
      %v1222 = vpop.f32.mrb[0].mxu0
      %v1223 = vpop.f32.mrb[0].mxu0
      %v1224 = vadd.f32 %v1076, %v1223
      %v1225 = vpop.f32.mrb[0].mxu0
      %1226 = vmatprep.mubr.bf16.mxu0 0
      %1227 = vmatmul.mubr.bf16.gmra.mrb[0].mxu0 %v1112
      %v1228 = vpop.f32.mrb[0].mxu0
      %v1229 = vadd.f32 %v1076, %v1228
      %v1230 = vpop.f32.mrb[0].mxu0
      %v1231 = vpop.f32.mrb[0].mxu0
      %v1232 = vadd.f32 %v1076, %v1231
      %v1233 = vpop.f32.mrb[0].mxu0
      %1234 = vmatprep.mubr.bf16.mxu0 0
      %1235 = vmatmul.mubr.bf16.gmra.mrb[0].mxu0 %v1115
      %v1236 = vpop.f32.mrb[0].mxu0
      %v1237 = vadd.f32 %v1076, %v1236
      %v1238 = vpop.f32.mrb[0].mxu0
      %v1239 = vpop.f32.mrb[0].mxu0
      %v1240 = vadd.f32 %v1076, %v1239
      %v1241 = vpop.f32.mrb[0].mxu0
      %1242 = vmatprep.mubr.bf16.mxu0 0
      %1243 = vmatmul.mubr.bf16.gmra.mrb[0].mxu0 %v1118
      %v1244 = vpop.f32.mrb[0].mxu0
      %v1245 = vadd.f32 %v1076, %v1244
      %v1246 = vpop.f32.mrb[0].mxu0
      %v1247 = vpop.f32.mrb[0].mxu0
      %v1248 = vadd.f32 %v1076, %v1247
      %v1249 = vpop.f32.mrb[0].mxu0
      %1250 = vmatprep.mubr.bf16.mxu0 0
      %1251 = vmatmul.mubr.bf16.gmra.mrb[0].mxu0 %v1121
      %v1252 = vpop.f32.mrb[0].mxu0
      %v1253 = vadd.f32 %v1076, %v1252
      %v1254 = vpop.f32.mrb[0].mxu0
      %v1255 = vpop.f32.mrb[0].mxu0
      %v1256 = vadd.f32 %v1076, %v1255
      %v1257 = vpop.f32.mrb[0].mxu0
      %1258 = vmatprep.mubr.bf16.mxu0 0
      %1259 = vmatmul.mubr.bf16.gmra.mrb[0].mxu0 %v1124
      %v1260 = vpop.f32.mrb[0].mxu0
      %v1261 = vadd.f32 %v1076, %v1260
      %v1262 = vpop.f32.mrb[0].mxu0
      %v1263 = vpop.f32.mrb[0].mxu0
      %v1264 = vadd.f32 %v1076, %v1263
      %v1265 = vpop.f32.mrb[0].mxu0
      %1266 = vmatprep.mubr.bf16.mxu0 0
      %1267 = vmatmul.mubr.bf16.gmra.mrb[0].mxu0 %v1127
      %v1268 = vpop.f32.mrb[0].mxu0
      %v1269 = vadd.f32 %v1076, %v1268
      %v1270 = vpop.f32.mrb[0].mxu0
      %v1271 = vpop.f32.mrb[0].mxu0
      %v1272 = vadd.f32 %v1076, %v1271
      %v1273 = vpop.f32.mrb[0].mxu0
      %1274 = vmatprep.mubr.bf16.mxu0 0
      %1275 = vmatmul.mubr.bf16.gmra.mrb[0].mxu0 %v1130
      %v1276 = vpop.f32.mrb[0].mxu0
      %v1277 = vadd.f32 %v1076, %v1276
      %v1278 = vpop.f32.mrb[0].mxu0
      %v1279 = vpop.f32.mrb[0].mxu0
      %v1280 = vadd.f32 %v1076, %v1279
      %v1281 = vpop.f32.mrb[0].mxu0
      %1282 = vmatprep.mubr.bf16.mxu0 0
      %1283 = vmatmul.mubr.bf16.gmra.mrb[0].mxu0 %v1133
      %v1284 = vpop.f32.mrb[0].mxu0
      %v1285 = vadd.f32 %v1076, %v1284
      %v1286 = vpop.f32.mrb[0].mxu0
      %v1287 = vpop.f32.mrb[0].mxu0
      %v1288 = vadd.f32 %v1076, %v1287
      %v1289 = vpop.f32.mrb[0].mxu0
      %1290 = vmatprep.mubr.bf16.mxu0 0
      %1291 = vmatmul.mubr.bf16.gmra.mrb[0].mxu0 %v1136
      %v1292 = vpop.f32.mrb[0].mxu0
      %v1293 = vadd.f32 %v1076, %v1292
      %v1294 = vpop.f32.mrb[0].mxu0
      %v1295 = vpop.f32.mrb[0].mxu0
      %v1296 = vadd.f32 %v1076, %v1295
      %v1297 = vpop.f32.mrb[0].mxu0
      %1298 = vdwg.mxu0
      %1299 = vst.msk [vmem:[#allocation2] sm:$0xff] %vm557, 0.0
      %1300 = vst.msk [vmem:[#allocation2 + $0x8] sm:$0xff] %vm557, 0.0
      %1301 = vst.msk [vmem:[#allocation2 + $0x10] sm:$0xff] %vm557, 0.0
      %1302 = vst.msk [vmem:[#allocation2 + $0x118] sm:$0xff] %vm557, 0.0
      %1303 = vst.msk [vmem:[#allocation2 + $0x120] sm:$0xff] %vm557, 0.0
      %1304 = vst.msk [vmem:[#allocation2 + $0x128] sm:$0xff] %vm557, 0.0
      %1337 = vrot.lane.b32.xlu0 %v1173, 96
      %v1338 = vpop.permute.xlu0 %1337
      %1339 = vrot.lane.b32.xlu0 %v1176, 96
      %v1340 = vpop.permute.xlu0 %1339
      %1341 = vrot.lane.b32.xlu0 %v1181, 96
      %v1342 = vpop.permute.xlu0 %1341
      %1343 = vrot.lane.b32.xlu0 %v1184, 96
      %v1344 = vpop.permute.xlu0 %1343
      %1345 = vrot.lane.b32.xlu0 %v1189, 96
      %v1346 = vpop.permute.xlu0 %1345
      %1347 = vrot.lane.b32.xlu0 %v1192, 96
      %v1348 = vpop.permute.xlu0 %1347
      %1349 = vrot.lane.b32.xlu0 %v1197, 96
      %v1350 = vpop.permute.xlu0 %1349
      %1351 = vrot.lane.b32.xlu0 %v1200, 96
      %v1352 = vpop.permute.xlu0 %1351
      %1353 = vrot.lane.b32.xlu0 %v1205, 96
      %v1354 = vpop.permute.xlu0 %1353
      %1355 = vrot.lane.b32.xlu0 %v1208, 96
      %v1356 = vpop.permute.xlu0 %1355
      %1357 = vrot.lane.b32.xlu0 %v1213, 96
      %v1358 = vpop.permute.xlu0 %1357
      %1359 = vrot.lane.b32.xlu0 %v1216, 96
      %v1360 = vpop.permute.xlu0 %1359
      %1361 = vrot.lane.b32.xlu0 %v1221, 96
      %v1362 = vpop.permute.xlu0 %1361
      %1363 = vrot.lane.b32.xlu0 %v1224, 96
      %v1364 = vpop.permute.xlu0 %1363
      %1365 = vrot.lane.b32.xlu0 %v1229, 96
      %v1366 = vpop.permute.xlu0 %1365
      %1367 = vrot.lane.b32.xlu0 %v1232, 96
      %v1368 = vpop.permute.xlu0 %1367
      %1369 = vrot.lane.b32.xlu0 %v1237, 96
      %v1370 = vpop.permute.xlu0 %1369
      %1371 = vrot.lane.b32.xlu0 %v1240, 96
      %v1372 = vpop.permute.xlu0 %1371
      %1373 = vrot.lane.b32.xlu0 %v1245, 96
      %v1374 = vpop.permute.xlu0 %1373
      %1375 = vrot.lane.b32.xlu0 %v1248, 96
      %v1376 = vpop.permute.xlu0 %1375
      %1377 = vrot.lane.b32.xlu0 %v1253, 96
      %v1378 = vpop.permute.xlu0 %1377
      %1379 = vrot.lane.b32.xlu0 %v1256, 96
      %v1380 = vpop.permute.xlu0 %1379
      %1381 = vrot.lane.b32.xlu0 %v1261, 96
      %v1382 = vpop.permute.xlu0 %1381
      %1383 = vrot.lane.b32.xlu0 %v1264, 96
      %v1384 = vpop.permute.xlu0 %1383
      %1385 = vrot.lane.b32.xlu0 %v1269, 96
      %v1386 = vpop.permute.xlu0 %1385
      %1387 = vrot.lane.b32.xlu0 %v1272, 96
      %v1388 = vpop.permute.xlu0 %1387
      %1389 = vrot.lane.b32.xlu0 %v1277, 96
      %v1390 = vpop.permute.xlu0 %1389
      %1391 = vrot.lane.b32.xlu0 %v1280, 96
      %v1392 = vpop.permute.xlu0 %1391
      %1393 = vrot.lane.b32.xlu0 %v1285, 96
      %v1394 = vpop.permute.xlu0 %1393
      %1395 = vrot.lane.b32.xlu0 %v1288, 96
      %v1396 = vpop.permute.xlu0 %1395
      %1397 = vrot.lane.b32.xlu0 %v1293, 96
      %v1398 = vpop.permute.xlu0 %1397
      %1399 = vrot.lane.b32.xlu0 %v1296, 96
      %v1400 = vpop.permute.xlu0 %1399
      %1433 = vst.msk [vmem:[#allocation2 + $0x18] sm:$0xff] %vm557, %v1338
      %1434 = vst.msk [vmem:[#allocation2 + $0x20] sm:$0xff] %vm557, %v1340
      %1435 = vst.msk [vmem:[#allocation2 + $0x28] sm:$0xff] %vm557, %v1342
      %1436 = vst.msk [vmem:[#allocation2 + $0x30] sm:$0xff] %vm557, %v1344
      %1437 = vst.msk [vmem:[#allocation2 + $0x38] sm:$0xff] %vm557, %v1346
      %1438 = vst.msk [vmem:[#allocation2 + $0x40] sm:$0xff] %vm557, %v1348
      %1439 = vst.msk [vmem:[#allocation2 + $0x48] sm:$0xff] %vm557, %v1350
      %1440 = vst.msk [vmem:[#allocation2 + $0x50] sm:$0xff] %vm557, %v1352
      %1441 = vst.msk [vmem:[#allocation2 + $0x58] sm:$0xff] %vm557, %v1354
      %1442 = vst.msk [vmem:[#allocation2 + $0x60] sm:$0xff] %vm557, %v1356
      %1443 = vst.msk [vmem:[#allocation2 + $0x68] sm:$0xff] %vm557, %v1358
      %1444 = vst.msk [vmem:[#allocation2 + $0x70] sm:$0xff] %vm557, %v1360
      %1445 = vst.msk [vmem:[#allocation2 + $0x78] sm:$0xff] %vm557, %v1362
      %1446 = vst.msk [vmem:[#allocation2 + $0x80] sm:$0xff] %vm557, %v1364
      %1447 = vst.msk [vmem:[#allocation2 + $0x88] sm:$0xff] %vm557, %v1366
      %1448 = vst.msk [vmem:[#allocation2 + $0x90] sm:$0xff] %vm557, %v1368
      %1449 = vst.msk [vmem:[#allocation2 + $0x98] sm:$0xff] %vm557, %v1370
      %1450 = vst.msk [vmem:[#allocation2 + $0xa0] sm:$0xff] %vm557, %v1372
      %1451 = vst.msk [vmem:[#allocation2 + $0xa8] sm:$0xff] %vm557, %v1374
      %1452 = vst.msk [vmem:[#allocation2 + $0xb0] sm:$0xff] %vm557, %v1376
      %1453 = vst.msk [vmem:[#allocation2 + $0xb8] sm:$0xff] %vm557, %v1378
      %1454 = vst.msk [vmem:[#allocation2 + $0xc0] sm:$0xff] %vm557, %v1380
      %1455 = vst.msk [vmem:[#allocation2 + $0xc8] sm:$0xff] %vm557, %v1382
      %1456 = vst.msk [vmem:[#allocation2 + $0xd0] sm:$0xff] %vm557, %v1384
      %1457 = vst.msk [vmem:[#allocation2 + $0xd8] sm:$0xff] %vm557, %v1386
      %1458 = vst.msk [vmem:[#allocation2 + $0xe0] sm:$0xff] %vm557, %v1388
      %1459 = vst.msk [vmem:[#allocation2 + $0xe8] sm:$0xff] %vm557, %v1390
      %1460 = vst.msk [vmem:[#allocation2 + $0xf0] sm:$0xff] %vm557, %v1392
      %1461 = vst.msk [vmem:[#allocation2 + $0xf8] sm:$0xff] %vm557, %v1394
      %1462 = vst.msk [vmem:[#allocation2 + $0x100] sm:$0xff] %vm557, %v1396
      %1463 = vst.msk [vmem:[#allocation2 + $0x108] sm:$0xff] %vm557, %v1398
      %1464 = vst.msk [vmem:[#allocation2 + $0x110] sm:$0xff] %vm557, %v1400
      %v1465 = vlaneseq
      %v1466 = vshrl.u32 %v1465, 7
      %v1467 = vadd.s32 %v1466, 8
      %v1468 = vadd.s32 %v1466, 16
      %v1469 = vadd.s32 %v1466, 24
      %v1470 = vadd.s32 %v1466, 32
      %v1471 = vadd.s32 %v1466, 40
      %v1472 = vadd.s32 %v1466, 48
      %v1473 = vadd.s32 %v1466, 56
      %v1474 = vadd.s32 %v1466, 64
      %v1475 = vadd.s32 %v1466, 72
      %v1476 = vadd.s32 %v1466, 80
      %v1477 = vadd.s32 %v1466, 88
      %v1478 = vadd.s32 %v1466, 96
      %v1479 = vadd.s32 %v1466, 104
      %v1480 = vadd.s32 %v1466, 112
      %v1481 = vadd.s32 %v1466, 120
      %v1482 = vadd.s32 %v1466, 128
      %v1483 = vadd.s32 %v1466, 136
      %v1484 = vadd.s32 %v1466, 144
      %v1485 = vadd.s32 %v1466, 152
      %v1486 = vadd.s32 %v1466, 160
      %v1487 = vadd.s32 %v1466, 168
      %v1488 = vadd.s32 %v1466, 176
      %v1489 = vadd.s32 %v1466, 184
      %v1490 = vadd.s32 %v1466, 192
      %v1491 = vadd.s32 %v1466, 200
      %v1492 = vadd.s32 %v1466, 208
      %v1493 = vadd.s32 %v1466, 216
      %v1494 = vadd.s32 %v1466, 224
      %v1495 = vadd.s32 %v1466, 232
      %v1496 = vadd.s32 %v1466, 240
      %v1497 = vadd.s32 %v1466, 248
      %vm1498 = vcmp.lt.s32.totalorder %v1466, 0
      %v1499 = vsub.s32 0, %v1466
      %v1500 = vsel %vm1498, %v1499, %v1466
      %v1501 = vshrl.u32 %v1500, 4
      %v1502 = vand.u32 %v1500, 15
      %v1503 = vsub.s32 0, %v1502
      %v1504 = vsel %vm1498, %v1503, %v1502
      %vm1505 = vcmp.lt.s32.totalorder %v1467, 0
      %v1506 = vsub.s32 0, %v1467
      %v1507 = vsel %vm1505, %v1506, %v1467
      %v1508 = vshrl.u32 %v1507, 4
      %v1509 = vand.u32 %v1507, 15
      %v1510 = vsub.s32 0, %v1509
      %v1511 = vsel %vm1505, %v1510, %v1509
      %vm1512 = vcmp.lt.s32.totalorder %v1468, 0
      %v1513 = vsub.s32 0, %v1468
      %v1514 = vsel %vm1512, %v1513, %v1468
      %v1515 = vshrl.u32 %v1514, 4
      %v1516 = vand.u32 %v1514, 15
      %v1517 = vsub.s32 0, %v1516
      %v1518 = vsel %vm1512, %v1517, %v1516
      %vm1519 = vcmp.lt.s32.totalorder %v1469, 0
      %v1520 = vsub.s32 0, %v1469
      %v1521 = vsel %vm1519, %v1520, %v1469
      %v1522 = vshrl.u32 %v1521, 4
      %v1523 = vand.u32 %v1521, 15
      %v1524 = vsub.s32 0, %v1523
      %v1525 = vsel %vm1519, %v1524, %v1523
      %vm1526 = vcmp.lt.s32.totalorder %v1470, 0
      %v1527 = vsub.s32 0, %v1470
      %v1528 = vsel %vm1526, %v1527, %v1470
      %v1529 = vshrl.u32 %v1528, 4
      %v1530 = vand.u32 %v1528, 15
      %v1531 = vsub.s32 0, %v1530
      %v1532 = vsel %vm1526, %v1531, %v1530
      %vm1533 = vcmp.lt.s32.totalorder %v1471, 0
      %v1534 = vsub.s32 0, %v1471
      %v1535 = vsel %vm1533, %v1534, %v1471
      %v1536 = vshrl.u32 %v1535, 4
      %v1537 = vand.u32 %v1535, 15
      %v1538 = vsub.s32 0, %v1537
      %v1539 = vsel %vm1533, %v1538, %v1537
      %vm1540 = vcmp.lt.s32.totalorder %v1472, 0
      %v1541 = vsub.s32 0, %v1472
      %v1542 = vsel %vm1540, %v1541, %v1472
      %v1543 = vshrl.u32 %v1542, 4
      %v1544 = vand.u32 %v1542, 15
      %v1545 = vsub.s32 0, %v1544
      %v1546 = vsel %vm1540, %v1545, %v1544
      %vm1547 = vcmp.lt.s32.totalorder %v1473, 0
      %v1548 = vsub.s32 0, %v1473
      %v1549 = vsel %vm1547, %v1548, %v1473
      %v1550 = vshrl.u32 %v1549, 4
      %v1551 = vand.u32 %v1549, 15
      %v1552 = vsub.s32 0, %v1551
      %v1553 = vsel %vm1547, %v1552, %v1551
      %vm1554 = vcmp.lt.s32.totalorder %v1474, 0
      %v1555 = vsub.s32 0, %v1474
      %v1556 = vsel %vm1554, %v1555, %v1474
      %v1557 = vshrl.u32 %v1556, 4
      %v1558 = vand.u32 %v1556, 15
      %v1559 = vsub.s32 0, %v1558
      %v1560 = vsel %vm1554, %v1559, %v1558
      %vm1561 = vcmp.lt.s32.totalorder %v1475, 0
      %v1562 = vsub.s32 0, %v1475
      %v1563 = vsel %vm1561, %v1562, %v1475
      %v1564 = vshrl.u32 %v1563, 4
      %v1565 = vand.u32 %v1563, 15
      %v1566 = vsub.s32 0, %v1565
      %v1567 = vsel %vm1561, %v1566, %v1565
      %vm1568 = vcmp.lt.s32.totalorder %v1476, 0
      %v1569 = vsub.s32 0, %v1476
      %v1570 = vsel %vm1568, %v1569, %v1476
      %v1571 = vshrl.u32 %v1570, 4
      %v1572 = vand.u32 %v1570, 15
      %v1573 = vsub.s32 0, %v1572
      %v1574 = vsel %vm1568, %v1573, %v1572
      %vm1575 = vcmp.lt.s32.totalorder %v1477, 0
      %v1576 = vsub.s32 0, %v1477
      %v1577 = vsel %vm1575, %v1576, %v1477
      %v1578 = vshrl.u32 %v1577, 4
      %v1579 = vand.u32 %v1577, 15
      %v1580 = vsub.s32 0, %v1579
      %v1581 = vsel %vm1575, %v1580, %v1579
      %vm1582 = vcmp.lt.s32.totalorder %v1478, 0
      %v1583 = vsub.s32 0, %v1478
      %v1584 = vsel %vm1582, %v1583, %v1478
      %v1585 = vshrl.u32 %v1584, 4
      %v1586 = vand.u32 %v1584, 15
      %v1587 = vsub.s32 0, %v1586
      %v1588 = vsel %vm1582, %v1587, %v1586
      %vm1589 = vcmp.lt.s32.totalorder %v1479, 0
      %v1590 = vsub.s32 0, %v1479
      %v1591 = vsel %vm1589, %v1590, %v1479
      %v1592 = vshrl.u32 %v1591, 4
      %v1593 = vand.u32 %v1591, 15
      %v1594 = vsub.s32 0, %v1593
      %v1595 = vsel %vm1589, %v1594, %v1593
      %vm1596 = vcmp.lt.s32.totalorder %v1480, 0
      %v1597 = vsub.s32 0, %v1480
      %v1598 = vsel %vm1596, %v1597, %v1480
      %v1599 = vshrl.u32 %v1598, 4
      %v1600 = vand.u32 %v1598, 15
      %v1601 = vsub.s32 0, %v1600
      %v1602 = vsel %vm1596, %v1601, %v1600
      %vm1603 = vcmp.lt.s32.totalorder %v1481, 0
      %v1604 = vsub.s32 0, %v1481
      %v1605 = vsel %vm1603, %v1604, %v1481
      %v1606 = vshrl.u32 %v1605, 4
      %v1607 = vand.u32 %v1605, 15
      %v1608 = vsub.s32 0, %v1607
      %v1609 = vsel %vm1603, %v1608, %v1607
      %vm1610 = vcmp.lt.s32.totalorder %v1482, 0
      %v1611 = vsub.s32 0, %v1482
      %v1612 = vsel %vm1610, %v1611, %v1482
      %v1613 = vshrl.u32 %v1612, 4
      %v1614 = vand.u32 %v1612, 15
      %v1615 = vsub.s32 0, %v1614
      %v1616 = vsel %vm1610, %v1615, %v1614
      %vm1617 = vcmp.lt.s32.totalorder %v1483, 0
      %v1618 = vsub.s32 0, %v1483
      %v1619 = vsel %vm1617, %v1618, %v1483
      %v1620 = vshrl.u32 %v1619, 4
      %v1621 = vand.u32 %v1619, 15
      %v1622 = vsub.s32 0, %v1621
      %v1623 = vsel %vm1617, %v1622, %v1621
      %vm1624 = vcmp.lt.s32.totalorder %v1484, 0
      %v1625 = vsub.s32 0, %v1484
      %v1626 = vsel %vm1624, %v1625, %v1484
      %v1627 = vshrl.u32 %v1626, 4
      %v1628 = vand.u32 %v1626, 15
      %v1629 = vsub.s32 0, %v1628
      %v1630 = vsel %vm1624, %v1629, %v1628
      %vm1631 = vcmp.lt.s32.totalorder %v1485, 0
      %v1632 = vsub.s32 0, %v1485
      %v1633 = vsel %vm1631, %v1632, %v1485
      %v1634 = vshrl.u32 %v1633, 4
      %v1635 = vand.u32 %v1633, 15
      %v1636 = vsub.s32 0, %v1635
      %v1637 = vsel %vm1631, %v1636, %v1635
      %vm1638 = vcmp.lt.s32.totalorder %v1486, 0
      %v1639 = vsub.s32 0, %v1486
      %v1640 = vsel %vm1638, %v1639, %v1486
      %v1641 = vshrl.u32 %v1640, 4
      %v1642 = vand.u32 %v1640, 15
      %v1643 = vsub.s32 0, %v1642
      %v1644 = vsel %vm1638, %v1643, %v1642
      %vm1645 = vcmp.lt.s32.totalorder %v1487, 0
      %v1646 = vsub.s32 0, %v1487
      %v1647 = vsel %vm1645, %v1646, %v1487
      %v1648 = vshrl.u32 %v1647, 4
      %v1649 = vand.u32 %v1647, 15
      %v1650 = vsub.s32 0, %v1649
      %v1651 = vsel %vm1645, %v1650, %v1649
      %vm1652 = vcmp.lt.s32.totalorder %v1488, 0
      %v1653 = vsub.s32 0, %v1488
      %v1654 = vsel %vm1652, %v1653, %v1488
      %v1655 = vshrl.u32 %v1654, 4
      %v1656 = vand.u32 %v1654, 15
      %v1657 = vsub.s32 0, %v1656
      %v1658 = vsel %vm1652, %v1657, %v1656
      %vm1659 = vcmp.lt.s32.totalorder %v1489, 0
      %v1660 = vsub.s32 0, %v1489
      %v1661 = vsel %vm1659, %v1660, %v1489
      %v1662 = vshrl.u32 %v1661, 4
      %v1663 = vand.u32 %v1661, 15
      %v1664 = vsub.s32 0, %v1663
      %v1665 = vsel %vm1659, %v1664, %v1663
      %vm1666 = vcmp.lt.s32.totalorder %v1490, 0
      %v1667 = vsub.s32 0, %v1490
      %v1668 = vsel %vm1666, %v1667, %v1490
      %v1669 = vshrl.u32 %v1668, 4
      %v1670 = vand.u32 %v1668, 15
      %v1671 = vsub.s32 0, %v1670
      %v1672 = vsel %vm1666, %v1671, %v1670
      %vm1673 = vcmp.lt.s32.totalorder %v1491, 0
      %v1674 = vsub.s32 0, %v1491
      %v1675 = vsel %vm1673, %v1674, %v1491
      %v1676 = vshrl.u32 %v1675, 4
      %v1677 = vand.u32 %v1675, 15
      %v1678 = vsub.s32 0, %v1677
      %v1679 = vsel %vm1673, %v1678, %v1677
      %vm1680 = vcmp.lt.s32.totalorder %v1492, 0
      %v1681 = vsub.s32 0, %v1492
      %v1682 = vsel %vm1680, %v1681, %v1492
      %v1683 = vshrl.u32 %v1682, 4
      %v1684 = vand.u32 %v1682, 15
      %v1685 = vsub.s32 0, %v1684
      %v1686 = vsel %vm1680, %v1685, %v1684
      %vm1687 = vcmp.lt.s32.totalorder %v1493, 0
      %v1688 = vsub.s32 0, %v1493
      %v1689 = vsel %vm1687, %v1688, %v1493
      %v1690 = vshrl.u32 %v1689, 4
      %v1691 = vand.u32 %v1689, 15
      %v1692 = vsub.s32 0, %v1691
      %v1693 = vsel %vm1687, %v1692, %v1691
      %vm1694 = vcmp.lt.s32.totalorder %v1494, 0
      %v1695 = vsub.s32 0, %v1494
      %v1696 = vsel %vm1694, %v1695, %v1494
      %v1697 = vshrl.u32 %v1696, 4
      %v1698 = vand.u32 %v1696, 15
      %v1699 = vsub.s32 0, %v1698
      %v1700 = vsel %vm1694, %v1699, %v1698
      %vm1701 = vcmp.lt.s32.totalorder %v1495, 0
      %v1702 = vsub.s32 0, %v1495
      %v1703 = vsel %vm1701, %v1702, %v1495
      %v1704 = vshrl.u32 %v1703, 4
      %v1705 = vand.u32 %v1703, 15
      %v1706 = vsub.s32 0, %v1705
      %v1707 = vsel %vm1701, %v1706, %v1705
      %vm1708 = vcmp.lt.s32.totalorder %v1496, 0
      %v1709 = vsub.s32 0, %v1496
      %v1710 = vsel %vm1708, %v1709, %v1496
      %v1711 = vshrl.u32 %v1710, 4
      %v1712 = vand.u32 %v1710, 15
      %v1713 = vsub.s32 0, %v1712
      %v1714 = vsel %vm1708, %v1713, %v1712
      %vm1715 = vcmp.lt.s32.totalorder %v1497, 0
      %v1716 = vsub.s32 0, %v1497
      %v1717 = vsel %vm1715, %v1716, %v1497
      %v1718 = vshrl.u32 %v1717, 4
      %v1719 = vand.u32 %v1717, 15
      %v1720 = vsub.s32 0, %v1719
      %v1721 = vsel %vm1715, %v1720, %v1719
      %vm1722 = vcmp.ne.s32.totalorder %v1504, 0
      %vm1723 = vcmp.ne.s32.totalorder %v1511, 0
      %vm1724 = vcmp.ne.s32.totalorder %v1518, 0
      %vm1725 = vcmp.ne.s32.totalorder %v1525, 0
      %vm1726 = vcmp.ne.s32.totalorder %v1532, 0
      %vm1727 = vcmp.ne.s32.totalorder %v1539, 0
      %vm1728 = vcmp.ne.s32.totalorder %v1546, 0
      %vm1729 = vcmp.ne.s32.totalorder %v1553, 0
      %vm1730 = vcmp.ne.s32.totalorder %v1560, 0
      %vm1731 = vcmp.ne.s32.totalorder %v1567, 0
      %vm1732 = vcmp.ne.s32.totalorder %v1574, 0
      %vm1733 = vcmp.ne.s32.totalorder %v1581, 0
      %vm1734 = vcmp.ne.s32.totalorder %v1588, 0
      %vm1735 = vcmp.ne.s32.totalorder %v1595, 0
      %vm1736 = vcmp.ne.s32.totalorder %v1602, 0
      %vm1737 = vcmp.ne.s32.totalorder %v1609, 0
      %vm1738 = vcmp.ne.s32.totalorder %v1616, 0
      %vm1739 = vcmp.ne.s32.totalorder %v1623, 0
      %vm1740 = vcmp.ne.s32.totalorder %v1630, 0
      %vm1741 = vcmp.ne.s32.totalorder %v1637, 0
      %vm1742 = vcmp.ne.s32.totalorder %v1644, 0
      %vm1743 = vcmp.ne.s32.totalorder %v1651, 0
      %vm1744 = vcmp.ne.s32.totalorder %v1658, 0
      %vm1745 = vcmp.ne.s32.totalorder %v1665, 0
      %vm1746 = vcmp.ne.s32.totalorder %v1672, 0
      %vm1747 = vcmp.ne.s32.totalorder %v1679, 0
      %vm1748 = vcmp.ne.s32.totalorder %v1686, 0
      %vm1749 = vcmp.ne.s32.totalorder %v1693, 0
      %vm1750 = vcmp.ne.s32.totalorder %v1700, 0
      %vm1751 = vcmp.ne.s32.totalorder %v1707, 0
      %vm1752 = vcmp.ne.s32.totalorder %v1714, 0
      %vm1753 = vcmp.ne.s32.totalorder %v1721, 0
      %vm1754 = vcmp.lt.s32.totalorder %v1504, 0
      %vm1755 = vcmp.lt.s32.totalorder %v1511, 0
      %vm1756 = vcmp.lt.s32.totalorder %v1518, 0
      %vm1757 = vcmp.lt.s32.totalorder %v1525, 0
      %vm1758 = vcmp.lt.s32.totalorder %v1532, 0
      %vm1759 = vcmp.lt.s32.totalorder %v1539, 0
      %vm1760 = vcmp.lt.s32.totalorder %v1546, 0
      %vm1761 = vcmp.lt.s32.totalorder %v1553, 0
      %vm1762 = vcmp.lt.s32.totalorder %v1560, 0
      %vm1763 = vcmp.lt.s32.totalorder %v1567, 0
      %vm1764 = vcmp.lt.s32.totalorder %v1574, 0
      %vm1765 = vcmp.lt.s32.totalorder %v1581, 0
      %vm1766 = vcmp.lt.s32.totalorder %v1588, 0
      %vm1767 = vcmp.lt.s32.totalorder %v1595, 0
      %vm1768 = vcmp.lt.s32.totalorder %v1602, 0
      %vm1769 = vcmp.lt.s32.totalorder %v1609, 0
      %vm1770 = vcmp.lt.s32.totalorder %v1616, 0
      %vm1771 = vcmp.lt.s32.totalorder %v1623, 0
      %vm1772 = vcmp.lt.s32.totalorder %v1630, 0
      %vm1773 = vcmp.lt.s32.totalorder %v1637, 0
      %vm1774 = vcmp.lt.s32.totalorder %v1644, 0
      %vm1775 = vcmp.lt.s32.totalorder %v1651, 0
      %vm1776 = vcmp.lt.s32.totalorder %v1658, 0
      %vm1777 = vcmp.lt.s32.totalorder %v1665, 0
      %vm1778 = vcmp.lt.s32.totalorder %v1672, 0
      %vm1779 = vcmp.lt.s32.totalorder %v1679, 0
      %vm1780 = vcmp.lt.s32.totalorder %v1686, 0
      %vm1781 = vcmp.lt.s32.totalorder %v1693, 0
      %vm1782 = vcmp.lt.s32.totalorder %v1700, 0
      %vm1783 = vcmp.lt.s32.totalorder %v1707, 0
      %vm1784 = vcmp.lt.s32.totalorder %v1714, 0
      %vm1785 = vcmp.lt.s32.totalorder %v1721, 0
      %vm1786 = vmand %vm1754, %vm1722
      %vm1787 = vmand %vm1755, %vm1723
      %vm1788 = vmand %vm1756, %vm1724
      %vm1789 = vmand %vm1757, %vm1725
      %vm1790 = vmand %vm1758, %vm1726
      %vm1791 = vmand %vm1759, %vm1727
      %vm1792 = vmand %vm1760, %vm1728
      %vm1793 = vmand %vm1761, %vm1729
      %vm1794 = vmand %vm1762, %vm1730
      %vm1795 = vmand %vm1763, %vm1731
      %vm1796 = vmand %vm1764, %vm1732
      %vm1797 = vmand %vm1765, %vm1733
      %vm1798 = vmand %vm1766, %vm1734
      %vm1799 = vmand %vm1767, %vm1735
      %vm1800 = vmand %vm1768, %vm1736
      %vm1801 = vmand %vm1769, %vm1737
      %vm1802 = vmand %vm1770, %vm1738
      %vm1803 = vmand %vm1771, %vm1739
      %vm1804 = vmand %vm1772, %vm1740
      %vm1805 = vmand %vm1773, %vm1741
      %vm1806 = vmand %vm1774, %vm1742
      %vm1807 = vmand %vm1775, %vm1743
      %vm1808 = vmand %vm1776, %vm1744
      %vm1809 = vmand %vm1777, %vm1745
      %vm1810 = vmand %vm1778, %vm1746
      %vm1811 = vmand %vm1779, %vm1747
      %vm1812 = vmand %vm1780, %vm1748
      %vm1813 = vmand %vm1781, %vm1749
      %vm1814 = vmand %vm1782, %vm1750
      %vm1815 = vmand %vm1783, %vm1751
      %vm1816 = vmand %vm1784, %vm1752
      %vm1817 = vmand %vm1785, %vm1753
      %v1818 = vadd.s32 %v1504, 16
      %v1819 = vadd.s32 %v1511, 16
      %v1820 = vadd.s32 %v1518, 16
      %v1821 = vadd.s32 %v1525, 16
      %v1822 = vadd.s32 %v1532, 16
      %v1823 = vadd.s32 %v1539, 16
      %v1824 = vadd.s32 %v1546, 16
      %v1825 = vadd.s32 %v1553, 16
      %v1826 = vadd.s32 %v1560, 16
      %v1827 = vadd.s32 %v1567, 16
      %v1828 = vadd.s32 %v1574, 16
      %v1829 = vadd.s32 %v1581, 16
      %v1830 = vadd.s32 %v1588, 16
      %v1831 = vadd.s32 %v1595, 16
      %v1832 = vadd.s32 %v1602, 16
      %v1833 = vadd.s32 %v1609, 16
      %v1834 = vadd.s32 %v1616, 16
      %v1835 = vadd.s32 %v1623, 16
      %v1836 = vadd.s32 %v1630, 16
      %v1837 = vadd.s32 %v1637, 16
      %v1838 = vadd.s32 %v1644, 16
      %v1839 = vadd.s32 %v1651, 16
      %v1840 = vadd.s32 %v1658, 16
      %v1841 = vadd.s32 %v1665, 16
      %v1842 = vadd.s32 %v1672, 16
      %v1843 = vadd.s32 %v1679, 16
      %v1844 = vadd.s32 %v1686, 16
      %v1845 = vadd.s32 %v1693, 16
      %v1846 = vadd.s32 %v1700, 16
      %v1847 = vadd.s32 %v1707, 16
      %v1848 = vadd.s32 %v1714, 16
      %v1849 = vadd.s32 %v1721, 16
      %v1850 = vsel %vm1786, %v1818, %v1504
      %v1851 = vsel %vm1787, %v1819, %v1511
      %v1852 = vsel %vm1788, %v1820, %v1518
      %v1853 = vsel %vm1789, %v1821, %v1525
      %v1854 = vsel %vm1790, %v1822, %v1532
      %v1855 = vsel %vm1791, %v1823, %v1539
      %v1856 = vsel %vm1792, %v1824, %v1546
      %v1857 = vsel %vm1793, %v1825, %v1553
      %v1858 = vsel %vm1794, %v1826, %v1560
      %v1859 = vsel %vm1795, %v1827, %v1567
      %v1860 = vsel %vm1796, %v1828, %v1574
      %v1861 = vsel %vm1797, %v1829, %v1581
      %v1862 = vsel %vm1798, %v1830, %v1588
      %v1863 = vsel %vm1799, %v1831, %v1595
      %v1864 = vsel %vm1800, %v1832, %v1602
      %v1865 = vsel %vm1801, %v1833, %v1609
      %v1866 = vsel %vm1802, %v1834, %v1616
      %v1867 = vsel %vm1803, %v1835, %v1623
      %v1868 = vsel %vm1804, %v1836, %v1630
      %v1869 = vsel %vm1805, %v1837, %v1637
      %v1870 = vsel %vm1806, %v1838, %v1644
      %v1871 = vsel %vm1807, %v1839, %v1651
      %v1872 = vsel %vm1808, %v1840, %v1658
      %v1873 = vsel %vm1809, %v1841, %v1665
      %v1874 = vsel %vm1810, %v1842, %v1672
      %v1875 = vsel %vm1811, %v1843, %v1679
      %v1876 = vsel %vm1812, %v1844, %v1686
      %v1877 = vsel %vm1813, %v1845, %v1693
      %v1878 = vsel %vm1814, %v1846, %v1700
      %v1879 = vsel %vm1815, %v1847, %v1707
      %v1880 = vsel %vm1816, %v1848, %v1714
      %v1881 = vsel %vm1817, %v1849, %v1721
      %v1882 = vld [vmem:[%s5] sm:$0xff]
      %v1883 = vld [vmem:[%s5 + $0x8] sm:$0x1]
      %v1884 = vld [vmem:[#allocation2 + $0x7] sm:$0xff]
      %v1885 = vld [vmem:[#allocation2 + $0xf] sm:$0xff]
      %v1886 = vld [vmem:[#allocation2 + $0x17] sm:$0xff]
      %v1887 = vld [vmem:[#allocation2 + $0x1f] sm:$0xff]
      %v1888 = vld [vmem:[#allocation2 + $0x27] sm:$0xff]
      %v1889 = vld [vmem:[#allocation2 + $0x2f] sm:$0xff]
      %v1890 = vld [vmem:[#allocation2 + $0x37] sm:$0xff]
      %v1891 = vld [vmem:[#allocation2 + $0x3f] sm:$0xff]
      %v1892 = vld [vmem:[#allocation2 + $0x47] sm:$0xff]
      %v1893 = vld [vmem:[#allocation2 + $0x4f] sm:$0xff]
      %v1894 = vld [vmem:[#allocation2 + $0x57] sm:$0xff]
      %v1895 = vld [vmem:[#allocation2 + $0x5f] sm:$0xff]
      %v1896 = vld [vmem:[#allocation2 + $0x67] sm:$0xff]
      %v1897 = vld [vmem:[#allocation2 + $0x6f] sm:$0xff]
      %v1898 = vld [vmem:[#allocation2 + $0x77] sm:$0xff]
      %v1899 = vld [vmem:[#allocation2 + $0x7f] sm:$0xff]
      %v1900 = vld [vmem:[#allocation2 + $0x87] sm:$0xff]
      %v1901 = vld [vmem:[#allocation2 + $0x8f] sm:$0xff]
      %v1902 = vld [vmem:[#allocation2 + $0x97] sm:$0xff]
      %v1903 = vld [vmem:[#allocation2 + $0x9f] sm:$0xff]
      %v1904 = vld [vmem:[#allocation2 + $0xa7] sm:$0xff]
      %v1905 = vld [vmem:[#allocation2 + $0xaf] sm:$0xff]
      %v1906 = vld [vmem:[#allocation2 + $0xb7] sm:$0xff]
      %v1907 = vld [vmem:[#allocation2 + $0xbf] sm:$0xff]
      %v1908 = vld [vmem:[#allocation2 + $0xc7] sm:$0xff]
      %v1909 = vld [vmem:[#allocation2 + $0xcf] sm:$0xff]
      %v1910 = vld [vmem:[#allocation2 + $0xd7] sm:$0xff]
      %v1911 = vld [vmem:[#allocation2 + $0xdf] sm:$0xff]
      %v1912 = vld [vmem:[#allocation2 + $0xe7] sm:$0xff]
      %v1913 = vld [vmem:[#allocation2 + $0xef] sm:$0xff]
      %v1914 = vld [vmem:[#allocation2 + $0xf7] sm:$0xff]
      %v1915 = vld [vmem:[#allocation2 + $0xff] sm:$0xff]
      %v1916 = vlaneseq
      %v1917 = vshrl.u32 %v1916, 7
      %v1918 = vsub.s32 0, %v1917
      %v1919 = vrot.slane %v1882, %v1918
      %v1920 = vmul.f32 %v1884, %v1919
      %v1921 = vmul.f32 %v1885, %v1919
      %v1922 = vmul.f32 %v1886, %v1919
      %v1923 = vmul.f32 %v1887, %v1919
      %v1924 = vmul.f32 %v1888, %v1919
      %v1925 = vmul.f32 %v1889, %v1919
      %v1926 = vmul.f32 %v1890, %v1919
      %v1927 = vmul.f32 %v1891, %v1919
      %v1928 = vmul.f32 %v1892, %v1919
      %v1929 = vmul.f32 %v1893, %v1919
      %v1930 = vmul.f32 %v1894, %v1919
      %v1931 = vmul.f32 %v1895, %v1919
      %v1932 = vmul.f32 %v1896, %v1919
      %v1933 = vmul.f32 %v1897, %v1919
      %v1934 = vmul.f32 %v1898, %v1919
      %v1935 = vmul.f32 %v1899, %v1919
      %v1936 = vmul.f32 %v1900, %v1919
      %v1937 = vmul.f32 %v1901, %v1919
      %v1938 = vmul.f32 %v1902, %v1919
      %v1939 = vmul.f32 %v1903, %v1919
      %v1940 = vmul.f32 %v1904, %v1919
      %v1941 = vmul.f32 %v1905, %v1919
      %v1942 = vmul.f32 %v1906, %v1919
      %v1943 = vmul.f32 %v1907, %v1919
      %v1944 = vmul.f32 %v1908, %v1919
      %v1945 = vmul.f32 %v1909, %v1919
      %v1946 = vmul.f32 %v1910, %v1919
      %v1947 = vmul.f32 %v1911, %v1919
      %v1948 = vmul.f32 %v1912, %v1919
      %v1949 = vmul.f32 %v1913, %v1919
      %v1950 = vmul.f32 %v1914, %v1919
      %v1951 = vmul.f32 %v1915, %v1919
      %v1952 = vadd.f32 %v1920, 0.0
      %v1953 = vadd.f32 %v1921, 0.0
      %v1954 = vadd.f32 %v1922, 0.0
      %v1955 = vadd.f32 %v1923, 0.0
      %v1956 = vadd.f32 %v1924, 0.0
      %v1957 = vadd.f32 %v1925, 0.0
      %v1958 = vadd.f32 %v1926, 0.0
      %v1959 = vadd.f32 %v1927, 0.0
      %v1960 = vadd.f32 %v1928, 0.0
      %v1961 = vadd.f32 %v1929, 0.0
      %v1962 = vadd.f32 %v1930, 0.0
      %v1963 = vadd.f32 %v1931, 0.0
      %v1964 = vadd.f32 %v1932, 0.0
      %v1965 = vadd.f32 %v1933, 0.0
      %v1966 = vadd.f32 %v1934, 0.0
      %v1967 = vadd.f32 %v1935, 0.0
      %v1968 = vadd.f32 %v1936, 0.0
      %v1969 = vadd.f32 %v1937, 0.0
      %v1970 = vadd.f32 %v1938, 0.0
      %v1971 = vadd.f32 %v1939, 0.0
      %v1972 = vadd.f32 %v1940, 0.0
      %v1973 = vadd.f32 %v1941, 0.0
      %v1974 = vadd.f32 %v1942, 0.0
      %v1975 = vadd.f32 %v1943, 0.0
      %v1976 = vadd.f32 %v1944, 0.0
      %v1977 = vadd.f32 %v1945, 0.0
      %v1978 = vadd.f32 %v1946, 0.0
      %v1979 = vadd.f32 %v1947, 0.0
      %v1980 = vadd.f32 %v1948, 0.0
      %v1981 = vadd.f32 %v1949, 0.0
      %v1982 = vadd.f32 %v1950, 0.0
      %v1983 = vadd.f32 %v1951, 0.0
      %v1984 = vld [vmem:[#allocation2 + $0x107] sm:$0xff]
      %v1985 = vld [vmem:[#allocation2 + $0x10f] sm:$0xff]
      %v1986 = vlaneseq
      %v1987 = vshrl.u32 %v1986, 7
      %v1988 = vsub.s32 3, %v1987
      %v1989 = vrot.slane %v1882, %v1988
      %v1990 = vmul.f32 %v1886, %v1989
      %v1991 = vmul.f32 %v1887, %v1989
      %v1992 = vmul.f32 %v1888, %v1989
      %v1993 = vmul.f32 %v1889, %v1989
      %v1994 = vmul.f32 %v1890, %v1989
      %v1995 = vmul.f32 %v1891, %v1989
      %v1996 = vmul.f32 %v1892, %v1989
      %v1997 = vmul.f32 %v1893, %v1989
      %v1998 = vmul.f32 %v1894, %v1989
      %v1999 = vmul.f32 %v1895, %v1989
      %v2000 = vmul.f32 %v1896, %v1989
      %v2001 = vmul.f32 %v1897, %v1989
      %v2002 = vmul.f32 %v1898, %v1989
      %v2003 = vmul.f32 %v1899, %v1989
      %v2004 = vmul.f32 %v1900, %v1989
      %v2005 = vmul.f32 %v1901, %v1989
      %v2006 = vmul.f32 %v1902, %v1989
      %v2007 = vmul.f32 %v1903, %v1989
      %v2008 = vmul.f32 %v1904, %v1989
      %v2009 = vmul.f32 %v1905, %v1989
      %v2010 = vmul.f32 %v1906, %v1989
      %v2011 = vmul.f32 %v1907, %v1989
      %v2012 = vmul.f32 %v1908, %v1989
      %v2013 = vmul.f32 %v1909, %v1989
      %v2014 = vmul.f32 %v1910, %v1989
      %v2015 = vmul.f32 %v1911, %v1989
      %v2016 = vmul.f32 %v1912, %v1989
      %v2017 = vmul.f32 %v1913, %v1989
      %v2018 = vmul.f32 %v1914, %v1989
      %v2019 = vmul.f32 %v1915, %v1989
      %v2020 = vmul.f32 %v1984, %v1989
      %v2021 = vmul.f32 %v1985, %v1989
      %v2022 = vadd.f32 %v1952, %v1990
      %v2023 = vadd.f32 %v1953, %v1991
      %v2024 = vadd.f32 %v1954, %v1992
      %v2025 = vadd.f32 %v1955, %v1993
      %v2026 = vadd.f32 %v1956, %v1994
      %v2027 = vadd.f32 %v1957, %v1995
      %v2028 = vadd.f32 %v1958, %v1996
      %v2029 = vadd.f32 %v1959, %v1997
      %v2030 = vadd.f32 %v1960, %v1998
      %v2031 = vadd.f32 %v1961, %v1999
      %v2032 = vadd.f32 %v1962, %v2000
      %v2033 = vadd.f32 %v1963, %v2001
      %v2034 = vadd.f32 %v1964, %v2002
      %v2035 = vadd.f32 %v1965, %v2003
      %v2036 = vadd.f32 %v1966, %v2004
      %v2037 = vadd.f32 %v1967, %v2005
      %v2038 = vadd.f32 %v1968, %v2006
      %v2039 = vadd.f32 %v1969, %v2007
      %v2040 = vadd.f32 %v1970, %v2008
      %v2041 = vadd.f32 %v1971, %v2009
      %v2042 = vadd.f32 %v1972, %v2010
      %v2043 = vadd.f32 %v1973, %v2011
      %v2044 = vadd.f32 %v1974, %v2012
      %v2045 = vadd.f32 %v1975, %v2013
      %v2046 = vadd.f32 %v1976, %v2014
      %v2047 = vadd.f32 %v1977, %v2015
      %v2048 = vadd.f32 %v1978, %v2016
      %v2049 = vadd.f32 %v1979, %v2017
      %v2050 = vadd.f32 %v1980, %v2018
      %v2051 = vadd.f32 %v1981, %v2019
      %v2052 = vadd.f32 %v1982, %v2020
      %v2053 = vadd.f32 %v1983, %v2021
      %v2054 = vld [vmem:[#allocation2 + $0x117] sm:$0xff]
      %v2055 = vld [vmem:[#allocation2 + $0x11f] sm:$0xff]
      %v2056 = vlaneseq
      %v2057 = vshrl.u32 %v2056, 7
      %v2058 = vsub.s32 6, %v2057
      %v2059 = vrot.slane %v1882, %v2058
      %v2060 = vmul.f32 %v1888, %v2059
      %v2061 = vmul.f32 %v1889, %v2059
      %v2062 = vmul.f32 %v1890, %v2059
      %v2063 = vmul.f32 %v1891, %v2059
      %v2064 = vmul.f32 %v1892, %v2059
      %v2065 = vmul.f32 %v1893, %v2059
      %v2066 = vmul.f32 %v1894, %v2059
      %v2067 = vmul.f32 %v1895, %v2059
      %v2068 = vmul.f32 %v1896, %v2059
      %v2069 = vmul.f32 %v1897, %v2059
      %v2070 = vmul.f32 %v1898, %v2059
      %v2071 = vmul.f32 %v1899, %v2059
      %v2072 = vmul.f32 %v1900, %v2059
      %v2073 = vmul.f32 %v1901, %v2059
      %v2074 = vmul.f32 %v1902, %v2059
      %v2075 = vmul.f32 %v1903, %v2059
      %v2076 = vmul.f32 %v1904, %v2059
      %v2077 = vmul.f32 %v1905, %v2059
      %v2078 = vmul.f32 %v1906, %v2059
      %v2079 = vmul.f32 %v1907, %v2059
      %v2080 = vmul.f32 %v1908, %v2059
      %v2081 = vmul.f32 %v1909, %v2059
      %v2082 = vmul.f32 %v1910, %v2059
      %v2083 = vmul.f32 %v1911, %v2059
      %v2084 = vmul.f32 %v1912, %v2059
      %v2085 = vmul.f32 %v1913, %v2059
      %v2086 = vmul.f32 %v1914, %v2059
      %v2087 = vmul.f32 %v1915, %v2059
      %v2088 = vmul.f32 %v1984, %v2059
      %v2089 = vmul.f32 %v1985, %v2059
      %v2090 = vmul.f32 %v2054, %v2059
      %v2091 = vmul.f32 %v2055, %v2059
      %v2092 = vadd.f32 %v2022, %v2060
      %v2093 = vadd.f32 %v2023, %v2061
      %v2094 = vadd.f32 %v2024, %v2062
      %v2095 = vadd.f32 %v2025, %v2063
      %v2096 = vadd.f32 %v2026, %v2064
      %v2097 = vadd.f32 %v2027, %v2065
      %v2098 = vadd.f32 %v2028, %v2066
      %v2099 = vadd.f32 %v2029, %v2067
      %v2100 = vadd.f32 %v2030, %v2068
      %v2101 = vadd.f32 %v2031, %v2069
      %v2102 = vadd.f32 %v2032, %v2070
      %v2103 = vadd.f32 %v2033, %v2071
      %v2104 = vadd.f32 %v2034, %v2072
      %v2105 = vadd.f32 %v2035, %v2073
      %v2106 = vadd.f32 %v2036, %v2074
      %v2107 = vadd.f32 %v2037, %v2075
      %v2108 = vadd.f32 %v2038, %v2076
      %v2109 = vadd.f32 %v2039, %v2077
      %v2110 = vadd.f32 %v2040, %v2078
      %v2111 = vadd.f32 %v2041, %v2079
      %v2112 = vadd.f32 %v2042, %v2080
      %v2113 = vadd.f32 %v2043, %v2081
      %v2114 = vadd.f32 %v2044, %v2082
      %v2115 = vadd.f32 %v2045, %v2083
      %v2116 = vadd.f32 %v2046, %v2084
      %v2117 = vadd.f32 %v2047, %v2085
      %v2118 = vadd.f32 %v2048, %v2086
      %v2119 = vadd.f32 %v2049, %v2087
      %v2120 = vadd.f32 %v2050, %v2088
      %v2121 = vadd.f32 %v2051, %v2089
      %v2122 = vadd.f32 %v2052, %v2090
      %v2123 = vadd.f32 %v2053, %v2091
      %vm2124 = vcmp.ge.s32.totalorder %v1850, 1
      %vm2125 = vcmp.ge.s32.totalorder %v1851, 1
      %vm2126 = vcmp.ge.s32.totalorder %v1852, 1
      %vm2127 = vcmp.ge.s32.totalorder %v1853, 1
      %vm2128 = vcmp.ge.s32.totalorder %v1854, 1
      %vm2129 = vcmp.ge.s32.totalorder %v1855, 1
      %vm2130 = vcmp.ge.s32.totalorder %v1856, 1
      %vm2131 = vcmp.ge.s32.totalorder %v1857, 1
      %vm2132 = vcmp.ge.s32.totalorder %v1858, 1
      %vm2133 = vcmp.ge.s32.totalorder %v1859, 1
      %vm2134 = vcmp.ge.s32.totalorder %v1860, 1
      %vm2135 = vcmp.ge.s32.totalorder %v1861, 1
      %vm2136 = vcmp.ge.s32.totalorder %v1862, 1
      %vm2137 = vcmp.ge.s32.totalorder %v1863, 1
      %vm2138 = vcmp.ge.s32.totalorder %v1864, 1
      %vm2139 = vcmp.ge.s32.totalorder %v1865, 1
      %vm2140 = vcmp.ge.s32.totalorder %v1866, 1
      %vm2141 = vcmp.ge.s32.totalorder %v1867, 1
      %vm2142 = vcmp.ge.s32.totalorder %v1868, 1
      %vm2143 = vcmp.ge.s32.totalorder %v1869, 1
      %vm2144 = vcmp.ge.s32.totalorder %v1870, 1
      %vm2145 = vcmp.ge.s32.totalorder %v1871, 1
      %vm2146 = vcmp.ge.s32.totalorder %v1872, 1
      %vm2147 = vcmp.ge.s32.totalorder %v1873, 1
      %vm2148 = vcmp.ge.s32.totalorder %v1874, 1
      %vm2149 = vcmp.ge.s32.totalorder %v1875, 1
      %vm2150 = vcmp.ge.s32.totalorder %v1876, 1
      %vm2151 = vcmp.ge.s32.totalorder %v1877, 1
      %vm2152 = vcmp.ge.s32.totalorder %v1878, 1
      %vm2153 = vcmp.ge.s32.totalorder %v1879, 1
      %vm2154 = vcmp.ge.s32.totalorder %v1880, 1
      %vm2155 = vcmp.ge.s32.totalorder %v1881, 1
      %v2156 = vsel %vm2124, 1, 0
      %v2157 = vsel %vm2125, 1, 0
      %v2158 = vsel %vm2126, 1, 0
      %v2159 = vsel %vm2127, 1, 0
      %v2160 = vsel %vm2128, 1, 0
      %v2161 = vsel %vm2129, 1, 0
      %v2162 = vsel %vm2130, 1, 0
      %v2163 = vsel %vm2131, 1, 0
      %v2164 = vsel %vm2132, 1, 0
      %v2165 = vsel %vm2133, 1, 0
      %v2166 = vsel %vm2134, 1, 0
      %v2167 = vsel %vm2135, 1, 0
      %v2168 = vsel %vm2136, 1, 0
      %v2169 = vsel %vm2137, 1, 0
      %v2170 = vsel %vm2138, 1, 0
      %v2171 = vsel %vm2139, 1, 0
      %v2172 = vsel %vm2140, 1, 0
      %v2173 = vsel %vm2141, 1, 0
      %v2174 = vsel %vm2142, 1, 0
      %v2175 = vsel %vm2143, 1, 0
      %v2176 = vsel %vm2144, 1, 0
      %v2177 = vsel %vm2145, 1, 0
      %v2178 = vsel %vm2146, 1, 0
      %v2179 = vsel %vm2147, 1, 0
      %v2180 = vsel %vm2148, 1, 0
      %v2181 = vsel %vm2149, 1, 0
      %v2182 = vsel %vm2150, 1, 0
      %v2183 = vsel %vm2151, 1, 0
      %v2184 = vsel %vm2152, 1, 0
      %v2185 = vsel %vm2153, 1, 0
      %v2186 = vsel %vm2154, 1, 0
      %v2187 = vsel %vm2155, 1, 0
      %vm2188 = vcmp.eq.s32.totalorder %v2156, 1
      %vm2189 = vcmp.eq.s32.totalorder %v2157, 1
      %vm2190 = vcmp.eq.s32.totalorder %v2158, 1
      %vm2191 = vcmp.eq.s32.totalorder %v2159, 1
      %vm2192 = vcmp.eq.s32.totalorder %v2160, 1
      %vm2193 = vcmp.eq.s32.totalorder %v2161, 1
      %vm2194 = vcmp.eq.s32.totalorder %v2162, 1
      %vm2195 = vcmp.eq.s32.totalorder %v2163, 1
      %vm2196 = vcmp.eq.s32.totalorder %v2164, 1
      %vm2197 = vcmp.eq.s32.totalorder %v2165, 1
      %vm2198 = vcmp.eq.s32.totalorder %v2166, 1
      %vm2199 = vcmp.eq.s32.totalorder %v2167, 1
      %vm2200 = vcmp.eq.s32.totalorder %v2168, 1
      %vm2201 = vcmp.eq.s32.totalorder %v2169, 1
      %vm2202 = vcmp.eq.s32.totalorder %v2170, 1
      %vm2203 = vcmp.eq.s32.totalorder %v2171, 1
      %vm2204 = vcmp.eq.s32.totalorder %v2172, 1
      %vm2205 = vcmp.eq.s32.totalorder %v2173, 1
      %vm2206 = vcmp.eq.s32.totalorder %v2174, 1
      %vm2207 = vcmp.eq.s32.totalorder %v2175, 1
      %vm2208 = vcmp.eq.s32.totalorder %v2176, 1
      %vm2209 = vcmp.eq.s32.totalorder %v2177, 1
      %vm2210 = vcmp.eq.s32.totalorder %v2178, 1
      %vm2211 = vcmp.eq.s32.totalorder %v2179, 1
      %vm2212 = vcmp.eq.s32.totalorder %v2180, 1
      %vm2213 = vcmp.eq.s32.totalorder %v2181, 1
      %vm2214 = vcmp.eq.s32.totalorder %v2182, 1
      %vm2215 = vcmp.eq.s32.totalorder %v2183, 1
      %vm2216 = vcmp.eq.s32.totalorder %v2184, 1
      %vm2217 = vcmp.eq.s32.totalorder %v2185, 1
      %vm2218 = vcmp.eq.s32.totalorder %v2186, 1
      %vm2219 = vcmp.eq.s32.totalorder %v2187, 1
      %v2220 = vsel %vm2188, %v2092, 0.0
      %v2221 = vsel %vm2189, %v2093, 0.0
      %v2222 = vsel %vm2190, %v2094, 0.0
      %v2223 = vsel %vm2191, %v2095, 0.0
      %v2224 = vsel %vm2192, %v2096, 0.0
      %v2225 = vsel %vm2193, %v2097, 0.0
      %v2226 = vsel %vm2194, %v2098, 0.0
      %v2227 = vsel %vm2195, %v2099, 0.0
      %v2228 = vsel %vm2196, %v2100, 0.0
      %v2229 = vsel %vm2197, %v2101, 0.0
      %v2230 = vsel %vm2198, %v2102, 0.0
      %v2231 = vsel %vm2199, %v2103, 0.0
      %v2232 = vsel %vm2200, %v2104, 0.0
      %v2233 = vsel %vm2201, %v2105, 0.0
      %v2234 = vsel %vm2202, %v2106, 0.0
      %v2235 = vsel %vm2203, %v2107, 0.0
      %v2236 = vsel %vm2204, %v2108, 0.0
      %v2237 = vsel %vm2205, %v2109, 0.0
      %v2238 = vsel %vm2206, %v2110, 0.0
      %v2239 = vsel %vm2207, %v2111, 0.0
      %v2240 = vsel %vm2208, %v2112, 0.0
      %v2241 = vsel %vm2209, %v2113, 0.0
      %v2242 = vsel %vm2210, %v2114, 0.0
      %v2243 = vsel %vm2211, %v2115, 0.0
      %v2244 = vsel %vm2212, %v2116, 0.0
      %v2245 = vsel %vm2213, %v2117, 0.0
      %v2246 = vsel %vm2214, %v2118, 0.0
      %v2247 = vsel %vm2215, %v2119, 0.0
      %v2248 = vsel %vm2216, %v2120, 0.0
      %v2249 = vsel %vm2217, %v2121, 0.0
      %v2250 = vsel %vm2218, %v2122, 0.0
      %v2251 = vsel %vm2219, %v2123, 0.0
      %v2252 = vadd.f32 %v2220, 0.0
      %v2253 = vadd.f32 %v2221, 0.0
      %v2254 = vadd.f32 %v2222, 0.0
      %v2255 = vadd.f32 %v2223, 0.0
      %v2256 = vadd.f32 %v2224, 0.0
      %v2257 = vadd.f32 %v2225, 0.0
      %v2258 = vadd.f32 %v2226, 0.0
      %v2259 = vadd.f32 %v2227, 0.0
      %v2260 = vadd.f32 %v2228, 0.0
      %v2261 = vadd.f32 %v2229, 0.0
      %v2262 = vadd.f32 %v2230, 0.0
      %v2263 = vadd.f32 %v2231, 0.0
      %v2264 = vadd.f32 %v2232, 0.0
      %v2265 = vadd.f32 %v2233, 0.0
      %v2266 = vadd.f32 %v2234, 0.0
      %v2267 = vadd.f32 %v2235, 0.0
      %v2268 = vadd.f32 %v2236, 0.0
      %v2269 = vadd.f32 %v2237, 0.0
      %v2270 = vadd.f32 %v2238, 0.0
      %v2271 = vadd.f32 %v2239, 0.0
      %v2272 = vadd.f32 %v2240, 0.0
      %v2273 = vadd.f32 %v2241, 0.0
      %v2274 = vadd.f32 %v2242, 0.0
      %v2275 = vadd.f32 %v2243, 0.0
      %v2276 = vadd.f32 %v2244, 0.0
      %v2277 = vadd.f32 %v2245, 0.0
      %v2278 = vadd.f32 %v2246, 0.0
      %v2279 = vadd.f32 %v2247, 0.0
      %v2280 = vadd.f32 %v2248, 0.0
      %v2281 = vadd.f32 %v2249, 0.0
      %v2282 = vadd.f32 %v2250, 0.0
      %v2283 = vadd.f32 %v2251, 0.0
      %v2284 = vld [vmem:[#allocation2 + $0x8] sm:$0xff]
      %v2285 = vld [vmem:[#allocation2 + $0x10] sm:$0xff]
      %v2286 = vld [vmem:[#allocation2 + $0x18] sm:$0xff]
      %v2287 = vld [vmem:[#allocation2 + $0x20] sm:$0xff]
      %v2288 = vld [vmem:[#allocation2 + $0x28] sm:$0xff]
      %v2289 = vld [vmem:[#allocation2 + $0x30] sm:$0xff]
      %v2290 = vld [vmem:[#allocation2 + $0x38] sm:$0xff]
      %v2291 = vld [vmem:[#allocation2 + $0x40] sm:$0xff]
      %v2292 = vld [vmem:[#allocation2 + $0x48] sm:$0xff]
      %v2293 = vld [vmem:[#allocation2 + $0x50] sm:$0xff]
      %v2294 = vld [vmem:[#allocation2 + $0x58] sm:$0xff]
      %v2295 = vld [vmem:[#allocation2 + $0x60] sm:$0xff]
      %v2296 = vld [vmem:[#allocation2 + $0x68] sm:$0xff]
      %v2297 = vld [vmem:[#allocation2 + $0x70] sm:$0xff]
      %v2298 = vld [vmem:[#allocation2 + $0x78] sm:$0xff]
      %v2299 = vld [vmem:[#allocation2 + $0x80] sm:$0xff]
      %v2300 = vld [vmem:[#allocation2 + $0x88] sm:$0xff]
      %v2301 = vld [vmem:[#allocation2 + $0x90] sm:$0xff]
      %v2302 = vld [vmem:[#allocation2 + $0x98] sm:$0xff]
      %v2303 = vld [vmem:[#allocation2 + $0xa0] sm:$0xff]
      %v2304 = vld [vmem:[#allocation2 + $0xa8] sm:$0xff]
      %v2305 = vld [vmem:[#allocation2 + $0xb0] sm:$0xff]
      %v2306 = vld [vmem:[#allocation2 + $0xb8] sm:$0xff]
      %v2307 = vld [vmem:[#allocation2 + $0xc0] sm:$0xff]
      %v2308 = vld [vmem:[#allocation2 + $0xc8] sm:$0xff]
      %v2309 = vld [vmem:[#allocation2 + $0xd0] sm:$0xff]
      %v2310 = vld [vmem:[#allocation2 + $0xd8] sm:$0xff]
      %v2311 = vld [vmem:[#allocation2 + $0xe0] sm:$0xff]
      %v2312 = vld [vmem:[#allocation2 + $0xe8] sm:$0xff]
      %v2313 = vld [vmem:[#allocation2 + $0xf0] sm:$0xff]
      %v2314 = vld [vmem:[#allocation2 + $0xf8] sm:$0xff]
      %v2315 = vld [vmem:[#allocation2 + $0x100] sm:$0xff]
      %v2316 = vlaneseq
      %v2317 = vshrl.u32 %v2316, 7
      %v2318 = vsub.s32 1, %v2317
      %v2319 = vrot.slane %v1882, %v2318
      %v2320 = vmul.f32 %v2284, %v2319
      %v2321 = vmul.f32 %v2285, %v2319
      %v2322 = vmul.f32 %v2286, %v2319
      %v2323 = vmul.f32 %v2287, %v2319
      %v2324 = vmul.f32 %v2288, %v2319
      %v2325 = vmul.f32 %v2289, %v2319
      %v2326 = vmul.f32 %v2290, %v2319
      %v2327 = vmul.f32 %v2291, %v2319
      %v2328 = vmul.f32 %v2292, %v2319
      %v2329 = vmul.f32 %v2293, %v2319
      %v2330 = vmul.f32 %v2294, %v2319
      %v2331 = vmul.f32 %v2295, %v2319
      %v2332 = vmul.f32 %v2296, %v2319
      %v2333 = vmul.f32 %v2297, %v2319
      %v2334 = vmul.f32 %v2298, %v2319
      %v2335 = vmul.f32 %v2299, %v2319
      %v2336 = vmul.f32 %v2300, %v2319
      %v2337 = vmul.f32 %v2301, %v2319
      %v2338 = vmul.f32 %v2302, %v2319
      %v2339 = vmul.f32 %v2303, %v2319
      %v2340 = vmul.f32 %v2304, %v2319
      %v2341 = vmul.f32 %v2305, %v2319
      %v2342 = vmul.f32 %v2306, %v2319
      %v2343 = vmul.f32 %v2307, %v2319
      %v2344 = vmul.f32 %v2308, %v2319
      %v2345 = vmul.f32 %v2309, %v2319
      %v2346 = vmul.f32 %v2310, %v2319
      %v2347 = vmul.f32 %v2311, %v2319
      %v2348 = vmul.f32 %v2312, %v2319
      %v2349 = vmul.f32 %v2313, %v2319
      %v2350 = vmul.f32 %v2314, %v2319
      %v2351 = vmul.f32 %v2315, %v2319
      %v2352 = vadd.f32 %v2320, 0.0
      %v2353 = vadd.f32 %v2321, 0.0
      %v2354 = vadd.f32 %v2322, 0.0
      %v2355 = vadd.f32 %v2323, 0.0
      %v2356 = vadd.f32 %v2324, 0.0
      %v2357 = vadd.f32 %v2325, 0.0
      %v2358 = vadd.f32 %v2326, 0.0
      %v2359 = vadd.f32 %v2327, 0.0
      %v2360 = vadd.f32 %v2328, 0.0
      %v2361 = vadd.f32 %v2329, 0.0
      %v2362 = vadd.f32 %v2330, 0.0
      %v2363 = vadd.f32 %v2331, 0.0
      %v2364 = vadd.f32 %v2332, 0.0
      %v2365 = vadd.f32 %v2333, 0.0
      %v2366 = vadd.f32 %v2334, 0.0
      %v2367 = vadd.f32 %v2335, 0.0
      %v2368 = vadd.f32 %v2336, 0.0
      %v2369 = vadd.f32 %v2337, 0.0
      %v2370 = vadd.f32 %v2338, 0.0
      %v2371 = vadd.f32 %v2339, 0.0
      %v2372 = vadd.f32 %v2340, 0.0
      %v2373 = vadd.f32 %v2341, 0.0
      %v2374 = vadd.f32 %v2342, 0.0
      %v2375 = vadd.f32 %v2343, 0.0
      %v2376 = vadd.f32 %v2344, 0.0
      %v2377 = vadd.f32 %v2345, 0.0
      %v2378 = vadd.f32 %v2346, 0.0
      %v2379 = vadd.f32 %v2347, 0.0
      %v2380 = vadd.f32 %v2348, 0.0
      %v2381 = vadd.f32 %v2349, 0.0
      %v2382 = vadd.f32 %v2350, 0.0
      %v2383 = vadd.f32 %v2351, 0.0
      %v2384 = vld [vmem:[#allocation2 + $0x108] sm:$0xff]
      %v2385 = vld [vmem:[#allocation2 + $0x110] sm:$0xff]
      %v2386 = vlaneseq
      %v2387 = vshrl.u32 %v2386, 7
      %v2388 = vsub.s32 4, %v2387
      %v2389 = vrot.slane %v1882, %v2388
      %v2390 = vmul.f32 %v2286, %v2389
      %v2391 = vmul.f32 %v2287, %v2389
      %v2392 = vmul.f32 %v2288, %v2389
      %v2393 = vmul.f32 %v2289, %v2389
      %v2394 = vmul.f32 %v2290, %v2389
      %v2395 = vmul.f32 %v2291, %v2389
      %v2396 = vmul.f32 %v2292, %v2389
      %v2397 = vmul.f32 %v2293, %v2389
      %v2398 = vmul.f32 %v2294, %v2389
      %v2399 = vmul.f32 %v2295, %v2389
      %v2400 = vmul.f32 %v2296, %v2389
      %v2401 = vmul.f32 %v2297, %v2389
      %v2402 = vmul.f32 %v2298, %v2389
      %v2403 = vmul.f32 %v2299, %v2389
      %v2404 = vmul.f32 %v2300, %v2389
      %v2405 = vmul.f32 %v2301, %v2389
      %v2406 = vmul.f32 %v2302, %v2389
      %v2407 = vmul.f32 %v2303, %v2389
      %v2408 = vmul.f32 %v2304, %v2389
      %v2409 = vmul.f32 %v2305, %v2389
      %v2410 = vmul.f32 %v2306, %v2389
      %v2411 = vmul.f32 %v2307, %v2389
      %v2412 = vmul.f32 %v2308, %v2389
      %v2413 = vmul.f32 %v2309, %v2389
      %v2414 = vmul.f32 %v2310, %v2389
      %v2415 = vmul.f32 %v2311, %v2389
      %v2416 = vmul.f32 %v2312, %v2389
      %v2417 = vmul.f32 %v2313, %v2389
      %v2418 = vmul.f32 %v2314, %v2389
      %v2419 = vmul.f32 %v2315, %v2389
      %v2420 = vmul.f32 %v2384, %v2389
      %v2421 = vmul.f32 %v2385, %v2389
      %v2422 = vadd.f32 %v2352, %v2390
      %v2423 = vadd.f32 %v2353, %v2391
      %v2424 = vadd.f32 %v2354, %v2392
      %v2425 = vadd.f32 %v2355, %v2393
      %v2426 = vadd.f32 %v2356, %v2394
      %v2427 = vadd.f32 %v2357, %v2395
      %v2428 = vadd.f32 %v2358, %v2396
      %v2429 = vadd.f32 %v2359, %v2397
      %v2430 = vadd.f32 %v2360, %v2398
      %v2431 = vadd.f32 %v2361, %v2399
      %v2432 = vadd.f32 %v2362, %v2400
      %v2433 = vadd.f32 %v2363, %v2401
      %v2434 = vadd.f32 %v2364, %v2402
      %v2435 = vadd.f32 %v2365, %v2403
      %v2436 = vadd.f32 %v2366, %v2404
      %v2437 = vadd.f32 %v2367, %v2405
      %v2438 = vadd.f32 %v2368, %v2406
      %v2439 = vadd.f32 %v2369, %v2407
      %v2440 = vadd.f32 %v2370, %v2408
      %v2441 = vadd.f32 %v2371, %v2409
      %v2442 = vadd.f32 %v2372, %v2410
      %v2443 = vadd.f32 %v2373, %v2411
      %v2444 = vadd.f32 %v2374, %v2412
      %v2445 = vadd.f32 %v2375, %v2413
      %v2446 = vadd.f32 %v2376, %v2414
      %v2447 = vadd.f32 %v2377, %v2415
      %v2448 = vadd.f32 %v2378, %v2416
      %v2449 = vadd.f32 %v2379, %v2417
      %v2450 = vadd.f32 %v2380, %v2418
      %v2451 = vadd.f32 %v2381, %v2419
      %v2452 = vadd.f32 %v2382, %v2420
      %v2453 = vadd.f32 %v2383, %v2421
      %v2454 = vld [vmem:[#allocation2 + $0x118] sm:$0xff]
      %v2455 = vld [vmem:[#allocation2 + $0x120] sm:$0xff]
      %v2456 = vlaneseq
      %v2457 = vshrl.u32 %v2456, 7
      %v2458 = vsub.s32 7, %v2457
      %v2459 = vrot.slane %v1882, %v2458
      %v2460 = vmul.f32 %v2288, %v2459
      %v2461 = vmul.f32 %v2289, %v2459
      %v2462 = vmul.f32 %v2290, %v2459
      %v2463 = vmul.f32 %v2291, %v2459
      %v2464 = vmul.f32 %v2292, %v2459
      %v2465 = vmul.f32 %v2293, %v2459
      %v2466 = vmul.f32 %v2294, %v2459
      %v2467 = vmul.f32 %v2295, %v2459
      %v2468 = vmul.f32 %v2296, %v2459
      %v2469 = vmul.f32 %v2297, %v2459
      %v2470 = vmul.f32 %v2298, %v2459
      %v2471 = vmul.f32 %v2299, %v2459
      %v2472 = vmul.f32 %v2300, %v2459
      %v2473 = vmul.f32 %v2301, %v2459
      %v2474 = vmul.f32 %v2302, %v2459
      %v2475 = vmul.f32 %v2303, %v2459
      %v2476 = vmul.f32 %v2304, %v2459
      %v2477 = vmul.f32 %v2305, %v2459
      %v2478 = vmul.f32 %v2306, %v2459
      %v2479 = vmul.f32 %v2307, %v2459
      %v2480 = vmul.f32 %v2308, %v2459
      %v2481 = vmul.f32 %v2309, %v2459
      %v2482 = vmul.f32 %v2310, %v2459
      %v2483 = vmul.f32 %v2311, %v2459
      %v2484 = vmul.f32 %v2312, %v2459
      %v2485 = vmul.f32 %v2313, %v2459
      %v2486 = vmul.f32 %v2314, %v2459
      %v2487 = vmul.f32 %v2315, %v2459
      %v2488 = vmul.f32 %v2384, %v2459
      %v2489 = vmul.f32 %v2385, %v2459
      %v2490 = vmul.f32 %v2454, %v2459
      %v2491 = vmul.f32 %v2455, %v2459
      %v2492 = vadd.f32 %v2422, %v2460
      %v2493 = vadd.f32 %v2423, %v2461
      %v2494 = vadd.f32 %v2424, %v2462
      %v2495 = vadd.f32 %v2425, %v2463
      %v2496 = vadd.f32 %v2426, %v2464
      %v2497 = vadd.f32 %v2427, %v2465
      %v2498 = vadd.f32 %v2428, %v2466
      %v2499 = vadd.f32 %v2429, %v2467
      %v2500 = vadd.f32 %v2430, %v2468
      %v2501 = vadd.f32 %v2431, %v2469
      %v2502 = vadd.f32 %v2432, %v2470
      %v2503 = vadd.f32 %v2433, %v2471
      %v2504 = vadd.f32 %v2434, %v2472
      %v2505 = vadd.f32 %v2435, %v2473
      %v2506 = vadd.f32 %v2436, %v2474
      %v2507 = vadd.f32 %v2437, %v2475
      %v2508 = vadd.f32 %v2438, %v2476
      %v2509 = vadd.f32 %v2439, %v2477
      %v2510 = vadd.f32 %v2440, %v2478
      %v2511 = vadd.f32 %v2441, %v2479
      %v2512 = vadd.f32 %v2442, %v2480
      %v2513 = vadd.f32 %v2443, %v2481
      %v2514 = vadd.f32 %v2444, %v2482
      %v2515 = vadd.f32 %v2445, %v2483
      %v2516 = vadd.f32 %v2446, %v2484
      %v2517 = vadd.f32 %v2447, %v2485
      %v2518 = vadd.f32 %v2448, %v2486
      %v2519 = vadd.f32 %v2449, %v2487
      %v2520 = vadd.f32 %v2450, %v2488
      %v2521 = vadd.f32 %v2451, %v2489
      %v2522 = vadd.f32 %v2452, %v2490
      %v2523 = vadd.f32 %v2453, %v2491
      %v2524 = vadd.f32 %v2252, %v2492
      %v2525 = vadd.f32 %v2253, %v2493
      %v2526 = vadd.f32 %v2254, %v2494
      %v2527 = vadd.f32 %v2255, %v2495
      %v2528 = vadd.f32 %v2256, %v2496
      %v2529 = vadd.f32 %v2257, %v2497
      %v2530 = vadd.f32 %v2258, %v2498
      %v2531 = vadd.f32 %v2259, %v2499
      %v2532 = vadd.f32 %v2260, %v2500
      %v2533 = vadd.f32 %v2261, %v2501
      %v2534 = vadd.f32 %v2262, %v2502
      %v2535 = vadd.f32 %v2263, %v2503
      %v2536 = vadd.f32 %v2264, %v2504
      %v2537 = vadd.f32 %v2265, %v2505
      %v2538 = vadd.f32 %v2266, %v2506
      %v2539 = vadd.f32 %v2267, %v2507
      %v2540 = vadd.f32 %v2268, %v2508
      %v2541 = vadd.f32 %v2269, %v2509
      %v2542 = vadd.f32 %v2270, %v2510
      %v2543 = vadd.f32 %v2271, %v2511
      %v2544 = vadd.f32 %v2272, %v2512
      %v2545 = vadd.f32 %v2273, %v2513
      %v2546 = vadd.f32 %v2274, %v2514
      %v2547 = vadd.f32 %v2275, %v2515
      %v2548 = vadd.f32 %v2276, %v2516
      %v2549 = vadd.f32 %v2277, %v2517
      %v2550 = vadd.f32 %v2278, %v2518
      %v2551 = vadd.f32 %v2279, %v2519
      %v2552 = vadd.f32 %v2280, %v2520
      %v2553 = vadd.f32 %v2281, %v2521
      %v2554 = vadd.f32 %v2282, %v2522
      %v2555 = vadd.f32 %v2283, %v2523
      %v2556 = vld [vmem:[#allocation2 + $0x9] sm:$0xff]
      %v2557 = vld [vmem:[#allocation2 + $0x11] sm:$0xff]
      %v2558 = vld [vmem:[#allocation2 + $0x19] sm:$0xff]
      %v2559 = vld [vmem:[#allocation2 + $0x21] sm:$0xff]
      %v2560 = vld [vmem:[#allocation2 + $0x29] sm:$0xff]
      %v2561 = vld [vmem:[#allocation2 + $0x31] sm:$0xff]
      %v2562 = vld [vmem:[#allocation2 + $0x39] sm:$0xff]
      %v2563 = vld [vmem:[#allocation2 + $0x41] sm:$0xff]
      %v2564 = vld [vmem:[#allocation2 + $0x49] sm:$0xff]
      %v2565 = vld [vmem:[#allocation2 + $0x51] sm:$0xff]
      %v2566 = vld [vmem:[#allocation2 + $0x59] sm:$0xff]
      %v2567 = vld [vmem:[#allocation2 + $0x61] sm:$0xff]
      %v2568 = vld [vmem:[#allocation2 + $0x69] sm:$0xff]
      %v2569 = vld [vmem:[#allocation2 + $0x71] sm:$0xff]
      %v2570 = vld [vmem:[#allocation2 + $0x79] sm:$0xff]
      %v2571 = vld [vmem:[#allocation2 + $0x81] sm:$0xff]
      %v2572 = vld [vmem:[#allocation2 + $0x89] sm:$0xff]
      %v2573 = vld [vmem:[#allocation2 + $0x91] sm:$0xff]
      %v2574 = vld [vmem:[#allocation2 + $0x99] sm:$0xff]
      %v2575 = vld [vmem:[#allocation2 + $0xa1] sm:$0xff]
      %v2576 = vld [vmem:[#allocation2 + $0xa9] sm:$0xff]
      %v2577 = vld [vmem:[#allocation2 + $0xb1] sm:$0xff]
      %v2578 = vld [vmem:[#allocation2 + $0xb9] sm:$0xff]
      %v2579 = vld [vmem:[#allocation2 + $0xc1] sm:$0xff]
      %v2580 = vld [vmem:[#allocation2 + $0xc9] sm:$0xff]
      %v2581 = vld [vmem:[#allocation2 + $0xd1] sm:$0xff]
      %v2582 = vld [vmem:[#allocation2 + $0xd9] sm:$0xff]
      %v2583 = vld [vmem:[#allocation2 + $0xe1] sm:$0xff]
      %v2584 = vld [vmem:[#allocation2 + $0xe9] sm:$0xff]
      %v2585 = vld [vmem:[#allocation2 + $0xf1] sm:$0xff]
      %v2586 = vld [vmem:[#allocation2 + $0xf9] sm:$0xff]
      %v2587 = vld [vmem:[#allocation2 + $0x101] sm:$0xff]
      %v2588 = vlaneseq
      %v2589 = vshrl.u32 %v2588, 7
      %v2590 = vsub.s32 2, %v2589
      %v2591 = vrot.slane %v1882, %v2590
      %v2592 = vmul.f32 %v2556, %v2591
      %v2593 = vmul.f32 %v2557, %v2591
      %v2594 = vmul.f32 %v2558, %v2591
      %v2595 = vmul.f32 %v2559, %v2591
      %v2596 = vmul.f32 %v2560, %v2591
      %v2597 = vmul.f32 %v2561, %v2591
      %v2598 = vmul.f32 %v2562, %v2591
      %v2599 = vmul.f32 %v2563, %v2591
      %v2600 = vmul.f32 %v2564, %v2591
      %v2601 = vmul.f32 %v2565, %v2591
      %v2602 = vmul.f32 %v2566, %v2591
      %v2603 = vmul.f32 %v2567, %v2591
      %v2604 = vmul.f32 %v2568, %v2591
      %v2605 = vmul.f32 %v2569, %v2591
      %v2606 = vmul.f32 %v2570, %v2591
      %v2607 = vmul.f32 %v2571, %v2591
      %v2608 = vmul.f32 %v2572, %v2591
      %v2609 = vmul.f32 %v2573, %v2591
      %v2610 = vmul.f32 %v2574, %v2591
      %v2611 = vmul.f32 %v2575, %v2591
      %v2612 = vmul.f32 %v2576, %v2591
      %v2613 = vmul.f32 %v2577, %v2591
      %v2614 = vmul.f32 %v2578, %v2591
      %v2615 = vmul.f32 %v2579, %v2591
      %v2616 = vmul.f32 %v2580, %v2591
      %v2617 = vmul.f32 %v2581, %v2591
      %v2618 = vmul.f32 %v2582, %v2591
      %v2619 = vmul.f32 %v2583, %v2591
      %v2620 = vmul.f32 %v2584, %v2591
      %v2621 = vmul.f32 %v2585, %v2591
      %v2622 = vmul.f32 %v2586, %v2591
      %v2623 = vmul.f32 %v2587, %v2591
      %v2624 = vadd.f32 %v2592, 0.0
      %v2625 = vadd.f32 %v2593, 0.0
      %v2626 = vadd.f32 %v2594, 0.0
      %v2627 = vadd.f32 %v2595, 0.0
      %v2628 = vadd.f32 %v2596, 0.0
      %v2629 = vadd.f32 %v2597, 0.0
      %v2630 = vadd.f32 %v2598, 0.0
      %v2631 = vadd.f32 %v2599, 0.0
      %v2632 = vadd.f32 %v2600, 0.0
      %v2633 = vadd.f32 %v2601, 0.0
      %v2634 = vadd.f32 %v2602, 0.0
      %v2635 = vadd.f32 %v2603, 0.0
      %v2636 = vadd.f32 %v2604, 0.0
      %v2637 = vadd.f32 %v2605, 0.0
      %v2638 = vadd.f32 %v2606, 0.0
      %v2639 = vadd.f32 %v2607, 0.0
      %v2640 = vadd.f32 %v2608, 0.0
      %v2641 = vadd.f32 %v2609, 0.0
      %v2642 = vadd.f32 %v2610, 0.0
      %v2643 = vadd.f32 %v2611, 0.0
      %v2644 = vadd.f32 %v2612, 0.0
      %v2645 = vadd.f32 %v2613, 0.0
      %v2646 = vadd.f32 %v2614, 0.0
      %v2647 = vadd.f32 %v2615, 0.0
      %v2648 = vadd.f32 %v2616, 0.0
      %v2649 = vadd.f32 %v2617, 0.0
      %v2650 = vadd.f32 %v2618, 0.0
      %v2651 = vadd.f32 %v2619, 0.0
      %v2652 = vadd.f32 %v2620, 0.0
      %v2653 = vadd.f32 %v2621, 0.0
      %v2654 = vadd.f32 %v2622, 0.0
      %v2655 = vadd.f32 %v2623, 0.0
      %v2656 = vld [vmem:[#allocation2 + $0x109] sm:$0xff]
      %v2657 = vld [vmem:[#allocation2 + $0x111] sm:$0xff]
      %v2658 = vlaneseq
      %v2659 = vshrl.u32 %v2658, 7
      %v2660 = vsub.s32 5, %v2659
      %v2661 = vrot.slane %v1882, %v2660
      %v2662 = vmul.f32 %v2558, %v2661
      %v2663 = vmul.f32 %v2559, %v2661
      %v2664 = vmul.f32 %v2560, %v2661
      %v2665 = vmul.f32 %v2561, %v2661
      %v2666 = vmul.f32 %v2562, %v2661
      %v2667 = vmul.f32 %v2563, %v2661
      %v2668 = vmul.f32 %v2564, %v2661
      %v2669 = vmul.f32 %v2565, %v2661
      %v2670 = vmul.f32 %v2566, %v2661
      %v2671 = vmul.f32 %v2567, %v2661
      %v2672 = vmul.f32 %v2568, %v2661
      %v2673 = vmul.f32 %v2569, %v2661
      %v2674 = vmul.f32 %v2570, %v2661
      %v2675 = vmul.f32 %v2571, %v2661
      %v2676 = vmul.f32 %v2572, %v2661
      %v2677 = vmul.f32 %v2573, %v2661
      %v2678 = vmul.f32 %v2574, %v2661
      %v2679 = vmul.f32 %v2575, %v2661
      %v2680 = vmul.f32 %v2576, %v2661
      %v2681 = vmul.f32 %v2577, %v2661
      %v2682 = vmul.f32 %v2578, %v2661
      %v2683 = vmul.f32 %v2579, %v2661
      %v2684 = vmul.f32 %v2580, %v2661
      %v2685 = vmul.f32 %v2581, %v2661
      %v2686 = vmul.f32 %v2582, %v2661
      %v2687 = vmul.f32 %v2583, %v2661
      %v2688 = vmul.f32 %v2584, %v2661
      %v2689 = vmul.f32 %v2585, %v2661
      %v2690 = vmul.f32 %v2586, %v2661
      %v2691 = vmul.f32 %v2587, %v2661
      %v2692 = vmul.f32 %v2656, %v2661
      %v2693 = vmul.f32 %v2657, %v2661
      %v2694 = vadd.f32 %v2624, %v2662
      %v2695 = vadd.f32 %v2625, %v2663
      %v2696 = vadd.f32 %v2626, %v2664
      %v2697 = vadd.f32 %v2627, %v2665
      %v2698 = vadd.f32 %v2628, %v2666
      %v2699 = vadd.f32 %v2629, %v2667
      %v2700 = vadd.f32 %v2630, %v2668
      %v2701 = vadd.f32 %v2631, %v2669
      %v2702 = vadd.f32 %v2632, %v2670
      %v2703 = vadd.f32 %v2633, %v2671
      %v2704 = vadd.f32 %v2634, %v2672
      %v2705 = vadd.f32 %v2635, %v2673
      %v2706 = vadd.f32 %v2636, %v2674
      %v2707 = vadd.f32 %v2637, %v2675
      %v2708 = vadd.f32 %v2638, %v2676
      %v2709 = vadd.f32 %v2639, %v2677
      %v2710 = vadd.f32 %v2640, %v2678
      %v2711 = vadd.f32 %v2641, %v2679
      %v2712 = vadd.f32 %v2642, %v2680
      %v2713 = vadd.f32 %v2643, %v2681
      %v2714 = vadd.f32 %v2644, %v2682
      %v2715 = vadd.f32 %v2645, %v2683
      %v2716 = vadd.f32 %v2646, %v2684
      %v2717 = vadd.f32 %v2647, %v2685
      %v2718 = vadd.f32 %v2648, %v2686
      %v2719 = vadd.f32 %v2649, %v2687
      %v2720 = vadd.f32 %v2650, %v2688
      %v2721 = vadd.f32 %v2651, %v2689
      %v2722 = vadd.f32 %v2652, %v2690
      %v2723 = vadd.f32 %v2653, %v2691
      %v2724 = vadd.f32 %v2654, %v2692
      %v2725 = vadd.f32 %v2655, %v2693
      %v2726 = vld [vmem:[#allocation2 + $0x119] sm:$0xff]
      %v2727 = vld [vmem:[#allocation2 + $0x121] sm:$0xff]
      %v2728 = vlaneseq
      %v2729 = vshrl.u32 %v2728, 7
      %v2730 = vsub.s32 0, %v2729
      %v2731 = vrot.slane %v1883, %v2730
      %v2732 = vmul.f32 %v2560, %v2731
      %v2733 = vmul.f32 %v2561, %v2731
      %v2734 = vmul.f32 %v2562, %v2731
      %v2735 = vmul.f32 %v2563, %v2731
      %v2736 = vmul.f32 %v2564, %v2731
      %v2737 = vmul.f32 %v2565, %v2731
      %v2738 = vmul.f32 %v2566, %v2731
      %v2739 = vmul.f32 %v2567, %v2731
      %v2740 = vmul.f32 %v2568, %v2731
      %v2741 = vmul.f32 %v2569, %v2731
      %v2742 = vmul.f32 %v2570, %v2731
      %v2743 = vmul.f32 %v2571, %v2731
      %v2744 = vmul.f32 %v2572, %v2731
      %v2745 = vmul.f32 %v2573, %v2731
      %v2746 = vmul.f32 %v2574, %v2731
      %v2747 = vmul.f32 %v2575, %v2731
      %v2748 = vmul.f32 %v2576, %v2731
      %v2749 = vmul.f32 %v2577, %v2731
      %v2750 = vmul.f32 %v2578, %v2731
      %v2751 = vmul.f32 %v2579, %v2731
      %v2752 = vmul.f32 %v2580, %v2731
      %v2753 = vmul.f32 %v2581, %v2731
      %v2754 = vmul.f32 %v2582, %v2731
      %v2755 = vmul.f32 %v2583, %v2731
      %v2756 = vmul.f32 %v2584, %v2731
      %v2757 = vmul.f32 %v2585, %v2731
      %v2758 = vmul.f32 %v2586, %v2731
      %v2759 = vmul.f32 %v2587, %v2731
      %v2760 = vmul.f32 %v2656, %v2731
      %v2761 = vmul.f32 %v2657, %v2731
      %v2762 = vmul.f32 %v2726, %v2731
      %v2763 = vmul.f32 %v2727, %v2731
      %v2764 = vadd.f32 %v2694, %v2732
      %v2765 = vadd.f32 %v2695, %v2733
      %v2766 = vadd.f32 %v2696, %v2734
      %v2767 = vadd.f32 %v2697, %v2735
      %v2768 = vadd.f32 %v2698, %v2736
      %v2769 = vadd.f32 %v2699, %v2737
      %v2770 = vadd.f32 %v2700, %v2738
      %v2771 = vadd.f32 %v2701, %v2739
      %v2772 = vadd.f32 %v2702, %v2740
      %v2773 = vadd.f32 %v2703, %v2741
      %v2774 = vadd.f32 %v2704, %v2742
      %v2775 = vadd.f32 %v2705, %v2743
      %v2776 = vadd.f32 %v2706, %v2744
      %v2777 = vadd.f32 %v2707, %v2745
      %v2778 = vadd.f32 %v2708, %v2746
      %v2779 = vadd.f32 %v2709, %v2747
      %v2780 = vadd.f32 %v2710, %v2748
      %v2781 = vadd.f32 %v2711, %v2749
      %v2782 = vadd.f32 %v2712, %v2750
      %v2783 = vadd.f32 %v2713, %v2751
      %v2784 = vadd.f32 %v2714, %v2752
      %v2785 = vadd.f32 %v2715, %v2753
      %v2786 = vadd.f32 %v2716, %v2754
      %v2787 = vadd.f32 %v2717, %v2755
      %v2788 = vadd.f32 %v2718, %v2756
      %v2789 = vadd.f32 %v2719, %v2757
      %v2790 = vadd.f32 %v2720, %v2758
      %v2791 = vadd.f32 %v2721, %v2759
      %v2792 = vadd.f32 %v2722, %v2760
      %v2793 = vadd.f32 %v2723, %v2761
      %v2794 = vadd.f32 %v2724, %v2762
      %v2795 = vadd.f32 %v2725, %v2763
      %vm2796 = vcmp.lt.s32.totalorder %v1850, 15
      %vm2797 = vcmp.lt.s32.totalorder %v1851, 15
      %vm2798 = vcmp.lt.s32.totalorder %v1852, 15
      %vm2799 = vcmp.lt.s32.totalorder %v1853, 15
      %vm2800 = vcmp.lt.s32.totalorder %v1854, 15
      %vm2801 = vcmp.lt.s32.totalorder %v1855, 15
      %vm2802 = vcmp.lt.s32.totalorder %v1856, 15
      %vm2803 = vcmp.lt.s32.totalorder %v1857, 15
      %vm2804 = vcmp.lt.s32.totalorder %v1858, 15
      %vm2805 = vcmp.lt.s32.totalorder %v1859, 15
      %vm2806 = vcmp.lt.s32.totalorder %v1860, 15
      %vm2807 = vcmp.lt.s32.totalorder %v1861, 15
      %vm2808 = vcmp.lt.s32.totalorder %v1862, 15
      %vm2809 = vcmp.lt.s32.totalorder %v1863, 15
      %vm2810 = vcmp.lt.s32.totalorder %v1864, 15
      %vm2811 = vcmp.lt.s32.totalorder %v1865, 15
      %vm2812 = vcmp.lt.s32.totalorder %v1866, 15
      %vm2813 = vcmp.lt.s32.totalorder %v1867, 15
      %vm2814 = vcmp.lt.s32.totalorder %v1868, 15
      %vm2815 = vcmp.lt.s32.totalorder %v1869, 15
      %vm2816 = vcmp.lt.s32.totalorder %v1870, 15
      %vm2817 = vcmp.lt.s32.totalorder %v1871, 15
      %vm2818 = vcmp.lt.s32.totalorder %v1872, 15
      %vm2819 = vcmp.lt.s32.totalorder %v1873, 15
      %vm2820 = vcmp.lt.s32.totalorder %v1874, 15
      %vm2821 = vcmp.lt.s32.totalorder %v1875, 15
      %vm2822 = vcmp.lt.s32.totalorder %v1876, 15
      %vm2823 = vcmp.lt.s32.totalorder %v1877, 15
      %vm2824 = vcmp.lt.s32.totalorder %v1878, 15
      %vm2825 = vcmp.lt.s32.totalorder %v1879, 15
      %vm2826 = vcmp.lt.s32.totalorder %v1880, 15
      %vm2827 = vcmp.lt.s32.totalorder %v1881, 15
      %v2828 = vsel %vm2796, 1, 0
      %v2829 = vsel %vm2797, 1, 0
      %v2830 = vsel %vm2798, 1, 0
      %v2831 = vsel %vm2799, 1, 0
      %v2832 = vsel %vm2800, 1, 0
      %v2833 = vsel %vm2801, 1, 0
      %v2834 = vsel %vm2802, 1, 0
      %v2835 = vsel %vm2803, 1, 0
      %v2836 = vsel %vm2804, 1, 0
      %v2837 = vsel %vm2805, 1, 0
      %v2838 = vsel %vm2806, 1, 0
      %v2839 = vsel %vm2807, 1, 0
      %v2840 = vsel %vm2808, 1, 0
      %v2841 = vsel %vm2809, 1, 0
      %v2842 = vsel %vm2810, 1, 0
      %v2843 = vsel %vm2811, 1, 0
      %v2844 = vsel %vm2812, 1, 0
      %v2845 = vsel %vm2813, 1, 0
      %v2846 = vsel %vm2814, 1, 0
      %v2847 = vsel %vm2815, 1, 0
      %v2848 = vsel %vm2816, 1, 0
      %v2849 = vsel %vm2817, 1, 0
      %v2850 = vsel %vm2818, 1, 0
      %v2851 = vsel %vm2819, 1, 0
      %v2852 = vsel %vm2820, 1, 0
      %v2853 = vsel %vm2821, 1, 0
      %v2854 = vsel %vm2822, 1, 0
      %v2855 = vsel %vm2823, 1, 0
      %v2856 = vsel %vm2824, 1, 0
      %v2857 = vsel %vm2825, 1, 0
      %v2858 = vsel %vm2826, 1, 0
      %v2859 = vsel %vm2827, 1, 0
      %vm2860 = vcmp.eq.s32.totalorder %v2828, 1
      %vm2861 = vcmp.eq.s32.totalorder %v2829, 1
      %vm2862 = vcmp.eq.s32.totalorder %v2830, 1
      %vm2863 = vcmp.eq.s32.totalorder %v2831, 1
      %vm2864 = vcmp.eq.s32.totalorder %v2832, 1
      %vm2865 = vcmp.eq.s32.totalorder %v2833, 1
      %vm2866 = vcmp.eq.s32.totalorder %v2834, 1
      %vm2867 = vcmp.eq.s32.totalorder %v2835, 1
      %vm2868 = vcmp.eq.s32.totalorder %v2836, 1
      %vm2869 = vcmp.eq.s32.totalorder %v2837, 1
      %vm2870 = vcmp.eq.s32.totalorder %v2838, 1
      %vm2871 = vcmp.eq.s32.totalorder %v2839, 1
      %vm2872 = vcmp.eq.s32.totalorder %v2840, 1
      %vm2873 = vcmp.eq.s32.totalorder %v2841, 1
      %vm2874 = vcmp.eq.s32.totalorder %v2842, 1
      %vm2875 = vcmp.eq.s32.totalorder %v2843, 1
      %vm2876 = vcmp.eq.s32.totalorder %v2844, 1
      %vm2877 = vcmp.eq.s32.totalorder %v2845, 1
      %vm2878 = vcmp.eq.s32.totalorder %v2846, 1
      %vm2879 = vcmp.eq.s32.totalorder %v2847, 1
      %vm2880 = vcmp.eq.s32.totalorder %v2848, 1
      %vm2881 = vcmp.eq.s32.totalorder %v2849, 1
      %vm2882 = vcmp.eq.s32.totalorder %v2850, 1
      %vm2883 = vcmp.eq.s32.totalorder %v2851, 1
      %vm2884 = vcmp.eq.s32.totalorder %v2852, 1
      %vm2885 = vcmp.eq.s32.totalorder %v2853, 1
      %vm2886 = vcmp.eq.s32.totalorder %v2854, 1
      %vm2887 = vcmp.eq.s32.totalorder %v2855, 1
      %vm2888 = vcmp.eq.s32.totalorder %v2856, 1
      %vm2889 = vcmp.eq.s32.totalorder %v2857, 1
      %vm2890 = vcmp.eq.s32.totalorder %v2858, 1
      %vm2891 = vcmp.eq.s32.totalorder %v2859, 1
      %v2892 = vsel %vm2860, %v2764, 0.0
      %v2893 = vsel %vm2861, %v2765, 0.0
      %v2894 = vsel %vm2862, %v2766, 0.0
      %v2895 = vsel %vm2863, %v2767, 0.0
      %v2896 = vsel %vm2864, %v2768, 0.0
      %v2897 = vsel %vm2865, %v2769, 0.0
      %v2898 = vsel %vm2866, %v2770, 0.0
      %v2899 = vsel %vm2867, %v2771, 0.0
      %v2900 = vsel %vm2868, %v2772, 0.0
      %v2901 = vsel %vm2869, %v2773, 0.0
      %v2902 = vsel %vm2870, %v2774, 0.0
      %v2903 = vsel %vm2871, %v2775, 0.0
      %v2904 = vsel %vm2872, %v2776, 0.0
      %v2905 = vsel %vm2873, %v2777, 0.0
      %v2906 = vsel %vm2874, %v2778, 0.0
      %v2907 = vsel %vm2875, %v2779, 0.0
      %v2908 = vsel %vm2876, %v2780, 0.0
      %v2909 = vsel %vm2877, %v2781, 0.0
      %v2910 = vsel %vm2878, %v2782, 0.0
      %v2911 = vsel %vm2879, %v2783, 0.0
      %v2912 = vsel %vm2880, %v2784, 0.0
      %v2913 = vsel %vm2881, %v2785, 0.0
      %v2914 = vsel %vm2882, %v2786, 0.0
      %v2915 = vsel %vm2883, %v2787, 0.0
      %v2916 = vsel %vm2884, %v2788, 0.0
      %v2917 = vsel %vm2885, %v2789, 0.0
      %v2918 = vsel %vm2886, %v2790, 0.0
      %v2919 = vsel %vm2887, %v2791, 0.0
      %v2920 = vsel %vm2888, %v2792, 0.0
      %v2921 = vsel %vm2889, %v2793, 0.0
      %v2922 = vsel %vm2890, %v2794, 0.0
      %v2923 = vsel %vm2891, %v2795, 0.0
      %v2924 = vadd.f32 %v2524, %v2892
      %v2925 = vadd.f32 %v2525, %v2893
      %v2926 = vadd.f32 %v2526, %v2894
      %v2927 = vadd.f32 %v2527, %v2895
      %v2928 = vadd.f32 %v2528, %v2896
      %v2929 = vadd.f32 %v2529, %v2897
      %v2930 = vadd.f32 %v2530, %v2898
      %v2931 = vadd.f32 %v2531, %v2899
      %v2932 = vadd.f32 %v2532, %v2900
      %v2933 = vadd.f32 %v2533, %v2901
      %v2934 = vadd.f32 %v2534, %v2902
      %v2935 = vadd.f32 %v2535, %v2903
      %v2936 = vadd.f32 %v2536, %v2904
      %v2937 = vadd.f32 %v2537, %v2905
      %v2938 = vadd.f32 %v2538, %v2906
      %v2939 = vadd.f32 %v2539, %v2907
      %v2940 = vadd.f32 %v2540, %v2908
      %v2941 = vadd.f32 %v2541, %v2909
      %v2942 = vadd.f32 %v2542, %v2910
      %v2943 = vadd.f32 %v2543, %v2911
      %v2944 = vadd.f32 %v2544, %v2912
      %v2945 = vadd.f32 %v2545, %v2913
      %v2946 = vadd.f32 %v2546, %v2914
      %v2947 = vadd.f32 %v2547, %v2915
      %v2948 = vadd.f32 %v2548, %v2916
      %v2949 = vadd.f32 %v2549, %v2917
      %v2950 = vadd.f32 %v2550, %v2918
      %v2951 = vadd.f32 %v2551, %v2919
      %v2952 = vadd.f32 %v2552, %v2920
      %v2953 = vadd.f32 %v2553, %v2921
      %v2954 = vadd.f32 %v2554, %v2922
      %v2955 = vadd.f32 %v2555, %v2923
      %v2956 = vmul.f32 %v2924, 0.5
      %v2957 = vmul.f32 %v2925, 0.5
      %v2958 = vmul.f32 %v2926, 0.5
      %v2959 = vmul.f32 %v2927, 0.5
      %v2960 = vmul.f32 %v2928, 0.5
      %v2961 = vmul.f32 %v2929, 0.5
      %v2962 = vmul.f32 %v2930, 0.5
      %v2963 = vmul.f32 %v2931, 0.5
      %v2964 = vmul.f32 %v2932, 0.5
      %v2965 = vmul.f32 %v2933, 0.5
      %v2966 = vmul.f32 %v2934, 0.5
      %v2967 = vmul.f32 %v2935, 0.5
      %v2968 = vmul.f32 %v2936, 0.5
      %v2969 = vmul.f32 %v2937, 0.5
      %v2970 = vmul.f32 %v2938, 0.5
      %v2971 = vmul.f32 %v2939, 0.5
      %v2972 = vmul.f32 %v2940, 0.5
      %v2973 = vmul.f32 %v2941, 0.5
      %v2974 = vmul.f32 %v2942, 0.5
      %v2975 = vmul.f32 %v2943, 0.5
      %v2976 = vmul.f32 %v2944, 0.5
      %v2977 = vmul.f32 %v2945, 0.5
      %v2978 = vmul.f32 %v2946, 0.5
      %v2979 = vmul.f32 %v2947, 0.5
      %v2980 = vmul.f32 %v2948, 0.5
      %v2981 = vmul.f32 %v2949, 0.5
      %v2982 = vmul.f32 %v2950, 0.5
      %v2983 = vmul.f32 %v2951, 0.5
      %v2984 = vmul.f32 %v2952, 0.5
      %v2985 = vmul.f32 %v2953, 0.5
      %v2986 = vmul.f32 %v2954, 0.5
      %v2987 = vmul.f32 %v2955, 0.5
      %v2988 = vmul.f32 %v2924, 0.70710677
      %v2989 = vmul.f32 %v2925, 0.70710677
      %v2990 = vmul.f32 %v2926, 0.70710677
      %v2991 = vmul.f32 %v2927, 0.70710677
      %v2992 = vmul.f32 %v2928, 0.70710677
      %v2993 = vmul.f32 %v2929, 0.70710677
      %v2994 = vmul.f32 %v2930, 0.70710677
      %v2995 = vmul.f32 %v2931, 0.70710677
      %v2996 = vmul.f32 %v2932, 0.70710677
      %v2997 = vmul.f32 %v2933, 0.70710677
      %v2998 = vmul.f32 %v2934, 0.70710677
      %v2999 = vmul.f32 %v2935, 0.70710677
      %v3000 = vmul.f32 %v2936, 0.70710677
      %v3001 = vmul.f32 %v2937, 0.70710677
      %v3002 = vmul.f32 %v2938, 0.70710677
      %v3003 = vmul.f32 %v2939, 0.70710677
      %v3004 = vmul.f32 %v2940, 0.70710677
      %v3005 = vmul.f32 %v2941, 0.70710677
      %v3006 = vmul.f32 %v2942, 0.70710677
      %v3007 = vmul.f32 %v2943, 0.70710677
      %v3008 = vmul.f32 %v2944, 0.70710677
      %v3009 = vmul.f32 %v2945, 0.70710677
      %v3010 = vmul.f32 %v2946, 0.70710677
      %v3011 = vmul.f32 %v2947, 0.70710677
      %v3012 = vmul.f32 %v2948, 0.70710677
      %v3013 = vmul.f32 %v2949, 0.70710677
      %v3014 = vmul.f32 %v2950, 0.70710677
      %v3015 = vmul.f32 %v2951, 0.70710677
      %v3016 = vmul.f32 %v2952, 0.70710677
      %v3017 = vmul.f32 %v2953, 0.70710677
      %v3018 = vmul.f32 %v2954, 0.70710677
      %v3019 = vmul.f32 %v2955, 0.70710677
      %vm3020 = vcmp.ge.f32.partialorder %v2988, 0.0
      %vm3021 = vcmp.ge.f32.partialorder %v2989, 0.0
      %vm3022 = vcmp.ge.f32.partialorder %v2990, 0.0
      %vm3023 = vcmp.ge.f32.partialorder %v2991, 0.0
      %vm3024 = vcmp.ge.f32.partialorder %v2992, 0.0
      %vm3025 = vcmp.ge.f32.partialorder %v2993, 0.0
      %vm3026 = vcmp.ge.f32.partialorder %v2994, 0.0
      %vm3027 = vcmp.ge.f32.partialorder %v2995, 0.0
      %vm3028 = vcmp.ge.f32.partialorder %v2996, 0.0
      %vm3029 = vcmp.ge.f32.partialorder %v2997, 0.0
      %vm3030 = vcmp.ge.f32.partialorder %v2998, 0.0
      %vm3031 = vcmp.ge.f32.partialorder %v2999, 0.0
      %vm3032 = vcmp.ge.f32.partialorder %v3000, 0.0
      %vm3033 = vcmp.ge.f32.partialorder %v3001, 0.0
      %vm3034 = vcmp.ge.f32.partialorder %v3002, 0.0
      %vm3035 = vcmp.ge.f32.partialorder %v3003, 0.0
      %vm3036 = vcmp.ge.f32.partialorder %v3004, 0.0
      %vm3037 = vcmp.ge.f32.partialorder %v3005, 0.0
      %vm3038 = vcmp.ge.f32.partialorder %v3006, 0.0
      %vm3039 = vcmp.ge.f32.partialorder %v3007, 0.0
      %vm3040 = vcmp.ge.f32.partialorder %v3008, 0.0
      %vm3041 = vcmp.ge.f32.partialorder %v3009, 0.0
      %vm3042 = vcmp.ge.f32.partialorder %v3010, 0.0
      %vm3043 = vcmp.ge.f32.partialorder %v3011, 0.0
      %vm3044 = vcmp.ge.f32.partialorder %v3012, 0.0
      %vm3045 = vcmp.ge.f32.partialorder %v3013, 0.0
      %vm3046 = vcmp.ge.f32.partialorder %v3014, 0.0
      %vm3047 = vcmp.ge.f32.partialorder %v3015, 0.0
      %vm3048 = vcmp.ge.f32.partialorder %v3016, 0.0
      %vm3049 = vcmp.ge.f32.partialorder %v3017, 0.0
      %vm3050 = vcmp.ge.f32.partialorder %v3018, 0.0
      %vm3051 = vcmp.ge.f32.partialorder %v3019, 0.0
      %v3052 = vsel %vm3020, 1.0, -1.0
      %v3053 = vsel %vm3021, 1.0, -1.0
      %v3054 = vsel %vm3022, 1.0, -1.0
      %v3055 = vsel %vm3023, 1.0, -1.0
      %v3056 = vsel %vm3024, 1.0, -1.0
      %v3057 = vsel %vm3025, 1.0, -1.0
      %v3058 = vsel %vm3026, 1.0, -1.0
      %v3059 = vsel %vm3027, 1.0, -1.0
      %v3060 = vsel %vm3028, 1.0, -1.0
      %v3061 = vsel %vm3029, 1.0, -1.0
      %v3062 = vsel %vm3030, 1.0, -1.0
      %v3063 = vsel %vm3031, 1.0, -1.0
      %v3064 = vsel %vm3032, 1.0, -1.0
      %v3065 = vsel %vm3033, 1.0, -1.0
      %v3066 = vsel %vm3034, 1.0, -1.0
      %v3067 = vsel %vm3035, 1.0, -1.0
      %v3068 = vsel %vm3036, 1.0, -1.0
      %v3069 = vsel %vm3037, 1.0, -1.0
      %v3070 = vsel %vm3038, 1.0, -1.0
      %v3071 = vsel %vm3039, 1.0, -1.0
      %v3072 = vsel %vm3040, 1.0, -1.0
      %v3073 = vsel %vm3041, 1.0, -1.0
      %v3074 = vsel %vm3042, 1.0, -1.0
      %v3075 = vsel %vm3043, 1.0, -1.0
      %v3076 = vsel %vm3044, 1.0, -1.0
      %v3077 = vsel %vm3045, 1.0, -1.0
      %v3078 = vsel %vm3046, 1.0, -1.0
      %v3079 = vsel %vm3047, 1.0, -1.0
      %v3080 = vsel %vm3048, 1.0, -1.0
      %v3081 = vsel %vm3049, 1.0, -1.0
      %v3082 = vsel %vm3050, 1.0, -1.0
      %v3083 = vsel %vm3051, 1.0, -1.0
      %v3084 = vand.u32 2147483647, %v2988
      %v3085 = vand.u32 2147483647, %v2989
      %v3086 = vand.u32 2147483647, %v2990
      %v3087 = vand.u32 2147483647, %v2991
      %v3088 = vand.u32 2147483647, %v2992
      %v3089 = vand.u32 2147483647, %v2993
      %v3090 = vand.u32 2147483647, %v2994
      %v3091 = vand.u32 2147483647, %v2995
      %v3092 = vand.u32 2147483647, %v2996
      %v3093 = vand.u32 2147483647, %v2997
      %v3094 = vand.u32 2147483647, %v2998
      %v3095 = vand.u32 2147483647, %v2999
      %v3096 = vand.u32 2147483647, %v3000
      %v3097 = vand.u32 2147483647, %v3001
      %v3098 = vand.u32 2147483647, %v3002
      %v3099 = vand.u32 2147483647, %v3003
      %v3100 = vand.u32 2147483647, %v3004
      %v3101 = vand.u32 2147483647, %v3005
      %v3102 = vand.u32 2147483647, %v3006
      %v3103 = vand.u32 2147483647, %v3007
      %v3104 = vand.u32 2147483647, %v3008
      %v3105 = vand.u32 2147483647, %v3009
      %v3106 = vand.u32 2147483647, %v3010
      %v3107 = vand.u32 2147483647, %v3011
      %v3108 = vand.u32 2147483647, %v3012
      %v3109 = vand.u32 2147483647, %v3013
      %v3110 = vand.u32 2147483647, %v3014
      %v3111 = vand.u32 2147483647, %v3015
      %v3112 = vand.u32 2147483647, %v3016
      %v3113 = vand.u32 2147483647, %v3017
      %v3114 = vand.u32 2147483647, %v3018
      %v3115 = vand.u32 2147483647, %v3019
      %v3116 = vmul.f32 %v3084, 0.3275911
      %v3117 = vmul.f32 %v3085, 0.3275911
      %v3118 = vmul.f32 %v3086, 0.3275911
      %v3119 = vmul.f32 %v3087, 0.3275911
      %v3120 = vmul.f32 %v3088, 0.3275911
      %v3121 = vmul.f32 %v3089, 0.3275911
      %v3122 = vmul.f32 %v3090, 0.3275911
      %v3123 = vmul.f32 %v3091, 0.3275911
      %v3124 = vmul.f32 %v3092, 0.3275911
      %v3125 = vmul.f32 %v3093, 0.3275911
      %v3126 = vmul.f32 %v3094, 0.3275911
      %v3127 = vmul.f32 %v3095, 0.3275911
      %v3128 = vmul.f32 %v3096, 0.3275911
      %v3129 = vmul.f32 %v3097, 0.3275911
      %v3130 = vmul.f32 %v3098, 0.3275911
      %v3131 = vmul.f32 %v3099, 0.3275911
      %v3132 = vmul.f32 %v3100, 0.3275911
      %v3133 = vmul.f32 %v3101, 0.3275911
      %v3134 = vmul.f32 %v3102, 0.3275911
      %v3135 = vmul.f32 %v3103, 0.3275911
      %v3136 = vmul.f32 %v3104, 0.3275911
      %v3137 = vmul.f32 %v3105, 0.3275911
      %v3138 = vmul.f32 %v3106, 0.3275911
      %v3139 = vmul.f32 %v3107, 0.3275911
      %v3140 = vmul.f32 %v3108, 0.3275911
      %v3141 = vmul.f32 %v3109, 0.3275911
      %v3142 = vmul.f32 %v3110, 0.3275911
      %v3143 = vmul.f32 %v3111, 0.3275911
      %v3144 = vmul.f32 %v3112, 0.3275911
      %v3145 = vmul.f32 %v3113, 0.3275911
      %v3146 = vmul.f32 %v3114, 0.3275911
      %v3147 = vmul.f32 %v3115, 0.3275911
      %v3148 = vadd.f32 %v3116, 1.0
      %v3149 = vadd.f32 %v3117, 1.0
      %v3150 = vadd.f32 %v3118, 1.0
      %v3151 = vadd.f32 %v3119, 1.0
      %v3152 = vadd.f32 %v3120, 1.0
      %v3153 = vadd.f32 %v3121, 1.0
      %v3154 = vadd.f32 %v3122, 1.0
      %v3155 = vadd.f32 %v3123, 1.0
      %v3156 = vadd.f32 %v3124, 1.0
      %v3157 = vadd.f32 %v3125, 1.0
      %v3158 = vadd.f32 %v3126, 1.0
      %v3159 = vadd.f32 %v3127, 1.0
      %v3160 = vadd.f32 %v3128, 1.0
      %v3161 = vadd.f32 %v3129, 1.0
      %v3162 = vadd.f32 %v3130, 1.0
      %v3163 = vadd.f32 %v3131, 1.0
      %v3164 = vadd.f32 %v3132, 1.0
      %v3165 = vadd.f32 %v3133, 1.0
      %v3166 = vadd.f32 %v3134, 1.0
      %v3167 = vadd.f32 %v3135, 1.0
      %v3168 = vadd.f32 %v3136, 1.0
      %v3169 = vadd.f32 %v3137, 1.0
      %v3170 = vadd.f32 %v3138, 1.0
      %v3171 = vadd.f32 %v3139, 1.0
      %v3172 = vadd.f32 %v3140, 1.0
      %v3173 = vadd.f32 %v3141, 1.0
      %v3174 = vadd.f32 %v3142, 1.0
      %v3175 = vadd.f32 %v3143, 1.0
      %v3176 = vadd.f32 %v3144, 1.0
      %v3177 = vadd.f32 %v3145, 1.0
      %v3178 = vadd.f32 %v3146, 1.0
      %v3179 = vadd.f32 %v3147, 1.0
      %v3180 = vrcp.pop %v3148
      %v3181 = vmul.f32 1.0, %v3180
      %v3182 = vrcp.pop %v3149
      %v3183 = vmul.f32 1.0, %v3182
      %v3184 = vrcp.pop %v3150
      %v3185 = vmul.f32 1.0, %v3184
      %v3186 = vrcp.pop %v3151
      %v3187 = vmul.f32 1.0, %v3186
      %v3188 = vrcp.pop %v3152
      %v3189 = vmul.f32 1.0, %v3188
      %v3190 = vrcp.pop %v3153
      %v3191 = vmul.f32 1.0, %v3190
      %v3192 = vrcp.pop %v3154
      %v3193 = vmul.f32 1.0, %v3192
      %v3194 = vrcp.pop %v3155
      %v3195 = vmul.f32 1.0, %v3194
      %v3196 = vrcp.pop %v3156
      %v3197 = vmul.f32 1.0, %v3196
      %v3198 = vrcp.pop %v3157
      %v3199 = vmul.f32 1.0, %v3198
      %v3200 = vrcp.pop %v3158
      %v3201 = vmul.f32 1.0, %v3200
      %v3202 = vrcp.pop %v3159
      %v3203 = vmul.f32 1.0, %v3202
      %v3204 = vrcp.pop %v3160
      %v3205 = vmul.f32 1.0, %v3204
      %v3206 = vrcp.pop %v3161
      %v3207 = vmul.f32 1.0, %v3206
      %v3208 = vrcp.pop %v3162
      %v3209 = vmul.f32 1.0, %v3208
      %v3210 = vrcp.pop %v3163
      %v3211 = vmul.f32 1.0, %v3210
      %v3212 = vrcp.pop %v3164
      %v3213 = vmul.f32 1.0, %v3212
      %v3214 = vrcp.pop %v3165
      %v3215 = vmul.f32 1.0, %v3214
      %v3216 = vrcp.pop %v3166
      %v3217 = vmul.f32 1.0, %v3216
      %v3218 = vrcp.pop %v3167
      %v3219 = vmul.f32 1.0, %v3218
      %v3220 = vrcp.pop %v3168
      %v3221 = vmul.f32 1.0, %v3220
      %v3222 = vrcp.pop %v3169
      %v3223 = vmul.f32 1.0, %v3222
      %v3224 = vrcp.pop %v3170
      %v3225 = vmul.f32 1.0, %v3224
      %v3226 = vrcp.pop %v3171
      %v3227 = vmul.f32 1.0, %v3226
      %v3228 = vrcp.pop %v3172
      %v3229 = vmul.f32 1.0, %v3228
      %v3230 = vrcp.pop %v3173
      %v3231 = vmul.f32 1.0, %v3230
      %v3232 = vrcp.pop %v3174
      %v3233 = vmul.f32 1.0, %v3232
      %v3234 = vrcp.pop %v3175
      %v3235 = vmul.f32 1.0, %v3234
      %v3236 = vrcp.pop %v3176
      %v3237 = vmul.f32 1.0, %v3236
      %v3238 = vrcp.pop %v3177
      %v3239 = vmul.f32 1.0, %v3238
      %v3240 = vrcp.pop %v3178
      %v3241 = vmul.f32 1.0, %v3240
      %v3242 = vrcp.pop %v3179
      %v3243 = vmul.f32 1.0, %v3242
      %v3244 = vmul.f32 %v3181, 1.0614054
      %v3245 = vmul.f32 %v3183, 1.0614054
      %v3246 = vmul.f32 %v3185, 1.0614054
      %v3247 = vmul.f32 %v3187, 1.0614054
      %v3248 = vmul.f32 %v3189, 1.0614054
      %v3249 = vmul.f32 %v3191, 1.0614054
      %v3250 = vmul.f32 %v3193, 1.0614054
      %v3251 = vmul.f32 %v3195, 1.0614054
      %v3252 = vmul.f32 %v3197, 1.0614054
      %v3253 = vmul.f32 %v3199, 1.0614054
      %v3254 = vmul.f32 %v3201, 1.0614054
      %v3255 = vmul.f32 %v3203, 1.0614054
      %v3256 = vmul.f32 %v3205, 1.0614054
      %v3257 = vmul.f32 %v3207, 1.0614054
      %v3258 = vmul.f32 %v3209, 1.0614054
      %v3259 = vmul.f32 %v3211, 1.0614054
      %v3260 = vmul.f32 %v3213, 1.0614054
      %v3261 = vmul.f32 %v3215, 1.0614054
      %v3262 = vmul.f32 %v3217, 1.0614054
      %v3263 = vmul.f32 %v3219, 1.0614054
      %v3264 = vmul.f32 %v3221, 1.0614054
      %v3265 = vmul.f32 %v3223, 1.0614054
      %v3266 = vmul.f32 %v3225, 1.0614054
      %v3267 = vmul.f32 %v3227, 1.0614054
      %v3268 = vmul.f32 %v3229, 1.0614054
      %v3269 = vmul.f32 %v3231, 1.0614054
      %v3270 = vmul.f32 %v3233, 1.0614054
      %v3271 = vmul.f32 %v3235, 1.0614054
      %v3272 = vmul.f32 %v3237, 1.0614054
      %v3273 = vmul.f32 %v3239, 1.0614054
      %v3274 = vmul.f32 %v3241, 1.0614054
      %v3275 = vmul.f32 %v3243, 1.0614054
      %v3276 = vadd.f32 %v3244, -1.4531521
      %v3277 = vadd.f32 %v3245, -1.4531521
      %v3278 = vadd.f32 %v3246, -1.4531521
      %v3279 = vadd.f32 %v3247, -1.4531521
      %v3280 = vadd.f32 %v3248, -1.4531521
      %v3281 = vadd.f32 %v3249, -1.4531521
      %v3282 = vadd.f32 %v3250, -1.4531521
      %v3283 = vadd.f32 %v3251, -1.4531521
      %v3284 = vadd.f32 %v3252, -1.4531521
      %v3285 = vadd.f32 %v3253, -1.4531521
      %v3286 = vadd.f32 %v3254, -1.4531521
      %v3287 = vadd.f32 %v3255, -1.4531521
      %v3288 = vadd.f32 %v3256, -1.4531521
      %v3289 = vadd.f32 %v3257, -1.4531521
      %v3290 = vadd.f32 %v3258, -1.4531521
      %v3291 = vadd.f32 %v3259, -1.4531521
      %v3292 = vadd.f32 %v3260, -1.4531521
      %v3293 = vadd.f32 %v3261, -1.4531521
      %v3294 = vadd.f32 %v3262, -1.4531521
      %v3295 = vadd.f32 %v3263, -1.4531521
      %v3296 = vadd.f32 %v3264, -1.4531521
      %v3297 = vadd.f32 %v3265, -1.4531521
      %v3298 = vadd.f32 %v3266, -1.4531521
      %v3299 = vadd.f32 %v3267, -1.4531521
      %v3300 = vadd.f32 %v3268, -1.4531521
      %v3301 = vadd.f32 %v3269, -1.4531521
      %v3302 = vadd.f32 %v3270, -1.4531521
      %v3303 = vadd.f32 %v3271, -1.4531521
      %v3304 = vadd.f32 %v3272, -1.4531521
      %v3305 = vadd.f32 %v3273, -1.4531521
      %v3306 = vadd.f32 %v3274, -1.4531521
      %v3307 = vadd.f32 %v3275, -1.4531521
      %v3308 = vmul.f32 %v3181, %v3276
      %v3309 = vmul.f32 %v3183, %v3277
      %v3310 = vmul.f32 %v3185, %v3278
      %v3311 = vmul.f32 %v3187, %v3279
      %v3312 = vmul.f32 %v3189, %v3280
      %v3313 = vmul.f32 %v3191, %v3281
      %v3314 = vmul.f32 %v3193, %v3282
      %v3315 = vmul.f32 %v3195, %v3283
      %v3316 = vmul.f32 %v3197, %v3284
      %v3317 = vmul.f32 %v3199, %v3285
      %v3318 = vmul.f32 %v3201, %v3286
      %v3319 = vmul.f32 %v3203, %v3287
      %v3320 = vmul.f32 %v3205, %v3288
      %v3321 = vmul.f32 %v3207, %v3289
      %v3322 = vmul.f32 %v3209, %v3290
      %v3323 = vmul.f32 %v3211, %v3291
      %v3324 = vmul.f32 %v3213, %v3292
      %v3325 = vmul.f32 %v3215, %v3293
      %v3326 = vmul.f32 %v3217, %v3294
      %v3327 = vmul.f32 %v3219, %v3295
      %v3328 = vmul.f32 %v3221, %v3296
      %v3329 = vmul.f32 %v3223, %v3297
      %v3330 = vmul.f32 %v3225, %v3298
      %v3331 = vmul.f32 %v3227, %v3299
      %v3332 = vmul.f32 %v3229, %v3300
      %v3333 = vmul.f32 %v3231, %v3301
      %v3334 = vmul.f32 %v3233, %v3302
      %v3335 = vmul.f32 %v3235, %v3303
      %v3336 = vmul.f32 %v3237, %v3304
      %v3337 = vmul.f32 %v3239, %v3305
      %v3338 = vmul.f32 %v3241, %v3306
      %v3339 = vmul.f32 %v3243, %v3307
      %v3340 = vadd.f32 %v3308, 1.4214138
      %v3341 = vadd.f32 %v3309, 1.4214138
      %v3342 = vadd.f32 %v3310, 1.4214138
      %v3343 = vadd.f32 %v3311, 1.4214138
      %v3344 = vadd.f32 %v3312, 1.4214138
      %v3345 = vadd.f32 %v3313, 1.4214138
      %v3346 = vadd.f32 %v3314, 1.4214138
      %v3347 = vadd.f32 %v3315, 1.4214138
      %v3348 = vadd.f32 %v3316, 1.4214138
      %v3349 = vadd.f32 %v3317, 1.4214138
      %v3350 = vadd.f32 %v3318, 1.4214138
      %v3351 = vadd.f32 %v3319, 1.4214138
      %v3352 = vadd.f32 %v3320, 1.4214138
      %v3353 = vadd.f32 %v3321, 1.4214138
      %v3354 = vadd.f32 %v3322, 1.4214138
      %v3355 = vadd.f32 %v3323, 1.4214138
      %v3356 = vadd.f32 %v3324, 1.4214138
      %v3357 = vadd.f32 %v3325, 1.4214138
      %v3358 = vadd.f32 %v3326, 1.4214138
      %v3359 = vadd.f32 %v3327, 1.4214138
      %v3360 = vadd.f32 %v3328, 1.4214138
      %v3361 = vadd.f32 %v3329, 1.4214138
      %v3362 = vadd.f32 %v3330, 1.4214138
      %v3363 = vadd.f32 %v3331, 1.4214138
      %v3364 = vadd.f32 %v3332, 1.4214138
      %v3365 = vadd.f32 %v3333, 1.4214138
      %v3366 = vadd.f32 %v3334, 1.4214138
      %v3367 = vadd.f32 %v3335, 1.4214138
      %v3368 = vadd.f32 %v3336, 1.4214138
      %v3369 = vadd.f32 %v3337, 1.4214138
      %v3370 = vadd.f32 %v3338, 1.4214138
      %v3371 = vadd.f32 %v3339, 1.4214138
      %v3372 = vmul.f32 %v3181, %v3340
      %v3373 = vmul.f32 %v3183, %v3341
      %v3374 = vmul.f32 %v3185, %v3342
      %v3375 = vmul.f32 %v3187, %v3343
      %v3376 = vmul.f32 %v3189, %v3344
      %v3377 = vmul.f32 %v3191, %v3345
      %v3378 = vmul.f32 %v3193, %v3346
      %v3379 = vmul.f32 %v3195, %v3347
      %v3380 = vmul.f32 %v3197, %v3348
      %v3381 = vmul.f32 %v3199, %v3349
      %v3382 = vmul.f32 %v3201, %v3350
      %v3383 = vmul.f32 %v3203, %v3351
      %v3384 = vmul.f32 %v3205, %v3352
      %v3385 = vmul.f32 %v3207, %v3353
      %v3386 = vmul.f32 %v3209, %v3354
      %v3387 = vmul.f32 %v3211, %v3355
      %v3388 = vmul.f32 %v3213, %v3356
      %v3389 = vmul.f32 %v3215, %v3357
      %v3390 = vmul.f32 %v3217, %v3358
      %v3391 = vmul.f32 %v3219, %v3359
      %v3392 = vmul.f32 %v3221, %v3360
      %v3393 = vmul.f32 %v3223, %v3361
      %v3394 = vmul.f32 %v3225, %v3362
      %v3395 = vmul.f32 %v3227, %v3363
      %v3396 = vmul.f32 %v3229, %v3364
      %v3397 = vmul.f32 %v3231, %v3365
      %v3398 = vmul.f32 %v3233, %v3366
      %v3399 = vmul.f32 %v3235, %v3367
      %v3400 = vmul.f32 %v3237, %v3368
      %v3401 = vmul.f32 %v3239, %v3369
      %v3402 = vmul.f32 %v3241, %v3370
      %v3403 = vmul.f32 %v3243, %v3371
      %v3404 = vadd.f32 %v3372, -0.28449672
      %v3405 = vadd.f32 %v3373, -0.28449672
      %v3406 = vadd.f32 %v3374, -0.28449672
      %v3407 = vadd.f32 %v3375, -0.28449672
      %v3408 = vadd.f32 %v3376, -0.28449672
      %v3409 = vadd.f32 %v3377, -0.28449672
      %v3410 = vadd.f32 %v3378, -0.28449672
      %v3411 = vadd.f32 %v3379, -0.28449672
      %v3412 = vadd.f32 %v3380, -0.28449672
      %v3413 = vadd.f32 %v3381, -0.28449672
      %v3414 = vadd.f32 %v3382, -0.28449672
      %v3415 = vadd.f32 %v3383, -0.28449672
      %v3416 = vadd.f32 %v3384, -0.28449672
      %v3417 = vadd.f32 %v3385, -0.28449672
      %v3418 = vadd.f32 %v3386, -0.28449672
      %v3419 = vadd.f32 %v3387, -0.28449672
      %v3420 = vadd.f32 %v3388, -0.28449672
      %v3421 = vadd.f32 %v3389, -0.28449672
      %v3422 = vadd.f32 %v3390, -0.28449672
      %v3423 = vadd.f32 %v3391, -0.28449672
      %v3424 = vadd.f32 %v3392, -0.28449672
      %v3425 = vadd.f32 %v3393, -0.28449672
      %v3426 = vadd.f32 %v3394, -0.28449672
      %v3427 = vadd.f32 %v3395, -0.28449672
      %v3428 = vadd.f32 %v3396, -0.28449672
      %v3429 = vadd.f32 %v3397, -0.28449672
      %v3430 = vadd.f32 %v3398, -0.28449672
      %v3431 = vadd.f32 %v3399, -0.28449672
      %v3432 = vadd.f32 %v3400, -0.28449672
      %v3433 = vadd.f32 %v3401, -0.28449672
      %v3434 = vadd.f32 %v3402, -0.28449672
      %v3435 = vadd.f32 %v3403, -0.28449672
      %v3436 = vmul.f32 %v3181, %v3404
      %v3437 = vmul.f32 %v3183, %v3405
      %v3438 = vmul.f32 %v3185, %v3406
      %v3439 = vmul.f32 %v3187, %v3407
      %v3440 = vmul.f32 %v3189, %v3408
      %v3441 = vmul.f32 %v3191, %v3409
      %v3442 = vmul.f32 %v3193, %v3410
      %v3443 = vmul.f32 %v3195, %v3411
      %v3444 = vmul.f32 %v3197, %v3412
      %v3445 = vmul.f32 %v3199, %v3413
      %v3446 = vmul.f32 %v3201, %v3414
      %v3447 = vmul.f32 %v3203, %v3415
      %v3448 = vmul.f32 %v3205, %v3416
      %v3449 = vmul.f32 %v3207, %v3417
      %v3450 = vmul.f32 %v3209, %v3418
      %v3451 = vmul.f32 %v3211, %v3419
      %v3452 = vmul.f32 %v3213, %v3420
      %v3453 = vmul.f32 %v3215, %v3421
      %v3454 = vmul.f32 %v3217, %v3422
      %v3455 = vmul.f32 %v3219, %v3423
      %v3456 = vmul.f32 %v3221, %v3424
      %v3457 = vmul.f32 %v3223, %v3425
      %v3458 = vmul.f32 %v3225, %v3426
      %v3459 = vmul.f32 %v3227, %v3427
      %v3460 = vmul.f32 %v3229, %v3428
      %v3461 = vmul.f32 %v3231, %v3429
      %v3462 = vmul.f32 %v3233, %v3430
      %v3463 = vmul.f32 %v3235, %v3431
      %v3464 = vmul.f32 %v3237, %v3432
      %v3465 = vmul.f32 %v3239, %v3433
      %v3466 = vmul.f32 %v3241, %v3434
      %v3467 = vmul.f32 %v3243, %v3435
      %v3468 = vadd.f32 %v3436, 0.2548296
      %v3469 = vadd.f32 %v3437, 0.2548296
      %v3470 = vadd.f32 %v3438, 0.2548296
      %v3471 = vadd.f32 %v3439, 0.2548296
      %v3472 = vadd.f32 %v3440, 0.2548296
      %v3473 = vadd.f32 %v3441, 0.2548296
      %v3474 = vadd.f32 %v3442, 0.2548296
      %v3475 = vadd.f32 %v3443, 0.2548296
      %v3476 = vadd.f32 %v3444, 0.2548296
      %v3477 = vadd.f32 %v3445, 0.2548296
      %v3478 = vadd.f32 %v3446, 0.2548296
      %v3479 = vadd.f32 %v3447, 0.2548296
      %v3480 = vadd.f32 %v3448, 0.2548296
      %v3481 = vadd.f32 %v3449, 0.2548296
      %v3482 = vadd.f32 %v3450, 0.2548296
      %v3483 = vadd.f32 %v3451, 0.2548296
      %v3484 = vadd.f32 %v3452, 0.2548296
      %v3485 = vadd.f32 %v3453, 0.2548296
      %v3486 = vadd.f32 %v3454, 0.2548296
      %v3487 = vadd.f32 %v3455, 0.2548296
      %v3488 = vadd.f32 %v3456, 0.2548296
      %v3489 = vadd.f32 %v3457, 0.2548296
      %v3490 = vadd.f32 %v3458, 0.2548296
      %v3491 = vadd.f32 %v3459, 0.2548296
      %v3492 = vadd.f32 %v3460, 0.2548296
      %v3493 = vadd.f32 %v3461, 0.2548296
      %v3494 = vadd.f32 %v3462, 0.2548296
      %v3495 = vadd.f32 %v3463, 0.2548296
      %v3496 = vadd.f32 %v3464, 0.2548296
      %v3497 = vadd.f32 %v3465, 0.2548296
      %v3498 = vadd.f32 %v3466, 0.2548296
      %v3499 = vadd.f32 %v3467, 0.2548296
      %v3500 = vmul.f32 %v3181, %v3468
      %v3501 = vmul.f32 %v3183, %v3469
      %v3502 = vmul.f32 %v3185, %v3470
      %v3503 = vmul.f32 %v3187, %v3471
      %v3504 = vmul.f32 %v3189, %v3472
      %v3505 = vmul.f32 %v3191, %v3473
      %v3506 = vmul.f32 %v3193, %v3474
      %v3507 = vmul.f32 %v3195, %v3475
      %v3508 = vmul.f32 %v3197, %v3476
      %v3509 = vmul.f32 %v3199, %v3477
      %v3510 = vmul.f32 %v3201, %v3478
      %v3511 = vmul.f32 %v3203, %v3479
      %v3512 = vmul.f32 %v3205, %v3480
      %v3513 = vmul.f32 %v3207, %v3481
      %v3514 = vmul.f32 %v3209, %v3482
      %v3515 = vmul.f32 %v3211, %v3483
      %v3516 = vmul.f32 %v3213, %v3484
      %v3517 = vmul.f32 %v3215, %v3485
      %v3518 = vmul.f32 %v3217, %v3486
      %v3519 = vmul.f32 %v3219, %v3487
      %v3520 = vmul.f32 %v3221, %v3488
      %v3521 = vmul.f32 %v3223, %v3489
      %v3522 = vmul.f32 %v3225, %v3490
      %v3523 = vmul.f32 %v3227, %v3491
      %v3524 = vmul.f32 %v3229, %v3492
      %v3525 = vmul.f32 %v3231, %v3493
      %v3526 = vmul.f32 %v3233, %v3494
      %v3527 = vmul.f32 %v3235, %v3495
      %v3528 = vmul.f32 %v3237, %v3496
      %v3529 = vmul.f32 %v3239, %v3497
      %v3530 = vmul.f32 %v3241, %v3498
      %v3531 = vmul.f32 %v3243, %v3499
      %v3532 = vsub.f32 0.0, %v3084
      %v3533 = vsub.f32 0.0, %v3085
      %v3534 = vsub.f32 0.0, %v3086
      %v3535 = vsub.f32 0.0, %v3087
      %v3536 = vsub.f32 0.0, %v3088
      %v3537 = vsub.f32 0.0, %v3089
      %v3538 = vsub.f32 0.0, %v3090
      %v3539 = vsub.f32 0.0, %v3091
      %v3540 = vsub.f32 0.0, %v3092
      %v3541 = vsub.f32 0.0, %v3093
      %v3542 = vsub.f32 0.0, %v3094
      %v3543 = vsub.f32 0.0, %v3095
      %v3544 = vsub.f32 0.0, %v3096
      %v3545 = vsub.f32 0.0, %v3097
      %v3546 = vsub.f32 0.0, %v3098
      %v3547 = vsub.f32 0.0, %v3099
      %v3548 = vsub.f32 0.0, %v3100
      %v3549 = vsub.f32 0.0, %v3101
      %v3550 = vsub.f32 0.0, %v3102
      %v3551 = vsub.f32 0.0, %v3103
      %v3552 = vsub.f32 0.0, %v3104
      %v3553 = vsub.f32 0.0, %v3105
      %v3554 = vsub.f32 0.0, %v3106
      %v3555 = vsub.f32 0.0, %v3107
      %v3556 = vsub.f32 0.0, %v3108
      %v3557 = vsub.f32 0.0, %v3109
      %v3558 = vsub.f32 0.0, %v3110
      %v3559 = vsub.f32 0.0, %v3111
      %v3560 = vsub.f32 0.0, %v3112
      %v3561 = vsub.f32 0.0, %v3113
      %v3562 = vsub.f32 0.0, %v3114
      %v3563 = vsub.f32 0.0, %v3115
      %v3564 = vmul.f32 %v3532, %v3084
      %v3565 = vmul.f32 %v3533, %v3085
      %v3566 = vmul.f32 %v3534, %v3086
      %v3567 = vmul.f32 %v3535, %v3087
      %v3568 = vmul.f32 %v3536, %v3088
      %v3569 = vmul.f32 %v3537, %v3089
      %v3570 = vmul.f32 %v3538, %v3090
      %v3571 = vmul.f32 %v3539, %v3091
      %v3572 = vmul.f32 %v3540, %v3092
      %v3573 = vmul.f32 %v3541, %v3093
      %v3574 = vmul.f32 %v3542, %v3094
      %v3575 = vmul.f32 %v3543, %v3095
      %v3576 = vmul.f32 %v3544, %v3096
      %v3577 = vmul.f32 %v3545, %v3097
      %v3578 = vmul.f32 %v3546, %v3098
      %v3579 = vmul.f32 %v3547, %v3099
      %v3580 = vmul.f32 %v3548, %v3100
      %v3581 = vmul.f32 %v3549, %v3101
      %v3582 = vmul.f32 %v3550, %v3102
      %v3583 = vmul.f32 %v3551, %v3103
      %v3584 = vmul.f32 %v3552, %v3104
      %v3585 = vmul.f32 %v3553, %v3105
      %v3586 = vmul.f32 %v3554, %v3106
      %v3587 = vmul.f32 %v3555, %v3107
      %v3588 = vmul.f32 %v3556, %v3108
      %v3589 = vmul.f32 %v3557, %v3109
      %v3590 = vmul.f32 %v3558, %v3110
      %v3591 = vmul.f32 %v3559, %v3111
      %v3592 = vmul.f32 %v3560, %v3112
      %v3593 = vmul.f32 %v3561, %v3113
      %v3594 = vmul.f32 %v3562, %v3114
      %v3595 = vmul.f32 %v3563, %v3115
      %v3596 = vmul.f32 %v3564, 1.442695
      %v3597 = vpow.pop %v3596
      %v3598 = vmul.f32 %v3565, 1.442695
      %v3599 = vpow.pop %v3598
      %v3600 = vmul.f32 %v3566, 1.442695
      %v3601 = vpow.pop %v3600
      %v3602 = vmul.f32 %v3567, 1.442695
      %v3603 = vpow.pop %v3602
      %v3604 = vmul.f32 %v3568, 1.442695
      %v3605 = vpow.pop %v3604
      %v3606 = vmul.f32 %v3569, 1.442695
      %v3607 = vpow.pop %v3606
      %v3608 = vmul.f32 %v3570, 1.442695
      %v3609 = vpow.pop %v3608
      %v3610 = vmul.f32 %v3571, 1.442695
      %v3611 = vpow.pop %v3610
      %v3612 = vmul.f32 %v3572, 1.442695
      %v3613 = vpow.pop %v3612
      %v3614 = vmul.f32 %v3573, 1.442695
      %v3615 = vpow.pop %v3614
      %v3616 = vmul.f32 %v3574, 1.442695
      %v3617 = vpow.pop %v3616
      %v3618 = vmul.f32 %v3575, 1.442695
      %v3619 = vpow.pop %v3618
      %v3620 = vmul.f32 %v3576, 1.442695
      %v3621 = vpow.pop %v3620
      %v3622 = vmul.f32 %v3577, 1.442695
      %v3623 = vpow.pop %v3622
      %v3624 = vmul.f32 %v3578, 1.442695
      %v3625 = vpow.pop %v3624
      %v3626 = vmul.f32 %v3579, 1.442695
      %v3627 = vpow.pop %v3626
      %v3628 = vmul.f32 %v3580, 1.442695
      %v3629 = vpow.pop %v3628
      %v3630 = vmul.f32 %v3581, 1.442695
      %v3631 = vpow.pop %v3630
      %v3632 = vmul.f32 %v3582, 1.442695
      %v3633 = vpow.pop %v3632
      %v3634 = vmul.f32 %v3583, 1.442695
      %v3635 = vpow.pop %v3634
      %v3636 = vmul.f32 %v3584, 1.442695
      %v3637 = vpow.pop %v3636
      %v3638 = vmul.f32 %v3585, 1.442695
      %v3639 = vpow.pop %v3638
      %v3640 = vmul.f32 %v3586, 1.442695
      %v3641 = vpow.pop %v3640
      %v3642 = vmul.f32 %v3587, 1.442695
      %v3643 = vpow.pop %v3642
      %v3644 = vmul.f32 %v3588, 1.442695
      %v3645 = vpow.pop %v3644
      %v3646 = vmul.f32 %v3589, 1.442695
      %v3647 = vpow.pop %v3646
      %v3648 = vmul.f32 %v3590, 1.442695
      %v3649 = vpow.pop %v3648
      %v3650 = vmul.f32 %v3591, 1.442695
      %v3651 = vpow.pop %v3650
      %v3652 = vmul.f32 %v3592, 1.442695
      %v3653 = vpow.pop %v3652
      %v3654 = vmul.f32 %v3593, 1.442695
      %v3655 = vpow.pop %v3654
      %v3656 = vmul.f32 %v3594, 1.442695
      %v3657 = vpow.pop %v3656
      %v3658 = vmul.f32 %v3595, 1.442695
      %v3659 = vpow.pop %v3658
      %v3660 = vmul.f32 %v3500, %v3597
      %v3661 = vmul.f32 %v3501, %v3599
      %v3662 = vmul.f32 %v3502, %v3601
      %v3663 = vmul.f32 %v3503, %v3603
      %v3664 = vmul.f32 %v3504, %v3605
      %v3665 = vmul.f32 %v3505, %v3607
      %v3666 = vmul.f32 %v3506, %v3609
      %v3667 = vmul.f32 %v3507, %v3611
      %v3668 = vmul.f32 %v3508, %v3613
      %v3669 = vmul.f32 %v3509, %v3615
      %v3670 = vmul.f32 %v3510, %v3617
      %v3671 = vmul.f32 %v3511, %v3619
      %v3672 = vmul.f32 %v3512, %v3621
      %v3673 = vmul.f32 %v3513, %v3623
      %v3674 = vmul.f32 %v3514, %v3625
      %v3675 = vmul.f32 %v3515, %v3627
      %v3676 = vmul.f32 %v3516, %v3629
      %v3677 = vmul.f32 %v3517, %v3631
      %v3678 = vmul.f32 %v3518, %v3633
      %v3679 = vmul.f32 %v3519, %v3635
      %v3680 = vmul.f32 %v3520, %v3637
      %v3681 = vmul.f32 %v3521, %v3639
      %v3682 = vmul.f32 %v3522, %v3641
      %v3683 = vmul.f32 %v3523, %v3643
      %v3684 = vmul.f32 %v3524, %v3645
      %v3685 = vmul.f32 %v3525, %v3647
      %v3686 = vmul.f32 %v3526, %v3649
      %v3687 = vmul.f32 %v3527, %v3651
      %v3688 = vmul.f32 %v3528, %v3653
      %v3689 = vmul.f32 %v3529, %v3655
      %v3690 = vmul.f32 %v3530, %v3657
      %v3691 = vmul.f32 %v3531, %v3659
      %v3692 = vsub.f32 1.0, %v3660
      %v3693 = vsub.f32 1.0, %v3661
      %v3694 = vsub.f32 1.0, %v3662
      %v3695 = vsub.f32 1.0, %v3663
      %v3696 = vsub.f32 1.0, %v3664
      %v3697 = vsub.f32 1.0, %v3665
      %v3698 = vsub.f32 1.0, %v3666
      %v3699 = vsub.f32 1.0, %v3667
      %v3700 = vsub.f32 1.0, %v3668
      %v3701 = vsub.f32 1.0, %v3669
      %v3702 = vsub.f32 1.0, %v3670
      %v3703 = vsub.f32 1.0, %v3671
      %v3704 = vsub.f32 1.0, %v3672
      %v3705 = vsub.f32 1.0, %v3673
      %v3706 = vsub.f32 1.0, %v3674
      %v3707 = vsub.f32 1.0, %v3675
      %v3708 = vsub.f32 1.0, %v3676
      %v3709 = vsub.f32 1.0, %v3677
      %v3710 = vsub.f32 1.0, %v3678
      %v3711 = vsub.f32 1.0, %v3679
      %v3712 = vsub.f32 1.0, %v3680
      %v3713 = vsub.f32 1.0, %v3681
      %v3714 = vsub.f32 1.0, %v3682
      %v3715 = vsub.f32 1.0, %v3683
      %v3716 = vsub.f32 1.0, %v3684
      %v3717 = vsub.f32 1.0, %v3685
      %v3718 = vsub.f32 1.0, %v3686
      %v3719 = vsub.f32 1.0, %v3687
      %v3720 = vsub.f32 1.0, %v3688
      %v3721 = vsub.f32 1.0, %v3689
      %v3722 = vsub.f32 1.0, %v3690
      %v3723 = vsub.f32 1.0, %v3691
      %v3724 = vmul.f32 %v3052, %v3692
      %v3725 = vmul.f32 %v3053, %v3693
      %v3726 = vmul.f32 %v3054, %v3694
      %v3727 = vmul.f32 %v3055, %v3695
      %v3728 = vmul.f32 %v3056, %v3696
      %v3729 = vmul.f32 %v3057, %v3697
      %v3730 = vmul.f32 %v3058, %v3698
      %v3731 = vmul.f32 %v3059, %v3699
      %v3732 = vmul.f32 %v3060, %v3700
      %v3733 = vmul.f32 %v3061, %v3701
      %v3734 = vmul.f32 %v3062, %v3702
      %v3735 = vmul.f32 %v3063, %v3703
      %v3736 = vmul.f32 %v3064, %v3704
      %v3737 = vmul.f32 %v3065, %v3705
      %v3738 = vmul.f32 %v3066, %v3706
      %v3739 = vmul.f32 %v3067, %v3707
      %v3740 = vmul.f32 %v3068, %v3708
      %v3741 = vmul.f32 %v3069, %v3709
      %v3742 = vmul.f32 %v3070, %v3710
      %v3743 = vmul.f32 %v3071, %v3711
      %v3744 = vmul.f32 %v3072, %v3712
      %v3745 = vmul.f32 %v3073, %v3713
      %v3746 = vmul.f32 %v3074, %v3714
      %v3747 = vmul.f32 %v3075, %v3715
      %v3748 = vmul.f32 %v3076, %v3716
      %v3749 = vmul.f32 %v3077, %v3717
      %v3750 = vmul.f32 %v3078, %v3718
      %v3751 = vmul.f32 %v3079, %v3719
      %v3752 = vmul.f32 %v3080, %v3720
      %v3753 = vmul.f32 %v3081, %v3721
      %v3754 = vmul.f32 %v3082, %v3722
      %v3755 = vmul.f32 %v3083, %v3723
      %v3756 = vadd.f32 %v3724, 1.0
      %v3757 = vadd.f32 %v3725, 1.0
      %v3758 = vadd.f32 %v3726, 1.0
      %v3759 = vadd.f32 %v3727, 1.0
      %v3760 = vadd.f32 %v3728, 1.0
      %v3761 = vadd.f32 %v3729, 1.0
      %v3762 = vadd.f32 %v3730, 1.0
      %v3763 = vadd.f32 %v3731, 1.0
      %v3764 = vadd.f32 %v3732, 1.0
      %v3765 = vadd.f32 %v3733, 1.0
      %v3766 = vadd.f32 %v3734, 1.0
      %v3767 = vadd.f32 %v3735, 1.0
      %v3768 = vadd.f32 %v3736, 1.0
      %v3769 = vadd.f32 %v3737, 1.0
      %v3770 = vadd.f32 %v3738, 1.0
      %v3771 = vadd.f32 %v3739, 1.0
      %v3772 = vadd.f32 %v3740, 1.0
      %v3773 = vadd.f32 %v3741, 1.0
      %v3774 = vadd.f32 %v3742, 1.0
      %v3775 = vadd.f32 %v3743, 1.0
      %v3776 = vadd.f32 %v3744, 1.0
      %v3777 = vadd.f32 %v3745, 1.0
      %v3778 = vadd.f32 %v3746, 1.0
      %v3779 = vadd.f32 %v3747, 1.0
      %v3780 = vadd.f32 %v3748, 1.0
      %v3781 = vadd.f32 %v3749, 1.0
      %v3782 = vadd.f32 %v3750, 1.0
      %v3783 = vadd.f32 %v3751, 1.0
      %v3784 = vadd.f32 %v3752, 1.0
      %v3785 = vadd.f32 %v3753, 1.0
      %v3786 = vadd.f32 %v3754, 1.0
      %v3787 = vadd.f32 %v3755, 1.0
      %v3788 = vmul.f32 %v2956, %v3756
      %v3789 = vmul.f32 %v2957, %v3757
      %v3790 = vmul.f32 %v2958, %v3758
      %v3791 = vmul.f32 %v2959, %v3759
      %v3792 = vmul.f32 %v2960, %v3760
      %v3793 = vmul.f32 %v2961, %v3761
      %v3794 = vmul.f32 %v2962, %v3762
      %v3795 = vmul.f32 %v2963, %v3763
      %v3796 = vmul.f32 %v2964, %v3764
      %v3797 = vmul.f32 %v2965, %v3765
      %v3798 = vmul.f32 %v2966, %v3766
      %v3799 = vmul.f32 %v2967, %v3767
      %v3800 = vmul.f32 %v2968, %v3768
      %v3801 = vmul.f32 %v2969, %v3769
      %v3802 = vmul.f32 %v2970, %v3770
      %v3803 = vmul.f32 %v2971, %v3771
      %v3804 = vmul.f32 %v2972, %v3772
      %v3805 = vmul.f32 %v2973, %v3773
      %v3806 = vmul.f32 %v2974, %v3774
      %v3807 = vmul.f32 %v2975, %v3775
      %v3808 = vmul.f32 %v2976, %v3776
      %v3809 = vmul.f32 %v2977, %v3777
      %v3810 = vmul.f32 %v2978, %v3778
      %v3811 = vmul.f32 %v2979, %v3779
      %v3812 = vmul.f32 %v2980, %v3780
      %v3813 = vmul.f32 %v2981, %v3781
      %v3814 = vmul.f32 %v2982, %v3782
      %v3815 = vmul.f32 %v2983, %v3783
      %v3816 = vmul.f32 %v2984, %v3784
      %v3817 = vmul.f32 %v2985, %v3785
      %v3818 = vmul.f32 %v2986, %v3786
      %v3819 = vmul.f32 %v2987, %v3787
      %3820 = vset.pattern.permute.xlu0 64
      %3821 = vperm.xlu0 %3820, %v1173
      %v3822 = vpop.permute.xlu0 %3821
      %3824 = vset.pattern.permute.xlu0 64
      %3825 = vperm.xlu0 %3824, %v1176
      %v3826 = vpop.permute.xlu0 %3825
      %3828 = vset.pattern.permute.xlu0 64
      %3829 = vperm.xlu0 %3828, %v1181
      %v3830 = vpop.permute.xlu0 %3829
      %3832 = vset.pattern.permute.xlu0 64
      %3833 = vperm.xlu0 %3832, %v1184
      %v3834 = vpop.permute.xlu0 %3833
      %3836 = vset.pattern.permute.xlu0 64
      %3837 = vperm.xlu0 %3836, %v1189
      %v3838 = vpop.permute.xlu0 %3837
      %3840 = vset.pattern.permute.xlu0 64
      %3841 = vperm.xlu0 %3840, %v1192
      %v3842 = vpop.permute.xlu0 %3841
      %3844 = vset.pattern.permute.xlu0 64
      %3845 = vperm.xlu0 %3844, %v1197
      %v3846 = vpop.permute.xlu0 %3845
      %3848 = vset.pattern.permute.xlu0 64
      %3849 = vperm.xlu0 %3848, %v1200
      %v3850 = vpop.permute.xlu0 %3849
      %3852 = vset.pattern.permute.xlu0 64
      %3853 = vperm.xlu0 %3852, %v1205
      %v3854 = vpop.permute.xlu0 %3853
      %3856 = vset.pattern.permute.xlu0 64
      %3857 = vperm.xlu0 %3856, %v1208
      %v3858 = vpop.permute.xlu0 %3857
      %3860 = vset.pattern.permute.xlu0 64
      %3861 = vperm.xlu0 %3860, %v1213
      %v3862 = vpop.permute.xlu0 %3861
      %3864 = vset.pattern.permute.xlu0 64
      %3865 = vperm.xlu0 %3864, %v1216
      %v3866 = vpop.permute.xlu0 %3865
      %3868 = vset.pattern.permute.xlu0 64
      %3869 = vperm.xlu0 %3868, %v1221
      %v3870 = vpop.permute.xlu0 %3869
      %3872 = vset.pattern.permute.xlu0 64
      %3873 = vperm.xlu0 %3872, %v1224
      %v3874 = vpop.permute.xlu0 %3873
      %3876 = vset.pattern.permute.xlu0 64
      %3877 = vperm.xlu0 %3876, %v1229
      %v3878 = vpop.permute.xlu0 %3877
      %3880 = vset.pattern.permute.xlu0 64
      %3881 = vperm.xlu0 %3880, %v1232
      %v3882 = vpop.permute.xlu0 %3881
      %3884 = vset.pattern.permute.xlu0 64
      %3885 = vperm.xlu0 %3884, %v1237
      %v3886 = vpop.permute.xlu0 %3885
      %3888 = vset.pattern.permute.xlu0 64
      %3889 = vperm.xlu0 %3888, %v1240
      %v3890 = vpop.permute.xlu0 %3889
      %3892 = vset.pattern.permute.xlu0 64
      %3893 = vperm.xlu0 %3892, %v1245
      %v3894 = vpop.permute.xlu0 %3893
      %3896 = vset.pattern.permute.xlu0 64
      %3897 = vperm.xlu0 %3896, %v1248
      %v3898 = vpop.permute.xlu0 %3897
      %3900 = vset.pattern.permute.xlu0 64
      %3901 = vperm.xlu0 %3900, %v1253
      %v3902 = vpop.permute.xlu0 %3901
      %3904 = vset.pattern.permute.xlu0 64
      %3905 = vperm.xlu0 %3904, %v1256
      %v3906 = vpop.permute.xlu0 %3905
      %3908 = vset.pattern.permute.xlu0 64
      %3909 = vperm.xlu0 %3908, %v1261
      %v3910 = vpop.permute.xlu0 %3909
      %3912 = vset.pattern.permute.xlu0 64
      %3913 = vperm.xlu0 %3912, %v1264
      %v3914 = vpop.permute.xlu0 %3913
      %3916 = vset.pattern.permute.xlu0 64
      %3917 = vperm.xlu0 %3916, %v1269
      %v3918 = vpop.permute.xlu0 %3917
      %3920 = vset.pattern.permute.xlu0 64
      %3921 = vperm.xlu0 %3920, %v1272
      %v3922 = vpop.permute.xlu0 %3921
      %3924 = vset.pattern.permute.xlu0 64
      %3925 = vperm.xlu0 %3924, %v1277
      %v3926 = vpop.permute.xlu0 %3925
      %3928 = vset.pattern.permute.xlu0 64
      %3929 = vperm.xlu0 %3928, %v1280
      %v3930 = vpop.permute.xlu0 %3929
      %3932 = vset.pattern.permute.xlu0 64
      %3933 = vperm.xlu0 %3932, %v1285
      %v3934 = vpop.permute.xlu0 %3933
      %3936 = vset.pattern.permute.xlu0 64
      %3937 = vperm.xlu0 %3936, %v1288
      %v3938 = vpop.permute.xlu0 %3937
      %3940 = vset.pattern.permute.xlu0 64
      %3941 = vperm.xlu0 %3940, %v1293
      %v3942 = vpop.permute.xlu0 %3941
      %3944 = vset.pattern.permute.xlu0 64
      %3945 = vperm.xlu0 %3944, %v1296
      %v3946 = vpop.permute.xlu0 %3945
      %v3948 = vmul.f32 %v3788, %v3822
      %v3949 = vmul.f32 %v3789, %v3826
      %v3950 = vmul.f32 %v3790, %v3830
      %v3951 = vmul.f32 %v3791, %v3834
      %v3952 = vmul.f32 %v3792, %v3838
      %v3953 = vmul.f32 %v3793, %v3842
      %v3954 = vmul.f32 %v3794, %v3846
      %v3955 = vmul.f32 %v3795, %v3850
      %v3956 = vmul.f32 %v3796, %v3854
      %v3957 = vmul.f32 %v3797, %v3858
      %v3958 = vmul.f32 %v3798, %v3862
      %v3959 = vmul.f32 %v3799, %v3866
      %v3960 = vmul.f32 %v3800, %v3870
      %v3961 = vmul.f32 %v3801, %v3874
      %v3962 = vmul.f32 %v3802, %v3878
      %v3963 = vmul.f32 %v3803, %v3882
      %v3964 = vmul.f32 %v3804, %v3886
      %v3965 = vmul.f32 %v3805, %v3890
      %v3966 = vmul.f32 %v3806, %v3894
      %v3967 = vmul.f32 %v3807, %v3898
      %v3968 = vmul.f32 %v3808, %v3902
      %v3969 = vmul.f32 %v3809, %v3906
      %v3970 = vmul.f32 %v3810, %v3910
      %v3971 = vmul.f32 %v3811, %v3914
      %v3972 = vmul.f32 %v3812, %v3918
      %v3973 = vmul.f32 %v3813, %v3922
      %v3974 = vmul.f32 %v3814, %v3926
      %v3975 = vmul.f32 %v3815, %v3930
      %v3976 = vmul.f32 %v3816, %v3934
      %v3977 = vmul.f32 %v3817, %v3938
      %v3978 = vmul.f32 %v3818, %v3942
      %v3979 = vmul.f32 %v3819, %v3946
      %v3980 = vsel %vm557, %v3788, 0.0
      %v3981 = vsel %vm557, %v3789, 0.0
      %v3982 = vadd.f32 %v3980, %v3981
      %v3983 = vsel %vm557, %v3790, 0.0
      %v3984 = vadd.f32 %v3982, %v3983
      %v3985 = vsel %vm557, %v3791, 0.0
      %v3986 = vadd.f32 %v3984, %v3985
      %v3987 = vsel %vm557, %v3792, 0.0
      %v3988 = vadd.f32 %v3986, %v3987
      %v3989 = vsel %vm557, %v3793, 0.0
      %v3990 = vadd.f32 %v3988, %v3989
      %v3991 = vsel %vm557, %v3794, 0.0
      %v3992 = vadd.f32 %v3990, %v3991
      %v3993 = vsel %vm557, %v3795, 0.0
      %v3994 = vadd.f32 %v3992, %v3993
      %v3995 = vsel %vm557, %v3796, 0.0
      %v3996 = vadd.f32 %v3994, %v3995
      %v3997 = vsel %vm557, %v3797, 0.0
      %v3998 = vadd.f32 %v3996, %v3997
      %v3999 = vsel %vm557, %v3798, 0.0
      %v4000 = vadd.f32 %v3998, %v3999
      %v4001 = vsel %vm557, %v3799, 0.0
      %v4002 = vadd.f32 %v4000, %v4001
      %v4003 = vsel %vm557, %v3800, 0.0
      %v4004 = vadd.f32 %v4002, %v4003
      %v4005 = vsel %vm557, %v3801, 0.0
      %v4006 = vadd.f32 %v4004, %v4005
      %v4007 = vsel %vm557, %v3802, 0.0
      %v4008 = vadd.f32 %v4006, %v4007
      %v4009 = vsel %vm557, %v3803, 0.0
      %v4010 = vadd.f32 %v4008, %v4009
      %v4011 = vsel %vm557, %v3804, 0.0
      %v4012 = vadd.f32 %v4010, %v4011
      %v4013 = vsel %vm557, %v3805, 0.0
      %v4014 = vadd.f32 %v4012, %v4013
      %v4015 = vsel %vm557, %v3806, 0.0
      %v4016 = vadd.f32 %v4014, %v4015
      %v4017 = vsel %vm557, %v3807, 0.0
      %v4018 = vadd.f32 %v4016, %v4017
      %v4019 = vsel %vm557, %v3808, 0.0
      %v4020 = vadd.f32 %v4018, %v4019
      %v4021 = vsel %vm557, %v3809, 0.0
      %v4022 = vadd.f32 %v4020, %v4021
      %v4023 = vsel %vm557, %v3810, 0.0
      %v4024 = vadd.f32 %v4022, %v4023
      %v4025 = vsel %vm557, %v3811, 0.0
      %v4026 = vadd.f32 %v4024, %v4025
      %v4027 = vsel %vm557, %v3812, 0.0
      %v4028 = vadd.f32 %v4026, %v4027
      %v4029 = vsel %vm557, %v3813, 0.0
      %v4030 = vadd.f32 %v4028, %v4029
      %v4031 = vsel %vm557, %v3814, 0.0
      %v4032 = vadd.f32 %v4030, %v4031
      %v4033 = vsel %vm557, %v3815, 0.0
      %v4034 = vadd.f32 %v4032, %v4033
      %v4035 = vsel %vm557, %v3816, 0.0
      %v4036 = vadd.f32 %v4034, %v4035
      %v4037 = vsel %vm557, %v3817, 0.0
      %v4038 = vadd.f32 %v4036, %v4037
      %v4039 = vsel %vm557, %v3818, 0.0
      %v4040 = vadd.f32 %v4038, %v4039
      %v4041 = vsel %vm557, %v3819, 0.0
      %v4042 = vadd.f32 %v4040, %v4041
      %v4043 = vrot.slane %v4042, 4
      %v4044 = vadd.f32 %v4042, %v4043
      %v4045 = vrot.slane %v4044, 2
      %v4046 = vadd.f32 %v4044, %v4045
      %v4047 = vrot.slane %v4046, 1
      %v4048 = vadd.f32 %v4046, %v4047
      %v4049 = vrcp.pop 256.0
      %v4050 = vmul.f32 %v4048, %v4049
      %v4051 = vmul.f32 %v4050, 0.5
      %v4052 = vmul.f32 %v4050, 0.70710677
      %vm4053 = vcmp.ge.f32.partialorder %v4052, 0.0
      %v4054 = vsel %vm4053, 1.0, -1.0
      %v4055 = vand.u32 2147483647, %v4052
      %v4056 = vmul.f32 %v4055, 0.3275911
      %v4057 = vadd.f32 %v4056, 1.0
      %v4058 = vrcp.pop %v4057
      %v4059 = vmul.f32 1.0, %v4058
      %v4060 = vmul.f32 %v4059, 1.0614054
      %v4061 = vadd.f32 %v4060, -1.4531521
      %v4062 = vmul.f32 %v4059, %v4061
      %v4063 = vadd.f32 %v4062, 1.4214138
      %v4064 = vmul.f32 %v4059, %v4063
      %v4065 = vadd.f32 %v4064, -0.28449672
      %v4066 = vmul.f32 %v4059, %v4065
      %v4067 = vadd.f32 %v4066, 0.2548296
      %v4068 = vmul.f32 %v4059, %v4067
      %v4069 = vsub.f32 0.0, %v4055
      %v4070 = vmul.f32 %v4069, %v4055
      %v4071 = vmul.f32 %v4070, 1.442695
      %v4072 = vpow.pop %v4071
      %v4073 = vmul.f32 %v4068, %v4072
      %v4074 = vsub.f32 1.0, %v4073
      %v4075 = vmul.f32 %v4054, %v4074
      %v4076 = vadd.f32 %v4075, 1.0
      %v4077 = vmul.f32 %v4051, %v4076
      %4078 = vset.pattern.permute.xlu0 65
      %4079 = vperm.xlu0 %4078, %v1173
      %v4080 = vpop.permute.xlu0 %4079
      %4082 = vset.pattern.permute.xlu0 65
      %4083 = vperm.xlu0 %4082, %v1176
      %v4084 = vpop.permute.xlu0 %4083
      %4086 = vset.pattern.permute.xlu0 65
      %4087 = vperm.xlu0 %4086, %v1181
      %v4088 = vpop.permute.xlu0 %4087
      %4090 = vset.pattern.permute.xlu0 65
      %4091 = vperm.xlu0 %4090, %v1184
      %v4092 = vpop.permute.xlu0 %4091
      %4094 = vset.pattern.permute.xlu0 65
      %4095 = vperm.xlu0 %4094, %v1189
      %v4096 = vpop.permute.xlu0 %4095
      %4098 = vset.pattern.permute.xlu0 65
      %4099 = vperm.xlu0 %4098, %v1192
      %v4100 = vpop.permute.xlu0 %4099
      %4102 = vset.pattern.permute.xlu0 65
      %4103 = vperm.xlu0 %4102, %v1197
      %v4104 = vpop.permute.xlu0 %4103
      %4106 = vset.pattern.permute.xlu0 65
      %4107 = vperm.xlu0 %4106, %v1200
      %v4108 = vpop.permute.xlu0 %4107
      %4110 = vset.pattern.permute.xlu0 65
      %4111 = vperm.xlu0 %4110, %v1205
      %v4112 = vpop.permute.xlu0 %4111
      %4114 = vset.pattern.permute.xlu0 65
      %4115 = vperm.xlu0 %4114, %v1208
      %v4116 = vpop.permute.xlu0 %4115
      %4118 = vset.pattern.permute.xlu0 65
      %4119 = vperm.xlu0 %4118, %v1213
      %v4120 = vpop.permute.xlu0 %4119
      %4122 = vset.pattern.permute.xlu0 65
      %4123 = vperm.xlu0 %4122, %v1216
      %v4124 = vpop.permute.xlu0 %4123
      %4126 = vset.pattern.permute.xlu0 65
      %4127 = vperm.xlu0 %4126, %v1221
      %v4128 = vpop.permute.xlu0 %4127
      %4130 = vset.pattern.permute.xlu0 65
      %4131 = vperm.xlu0 %4130, %v1224
      %v4132 = vpop.permute.xlu0 %4131
      %4134 = vset.pattern.permute.xlu0 65
      %4135 = vperm.xlu0 %4134, %v1229
      %v4136 = vpop.permute.xlu0 %4135
      %4138 = vset.pattern.permute.xlu0 65
      %4139 = vperm.xlu0 %4138, %v1232
      %v4140 = vpop.permute.xlu0 %4139
      %4142 = vset.pattern.permute.xlu0 65
      %4143 = vperm.xlu0 %4142, %v1237
      %v4144 = vpop.permute.xlu0 %4143
      %4146 = vset.pattern.permute.xlu0 65
      %4147 = vperm.xlu0 %4146, %v1240
      %v4148 = vpop.permute.xlu0 %4147
      %4150 = vset.pattern.permute.xlu0 65
      %4151 = vperm.xlu0 %4150, %v1245
      %v4152 = vpop.permute.xlu0 %4151
      %4154 = vset.pattern.permute.xlu0 65
      %4155 = vperm.xlu0 %4154, %v1248
      %v4156 = vpop.permute.xlu0 %4155
      %4158 = vset.pattern.permute.xlu0 65
      %4159 = vperm.xlu0 %4158, %v1253
      %v4160 = vpop.permute.xlu0 %4159
      %4162 = vset.pattern.permute.xlu0 65
      %4163 = vperm.xlu0 %4162, %v1256
      %v4164 = vpop.permute.xlu0 %4163
      %4166 = vset.pattern.permute.xlu0 65
      %4167 = vperm.xlu0 %4166, %v1261
      %v4168 = vpop.permute.xlu0 %4167
      %4170 = vset.pattern.permute.xlu0 65
      %4171 = vperm.xlu0 %4170, %v1264
      %v4172 = vpop.permute.xlu0 %4171
      %4174 = vset.pattern.permute.xlu0 65
      %4175 = vperm.xlu0 %4174, %v1269
      %v4176 = vpop.permute.xlu0 %4175
      %4178 = vset.pattern.permute.xlu0 65
      %4179 = vperm.xlu0 %4178, %v1272
      %v4180 = vpop.permute.xlu0 %4179
      %4182 = vset.pattern.permute.xlu0 65
      %4183 = vperm.xlu0 %4182, %v1277
      %v4184 = vpop.permute.xlu0 %4183
      %4186 = vset.pattern.permute.xlu0 65
      %4187 = vperm.xlu0 %4186, %v1280
      %v4188 = vpop.permute.xlu0 %4187
      %4190 = vset.pattern.permute.xlu0 65
      %4191 = vperm.xlu0 %4190, %v1285
      %v4192 = vpop.permute.xlu0 %4191
      %4194 = vset.pattern.permute.xlu0 65
      %4195 = vperm.xlu0 %4194, %v1288
      %v4196 = vpop.permute.xlu0 %4195
      %4198 = vset.pattern.permute.xlu0 65
      %4199 = vperm.xlu0 %4198, %v1293
      %v4200 = vpop.permute.xlu0 %4199
      %4202 = vset.pattern.permute.xlu0 65
      %4203 = vperm.xlu0 %4202, %v1296
      %v4204 = vpop.permute.xlu0 %4203
      %v4206 = vmul.f32 %v4077, %v4080
      %v4207 = vmul.f32 %v4077, %v4084
      %v4208 = vmul.f32 %v4077, %v4088
      %v4209 = vmul.f32 %v4077, %v4092
      %v4210 = vmul.f32 %v4077, %v4096
      %v4211 = vmul.f32 %v4077, %v4100
      %v4212 = vmul.f32 %v4077, %v4104
      %v4213 = vmul.f32 %v4077, %v4108
      %v4214 = vmul.f32 %v4077, %v4112
      %v4215 = vmul.f32 %v4077, %v4116
      %v4216 = vmul.f32 %v4077, %v4120
      %v4217 = vmul.f32 %v4077, %v4124
      %v4218 = vmul.f32 %v4077, %v4128
      %v4219 = vmul.f32 %v4077, %v4132
      %v4220 = vmul.f32 %v4077, %v4136
      %v4221 = vmul.f32 %v4077, %v4140
      %v4222 = vmul.f32 %v4077, %v4144
      %v4223 = vmul.f32 %v4077, %v4148
      %v4224 = vmul.f32 %v4077, %v4152
      %v4225 = vmul.f32 %v4077, %v4156
      %v4226 = vmul.f32 %v4077, %v4160
      %v4227 = vmul.f32 %v4077, %v4164
      %v4228 = vmul.f32 %v4077, %v4168
      %v4229 = vmul.f32 %v4077, %v4172
      %v4230 = vmul.f32 %v4077, %v4176
      %v4231 = vmul.f32 %v4077, %v4180
      %v4232 = vmul.f32 %v4077, %v4184
      %v4233 = vmul.f32 %v4077, %v4188
      %v4234 = vmul.f32 %v4077, %v4192
      %v4235 = vmul.f32 %v4077, %v4196
      %v4236 = vmul.f32 %v4077, %v4200
      %v4237 = vmul.f32 %v4077, %v4204
      %v4238 = vadd.f32 %v3948, %v4206
      %v4239 = vadd.f32 %v3949, %v4207
      %v4240 = vadd.f32 %v3950, %v4208
      %v4241 = vadd.f32 %v3951, %v4209
      %v4242 = vadd.f32 %v3952, %v4210
      %v4243 = vadd.f32 %v3953, %v4211
      %v4244 = vadd.f32 %v3954, %v4212
      %v4245 = vadd.f32 %v3955, %v4213
      %v4246 = vadd.f32 %v3956, %v4214
      %v4247 = vadd.f32 %v3957, %v4215
      %v4248 = vadd.f32 %v3958, %v4216
      %v4249 = vadd.f32 %v3959, %v4217
      %v4250 = vadd.f32 %v3960, %v4218
      %v4251 = vadd.f32 %v3961, %v4219
      %v4252 = vadd.f32 %v3962, %v4220
      %v4253 = vadd.f32 %v3963, %v4221
      %v4254 = vadd.f32 %v3964, %v4222
      %v4255 = vadd.f32 %v3965, %v4223
      %v4256 = vadd.f32 %v3966, %v4224
      %v4257 = vadd.f32 %v3967, %v4225
      %v4258 = vadd.f32 %v3968, %v4226
      %v4259 = vadd.f32 %v3969, %v4227
      %v4260 = vadd.f32 %v3970, %v4228
      %v4261 = vadd.f32 %v3971, %v4229
      %v4262 = vadd.f32 %v3972, %v4230
      %v4263 = vadd.f32 %v3973, %v4231
      %v4264 = vadd.f32 %v3974, %v4232
      %v4265 = vadd.f32 %v3975, %v4233
      %v4266 = vadd.f32 %v3976, %v4234
      %v4267 = vadd.f32 %v3977, %v4235
      %v4268 = vadd.f32 %v3978, %v4236
      %v4269 = vadd.f32 %v3979, %v4237
      %v4270 = vpack.c.bf16 %v4239, %v4238
      %v4271 = vpack.c.bf16 %v4241, %v4240
      %v4272 = vpack.c.bf16 %v4243, %v4242
      %v4273 = vpack.c.bf16 %v4245, %v4244
      %v4274 = vpack.c.bf16 %v4247, %v4246
      %v4275 = vpack.c.bf16 %v4249, %v4248
      %v4276 = vpack.c.bf16 %v4251, %v4250
      %v4277 = vpack.c.bf16 %v4253, %v4252
      %v4278 = vpack.c.bf16 %v4255, %v4254
      %v4279 = vpack.c.bf16 %v4257, %v4256
      %v4280 = vpack.c.bf16 %v4259, %v4258
      %v4281 = vpack.c.bf16 %v4261, %v4260
      %v4282 = vpack.c.bf16 %v4263, %v4262
      %v4283 = vpack.c.bf16 %v4265, %v4264
      %v4284 = vpack.c.bf16 %v4267, %v4266
      %v4285 = vpack.c.bf16 %v4269, %v4268
      %v4286 = vld [vmem:[%s6] sm:$0xf]
      %v4287 = vld [vmem:[%s6 + $0x4] sm:$0xf]
      %v4288 = vld [vmem:[%s6 + $0x8] sm:$0xf]
      %v4289 = vld [vmem:[%s6 + $0xc] sm:$0xf]
      %v4290 = vld [vmem:[%s7] sm:$0x1]
      %v4292 = vlaneseq
      %v4293 = vshrl.u32 %v4292, 7
      %v4294 = vsub.s32 0, %v4293
      %v4295 = vrot.slane %v4290, %v4294
      %v4301 = vunpack.c.l.b16 %v4286
      %v4302 = vunpack.c.l.b16 %v4287
      %v4303 = vunpack.c.l.b16 %v4288
      %v4304 = vunpack.c.l.b16 %v4289
      %v4305 = vpack.c.b16 %v4302, %v4301
      %v4306 = vpack.c.b16 %v4304, %v4303
      %v4310 = vsel %vm557, %v4270, 0
      %v4313 = vsel %vm557, %v4271, 0
      %v4316 = vsel %vm557, %v4272, 0
      %v4319 = vsel %vm557, %v4273, 0
      %v4322 = vsel %vm557, %v4274, 0
      %v4325 = vsel %vm557, %v4275, 0
      %v4328 = vsel %vm557, %v4276, 0
      %v4331 = vsel %vm557, %v4277, 0
      %v4334 = vsel %vm557, %v4278, 0
      %v4337 = vsel %vm557, %v4279, 0
      %v4340 = vsel %vm557, %v4280, 0
      %v4343 = vsel %vm557, %v4281, 0
      %v4346 = vsel %vm557, %v4282, 0
      %v4349 = vsel %vm557, %v4283, 0
      %v4352 = vsel %vm557, %v4284, 0
      %v4355 = vsel %vm557, %v4285, 0
      %4357 = vmatprep.subr.bf16.mxu0 0
      %4358 = vmatpush1.bf16.msra.mxu0 %v4305
      %4359 = vmatprep.subr.bf16.mxu0 0
      %4360 = vmatpush1.bf16.msra.mxu0 %v4306
      %4361 = vmatprep.subr.bf16.mxu0 0
      %4362 = vmatpush1.bf16.msra.mxu0 0
      %4363 = vmatprep.subr.bf16.mxu0 0
      %4364 = vmatpush1.bf16.msra.mxu0 0
      %4365 = vmatprep.subr.bf16.mxu0 0
      %4366 = vmatpush1.bf16.msra.mxu0 0
      %4367 = vmatprep.subr.bf16.mxu0 0
      %4368 = vmatpush1.bf16.msra.mxu0 0
      %4369 = vmatprep.subr.bf16.mxu0 0
      %4370 = vmatpush1.bf16.msra.mxu0 0
      %4371 = vmatprep.subr.bf16.mxu0 0
      %4372 = vmatpush1.bf16.msra.mxu0 0
      %4373 = vmatprep.subr.bf16.mxu0 0
      %4374 = vmatpush1.bf16.msra.mxu0 0
      %4375 = vmatprep.subr.bf16.mxu0 0
      %4376 = vmatpush1.bf16.msra.mxu0 0
      %4377 = vmatprep.subr.bf16.mxu0 0
      %4378 = vmatpush1.bf16.msra.mxu0 0
      %4379 = vmatprep.subr.bf16.mxu0 0
      %4380 = vmatpush1.bf16.msra.mxu0 0
      %4381 = vmatprep.subr.bf16.mxu0 0
      %4382 = vmatpush1.bf16.msra.mxu0 0
      %4383 = vmatprep.subr.bf16.mxu0 0
      %4384 = vmatpush1.bf16.msra.mxu0 0
      %4385 = vmatprep.subr.bf16.mxu0 0
      %4386 = vmatpush1.bf16.msra.mxu0 0
      %4387 = vmatprep.subr.bf16.mxu0 0
      %4388 = vmatpush1.bf16.msra.mxu0 0
      %4389 = vmatprep.mubr.bf16.mxu0 0
      %4390 = vmatmul.mubr.bf16.gmra.mrb[0].mxu0 %v4310
      %v4391 = vpop.f32.mrb[0].mxu0
      %v4392 = vadd.f32 %v4295, %v4391
      %v4393 = vpop.f32.mrb[0].mxu0
      %v4394 = vpop.f32.mrb[0].mxu0
      %v4395 = vadd.f32 %v4295, %v4394
      %v4396 = vpop.f32.mrb[0].mxu0
      %4397 = vmatprep.mubr.bf16.mxu0 0
      %4398 = vmatmul.mubr.bf16.gmra.mrb[0].mxu0 %v4313
      %v4399 = vpop.f32.mrb[0].mxu0
      %v4400 = vadd.f32 %v4295, %v4399
      %v4401 = vpop.f32.mrb[0].mxu0
      %v4402 = vpop.f32.mrb[0].mxu0
      %v4403 = vadd.f32 %v4295, %v4402
      %v4404 = vpop.f32.mrb[0].mxu0
      %4405 = vmatprep.mubr.bf16.mxu0 0
      %4406 = vmatmul.mubr.bf16.gmra.mrb[0].mxu0 %v4316
      %v4407 = vpop.f32.mrb[0].mxu0
      %v4408 = vadd.f32 %v4295, %v4407
      %v4409 = vpop.f32.mrb[0].mxu0
      %v4410 = vpop.f32.mrb[0].mxu0
      %v4411 = vadd.f32 %v4295, %v4410
      %v4412 = vpop.f32.mrb[0].mxu0
      %4413 = vmatprep.mubr.bf16.mxu0 0
      %4414 = vmatmul.mubr.bf16.gmra.mrb[0].mxu0 %v4319
      %v4415 = vpop.f32.mrb[0].mxu0
      %v4416 = vadd.f32 %v4295, %v4415
      %v4417 = vpop.f32.mrb[0].mxu0
      %v4418 = vpop.f32.mrb[0].mxu0
      %v4419 = vadd.f32 %v4295, %v4418
      %v4420 = vpop.f32.mrb[0].mxu0
      %4421 = vmatprep.mubr.bf16.mxu0 0
      %4422 = vmatmul.mubr.bf16.gmra.mrb[0].mxu0 %v4322
      %v4423 = vpop.f32.mrb[0].mxu0
      %v4424 = vadd.f32 %v4295, %v4423
      %v4425 = vpop.f32.mrb[0].mxu0
      %v4426 = vpop.f32.mrb[0].mxu0
      %v4427 = vadd.f32 %v4295, %v4426
      %v4428 = vpop.f32.mrb[0].mxu0
      %4429 = vmatprep.mubr.bf16.mxu0 0
      %4430 = vmatmul.mubr.bf16.gmra.mrb[0].mxu0 %v4325
      %v4431 = vpop.f32.mrb[0].mxu0
      %v4432 = vadd.f32 %v4295, %v4431
      %v4433 = vpop.f32.mrb[0].mxu0
      %v4434 = vpop.f32.mrb[0].mxu0
      %v4435 = vadd.f32 %v4295, %v4434
      %v4436 = vpop.f32.mrb[0].mxu0
      %4437 = vmatprep.mubr.bf16.mxu0 0
      %4438 = vmatmul.mubr.bf16.gmra.mrb[0].mxu0 %v4328
      %v4439 = vpop.f32.mrb[0].mxu0
      %v4440 = vadd.f32 %v4295, %v4439
      %v4441 = vpop.f32.mrb[0].mxu0
      %v4442 = vpop.f32.mrb[0].mxu0
      %v4443 = vadd.f32 %v4295, %v4442
      %v4444 = vpop.f32.mrb[0].mxu0
      %4445 = vmatprep.mubr.bf16.mxu0 0
      %4446 = vmatmul.mubr.bf16.gmra.mrb[0].mxu0 %v4331
      %v4447 = vpop.f32.mrb[0].mxu0
      %v4448 = vadd.f32 %v4295, %v4447
      %v4449 = vpop.f32.mrb[0].mxu0
      %v4450 = vpop.f32.mrb[0].mxu0
      %v4451 = vadd.f32 %v4295, %v4450
      %v4452 = vpop.f32.mrb[0].mxu0
      %4453 = vmatprep.mubr.bf16.mxu0 0
      %4454 = vmatmul.mubr.bf16.gmra.mrb[0].mxu0 %v4334
      %v4455 = vpop.f32.mrb[0].mxu0
      %v4456 = vadd.f32 %v4295, %v4455
      %v4457 = vpop.f32.mrb[0].mxu0
      %v4458 = vpop.f32.mrb[0].mxu0
      %v4459 = vadd.f32 %v4295, %v4458
      %v4460 = vpop.f32.mrb[0].mxu0
      %4461 = vmatprep.mubr.bf16.mxu0 0
      %4462 = vmatmul.mubr.bf16.gmra.mrb[0].mxu0 %v4337
      %v4463 = vpop.f32.mrb[0].mxu0
      %v4464 = vadd.f32 %v4295, %v4463
      %v4465 = vpop.f32.mrb[0].mxu0
      %v4466 = vpop.f32.mrb[0].mxu0
      %v4467 = vadd.f32 %v4295, %v4466
      %v4468 = vpop.f32.mrb[0].mxu0
      %4469 = vmatprep.mubr.bf16.mxu0 0
      %4470 = vmatmul.mubr.bf16.gmra.mrb[0].mxu0 %v4340
      %v4471 = vpop.f32.mrb[0].mxu0
      %v4472 = vadd.f32 %v4295, %v4471
      %v4473 = vpop.f32.mrb[0].mxu0
      %v4474 = vpop.f32.mrb[0].mxu0
      %v4475 = vadd.f32 %v4295, %v4474
      %v4476 = vpop.f32.mrb[0].mxu0
      %4477 = vmatprep.mubr.bf16.mxu0 0
      %4478 = vmatmul.mubr.bf16.gmra.mrb[0].mxu0 %v4343
      %v4479 = vpop.f32.mrb[0].mxu0
      %v4480 = vadd.f32 %v4295, %v4479
      %v4481 = vpop.f32.mrb[0].mxu0
      %v4482 = vpop.f32.mrb[0].mxu0
      %v4483 = vadd.f32 %v4295, %v4482
      %v4484 = vpop.f32.mrb[0].mxu0
      %4485 = vmatprep.mubr.bf16.mxu0 0
      %4486 = vmatmul.mubr.bf16.gmra.mrb[0].mxu0 %v4346
      %v4487 = vpop.f32.mrb[0].mxu0
      %v4488 = vadd.f32 %v4295, %v4487
      %v4489 = vpop.f32.mrb[0].mxu0
      %v4490 = vpop.f32.mrb[0].mxu0
      %v4491 = vadd.f32 %v4295, %v4490
      %v4492 = vpop.f32.mrb[0].mxu0
      %4493 = vmatprep.mubr.bf16.mxu0 0
      %4494 = vmatmul.mubr.bf16.gmra.mrb[0].mxu0 %v4349
      %v4495 = vpop.f32.mrb[0].mxu0
      %v4496 = vadd.f32 %v4295, %v4495
      %v4497 = vpop.f32.mrb[0].mxu0
      %v4498 = vpop.f32.mrb[0].mxu0
      %v4499 = vadd.f32 %v4295, %v4498
      %v4500 = vpop.f32.mrb[0].mxu0
      %4501 = vmatprep.mubr.bf16.mxu0 0
      %4502 = vmatmul.mubr.bf16.gmra.mrb[0].mxu0 %v4352
      %v4503 = vpop.f32.mrb[0].mxu0
      %v4504 = vadd.f32 %v4295, %v4503
      %v4505 = vpop.f32.mrb[0].mxu0
      %v4506 = vpop.f32.mrb[0].mxu0
      %v4507 = vadd.f32 %v4295, %v4506
      %v4508 = vpop.f32.mrb[0].mxu0
      %4509 = vmatprep.mubr.bf16.mxu0 0
      %4510 = vmatmul.mubr.bf16.gmra.mrb[0].mxu0 %v4355
      %v4511 = vpop.f32.mrb[0].mxu0
      %v4512 = vadd.f32 %v4295, %v4511
      %v4513 = vpop.f32.mrb[0].mxu0
      %v4514 = vpop.f32.mrb[0].mxu0
      %v4515 = vadd.f32 %v4295, %v4514
      %v4516 = vpop.f32.mrb[0].mxu0
      %4517 = vdwg.mxu0
      %v4518 = vmul.f32 %v1173, %v4392
      %v4519 = vmul.f32 %v1176, %v4395
      %v4520 = vmul.f32 %v1181, %v4400
      %v4521 = vmul.f32 %v1184, %v4403
      %v4522 = vmul.f32 %v1189, %v4408
      %v4523 = vmul.f32 %v1192, %v4411
      %v4524 = vmul.f32 %v1197, %v4416
      %v4525 = vmul.f32 %v1200, %v4419
      %v4526 = vmul.f32 %v1205, %v4424
      %v4527 = vmul.f32 %v1208, %v4427
      %v4528 = vmul.f32 %v1213, %v4432
      %v4529 = vmul.f32 %v1216, %v4435
      %v4530 = vmul.f32 %v1221, %v4440
      %v4531 = vmul.f32 %v1224, %v4443
      %v4532 = vmul.f32 %v1229, %v4448
      %v4533 = vmul.f32 %v1232, %v4451
      %v4534 = vmul.f32 %v1237, %v4456
      %v4535 = vmul.f32 %v1240, %v4459
      %v4536 = vmul.f32 %v1245, %v4464
      %v4537 = vmul.f32 %v1248, %v4467
      %v4538 = vmul.f32 %v1253, %v4472
      %v4539 = vmul.f32 %v1256, %v4475
      %v4540 = vmul.f32 %v1261, %v4480
      %v4541 = vmul.f32 %v1264, %v4483
      %v4542 = vmul.f32 %v1269, %v4488
      %v4543 = vmul.f32 %v1272, %v4491
      %v4544 = vmul.f32 %v1277, %v4496
      %v4545 = vmul.f32 %v1280, %v4499
      %v4546 = vmul.f32 %v1285, %v4504
      %v4547 = vmul.f32 %v1288, %v4507
      %v4548 = vmul.f32 %v1293, %v4512
      %v4549 = vmul.f32 %v1296, %v4515
      %v4550 = vpack.c.bf16 %v4519, %v4518
      %v4551 = vpack.c.bf16 %v4521, %v4520
      %v4552 = vpack.c.bf16 %v4523, %v4522
      %v4553 = vpack.c.bf16 %v4525, %v4524
      %v4554 = vpack.c.bf16 %v4527, %v4526
      %v4555 = vpack.c.bf16 %v4529, %v4528
      %v4556 = vpack.c.bf16 %v4531, %v4530
      %v4557 = vpack.c.bf16 %v4533, %v4532
      %v4558 = vpack.c.bf16 %v4535, %v4534
      %v4559 = vpack.c.bf16 %v4537, %v4536
      %v4560 = vpack.c.bf16 %v4539, %v4538
      %v4561 = vpack.c.bf16 %v4541, %v4540
      %v4562 = vpack.c.bf16 %v4543, %v4542
      %v4563 = vpack.c.bf16 %v4545, %v4544
      %v4564 = vpack.c.bf16 %v4547, %v4546
      %v4565 = vpack.c.bf16 %v4549, %v4548
      %v4566 = vld [vmem:[%s8] sm:$0xf]
      %v4567 = vld [vmem:[%s8 + $0x4] sm:$0xf]
      %v4568 = vld [vmem:[%s8 + $0x8] sm:$0xf]
      %v4569 = vld [vmem:[%s8 + $0xc] sm:$0xf]
      %v4570 = vld [vmem:[%s9] sm:$0x1]
      %v4572 = vlaneseq
      %v4573 = vshrl.u32 %v4572, 7
      %v4574 = vsub.s32 0, %v4573
      %v4575 = vrot.slane %v4570, %v4574
      %v4581 = vunpack.c.l.b16 %v4566
      %v4582 = vunpack.c.l.b16 %v4567
      %v4583 = vunpack.c.l.b16 %v4568
      %v4584 = vunpack.c.l.b16 %v4569
      %v4585 = vpack.c.b16 %v4582, %v4581
      %v4586 = vpack.c.b16 %v4584, %v4583
      %v4590 = vsel %vm557, %v4550, 0
      %v4593 = vsel %vm557, %v4551, 0
      %v4596 = vsel %vm557, %v4552, 0
      %v4599 = vsel %vm557, %v4553, 0
      %v4602 = vsel %vm557, %v4554, 0
      %v4605 = vsel %vm557, %v4555, 0
      %v4608 = vsel %vm557, %v4556, 0
      %v4611 = vsel %vm557, %v4557, 0
      %v4614 = vsel %vm557, %v4558, 0
      %v4617 = vsel %vm557, %v4559, 0
      %v4620 = vsel %vm557, %v4560, 0
      %v4623 = vsel %vm557, %v4561, 0
      %v4626 = vsel %vm557, %v4562, 0
      %v4629 = vsel %vm557, %v4563, 0
      %v4632 = vsel %vm557, %v4564, 0
      %v4635 = vsel %vm557, %v4565, 0
      %4637 = vmatprep.subr.bf16.mxu0 0
      %4638 = vmatpush1.bf16.msra.mxu0 %v4585
      %4639 = vmatprep.subr.bf16.mxu0 0
      %4640 = vmatpush1.bf16.msra.mxu0 %v4586
      %4641 = vmatprep.subr.bf16.mxu0 0
      %4642 = vmatpush1.bf16.msra.mxu0 0
      %4643 = vmatprep.subr.bf16.mxu0 0
      %4644 = vmatpush1.bf16.msra.mxu0 0
      %4645 = vmatprep.subr.bf16.mxu0 0
      %4646 = vmatpush1.bf16.msra.mxu0 0
      %4647 = vmatprep.subr.bf16.mxu0 0
      %4648 = vmatpush1.bf16.msra.mxu0 0
      %4649 = vmatprep.subr.bf16.mxu0 0
      %4650 = vmatpush1.bf16.msra.mxu0 0
      %4651 = vmatprep.subr.bf16.mxu0 0
      %4652 = vmatpush1.bf16.msra.mxu0 0
      %4653 = vmatprep.subr.bf16.mxu0 0
      %4654 = vmatpush1.bf16.msra.mxu0 0
      %4655 = vmatprep.subr.bf16.mxu0 0
      %4656 = vmatpush1.bf16.msra.mxu0 0
      %4657 = vmatprep.subr.bf16.mxu0 0
      %4658 = vmatpush1.bf16.msra.mxu0 0
      %4659 = vmatprep.subr.bf16.mxu0 0
      %4660 = vmatpush1.bf16.msra.mxu0 0
      %4661 = vmatprep.subr.bf16.mxu0 0
      %4662 = vmatpush1.bf16.msra.mxu0 0
      %4663 = vmatprep.subr.bf16.mxu0 0
      %4664 = vmatpush1.bf16.msra.mxu0 0
      %4665 = vmatprep.subr.bf16.mxu0 0
      %4666 = vmatpush1.bf16.msra.mxu0 0
      %4667 = vmatprep.subr.bf16.mxu0 0
      %4668 = vmatpush1.bf16.msra.mxu0 0
      %4669 = vmatprep.mubr.bf16.mxu0 0
      %4670 = vmatmul.mubr.bf16.gmra.mrb[0].mxu0 %v4590
      %v4671 = vpop.f32.mrb[0].mxu0
      %v4672 = vadd.f32 %v4575, %v4671
      %v4673 = vpop.f32.mrb[0].mxu0
      %v4674 = vpop.f32.mrb[0].mxu0
      %v4675 = vadd.f32 %v4575, %v4674
      %v4676 = vpop.f32.mrb[0].mxu0
      %4677 = vmatprep.mubr.bf16.mxu0 0
      %4678 = vmatmul.mubr.bf16.gmra.mrb[0].mxu0 %v4593
      %v4679 = vpop.f32.mrb[0].mxu0
      %v4680 = vadd.f32 %v4575, %v4679
      %v4681 = vpop.f32.mrb[0].mxu0
      %v4682 = vpop.f32.mrb[0].mxu0
      %v4683 = vadd.f32 %v4575, %v4682
      %v4684 = vpop.f32.mrb[0].mxu0
      %4685 = vmatprep.mubr.bf16.mxu0 0
      %4686 = vmatmul.mubr.bf16.gmra.mrb[0].mxu0 %v4596
      %v4687 = vpop.f32.mrb[0].mxu0
      %v4688 = vadd.f32 %v4575, %v4687
      %v4689 = vpop.f32.mrb[0].mxu0
      %v4690 = vpop.f32.mrb[0].mxu0
      %v4691 = vadd.f32 %v4575, %v4690
      %v4692 = vpop.f32.mrb[0].mxu0
      %4693 = vmatprep.mubr.bf16.mxu0 0
      %4694 = vmatmul.mubr.bf16.gmra.mrb[0].mxu0 %v4599
      %v4695 = vpop.f32.mrb[0].mxu0
      %v4696 = vadd.f32 %v4575, %v4695
      %v4697 = vpop.f32.mrb[0].mxu0
      %v4698 = vpop.f32.mrb[0].mxu0
      %v4699 = vadd.f32 %v4575, %v4698
      %v4700 = vpop.f32.mrb[0].mxu0
      %4701 = vmatprep.mubr.bf16.mxu0 0
      %4702 = vmatmul.mubr.bf16.gmra.mrb[0].mxu0 %v4602
      %v4703 = vpop.f32.mrb[0].mxu0
      %v4704 = vadd.f32 %v4575, %v4703
      %v4705 = vpop.f32.mrb[0].mxu0
      %v4706 = vpop.f32.mrb[0].mxu0
      %v4707 = vadd.f32 %v4575, %v4706
      %v4708 = vpop.f32.mrb[0].mxu0
      %4709 = vmatprep.mubr.bf16.mxu0 0
      %4710 = vmatmul.mubr.bf16.gmra.mrb[0].mxu0 %v4605
      %v4711 = vpop.f32.mrb[0].mxu0
      %v4712 = vadd.f32 %v4575, %v4711
      %v4713 = vpop.f32.mrb[0].mxu0
      %v4714 = vpop.f32.mrb[0].mxu0
      %v4715 = vadd.f32 %v4575, %v4714
      %v4716 = vpop.f32.mrb[0].mxu0
      %4717 = vmatprep.mubr.bf16.mxu0 0
      %4718 = vmatmul.mubr.bf16.gmra.mrb[0].mxu0 %v4608
      %v4719 = vpop.f32.mrb[0].mxu0
      %v4720 = vadd.f32 %v4575, %v4719
      %v4721 = vpop.f32.mrb[0].mxu0
      %v4722 = vpop.f32.mrb[0].mxu0
      %v4723 = vadd.f32 %v4575, %v4722
      %v4724 = vpop.f32.mrb[0].mxu0
      %4725 = vmatprep.mubr.bf16.mxu0 0
      %4726 = vmatmul.mubr.bf16.gmra.mrb[0].mxu0 %v4611
      %v4727 = vpop.f32.mrb[0].mxu0
      %v4728 = vadd.f32 %v4575, %v4727
      %v4729 = vpop.f32.mrb[0].mxu0
      %v4730 = vpop.f32.mrb[0].mxu0
      %v4731 = vadd.f32 %v4575, %v4730
      %v4732 = vpop.f32.mrb[0].mxu0
      %4733 = vmatprep.mubr.bf16.mxu0 0
      %4734 = vmatmul.mubr.bf16.gmra.mrb[0].mxu0 %v4614
      %v4735 = vpop.f32.mrb[0].mxu0
      %v4736 = vadd.f32 %v4575, %v4735
      %v4737 = vpop.f32.mrb[0].mxu0
      %v4738 = vpop.f32.mrb[0].mxu0
      %v4739 = vadd.f32 %v4575, %v4738
      %v4740 = vpop.f32.mrb[0].mxu0
      %4741 = vmatprep.mubr.bf16.mxu0 0
      %4742 = vmatmul.mubr.bf16.gmra.mrb[0].mxu0 %v4617
      %v4743 = vpop.f32.mrb[0].mxu0
      %v4744 = vadd.f32 %v4575, %v4743
      %v4745 = vpop.f32.mrb[0].mxu0
      %v4746 = vpop.f32.mrb[0].mxu0
      %v4747 = vadd.f32 %v4575, %v4746
      %v4748 = vpop.f32.mrb[0].mxu0
      %4749 = vmatprep.mubr.bf16.mxu0 0
      %4750 = vmatmul.mubr.bf16.gmra.mrb[0].mxu0 %v4620
      %v4751 = vpop.f32.mrb[0].mxu0
      %v4752 = vadd.f32 %v4575, %v4751
      %v4753 = vpop.f32.mrb[0].mxu0
      %v4754 = vpop.f32.mrb[0].mxu0
      %v4755 = vadd.f32 %v4575, %v4754
      %v4756 = vpop.f32.mrb[0].mxu0
      %4757 = vmatprep.mubr.bf16.mxu0 0
      %4758 = vmatmul.mubr.bf16.gmra.mrb[0].mxu0 %v4623
      %v4759 = vpop.f32.mrb[0].mxu0
      %v4760 = vadd.f32 %v4575, %v4759
      %v4761 = vpop.f32.mrb[0].mxu0
      %v4762 = vpop.f32.mrb[0].mxu0
      %v4763 = vadd.f32 %v4575, %v4762
      %v4764 = vpop.f32.mrb[0].mxu0
      %4765 = vmatprep.mubr.bf16.mxu0 0
      %4766 = vmatmul.mubr.bf16.gmra.mrb[0].mxu0 %v4626
      %v4767 = vpop.f32.mrb[0].mxu0
      %v4768 = vadd.f32 %v4575, %v4767
      %v4769 = vpop.f32.mrb[0].mxu0
      %v4770 = vpop.f32.mrb[0].mxu0
      %v4771 = vadd.f32 %v4575, %v4770
      %v4772 = vpop.f32.mrb[0].mxu0
      %4773 = vmatprep.mubr.bf16.mxu0 0
      %4774 = vmatmul.mubr.bf16.gmra.mrb[0].mxu0 %v4629
      %v4775 = vpop.f32.mrb[0].mxu0
      %v4776 = vadd.f32 %v4575, %v4775
      %v4777 = vpop.f32.mrb[0].mxu0
      %v4778 = vpop.f32.mrb[0].mxu0
      %v4779 = vadd.f32 %v4575, %v4778
      %v4780 = vpop.f32.mrb[0].mxu0
      %4781 = vmatprep.mubr.bf16.mxu0 0
      %4782 = vmatmul.mubr.bf16.gmra.mrb[0].mxu0 %v4632
      %v4783 = vpop.f32.mrb[0].mxu0
      %v4784 = vadd.f32 %v4575, %v4783
      %v4785 = vpop.f32.mrb[0].mxu0
      %v4786 = vpop.f32.mrb[0].mxu0
      %v4787 = vadd.f32 %v4575, %v4786
      %v4788 = vpop.f32.mrb[0].mxu0
      %4789 = vmatprep.mubr.bf16.mxu0 0
      %4790 = vmatmul.mubr.bf16.gmra.mrb[0].mxu0 %v4635
      %v4791 = vpop.f32.mrb[0].mxu0
      %v4792 = vadd.f32 %v4575, %v4791
      %v4793 = vpop.f32.mrb[0].mxu0
      %v4794 = vpop.f32.mrb[0].mxu0
      %v4795 = vadd.f32 %v4575, %v4794
      %v4796 = vpop.f32.mrb[0].mxu0
      %4797 = vdwg.mxu0
      %v4798 = vadd.f32 %v523, %v4672
      %v4799 = vadd.f32 %v524, %v4675
      %v4800 = vadd.f32 %v525, %v4680
      %v4801 = vadd.f32 %v526, %v4683
      %v4802 = vadd.f32 %v527, %v4688
      %v4803 = vadd.f32 %v528, %v4691
      %v4804 = vadd.f32 %v529, %v4696
      %v4805 = vadd.f32 %v530, %v4699
      %v4806 = vadd.f32 %v531, %v4704
      %v4807 = vadd.f32 %v532, %v4707
      %v4808 = vadd.f32 %v533, %v4712
      %v4809 = vadd.f32 %v534, %v4715
      %v4810 = vadd.f32 %v535, %v4720
      %v4811 = vadd.f32 %v536, %v4723
      %v4812 = vadd.f32 %v537, %v4728
      %v4813 = vadd.f32 %v538, %v4731
      %v4814 = vadd.f32 %v539, %v4736
      %v4815 = vadd.f32 %v540, %v4739
      %v4816 = vadd.f32 %v541, %v4744
      %v4817 = vadd.f32 %v542, %v4747
      %v4818 = vadd.f32 %v543, %v4752
      %v4819 = vadd.f32 %v544, %v4755
      %v4820 = vadd.f32 %v545, %v4760
      %v4821 = vadd.f32 %v546, %v4763
      %v4822 = vadd.f32 %v547, %v4768
      %v4823 = vadd.f32 %v548, %v4771
      %v4824 = vadd.f32 %v549, %v4776
      %v4825 = vadd.f32 %v550, %v4779
      %v4826 = vadd.f32 %v551, %v4784
      %v4827 = vadd.f32 %v552, %v4787
      %v4828 = vadd.f32 %v553, %v4792
      %v4829 = vadd.f32 %v554, %v4795
      %v4830 = vld [vmem:[%s10] sm:$0x1]
      %v4831 = vld [vmem:[%s11] sm:$0x1]
      %v4832 = vld [vmem:[%s12] sm:$0xf]
      %v4833 = vld [vmem:[%s12 + $0x4] sm:$0xf]
      %v4834 = vld [vmem:[%s12 + $0x8] sm:$0xf]
      %v4835 = vld [vmem:[%s12 + $0xc] sm:$0xf]
      %v4836 = vld [vmem:[%s13] sm:$0x1]
      %v4837 = vld [vmem:[%s14] sm:$0xf]
      %v4838 = vld [vmem:[%s14 + $0x4] sm:$0xf]
      %v4839 = vld [vmem:[%s14 + $0x8] sm:$0xf]
      %v4840 = vld [vmem:[%s14 + $0xc] sm:$0xf]
      %v4841 = vld [vmem:[%s14 + $0x10] sm:$0xf]
      %v4842 = vld [vmem:[%s14 + $0x14] sm:$0xf]
      %v4843 = vld [vmem:[%s14 + $0x18] sm:$0xf]
      %v4844 = vld [vmem:[%s14 + $0x1c] sm:$0xf]
      %v4845 = vld [vmem:[%s14 + $0x20] sm:$0xf]
      %v4846 = vld [vmem:[%s14 + $0x24] sm:$0xf]
      %v4847 = vld [vmem:[%s14 + $0x28] sm:$0xf]
      %v4848 = vld [vmem:[%s14 + $0x2c] sm:$0xf]
      %v4849 = vld [vmem:[%s14 + $0x30] sm:$0xf]
      %v4850 = vld [vmem:[%s14 + $0x34] sm:$0xf]
      %v4851 = vld [vmem:[%s14 + $0x38] sm:$0xf]
      %v4852 = vld [vmem:[%s14 + $0x3c] sm:$0xf]
      %v4853 = vld [vmem:[%s15] sm:$0x1]
      %v4854 = vsel %vm557, %v4798, 0.0
      %4855 = vadd.xlane.f32.xlu0 %v4854
      %v4856 = vpop.xlane.xlu0 %4855
      %v4857 = vsel %vm557, %v4799, 0.0
      %4858 = vadd.xlane.f32.xlu0 %v4857
      %v4859 = vpop.xlane.xlu0 %4858
      %v4860 = vsel %vm557, %v4800, 0.0
      %4861 = vadd.xlane.f32.xlu0 %v4860
      %v4862 = vpop.xlane.xlu0 %4861
      %v4863 = vsel %vm557, %v4801, 0.0
      %4864 = vadd.xlane.f32.xlu0 %v4863
      %v4865 = vpop.xlane.xlu0 %4864
      %v4866 = vsel %vm557, %v4802, 0.0
      %4867 = vadd.xlane.f32.xlu0 %v4866
      %v4868 = vpop.xlane.xlu0 %4867
      %v4869 = vsel %vm557, %v4803, 0.0
      %4870 = vadd.xlane.f32.xlu0 %v4869
      %v4871 = vpop.xlane.xlu0 %4870
      %v4872 = vsel %vm557, %v4804, 0.0
      %4873 = vadd.xlane.f32.xlu0 %v4872
      %v4874 = vpop.xlane.xlu0 %4873
      %v4875 = vsel %vm557, %v4805, 0.0
      %4876 = vadd.xlane.f32.xlu0 %v4875
      %v4877 = vpop.xlane.xlu0 %4876
      %v4878 = vsel %vm557, %v4806, 0.0
      %4879 = vadd.xlane.f32.xlu0 %v4878
      %v4880 = vpop.xlane.xlu0 %4879
      %v4881 = vsel %vm557, %v4807, 0.0
      %4882 = vadd.xlane.f32.xlu0 %v4881
      %v4883 = vpop.xlane.xlu0 %4882
      %v4884 = vsel %vm557, %v4808, 0.0
      %4885 = vadd.xlane.f32.xlu0 %v4884
      %v4886 = vpop.xlane.xlu0 %4885
      %v4887 = vsel %vm557, %v4809, 0.0
      %4888 = vadd.xlane.f32.xlu0 %v4887
      %v4889 = vpop.xlane.xlu0 %4888
      %v4890 = vsel %vm557, %v4810, 0.0
      %4891 = vadd.xlane.f32.xlu0 %v4890
      %v4892 = vpop.xlane.xlu0 %4891
      %v4893 = vsel %vm557, %v4811, 0.0
      %4894 = vadd.xlane.f32.xlu0 %v4893
      %v4895 = vpop.xlane.xlu0 %4894
      %v4896 = vsel %vm557, %v4812, 0.0
      %4897 = vadd.xlane.f32.xlu0 %v4896
      %v4898 = vpop.xlane.xlu0 %4897
      %v4899 = vsel %vm557, %v4813, 0.0
      %4900 = vadd.xlane.f32.xlu0 %v4899
      %v4901 = vpop.xlane.xlu0 %4900
      %v4902 = vsel %vm557, %v4814, 0.0
      %4903 = vadd.xlane.f32.xlu0 %v4902
      %v4904 = vpop.xlane.xlu0 %4903
      %v4905 = vsel %vm557, %v4815, 0.0
      %4906 = vadd.xlane.f32.xlu0 %v4905
      %v4907 = vpop.xlane.xlu0 %4906
      %v4908 = vsel %vm557, %v4816, 0.0
      %4909 = vadd.xlane.f32.xlu0 %v4908
      %v4910 = vpop.xlane.xlu0 %4909
      %v4911 = vsel %vm557, %v4817, 0.0
      %4912 = vadd.xlane.f32.xlu0 %v4911
      %v4913 = vpop.xlane.xlu0 %4912
      %v4914 = vsel %vm557, %v4818, 0.0
      %4915 = vadd.xlane.f32.xlu0 %v4914
      %v4916 = vpop.xlane.xlu0 %4915
      %v4917 = vsel %vm557, %v4819, 0.0
      %4918 = vadd.xlane.f32.xlu0 %v4917
      %v4919 = vpop.xlane.xlu0 %4918
      %v4920 = vsel %vm557, %v4820, 0.0
      %4921 = vadd.xlane.f32.xlu0 %v4920
      %v4922 = vpop.xlane.xlu0 %4921
      %v4923 = vsel %vm557, %v4821, 0.0
      %4924 = vadd.xlane.f32.xlu0 %v4923
      %v4925 = vpop.xlane.xlu0 %4924
      %v4926 = vsel %vm557, %v4822, 0.0
      %4927 = vadd.xlane.f32.xlu0 %v4926
      %v4928 = vpop.xlane.xlu0 %4927
      %v4929 = vsel %vm557, %v4823, 0.0
      %4930 = vadd.xlane.f32.xlu0 %v4929
      %v4931 = vpop.xlane.xlu0 %4930
      %v4932 = vsel %vm557, %v4824, 0.0
      %4933 = vadd.xlane.f32.xlu0 %v4932
      %v4934 = vpop.xlane.xlu0 %4933
      %v4935 = vsel %vm557, %v4825, 0.0
      %4936 = vadd.xlane.f32.xlu0 %v4935
      %v4937 = vpop.xlane.xlu0 %4936
      %v4938 = vsel %vm557, %v4826, 0.0
      %4939 = vadd.xlane.f32.xlu0 %v4938
      %v4940 = vpop.xlane.xlu0 %4939
      %v4941 = vsel %vm557, %v4827, 0.0
      %4942 = vadd.xlane.f32.xlu0 %v4941
      %v4943 = vpop.xlane.xlu0 %4942
      %v4944 = vsel %vm557, %v4828, 0.0
      %4945 = vadd.xlane.f32.xlu0 %v4944
      %v4946 = vpop.xlane.xlu0 %4945
      %v4947 = vsel %vm557, %v4829, 0.0
      %4948 = vadd.xlane.f32.xlu0 %v4947
      %v4949 = vpop.xlane.xlu0 %4948
      %v4950 = vmul.f32 %v4856, %v654
      %v4951 = vmul.f32 %v4859, %v654
      %v4952 = vmul.f32 %v4862, %v654
      %v4953 = vmul.f32 %v4865, %v654
      %v4954 = vmul.f32 %v4868, %v654
      %v4955 = vmul.f32 %v4871, %v654
      %v4956 = vmul.f32 %v4874, %v654
      %v4957 = vmul.f32 %v4877, %v654
      %v4958 = vmul.f32 %v4880, %v654
      %v4959 = vmul.f32 %v4883, %v654
      %v4960 = vmul.f32 %v4886, %v654
      %v4961 = vmul.f32 %v4889, %v654
      %v4962 = vmul.f32 %v4892, %v654
      %v4963 = vmul.f32 %v4895, %v654
      %v4964 = vmul.f32 %v4898, %v654
      %v4965 = vmul.f32 %v4901, %v654
      %v4966 = vmul.f32 %v4904, %v654
      %v4967 = vmul.f32 %v4907, %v654
      %v4968 = vmul.f32 %v4910, %v654
      %v4969 = vmul.f32 %v4913, %v654
      %v4970 = vmul.f32 %v4916, %v654
      %v4971 = vmul.f32 %v4919, %v654
      %v4972 = vmul.f32 %v4922, %v654
      %v4973 = vmul.f32 %v4925, %v654
      %v4974 = vmul.f32 %v4928, %v654
      %v4975 = vmul.f32 %v4931, %v654
      %v4976 = vmul.f32 %v4934, %v654
      %v4977 = vmul.f32 %v4937, %v654
      %v4978 = vmul.f32 %v4940, %v654
      %v4979 = vmul.f32 %v4943, %v654
      %v4980 = vmul.f32 %v4946, %v654
      %v4981 = vmul.f32 %v4949, %v654
      %v4982 = vsub.f32 %v4798, %v4950
      %v4983 = vsub.f32 %v4799, %v4951
      %v4984 = vsub.f32 %v4800, %v4952
      %v4985 = vsub.f32 %v4801, %v4953
      %v4986 = vsub.f32 %v4802, %v4954
      %v4987 = vsub.f32 %v4803, %v4955
      %v4988 = vsub.f32 %v4804, %v4956
      %v4989 = vsub.f32 %v4805, %v4957
      %v4990 = vsub.f32 %v4806, %v4958
      %v4991 = vsub.f32 %v4807, %v4959
      %v4992 = vsub.f32 %v4808, %v4960
      %v4993 = vsub.f32 %v4809, %v4961
      %v4994 = vsub.f32 %v4810, %v4962
      %v4995 = vsub.f32 %v4811, %v4963
      %v4996 = vsub.f32 %v4812, %v4964
      %v4997 = vsub.f32 %v4813, %v4965
      %v4998 = vsub.f32 %v4814, %v4966
      %v4999 = vsub.f32 %v4815, %v4967
      %v5000 = vsub.f32 %v4816, %v4968
      %v5001 = vsub.f32 %v4817, %v4969
      %v5002 = vsub.f32 %v4818, %v4970
      %v5003 = vsub.f32 %v4819, %v4971
      %v5004 = vsub.f32 %v4820, %v4972
      %v5005 = vsub.f32 %v4821, %v4973
      %v5006 = vsub.f32 %v4822, %v4974
      %v5007 = vsub.f32 %v4823, %v4975
      %v5008 = vsub.f32 %v4824, %v4976
      %v5009 = vsub.f32 %v4825, %v4977
      %v5010 = vsub.f32 %v4826, %v4978
      %v5011 = vsub.f32 %v4827, %v4979
      %v5012 = vsub.f32 %v4828, %v4980
      %v5013 = vsub.f32 %v4829, %v4981
      %v5014 = vmul.f32 %v4982, %v4982
      %v5015 = vmul.f32 %v4983, %v4983
      %v5016 = vmul.f32 %v4984, %v4984
      %v5017 = vmul.f32 %v4985, %v4985
      %v5018 = vmul.f32 %v4986, %v4986
      %v5019 = vmul.f32 %v4987, %v4987
      %v5020 = vmul.f32 %v4988, %v4988
      %v5021 = vmul.f32 %v4989, %v4989
      %v5022 = vmul.f32 %v4990, %v4990
      %v5023 = vmul.f32 %v4991, %v4991
      %v5024 = vmul.f32 %v4992, %v4992
      %v5025 = vmul.f32 %v4993, %v4993
      %v5026 = vmul.f32 %v4994, %v4994
      %v5027 = vmul.f32 %v4995, %v4995
      %v5028 = vmul.f32 %v4996, %v4996
      %v5029 = vmul.f32 %v4997, %v4997
      %v5030 = vmul.f32 %v4998, %v4998
      %v5031 = vmul.f32 %v4999, %v4999
      %v5032 = vmul.f32 %v5000, %v5000
      %v5033 = vmul.f32 %v5001, %v5001
      %v5034 = vmul.f32 %v5002, %v5002
      %v5035 = vmul.f32 %v5003, %v5003
      %v5036 = vmul.f32 %v5004, %v5004
      %v5037 = vmul.f32 %v5005, %v5005
      %v5038 = vmul.f32 %v5006, %v5006
      %v5039 = vmul.f32 %v5007, %v5007
      %v5040 = vmul.f32 %v5008, %v5008
      %v5041 = vmul.f32 %v5009, %v5009
      %v5042 = vmul.f32 %v5010, %v5010
      %v5043 = vmul.f32 %v5011, %v5011
      %v5044 = vmul.f32 %v5012, %v5012
      %v5045 = vmul.f32 %v5013, %v5013
      %v5046 = vsel %vm557, %v5014, 0.0
      %5047 = vadd.xlane.f32.xlu0 %v5046
      %v5048 = vpop.xlane.xlu0 %5047
      %v5049 = vsel %vm557, %v5015, 0.0
      %5050 = vadd.xlane.f32.xlu0 %v5049
      %v5051 = vpop.xlane.xlu0 %5050
      %v5052 = vsel %vm557, %v5016, 0.0
      %5053 = vadd.xlane.f32.xlu0 %v5052
      %v5054 = vpop.xlane.xlu0 %5053
      %v5055 = vsel %vm557, %v5017, 0.0
      %5056 = vadd.xlane.f32.xlu0 %v5055
      %v5057 = vpop.xlane.xlu0 %5056
      %v5058 = vsel %vm557, %v5018, 0.0
      %5059 = vadd.xlane.f32.xlu0 %v5058
      %v5060 = vpop.xlane.xlu0 %5059
      %v5061 = vsel %vm557, %v5019, 0.0
      %5062 = vadd.xlane.f32.xlu0 %v5061
      %v5063 = vpop.xlane.xlu0 %5062
      %v5064 = vsel %vm557, %v5020, 0.0
      %5065 = vadd.xlane.f32.xlu0 %v5064
      %v5066 = vpop.xlane.xlu0 %5065
      %v5067 = vsel %vm557, %v5021, 0.0
      %5068 = vadd.xlane.f32.xlu0 %v5067
      %v5069 = vpop.xlane.xlu0 %5068
      %v5070 = vsel %vm557, %v5022, 0.0
      %5071 = vadd.xlane.f32.xlu0 %v5070
      %v5072 = vpop.xlane.xlu0 %5071
      %v5073 = vsel %vm557, %v5023, 0.0
      %5074 = vadd.xlane.f32.xlu0 %v5073
      %v5075 = vpop.xlane.xlu0 %5074
      %v5076 = vsel %vm557, %v5024, 0.0
      %5077 = vadd.xlane.f32.xlu0 %v5076
      %v5078 = vpop.xlane.xlu0 %5077
      %v5079 = vsel %vm557, %v5025, 0.0
      %5080 = vadd.xlane.f32.xlu0 %v5079
      %v5081 = vpop.xlane.xlu0 %5080
      %v5082 = vsel %vm557, %v5026, 0.0
      %5083 = vadd.xlane.f32.xlu0 %v5082
      %v5084 = vpop.xlane.xlu0 %5083
      %v5085 = vsel %vm557, %v5027, 0.0
      %5086 = vadd.xlane.f32.xlu0 %v5085
      %v5087 = vpop.xlane.xlu0 %5086
      %v5088 = vsel %vm557, %v5028, 0.0
      %5089 = vadd.xlane.f32.xlu0 %v5088
      %v5090 = vpop.xlane.xlu0 %5089
      %v5091 = vsel %vm557, %v5029, 0.0
      %5092 = vadd.xlane.f32.xlu0 %v5091
      %v5093 = vpop.xlane.xlu0 %5092
      %v5094 = vsel %vm557, %v5030, 0.0
      %5095 = vadd.xlane.f32.xlu0 %v5094
      %v5096 = vpop.xlane.xlu0 %5095
      %v5097 = vsel %vm557, %v5031, 0.0
      %5098 = vadd.xlane.f32.xlu0 %v5097
      %v5099 = vpop.xlane.xlu0 %5098
      %v5100 = vsel %vm557, %v5032, 0.0
      %5101 = vadd.xlane.f32.xlu0 %v5100
      %v5102 = vpop.xlane.xlu0 %5101
      %v5103 = vsel %vm557, %v5033, 0.0
      %5104 = vadd.xlane.f32.xlu0 %v5103
      %v5105 = vpop.xlane.xlu0 %5104
      %v5106 = vsel %vm557, %v5034, 0.0
      %5107 = vadd.xlane.f32.xlu0 %v5106
      %v5108 = vpop.xlane.xlu0 %5107
      %v5109 = vsel %vm557, %v5035, 0.0
      %5110 = vadd.xlane.f32.xlu0 %v5109
      %v5111 = vpop.xlane.xlu0 %5110
      %v5112 = vsel %vm557, %v5036, 0.0
      %5113 = vadd.xlane.f32.xlu0 %v5112
      %v5114 = vpop.xlane.xlu0 %5113
      %v5115 = vsel %vm557, %v5037, 0.0
      %5116 = vadd.xlane.f32.xlu0 %v5115
      %v5117 = vpop.xlane.xlu0 %5116
      %v5118 = vsel %vm557, %v5038, 0.0
      %5119 = vadd.xlane.f32.xlu0 %v5118
      %v5120 = vpop.xlane.xlu0 %5119
      %v5121 = vsel %vm557, %v5039, 0.0
      %5122 = vadd.xlane.f32.xlu0 %v5121
      %v5123 = vpop.xlane.xlu0 %5122
      %v5124 = vsel %vm557, %v5040, 0.0
      %5125 = vadd.xlane.f32.xlu0 %v5124
      %v5126 = vpop.xlane.xlu0 %5125
      %v5127 = vsel %vm557, %v5041, 0.0
      %5128 = vadd.xlane.f32.xlu0 %v5127
      %v5129 = vpop.xlane.xlu0 %5128
      %v5130 = vsel %vm557, %v5042, 0.0
      %5131 = vadd.xlane.f32.xlu0 %v5130
      %v5132 = vpop.xlane.xlu0 %5131
      %v5133 = vsel %vm557, %v5043, 0.0
      %5134 = vadd.xlane.f32.xlu0 %v5133
      %v5135 = vpop.xlane.xlu0 %5134
      %v5136 = vsel %vm557, %v5044, 0.0
      %5137 = vadd.xlane.f32.xlu0 %v5136
      %v5138 = vpop.xlane.xlu0 %5137
      %v5139 = vsel %vm557, %v5045, 0.0
      %5140 = vadd.xlane.f32.xlu0 %v5139
      %v5141 = vpop.xlane.xlu0 %5140
      %v5142 = vmul.f32 %v5048, %v654
      %v5143 = vmul.f32 %v5051, %v654
      %v5144 = vmul.f32 %v5054, %v654
      %v5145 = vmul.f32 %v5057, %v654
      %v5146 = vmul.f32 %v5060, %v654
      %v5147 = vmul.f32 %v5063, %v654
      %v5148 = vmul.f32 %v5066, %v654
      %v5149 = vmul.f32 %v5069, %v654
      %v5150 = vmul.f32 %v5072, %v654
      %v5151 = vmul.f32 %v5075, %v654
      %v5152 = vmul.f32 %v5078, %v654
      %v5153 = vmul.f32 %v5081, %v654
      %v5154 = vmul.f32 %v5084, %v654
      %v5155 = vmul.f32 %v5087, %v654
      %v5156 = vmul.f32 %v5090, %v654
      %v5157 = vmul.f32 %v5093, %v654
      %v5158 = vmul.f32 %v5096, %v654
      %v5159 = vmul.f32 %v5099, %v654
      %v5160 = vmul.f32 %v5102, %v654
      %v5161 = vmul.f32 %v5105, %v654
      %v5162 = vmul.f32 %v5108, %v654
      %v5163 = vmul.f32 %v5111, %v654
      %v5164 = vmul.f32 %v5114, %v654
      %v5165 = vmul.f32 %v5117, %v654
      %v5166 = vmul.f32 %v5120, %v654
      %v5167 = vmul.f32 %v5123, %v654
      %v5168 = vmul.f32 %v5126, %v654
      %v5169 = vmul.f32 %v5129, %v654
      %v5170 = vmul.f32 %v5132, %v654
      %v5171 = vmul.f32 %v5135, %v654
      %v5172 = vmul.f32 %v5138, %v654
      %v5173 = vmul.f32 %v5141, %v654
      %v5174 = vadd.f32 %v5142, 1e-05
      %v5175 = vadd.f32 %v5143, 1e-05
      %v5176 = vadd.f32 %v5144, 1e-05
      %v5177 = vadd.f32 %v5145, 1e-05
      %v5178 = vadd.f32 %v5146, 1e-05
      %v5179 = vadd.f32 %v5147, 1e-05
      %v5180 = vadd.f32 %v5148, 1e-05
      %v5181 = vadd.f32 %v5149, 1e-05
      %v5182 = vadd.f32 %v5150, 1e-05
      %v5183 = vadd.f32 %v5151, 1e-05
      %v5184 = vadd.f32 %v5152, 1e-05
      %v5185 = vadd.f32 %v5153, 1e-05
      %v5186 = vadd.f32 %v5154, 1e-05
      %v5187 = vadd.f32 %v5155, 1e-05
      %v5188 = vadd.f32 %v5156, 1e-05
      %v5189 = vadd.f32 %v5157, 1e-05
      %v5190 = vadd.f32 %v5158, 1e-05
      %v5191 = vadd.f32 %v5159, 1e-05
      %v5192 = vadd.f32 %v5160, 1e-05
      %v5193 = vadd.f32 %v5161, 1e-05
      %v5194 = vadd.f32 %v5162, 1e-05
      %v5195 = vadd.f32 %v5163, 1e-05
      %v5196 = vadd.f32 %v5164, 1e-05
      %v5197 = vadd.f32 %v5165, 1e-05
      %v5198 = vadd.f32 %v5166, 1e-05
      %v5199 = vadd.f32 %v5167, 1e-05
      %v5200 = vadd.f32 %v5168, 1e-05
      %v5201 = vadd.f32 %v5169, 1e-05
      %v5202 = vadd.f32 %v5170, 1e-05
      %v5203 = vadd.f32 %v5171, 1e-05
      %v5204 = vadd.f32 %v5172, 1e-05
      %v5205 = vadd.f32 %v5173, 1e-05
      %v5206 = vrsqrt.pop %v5174
      %v5207 = vrsqrt.pop %v5175
      %v5208 = vrsqrt.pop %v5176
      %v5209 = vrsqrt.pop %v5177
      %v5210 = vrsqrt.pop %v5178
      %v5211 = vrsqrt.pop %v5179
      %v5212 = vrsqrt.pop %v5180
      %v5213 = vrsqrt.pop %v5181
      %v5214 = vrsqrt.pop %v5182
      %v5215 = vrsqrt.pop %v5183
      %v5216 = vrsqrt.pop %v5184
      %v5217 = vrsqrt.pop %v5185
      %v5218 = vrsqrt.pop %v5186
      %v5219 = vrsqrt.pop %v5187
      %v5220 = vrsqrt.pop %v5188
      %v5221 = vrsqrt.pop %v5189
      %v5222 = vrsqrt.pop %v5190
      %v5223 = vrsqrt.pop %v5191
      %v5224 = vrsqrt.pop %v5192
      %v5225 = vrsqrt.pop %v5193
      %v5226 = vrsqrt.pop %v5194
      %v5227 = vrsqrt.pop %v5195
      %v5228 = vrsqrt.pop %v5196
      %v5229 = vrsqrt.pop %v5197
      %v5230 = vrsqrt.pop %v5198
      %v5231 = vrsqrt.pop %v5199
      %v5232 = vrsqrt.pop %v5200
      %v5233 = vrsqrt.pop %v5201
      %v5234 = vrsqrt.pop %v5202
      %v5235 = vrsqrt.pop %v5203
      %v5236 = vrsqrt.pop %v5204
      %v5237 = vrsqrt.pop %v5205
      %v5238 = vmul.f32 %v4982, %v5206
      %v5239 = vmul.f32 %v4983, %v5207
      %v5240 = vmul.f32 %v4984, %v5208
      %v5241 = vmul.f32 %v4985, %v5209
      %v5242 = vmul.f32 %v4986, %v5210
      %v5243 = vmul.f32 %v4987, %v5211
      %v5244 = vmul.f32 %v4988, %v5212
      %v5245 = vmul.f32 %v4989, %v5213
      %v5246 = vmul.f32 %v4990, %v5214
      %v5247 = vmul.f32 %v4991, %v5215
      %v5248 = vmul.f32 %v4992, %v5216
      %v5249 = vmul.f32 %v4993, %v5217
      %v5250 = vmul.f32 %v4994, %v5218
      %v5251 = vmul.f32 %v4995, %v5219
      %v5252 = vmul.f32 %v4996, %v5220
      %v5253 = vmul.f32 %v4997, %v5221
      %v5254 = vmul.f32 %v4998, %v5222
      %v5255 = vmul.f32 %v4999, %v5223
      %v5256 = vmul.f32 %v5000, %v5224
      %v5257 = vmul.f32 %v5001, %v5225
      %v5258 = vmul.f32 %v5002, %v5226
      %v5259 = vmul.f32 %v5003, %v5227
      %v5260 = vmul.f32 %v5004, %v5228
      %v5261 = vmul.f32 %v5005, %v5229
      %v5262 = vmul.f32 %v5006, %v5230
      %v5263 = vmul.f32 %v5007, %v5231
      %v5264 = vmul.f32 %v5008, %v5232
      %v5265 = vmul.f32 %v5009, %v5233
      %v5266 = vmul.f32 %v5010, %v5234
      %v5267 = vmul.f32 %v5011, %v5235
      %v5268 = vmul.f32 %v5012, %v5236
      %v5269 = vmul.f32 %v5013, %v5237
      %v5271 = vlaneseq
      %v5272 = vshrl.u32 %v5271, 7
      %v5273 = vsub.s32 0, %v5272
      %v5274 = vrot.slane %v4830, %v5273
      %v5276 = vmul.f32 %v5238, %v5274
      %v5277 = vmul.f32 %v5239, %v5274
      %v5278 = vmul.f32 %v5240, %v5274
      %v5279 = vmul.f32 %v5241, %v5274
      %v5280 = vmul.f32 %v5242, %v5274
      %v5281 = vmul.f32 %v5243, %v5274
      %v5282 = vmul.f32 %v5244, %v5274
      %v5283 = vmul.f32 %v5245, %v5274
      %v5284 = vmul.f32 %v5246, %v5274
      %v5285 = vmul.f32 %v5247, %v5274
      %v5286 = vmul.f32 %v5248, %v5274
      %v5287 = vmul.f32 %v5249, %v5274
      %v5288 = vmul.f32 %v5250, %v5274
      %v5289 = vmul.f32 %v5251, %v5274
      %v5290 = vmul.f32 %v5252, %v5274
      %v5291 = vmul.f32 %v5253, %v5274
      %v5292 = vmul.f32 %v5254, %v5274
      %v5293 = vmul.f32 %v5255, %v5274
      %v5294 = vmul.f32 %v5256, %v5274
      %v5295 = vmul.f32 %v5257, %v5274
      %v5296 = vmul.f32 %v5258, %v5274
      %v5297 = vmul.f32 %v5259, %v5274
      %v5298 = vmul.f32 %v5260, %v5274
      %v5299 = vmul.f32 %v5261, %v5274
      %v5300 = vmul.f32 %v5262, %v5274
      %v5301 = vmul.f32 %v5263, %v5274
      %v5302 = vmul.f32 %v5264, %v5274
      %v5303 = vmul.f32 %v5265, %v5274
      %v5304 = vmul.f32 %v5266, %v5274
      %v5305 = vmul.f32 %v5267, %v5274
      %v5306 = vmul.f32 %v5268, %v5274
      %v5307 = vmul.f32 %v5269, %v5274
      %v5309 = vlaneseq
      %v5310 = vshrl.u32 %v5309, 7
      %v5311 = vsub.s32 0, %v5310
      %v5312 = vrot.slane %v4831, %v5311
      %v5314 = vadd.f32 %v5276, %v5312
      %v5315 = vadd.f32 %v5277, %v5312
      %v5316 = vadd.f32 %v5278, %v5312
      %v5317 = vadd.f32 %v5279, %v5312
      %v5318 = vadd.f32 %v5280, %v5312
      %v5319 = vadd.f32 %v5281, %v5312
      %v5320 = vadd.f32 %v5282, %v5312
      %v5321 = vadd.f32 %v5283, %v5312
      %v5322 = vadd.f32 %v5284, %v5312
      %v5323 = vadd.f32 %v5285, %v5312
      %v5324 = vadd.f32 %v5286, %v5312
      %v5325 = vadd.f32 %v5287, %v5312
      %v5326 = vadd.f32 %v5288, %v5312
      %v5327 = vadd.f32 %v5289, %v5312
      %v5328 = vadd.f32 %v5290, %v5312
      %v5329 = vadd.f32 %v5291, %v5312
      %v5330 = vadd.f32 %v5292, %v5312
      %v5331 = vadd.f32 %v5293, %v5312
      %v5332 = vadd.f32 %v5294, %v5312
      %v5333 = vadd.f32 %v5295, %v5312
      %v5334 = vadd.f32 %v5296, %v5312
      %v5335 = vadd.f32 %v5297, %v5312
      %v5336 = vadd.f32 %v5298, %v5312
      %v5337 = vadd.f32 %v5299, %v5312
      %v5338 = vadd.f32 %v5300, %v5312
      %v5339 = vadd.f32 %v5301, %v5312
      %v5340 = vadd.f32 %v5302, %v5312
      %v5341 = vadd.f32 %v5303, %v5312
      %v5342 = vadd.f32 %v5304, %v5312
      %v5343 = vadd.f32 %v5305, %v5312
      %v5344 = vadd.f32 %v5306, %v5312
      %v5345 = vadd.f32 %v5307, %v5312
      %v5346 = vpack.c.bf16 %v5315, %v5314
      %v5347 = vpack.c.bf16 %v5317, %v5316
      %v5348 = vpack.c.bf16 %v5319, %v5318
      %v5349 = vpack.c.bf16 %v5321, %v5320
      %v5350 = vpack.c.bf16 %v5323, %v5322
      %v5351 = vpack.c.bf16 %v5325, %v5324
      %v5352 = vpack.c.bf16 %v5327, %v5326
      %v5353 = vpack.c.bf16 %v5329, %v5328
      %v5354 = vpack.c.bf16 %v5331, %v5330
      %v5355 = vpack.c.bf16 %v5333, %v5332
      %v5356 = vpack.c.bf16 %v5335, %v5334
      %v5357 = vpack.c.bf16 %v5337, %v5336
      %v5358 = vpack.c.bf16 %v5339, %v5338
      %v5359 = vpack.c.bf16 %v5341, %v5340
      %v5360 = vpack.c.bf16 %v5343, %v5342
      %v5361 = vpack.c.bf16 %v5345, %v5344
      %v5363 = vlaneseq
      %v5364 = vshrl.u32 %v5363, 7
      %v5365 = vsub.s32 0, %v5364
      %v5366 = vrot.slane %v4836, %v5365
      %v5372 = vunpack.c.l.b16 %v4832
      %v5373 = vunpack.c.l.b16 %v4833
      %v5374 = vunpack.c.l.b16 %v4834
      %v5375 = vunpack.c.l.b16 %v4835
      %v5376 = vpack.c.b16 %v5373, %v5372
      %v5377 = vpack.c.b16 %v5375, %v5374
      %v5381 = vsel %vm557, %v5346, 0
      %v5384 = vsel %vm557, %v5347, 0
      %v5387 = vsel %vm557, %v5348, 0
      %v5390 = vsel %vm557, %v5349, 0
      %v5393 = vsel %vm557, %v5350, 0
      %v5396 = vsel %vm557, %v5351, 0
      %v5399 = vsel %vm557, %v5352, 0
      %v5402 = vsel %vm557, %v5353, 0
      %v5405 = vsel %vm557, %v5354, 0
      %v5408 = vsel %vm557, %v5355, 0
      %v5411 = vsel %vm557, %v5356, 0
      %v5414 = vsel %vm557, %v5357, 0
      %v5417 = vsel %vm557, %v5358, 0
      %v5420 = vsel %vm557, %v5359, 0
      %v5423 = vsel %vm557, %v5360, 0
      %v5426 = vsel %vm557, %v5361, 0
      %5428 = vmatprep.subr.bf16.mxu0 0
      %5429 = vmatpush1.bf16.msra.mxu0 %v5376
      %5430 = vmatprep.subr.bf16.mxu0 0
      %5431 = vmatpush1.bf16.msra.mxu0 %v5377
      %5432 = vmatprep.subr.bf16.mxu0 0
      %5433 = vmatpush1.bf16.msra.mxu0 0
      %5434 = vmatprep.subr.bf16.mxu0 0
      %5435 = vmatpush1.bf16.msra.mxu0 0
      %5436 = vmatprep.subr.bf16.mxu0 0
      %5437 = vmatpush1.bf16.msra.mxu0 0
      %5438 = vmatprep.subr.bf16.mxu0 0
      %5439 = vmatpush1.bf16.msra.mxu0 0
      %5440 = vmatprep.subr.bf16.mxu0 0
      %5441 = vmatpush1.bf16.msra.mxu0 0
      %5442 = vmatprep.subr.bf16.mxu0 0
      %5443 = vmatpush1.bf16.msra.mxu0 0
      %5444 = vmatprep.subr.bf16.mxu0 0
      %5445 = vmatpush1.bf16.msra.mxu0 0
      %5446 = vmatprep.subr.bf16.mxu0 0
      %5447 = vmatpush1.bf16.msra.mxu0 0
      %5448 = vmatprep.subr.bf16.mxu0 0
      %5449 = vmatpush1.bf16.msra.mxu0 0
      %5450 = vmatprep.subr.bf16.mxu0 0
      %5451 = vmatpush1.bf16.msra.mxu0 0
      %5452 = vmatprep.subr.bf16.mxu0 0
      %5453 = vmatpush1.bf16.msra.mxu0 0
      %5454 = vmatprep.subr.bf16.mxu0 0
      %5455 = vmatpush1.bf16.msra.mxu0 0
      %5456 = vmatprep.subr.bf16.mxu0 0
      %5457 = vmatpush1.bf16.msra.mxu0 0
      %5458 = vmatprep.subr.bf16.mxu0 0
      %5459 = vmatpush1.bf16.msra.mxu0 0
      %5460 = vmatprep.mubr.bf16.mxu0 0
      %5461 = vmatmul.mubr.bf16.gmra.mrb[0].mxu0 %v5381
      %v5462 = vpop.f32.mrb[0].mxu0
      %v5463 = vadd.f32 %v5366, %v5462
      %v5464 = vpop.f32.mrb[0].mxu0
      %v5465 = vpop.f32.mrb[0].mxu0
      %v5466 = vadd.f32 %v5366, %v5465
      %v5467 = vpop.f32.mrb[0].mxu0
      %5468 = vmatprep.mubr.bf16.mxu0 0
      %5469 = vmatmul.mubr.bf16.gmra.mrb[0].mxu0 %v5384
      %v5470 = vpop.f32.mrb[0].mxu0
      %v5471 = vadd.f32 %v5366, %v5470
      %v5472 = vpop.f32.mrb[0].mxu0
      %v5473 = vpop.f32.mrb[0].mxu0
      %v5474 = vadd.f32 %v5366, %v5473
      %v5475 = vpop.f32.mrb[0].mxu0
      %5476 = vmatprep.mubr.bf16.mxu0 0
      %5477 = vmatmul.mubr.bf16.gmra.mrb[0].mxu0 %v5387
      %v5478 = vpop.f32.mrb[0].mxu0
      %v5479 = vadd.f32 %v5366, %v5478
      %v5480 = vpop.f32.mrb[0].mxu0
      %v5481 = vpop.f32.mrb[0].mxu0
      %v5482 = vadd.f32 %v5366, %v5481
      %v5483 = vpop.f32.mrb[0].mxu0
      %5484 = vmatprep.mubr.bf16.mxu0 0
      %5485 = vmatmul.mubr.bf16.gmra.mrb[0].mxu0 %v5390
      %v5486 = vpop.f32.mrb[0].mxu0
      %v5487 = vadd.f32 %v5366, %v5486
      %v5488 = vpop.f32.mrb[0].mxu0
      %v5489 = vpop.f32.mrb[0].mxu0
      %v5490 = vadd.f32 %v5366, %v5489
      %v5491 = vpop.f32.mrb[0].mxu0
      %5492 = vmatprep.mubr.bf16.mxu0 0
      %5493 = vmatmul.mubr.bf16.gmra.mrb[0].mxu0 %v5393
      %v5494 = vpop.f32.mrb[0].mxu0
      %v5495 = vadd.f32 %v5366, %v5494
      %v5496 = vpop.f32.mrb[0].mxu0
      %v5497 = vpop.f32.mrb[0].mxu0
      %v5498 = vadd.f32 %v5366, %v5497
      %v5499 = vpop.f32.mrb[0].mxu0
      %5500 = vmatprep.mubr.bf16.mxu0 0
      %5501 = vmatmul.mubr.bf16.gmra.mrb[0].mxu0 %v5396
      %v5502 = vpop.f32.mrb[0].mxu0
      %v5503 = vadd.f32 %v5366, %v5502
      %v5504 = vpop.f32.mrb[0].mxu0
      %v5505 = vpop.f32.mrb[0].mxu0
      %v5506 = vadd.f32 %v5366, %v5505
      %v5507 = vpop.f32.mrb[0].mxu0
      %5508 = vmatprep.mubr.bf16.mxu0 0
      %5509 = vmatmul.mubr.bf16.gmra.mrb[0].mxu0 %v5399
      %v5510 = vpop.f32.mrb[0].mxu0
      %v5511 = vadd.f32 %v5366, %v5510
      %v5512 = vpop.f32.mrb[0].mxu0
      %v5513 = vpop.f32.mrb[0].mxu0
      %v5514 = vadd.f32 %v5366, %v5513
      %v5515 = vpop.f32.mrb[0].mxu0
      %5516 = vmatprep.mubr.bf16.mxu0 0
      %5517 = vmatmul.mubr.bf16.gmra.mrb[0].mxu0 %v5402
      %v5518 = vpop.f32.mrb[0].mxu0
      %v5519 = vadd.f32 %v5366, %v5518
      %v5520 = vpop.f32.mrb[0].mxu0
      %v5521 = vpop.f32.mrb[0].mxu0
      %v5522 = vadd.f32 %v5366, %v5521
      %v5523 = vpop.f32.mrb[0].mxu0
      %5524 = vmatprep.mubr.bf16.mxu0 0
      %5525 = vmatmul.mubr.bf16.gmra.mrb[0].mxu0 %v5405
      %v5526 = vpop.f32.mrb[0].mxu0
      %v5527 = vadd.f32 %v5366, %v5526
      %v5528 = vpop.f32.mrb[0].mxu0
      %v5529 = vpop.f32.mrb[0].mxu0
      %v5530 = vadd.f32 %v5366, %v5529
      %v5531 = vpop.f32.mrb[0].mxu0
      %5532 = vmatprep.mubr.bf16.mxu0 0
      %5533 = vmatmul.mubr.bf16.gmra.mrb[0].mxu0 %v5408
      %v5534 = vpop.f32.mrb[0].mxu0
      %v5535 = vadd.f32 %v5366, %v5534
      %v5536 = vpop.f32.mrb[0].mxu0
      %v5537 = vpop.f32.mrb[0].mxu0
      %v5538 = vadd.f32 %v5366, %v5537
      %v5539 = vpop.f32.mrb[0].mxu0
      %5540 = vmatprep.mubr.bf16.mxu0 0
      %5541 = vmatmul.mubr.bf16.gmra.mrb[0].mxu0 %v5411
      %v5542 = vpop.f32.mrb[0].mxu0
      %v5543 = vadd.f32 %v5366, %v5542
      %v5544 = vpop.f32.mrb[0].mxu0
      %v5545 = vpop.f32.mrb[0].mxu0
      %v5546 = vadd.f32 %v5366, %v5545
      %v5547 = vpop.f32.mrb[0].mxu0
      %5548 = vmatprep.mubr.bf16.mxu0 0
      %5549 = vmatmul.mubr.bf16.gmra.mrb[0].mxu0 %v5414
      %v5550 = vpop.f32.mrb[0].mxu0
      %v5551 = vadd.f32 %v5366, %v5550
      %v5552 = vpop.f32.mrb[0].mxu0
      %v5553 = vpop.f32.mrb[0].mxu0
      %v5554 = vadd.f32 %v5366, %v5553
      %v5555 = vpop.f32.mrb[0].mxu0
      %5556 = vmatprep.mubr.bf16.mxu0 0
      %5557 = vmatmul.mubr.bf16.gmra.mrb[0].mxu0 %v5417
      %v5558 = vpop.f32.mrb[0].mxu0
      %v5559 = vadd.f32 %v5366, %v5558
      %v5560 = vpop.f32.mrb[0].mxu0
      %v5561 = vpop.f32.mrb[0].mxu0
      %v5562 = vadd.f32 %v5366, %v5561
      %v5563 = vpop.f32.mrb[0].mxu0
      %5564 = vmatprep.mubr.bf16.mxu0 0
      %5565 = vmatmul.mubr.bf16.gmra.mrb[0].mxu0 %v5420
      %v5566 = vpop.f32.mrb[0].mxu0
      %v5567 = vadd.f32 %v5366, %v5566
      %v5568 = vpop.f32.mrb[0].mxu0
      %v5569 = vpop.f32.mrb[0].mxu0
      %v5570 = vadd.f32 %v5366, %v5569
      %v5571 = vpop.f32.mrb[0].mxu0
      %5572 = vmatprep.mubr.bf16.mxu0 0
      %5573 = vmatmul.mubr.bf16.gmra.mrb[0].mxu0 %v5423
      %v5574 = vpop.f32.mrb[0].mxu0
      %v5575 = vadd.f32 %v5366, %v5574
      %v5576 = vpop.f32.mrb[0].mxu0
      %v5577 = vpop.f32.mrb[0].mxu0
      %v5578 = vadd.f32 %v5366, %v5577
      %v5579 = vpop.f32.mrb[0].mxu0
      %5580 = vmatprep.mubr.bf16.mxu0 0
      %5581 = vmatmul.mubr.bf16.gmra.mrb[0].mxu0 %v5426
      %v5582 = vpop.f32.mrb[0].mxu0
      %v5583 = vadd.f32 %v5366, %v5582
      %v5584 = vpop.f32.mrb[0].mxu0
      %v5585 = vpop.f32.mrb[0].mxu0
      %v5586 = vadd.f32 %v5366, %v5585
      %v5587 = vpop.f32.mrb[0].mxu0
      %5588 = vdwg.mxu0
      %v5589 = vmul.f32 %v5463, 0.5
      %v5590 = vmul.f32 %v5466, 0.5
      %v5591 = vmul.f32 %v5471, 0.5
      %v5592 = vmul.f32 %v5474, 0.5
      %v5593 = vmul.f32 %v5479, 0.5
      %v5594 = vmul.f32 %v5482, 0.5
      %v5595 = vmul.f32 %v5487, 0.5
      %v5596 = vmul.f32 %v5490, 0.5
      %v5597 = vmul.f32 %v5495, 0.5
      %v5598 = vmul.f32 %v5498, 0.5
      %v5599 = vmul.f32 %v5503, 0.5
      %v5600 = vmul.f32 %v5506, 0.5
      %v5601 = vmul.f32 %v5511, 0.5
      %v5602 = vmul.f32 %v5514, 0.5
      %v5603 = vmul.f32 %v5519, 0.5
      %v5604 = vmul.f32 %v5522, 0.5
      %v5605 = vmul.f32 %v5527, 0.5
      %v5606 = vmul.f32 %v5530, 0.5
      %v5607 = vmul.f32 %v5535, 0.5
      %v5608 = vmul.f32 %v5538, 0.5
      %v5609 = vmul.f32 %v5543, 0.5
      %v5610 = vmul.f32 %v5546, 0.5
      %v5611 = vmul.f32 %v5551, 0.5
      %v5612 = vmul.f32 %v5554, 0.5
      %v5613 = vmul.f32 %v5559, 0.5
      %v5614 = vmul.f32 %v5562, 0.5
      %v5615 = vmul.f32 %v5567, 0.5
      %v5616 = vmul.f32 %v5570, 0.5
      %v5617 = vmul.f32 %v5575, 0.5
      %v5618 = vmul.f32 %v5578, 0.5
      %v5619 = vmul.f32 %v5583, 0.5
      %v5620 = vmul.f32 %v5586, 0.5
      %v5621 = vmul.f32 %v5463, 0.044715
      %v5622 = vmul.f32 %v5466, 0.044715
      %v5623 = vmul.f32 %v5471, 0.044715
      %v5624 = vmul.f32 %v5474, 0.044715
      %v5625 = vmul.f32 %v5479, 0.044715
      %v5626 = vmul.f32 %v5482, 0.044715
      %v5627 = vmul.f32 %v5487, 0.044715
      %v5628 = vmul.f32 %v5490, 0.044715
      %v5629 = vmul.f32 %v5495, 0.044715
      %v5630 = vmul.f32 %v5498, 0.044715
      %v5631 = vmul.f32 %v5503, 0.044715
      %v5632 = vmul.f32 %v5506, 0.044715
      %v5633 = vmul.f32 %v5511, 0.044715
      %v5634 = vmul.f32 %v5514, 0.044715
      %v5635 = vmul.f32 %v5519, 0.044715
      %v5636 = vmul.f32 %v5522, 0.044715
      %v5637 = vmul.f32 %v5527, 0.044715
      %v5638 = vmul.f32 %v5530, 0.044715
      %v5639 = vmul.f32 %v5535, 0.044715
      %v5640 = vmul.f32 %v5538, 0.044715
      %v5641 = vmul.f32 %v5543, 0.044715
      %v5642 = vmul.f32 %v5546, 0.044715
      %v5643 = vmul.f32 %v5551, 0.044715
      %v5644 = vmul.f32 %v5554, 0.044715
      %v5645 = vmul.f32 %v5559, 0.044715
      %v5646 = vmul.f32 %v5562, 0.044715
      %v5647 = vmul.f32 %v5567, 0.044715
      %v5648 = vmul.f32 %v5570, 0.044715
      %v5649 = vmul.f32 %v5575, 0.044715
      %v5650 = vmul.f32 %v5578, 0.044715
      %v5651 = vmul.f32 %v5583, 0.044715
      %v5652 = vmul.f32 %v5586, 0.044715
      %v5653 = vmul.f32 %v5621, %v5463
      %v5654 = vmul.f32 %v5622, %v5466
      %v5655 = vmul.f32 %v5623, %v5471
      %v5656 = vmul.f32 %v5624, %v5474
      %v5657 = vmul.f32 %v5625, %v5479
      %v5658 = vmul.f32 %v5626, %v5482
      %v5659 = vmul.f32 %v5627, %v5487
      %v5660 = vmul.f32 %v5628, %v5490
      %v5661 = vmul.f32 %v5629, %v5495
      %v5662 = vmul.f32 %v5630, %v5498
      %v5663 = vmul.f32 %v5631, %v5503
      %v5664 = vmul.f32 %v5632, %v5506
      %v5665 = vmul.f32 %v5633, %v5511
      %v5666 = vmul.f32 %v5634, %v5514
      %v5667 = vmul.f32 %v5635, %v5519
      %v5668 = vmul.f32 %v5636, %v5522
      %v5669 = vmul.f32 %v5637, %v5527
      %v5670 = vmul.f32 %v5638, %v5530
      %v5671 = vmul.f32 %v5639, %v5535
      %v5672 = vmul.f32 %v5640, %v5538
      %v5673 = vmul.f32 %v5641, %v5543
      %v5674 = vmul.f32 %v5642, %v5546
      %v5675 = vmul.f32 %v5643, %v5551
      %v5676 = vmul.f32 %v5644, %v5554
      %v5677 = vmul.f32 %v5645, %v5559
      %v5678 = vmul.f32 %v5646, %v5562
      %v5679 = vmul.f32 %v5647, %v5567
      %v5680 = vmul.f32 %v5648, %v5570
      %v5681 = vmul.f32 %v5649, %v5575
      %v5682 = vmul.f32 %v5650, %v5578
      %v5683 = vmul.f32 %v5651, %v5583
      %v5684 = vmul.f32 %v5652, %v5586
      %v5685 = vmul.f32 %v5653, %v5463
      %v5686 = vmul.f32 %v5654, %v5466
      %v5687 = vmul.f32 %v5655, %v5471
      %v5688 = vmul.f32 %v5656, %v5474
      %v5689 = vmul.f32 %v5657, %v5479
      %v5690 = vmul.f32 %v5658, %v5482
      %v5691 = vmul.f32 %v5659, %v5487
      %v5692 = vmul.f32 %v5660, %v5490
      %v5693 = vmul.f32 %v5661, %v5495
      %v5694 = vmul.f32 %v5662, %v5498
      %v5695 = vmul.f32 %v5663, %v5503
      %v5696 = vmul.f32 %v5664, %v5506
      %v5697 = vmul.f32 %v5665, %v5511
      %v5698 = vmul.f32 %v5666, %v5514
      %v5699 = vmul.f32 %v5667, %v5519
      %v5700 = vmul.f32 %v5668, %v5522
      %v5701 = vmul.f32 %v5669, %v5527
      %v5702 = vmul.f32 %v5670, %v5530
      %v5703 = vmul.f32 %v5671, %v5535
      %v5704 = vmul.f32 %v5672, %v5538
      %v5705 = vmul.f32 %v5673, %v5543
      %v5706 = vmul.f32 %v5674, %v5546
      %v5707 = vmul.f32 %v5675, %v5551
      %v5708 = vmul.f32 %v5676, %v5554
      %v5709 = vmul.f32 %v5677, %v5559
      %v5710 = vmul.f32 %v5678, %v5562
      %v5711 = vmul.f32 %v5679, %v5567
      %v5712 = vmul.f32 %v5680, %v5570
      %v5713 = vmul.f32 %v5681, %v5575
      %v5714 = vmul.f32 %v5682, %v5578
      %v5715 = vmul.f32 %v5683, %v5583
      %v5716 = vmul.f32 %v5684, %v5586
      %v5717 = vadd.f32 %v5463, %v5685
      %v5718 = vadd.f32 %v5466, %v5686
      %v5719 = vadd.f32 %v5471, %v5687
      %v5720 = vadd.f32 %v5474, %v5688
      %v5721 = vadd.f32 %v5479, %v5689
      %v5722 = vadd.f32 %v5482, %v5690
      %v5723 = vadd.f32 %v5487, %v5691
      %v5724 = vadd.f32 %v5490, %v5692
      %v5725 = vadd.f32 %v5495, %v5693
      %v5726 = vadd.f32 %v5498, %v5694
      %v5727 = vadd.f32 %v5503, %v5695
      %v5728 = vadd.f32 %v5506, %v5696
      %v5729 = vadd.f32 %v5511, %v5697
      %v5730 = vadd.f32 %v5514, %v5698
      %v5731 = vadd.f32 %v5519, %v5699
      %v5732 = vadd.f32 %v5522, %v5700
      %v5733 = vadd.f32 %v5527, %v5701
      %v5734 = vadd.f32 %v5530, %v5702
      %v5735 = vadd.f32 %v5535, %v5703
      %v5736 = vadd.f32 %v5538, %v5704
      %v5737 = vadd.f32 %v5543, %v5705
      %v5738 = vadd.f32 %v5546, %v5706
      %v5739 = vadd.f32 %v5551, %v5707
      %v5740 = vadd.f32 %v5554, %v5708
      %v5741 = vadd.f32 %v5559, %v5709
      %v5742 = vadd.f32 %v5562, %v5710
      %v5743 = vadd.f32 %v5567, %v5711
      %v5744 = vadd.f32 %v5570, %v5712
      %v5745 = vadd.f32 %v5575, %v5713
      %v5746 = vadd.f32 %v5578, %v5714
      %v5747 = vadd.f32 %v5583, %v5715
      %v5748 = vadd.f32 %v5586, %v5716
      %v5749 = vmul.f32 %v5717, 0.7978846
      %v5750 = vmul.f32 %v5718, 0.7978846
      %v5751 = vmul.f32 %v5719, 0.7978846
      %v5752 = vmul.f32 %v5720, 0.7978846
      %v5753 = vmul.f32 %v5721, 0.7978846
      %v5754 = vmul.f32 %v5722, 0.7978846
      %v5755 = vmul.f32 %v5723, 0.7978846
      %v5756 = vmul.f32 %v5724, 0.7978846
      %v5757 = vmul.f32 %v5725, 0.7978846
      %v5758 = vmul.f32 %v5726, 0.7978846
      %v5759 = vmul.f32 %v5727, 0.7978846
      %v5760 = vmul.f32 %v5728, 0.7978846
      %v5761 = vmul.f32 %v5729, 0.7978846
      %v5762 = vmul.f32 %v5730, 0.7978846
      %v5763 = vmul.f32 %v5731, 0.7978846
      %v5764 = vmul.f32 %v5732, 0.7978846
      %v5765 = vmul.f32 %v5733, 0.7978846
      %v5766 = vmul.f32 %v5734, 0.7978846
      %v5767 = vmul.f32 %v5735, 0.7978846
      %v5768 = vmul.f32 %v5736, 0.7978846
      %v5769 = vmul.f32 %v5737, 0.7978846
      %v5770 = vmul.f32 %v5738, 0.7978846
      %v5771 = vmul.f32 %v5739, 0.7978846
      %v5772 = vmul.f32 %v5740, 0.7978846
      %v5773 = vmul.f32 %v5741, 0.7978846
      %v5774 = vmul.f32 %v5742, 0.7978846
      %v5775 = vmul.f32 %v5743, 0.7978846
      %v5776 = vmul.f32 %v5744, 0.7978846
      %v5777 = vmul.f32 %v5745, 0.7978846
      %v5778 = vmul.f32 %v5746, 0.7978846
      %v5779 = vmul.f32 %v5747, 0.7978846
      %v5780 = vmul.f32 %v5748, 0.7978846
      %v5781 = vtanh.pop %v5749
      %v5782 = vtanh.pop %v5750
      %v5783 = vtanh.pop %v5751
      %v5784 = vtanh.pop %v5752
      %v5785 = vtanh.pop %v5753
      %v5786 = vtanh.pop %v5754
      %v5787 = vtanh.pop %v5755
      %v5788 = vtanh.pop %v5756
      %v5789 = vtanh.pop %v5757
      %v5790 = vtanh.pop %v5758
      %v5791 = vtanh.pop %v5759
      %v5792 = vtanh.pop %v5760
      %v5793 = vtanh.pop %v5761
      %v5794 = vtanh.pop %v5762
      %v5795 = vtanh.pop %v5763
      %v5796 = vtanh.pop %v5764
      %v5797 = vtanh.pop %v5765
      %v5798 = vtanh.pop %v5766
      %v5799 = vtanh.pop %v5767
      %v5800 = vtanh.pop %v5768
      %v5801 = vtanh.pop %v5769
      %v5802 = vtanh.pop %v5770
      %v5803 = vtanh.pop %v5771
      %v5804 = vtanh.pop %v5772
      %v5805 = vtanh.pop %v5773
      %v5806 = vtanh.pop %v5774
      %v5807 = vtanh.pop %v5775
      %v5808 = vtanh.pop %v5776
      %v5809 = vtanh.pop %v5777
      %v5810 = vtanh.pop %v5778
      %v5811 = vtanh.pop %v5779
      %v5812 = vtanh.pop %v5780
      %v5813 = vadd.f32 %v5781, 1.0
      %v5814 = vadd.f32 %v5782, 1.0
      %v5815 = vadd.f32 %v5783, 1.0
      %v5816 = vadd.f32 %v5784, 1.0
      %v5817 = vadd.f32 %v5785, 1.0
      %v5818 = vadd.f32 %v5786, 1.0
      %v5819 = vadd.f32 %v5787, 1.0
      %v5820 = vadd.f32 %v5788, 1.0
      %v5821 = vadd.f32 %v5789, 1.0
      %v5822 = vadd.f32 %v5790, 1.0
      %v5823 = vadd.f32 %v5791, 1.0
      %v5824 = vadd.f32 %v5792, 1.0
      %v5825 = vadd.f32 %v5793, 1.0
      %v5826 = vadd.f32 %v5794, 1.0
      %v5827 = vadd.f32 %v5795, 1.0
      %v5828 = vadd.f32 %v5796, 1.0
      %v5829 = vadd.f32 %v5797, 1.0
      %v5830 = vadd.f32 %v5798, 1.0
      %v5831 = vadd.f32 %v5799, 1.0
      %v5832 = vadd.f32 %v5800, 1.0
      %v5833 = vadd.f32 %v5801, 1.0
      %v5834 = vadd.f32 %v5802, 1.0
      %v5835 = vadd.f32 %v5803, 1.0
      %v5836 = vadd.f32 %v5804, 1.0
      %v5837 = vadd.f32 %v5805, 1.0
      %v5838 = vadd.f32 %v5806, 1.0
      %v5839 = vadd.f32 %v5807, 1.0
      %v5840 = vadd.f32 %v5808, 1.0
      %v5841 = vadd.f32 %v5809, 1.0
      %v5842 = vadd.f32 %v5810, 1.0
      %v5843 = vadd.f32 %v5811, 1.0
      %v5844 = vadd.f32 %v5812, 1.0
      %v5845 = vmul.f32 %v5589, %v5813
      %v5846 = vmul.f32 %v5590, %v5814
      %v5847 = vmul.f32 %v5591, %v5815
      %v5848 = vmul.f32 %v5592, %v5816
      %v5849 = vmul.f32 %v5593, %v5817
      %v5850 = vmul.f32 %v5594, %v5818
      %v5851 = vmul.f32 %v5595, %v5819
      %v5852 = vmul.f32 %v5596, %v5820
      %v5853 = vmul.f32 %v5597, %v5821
      %v5854 = vmul.f32 %v5598, %v5822
      %v5855 = vmul.f32 %v5599, %v5823
      %v5856 = vmul.f32 %v5600, %v5824
      %v5857 = vmul.f32 %v5601, %v5825
      %v5858 = vmul.f32 %v5602, %v5826
      %v5859 = vmul.f32 %v5603, %v5827
      %v5860 = vmul.f32 %v5604, %v5828
      %v5861 = vmul.f32 %v5605, %v5829
      %v5862 = vmul.f32 %v5606, %v5830
      %v5863 = vmul.f32 %v5607, %v5831
      %v5864 = vmul.f32 %v5608, %v5832
      %v5865 = vmul.f32 %v5609, %v5833
      %v5866 = vmul.f32 %v5610, %v5834
      %v5867 = vmul.f32 %v5611, %v5835
      %v5868 = vmul.f32 %v5612, %v5836
      %v5869 = vmul.f32 %v5613, %v5837
      %v5870 = vmul.f32 %v5614, %v5838
      %v5871 = vmul.f32 %v5615, %v5839
      %v5872 = vmul.f32 %v5616, %v5840
      %v5873 = vmul.f32 %v5617, %v5841
      %v5874 = vmul.f32 %v5618, %v5842
      %v5875 = vmul.f32 %v5619, %v5843
      %v5876 = vmul.f32 %v5620, %v5844
      %v5877 = vpack.c.bf16 %v5846, %v5845
      %v5878 = vpack.c.bf16 %v5848, %v5847
      %v5879 = vpack.c.bf16 %v5850, %v5849
      %v5880 = vpack.c.bf16 %v5852, %v5851
      %v5881 = vpack.c.bf16 %v5854, %v5853
      %v5882 = vpack.c.bf16 %v5856, %v5855
      %v5883 = vpack.c.bf16 %v5858, %v5857
      %v5884 = vpack.c.bf16 %v5860, %v5859
      %v5885 = vpack.c.bf16 %v5862, %v5861
      %v5886 = vpack.c.bf16 %v5864, %v5863
      %v5887 = vpack.c.bf16 %v5866, %v5865
      %v5888 = vpack.c.bf16 %v5868, %v5867
      %v5889 = vpack.c.bf16 %v5870, %v5869
      %v5890 = vpack.c.bf16 %v5872, %v5871
      %v5891 = vpack.c.bf16 %v5874, %v5873
      %v5892 = vpack.c.bf16 %v5876, %v5875
      %v5894 = vlaneseq
      %v5895 = vshrl.u32 %v5894, 7
      %v5896 = vsub.s32 0, %v5895
      %v5897 = vrot.slane %v4853, %v5896
      %v5915 = vunpack.c.l.b16 %v4837
      %v5916 = vunpack.c.l.b16 %v4838
      %v5917 = vunpack.c.l.b16 %v4839
      %v5918 = vunpack.c.l.b16 %v4840
      %v5919 = vunpack.c.l.b16 %v4841
      %v5920 = vunpack.c.l.b16 %v4842
      %v5921 = vunpack.c.l.b16 %v4843
      %v5922 = vunpack.c.l.b16 %v4844
      %v5923 = vunpack.c.l.b16 %v4845
      %v5924 = vunpack.c.l.b16 %v4846
      %v5925 = vunpack.c.l.b16 %v4847
      %v5926 = vunpack.c.l.b16 %v4848
      %v5927 = vunpack.c.l.b16 %v4849
      %v5928 = vunpack.c.l.b16 %v4850
      %v5929 = vunpack.c.l.b16 %v4851
      %v5930 = vunpack.c.l.b16 %v4852
      %v5931 = vpack.c.b16 %v5916, %v5915
      %v5932 = vpack.c.b16 %v5918, %v5917
      %v5933 = vpack.c.b16 %v5920, %v5919
      %v5934 = vpack.c.b16 %v5922, %v5921
      %v5935 = vpack.c.b16 %v5924, %v5923
      %v5936 = vpack.c.b16 %v5926, %v5925
      %v5937 = vpack.c.b16 %v5928, %v5927
      %v5938 = vpack.c.b16 %v5930, %v5929
      %5947 = vmatprep.subr.bf16.mxu0 0
      %5948 = vmatpush1.bf16.msra.mxu0 %v5931
      %5949 = vmatprep.subr.bf16.mxu0 0
      %5950 = vmatpush1.bf16.msra.mxu0 %v5932
      %5951 = vmatprep.subr.bf16.mxu0 0
      %5952 = vmatpush1.bf16.msra.mxu0 %v5933
      %5953 = vmatprep.subr.bf16.mxu0 0
      %5954 = vmatpush1.bf16.msra.mxu0 %v5934
      %5955 = vmatprep.subr.bf16.mxu0 0
      %5956 = vmatpush1.bf16.msra.mxu0 %v5935
      %5957 = vmatprep.subr.bf16.mxu0 0
      %5958 = vmatpush1.bf16.msra.mxu0 %v5936
      %5959 = vmatprep.subr.bf16.mxu0 0
      %5960 = vmatpush1.bf16.msra.mxu0 %v5937
      %5961 = vmatprep.subr.bf16.mxu0 0
      %5962 = vmatpush1.bf16.msra.mxu0 %v5938
      %5963 = vmatprep.subr.bf16.mxu0 0
      %5964 = vmatpush1.bf16.msra.mxu0 0
      %5965 = vmatprep.subr.bf16.mxu0 0
      %5966 = vmatpush1.bf16.msra.mxu0 0
      %5967 = vmatprep.subr.bf16.mxu0 0
      %5968 = vmatpush1.bf16.msra.mxu0 0
      %5969 = vmatprep.subr.bf16.mxu0 0
      %5970 = vmatpush1.bf16.msra.mxu0 0
      %5971 = vmatprep.subr.bf16.mxu0 0
      %5972 = vmatpush1.bf16.msra.mxu0 0
      %5973 = vmatprep.subr.bf16.mxu0 0
      %5974 = vmatpush1.bf16.msra.mxu0 0
      %5975 = vmatprep.subr.bf16.mxu0 0
      %5976 = vmatpush1.bf16.msra.mxu0 0
      %5977 = vmatprep.subr.bf16.mxu0 0
      %5978 = vmatpush1.bf16.msra.mxu0 0
      %5979 = vmatprep.mubr.bf16.mxu0 0
      %5980 = vmatmul.mubr.bf16.gmra.mrb[0].mxu0 %v5877
      %v5981 = vpop.f32.mrb[0].mxu0
      %v5982 = vadd.f32 %v5897, %v5981
      %v5983 = vpop.f32.mrb[0].mxu0
      %v5984 = vpop.f32.mrb[0].mxu0
      %v5985 = vadd.f32 %v5897, %v5984
      %v5986 = vpop.f32.mrb[0].mxu0
      %5987 = vmatprep.mubr.bf16.mxu0 0
      %5988 = vmatmul.mubr.bf16.gmra.mrb[0].mxu0 %v5878
      %v5989 = vpop.f32.mrb[0].mxu0
      %v5990 = vadd.f32 %v5897, %v5989
      %v5991 = vpop.f32.mrb[0].mxu0
      %v5992 = vpop.f32.mrb[0].mxu0
      %v5993 = vadd.f32 %v5897, %v5992
      %v5994 = vpop.f32.mrb[0].mxu0
      %5995 = vmatprep.mubr.bf16.mxu0 0
      %5996 = vmatmul.mubr.bf16.gmra.mrb[0].mxu0 %v5879
      %v5997 = vpop.f32.mrb[0].mxu0
      %v5998 = vadd.f32 %v5897, %v5997
      %v5999 = vpop.f32.mrb[0].mxu0
      %v6000 = vpop.f32.mrb[0].mxu0
      %v6001 = vadd.f32 %v5897, %v6000
      %v6002 = vpop.f32.mrb[0].mxu0
      %6003 = vmatprep.mubr.bf16.mxu0 0
      %6004 = vmatmul.mubr.bf16.gmra.mrb[0].mxu0 %v5880
      %v6005 = vpop.f32.mrb[0].mxu0
      %v6006 = vadd.f32 %v5897, %v6005
      %v6007 = vpop.f32.mrb[0].mxu0
      %v6008 = vpop.f32.mrb[0].mxu0
      %v6009 = vadd.f32 %v5897, %v6008
      %v6010 = vpop.f32.mrb[0].mxu0
      %6011 = vmatprep.mubr.bf16.mxu0 0
      %6012 = vmatmul.mubr.bf16.gmra.mrb[0].mxu0 %v5881
      %v6013 = vpop.f32.mrb[0].mxu0
      %v6014 = vadd.f32 %v5897, %v6013
      %v6015 = vpop.f32.mrb[0].mxu0
      %v6016 = vpop.f32.mrb[0].mxu0
      %v6017 = vadd.f32 %v5897, %v6016
      %v6018 = vpop.f32.mrb[0].mxu0
      %6019 = vmatprep.mubr.bf16.mxu0 0
      %6020 = vmatmul.mubr.bf16.gmra.mrb[0].mxu0 %v5882
      %v6021 = vpop.f32.mrb[0].mxu0
      %v6022 = vadd.f32 %v5897, %v6021
      %v6023 = vpop.f32.mrb[0].mxu0
      %v6024 = vpop.f32.mrb[0].mxu0
      %v6025 = vadd.f32 %v5897, %v6024
      %v6026 = vpop.f32.mrb[0].mxu0
      %6027 = vmatprep.mubr.bf16.mxu0 0
      %6028 = vmatmul.mubr.bf16.gmra.mrb[0].mxu0 %v5883
      %v6029 = vpop.f32.mrb[0].mxu0
      %v6030 = vadd.f32 %v5897, %v6029
      %v6031 = vpop.f32.mrb[0].mxu0
      %v6032 = vpop.f32.mrb[0].mxu0
      %v6033 = vadd.f32 %v5897, %v6032
      %v6034 = vpop.f32.mrb[0].mxu0
      %6035 = vmatprep.mubr.bf16.mxu0 0
      %6036 = vmatmul.mubr.bf16.gmra.mrb[0].mxu0 %v5884
      %v6037 = vpop.f32.mrb[0].mxu0
      %v6038 = vadd.f32 %v5897, %v6037
      %v6039 = vpop.f32.mrb[0].mxu0
      %v6040 = vpop.f32.mrb[0].mxu0
      %v6041 = vadd.f32 %v5897, %v6040
      %v6042 = vpop.f32.mrb[0].mxu0
      %6043 = vmatprep.mubr.bf16.mxu0 0
      %6044 = vmatmul.mubr.bf16.gmra.mrb[0].mxu0 %v5885
      %v6045 = vpop.f32.mrb[0].mxu0
      %v6046 = vadd.f32 %v5897, %v6045
      %v6047 = vpop.f32.mrb[0].mxu0
      %v6048 = vpop.f32.mrb[0].mxu0
      %v6049 = vadd.f32 %v5897, %v6048
      %v6050 = vpop.f32.mrb[0].mxu0
      %6051 = vmatprep.mubr.bf16.mxu0 0
      %6052 = vmatmul.mubr.bf16.gmra.mrb[0].mxu0 %v5886
      %v6053 = vpop.f32.mrb[0].mxu0
      %v6054 = vadd.f32 %v5897, %v6053
      %v6055 = vpop.f32.mrb[0].mxu0
      %v6056 = vpop.f32.mrb[0].mxu0
      %v6057 = vadd.f32 %v5897, %v6056
      %v6058 = vpop.f32.mrb[0].mxu0
      %6059 = vmatprep.mubr.bf16.mxu0 0
      %6060 = vmatmul.mubr.bf16.gmra.mrb[0].mxu0 %v5887
      %v6061 = vpop.f32.mrb[0].mxu0
      %v6062 = vadd.f32 %v5897, %v6061
      %v6063 = vpop.f32.mrb[0].mxu0
      %v6064 = vpop.f32.mrb[0].mxu0
      %v6065 = vadd.f32 %v5897, %v6064
      %v6066 = vpop.f32.mrb[0].mxu0
      %6067 = vmatprep.mubr.bf16.mxu0 0
      %6068 = vmatmul.mubr.bf16.gmra.mrb[0].mxu0 %v5888
      %v6069 = vpop.f32.mrb[0].mxu0
      %v6070 = vadd.f32 %v5897, %v6069
      %v6071 = vpop.f32.mrb[0].mxu0
      %v6072 = vpop.f32.mrb[0].mxu0
      %v6073 = vadd.f32 %v5897, %v6072
      %v6074 = vpop.f32.mrb[0].mxu0
      %6075 = vmatprep.mubr.bf16.mxu0 0
      %6076 = vmatmul.mubr.bf16.gmra.mrb[0].mxu0 %v5889
      %v6077 = vpop.f32.mrb[0].mxu0
      %v6078 = vadd.f32 %v5897, %v6077
      %v6079 = vpop.f32.mrb[0].mxu0
      %v6080 = vpop.f32.mrb[0].mxu0
      %v6081 = vadd.f32 %v5897, %v6080
      %v6082 = vpop.f32.mrb[0].mxu0
      %6083 = vmatprep.mubr.bf16.mxu0 0
      %6084 = vmatmul.mubr.bf16.gmra.mrb[0].mxu0 %v5890
      %v6085 = vpop.f32.mrb[0].mxu0
      %v6086 = vadd.f32 %v5897, %v6085
      %v6087 = vpop.f32.mrb[0].mxu0
      %v6088 = vpop.f32.mrb[0].mxu0
      %v6089 = vadd.f32 %v5897, %v6088
      %v6090 = vpop.f32.mrb[0].mxu0
      %6091 = vmatprep.mubr.bf16.mxu0 0
      %6092 = vmatmul.mubr.bf16.gmra.mrb[0].mxu0 %v5891
      %v6093 = vpop.f32.mrb[0].mxu0
      %v6094 = vadd.f32 %v5897, %v6093
      %v6095 = vpop.f32.mrb[0].mxu0
      %v6096 = vpop.f32.mrb[0].mxu0
      %v6097 = vadd.f32 %v5897, %v6096
      %v6098 = vpop.f32.mrb[0].mxu0
      %6099 = vmatprep.mubr.bf16.mxu0 0
      %6100 = vmatmul.mubr.bf16.gmra.mrb[0].mxu0 %v5892
      %v6101 = vpop.f32.mrb[0].mxu0
      %v6102 = vadd.f32 %v5897, %v6101
      %v6103 = vpop.f32.mrb[0].mxu0
      %v6104 = vpop.f32.mrb[0].mxu0
      %v6105 = vadd.f32 %v5897, %v6104
      %v6106 = vpop.f32.mrb[0].mxu0
      %6107 = vdwg.mxu0
      %v6108 = vadd.f32 %v4798, %v5982
      %v6109 = vadd.f32 %v4799, %v5985
      %v6110 = vadd.f32 %v4800, %v5990
      %v6111 = vadd.f32 %v4801, %v5993
      %v6112 = vadd.f32 %v4802, %v5998
      %v6113 = vadd.f32 %v4803, %v6001
      %v6114 = vadd.f32 %v4804, %v6006
      %v6115 = vadd.f32 %v4805, %v6009
      %v6116 = vadd.f32 %v4806, %v6014
      %v6117 = vadd.f32 %v4807, %v6017
      %v6118 = vadd.f32 %v4808, %v6022
      %v6119 = vadd.f32 %v4809, %v6025
      %v6120 = vadd.f32 %v4810, %v6030
      %v6121 = vadd.f32 %v4811, %v6033
      %v6122 = vadd.f32 %v4812, %v6038
      %v6123 = vadd.f32 %v4813, %v6041
      %v6124 = vadd.f32 %v4814, %v6046
      %v6125 = vadd.f32 %v4815, %v6049
      %v6126 = vadd.f32 %v4816, %v6054
      %v6127 = vadd.f32 %v4817, %v6057
      %v6128 = vadd.f32 %v4818, %v6062
      %v6129 = vadd.f32 %v4819, %v6065
      %v6130 = vadd.f32 %v4820, %v6070
      %v6131 = vadd.f32 %v4821, %v6073
      %v6132 = vadd.f32 %v4822, %v6078
      %v6133 = vadd.f32 %v4823, %v6081
      %v6134 = vadd.f32 %v4824, %v6086
      %v6135 = vadd.f32 %v4825, %v6089
      %v6136 = vadd.f32 %v4826, %v6094
      %v6137 = vadd.f32 %v4827, %v6097
      %v6138 = vadd.f32 %v4828, %v6102
      %v6139 = vadd.f32 %v4829, %v6105
      %6140 = vst.msk [vmem:[%s521] sm:$0xff] %vm557, %v6108
      %6141 = vst.msk [vmem:[%s521 + $0x8] sm:$0xff] %vm557, %v6109
      %6142 = vst.msk [vmem:[%s521 + $0x10] sm:$0xff] %vm557, %v6110
      %6143 = vst.msk [vmem:[%s521 + $0x18] sm:$0xff] %vm557, %v6111
      %6144 = vst.msk [vmem:[%s521 + $0x20] sm:$0xff] %vm557, %v6112
      %6145 = vst.msk [vmem:[%s521 + $0x28] sm:$0xff] %vm557, %v6113
      %6146 = vst.msk [vmem:[%s521 + $0x30] sm:$0xff] %vm557, %v6114
      %6147 = vst.msk [vmem:[%s521 + $0x38] sm:$0xff] %vm557, %v6115
      %6148 = vst.msk [vmem:[%s521 + $0x40] sm:$0xff] %vm557, %v6116
      %6149 = vst.msk [vmem:[%s521 + $0x48] sm:$0xff] %vm557, %v6117
      %6150 = vst.msk [vmem:[%s521 + $0x50] sm:$0xff] %vm557, %v6118
      %6151 = vst.msk [vmem:[%s521 + $0x58] sm:$0xff] %vm557, %v6119
      %6152 = vst.msk [vmem:[%s521 + $0x60] sm:$0xff] %vm557, %v6120
      %6153 = vst.msk [vmem:[%s521 + $0x68] sm:$0xff] %vm557, %v6121
      %6154 = vst.msk [vmem:[%s521 + $0x70] sm:$0xff] %vm557, %v6122
      %6155 = vst.msk [vmem:[%s521 + $0x78] sm:$0xff] %vm557, %v6123
      %6156 = vst.msk [vmem:[%s521 + $0x80] sm:$0xff] %vm557, %v6124
      %6157 = vst.msk [vmem:[%s521 + $0x88] sm:$0xff] %vm557, %v6125
      %6158 = vst.msk [vmem:[%s521 + $0x90] sm:$0xff] %vm557, %v6126
      %6159 = vst.msk [vmem:[%s521 + $0x98] sm:$0xff] %vm557, %v6127
      %6160 = vst.msk [vmem:[%s521 + $0xa0] sm:$0xff] %vm557, %v6128
      %6161 = vst.msk [vmem:[%s521 + $0xa8] sm:$0xff] %vm557, %v6129
      %6162 = vst.msk [vmem:[%s521 + $0xb0] sm:$0xff] %vm557, %v6130
      %6163 = vst.msk [vmem:[%s521 + $0xb8] sm:$0xff] %vm557, %v6131
      %6164 = vst.msk [vmem:[%s521 + $0xc0] sm:$0xff] %vm557, %v6132
      %6165 = vst.msk [vmem:[%s521 + $0xc8] sm:$0xff] %vm557, %v6133
      %6166 = vst.msk [vmem:[%s521 + $0xd0] sm:$0xff] %vm557, %v6134
      %6167 = vst.msk [vmem:[%s521 + $0xd8] sm:$0xff] %vm557, %v6135
      %6168 = vst.msk [vmem:[%s521 + $0xe0] sm:$0xff] %vm557, %v6136
      %6169 = vst.msk [vmem:[%s521 + $0xe8] sm:$0xff] %vm557, %v6137
      %6170 = vst.msk [vmem:[%s521 + $0xf0] sm:$0xff] %vm557, %v6138
      %6171 = vst.msk [vmem:[%s521 + $0xf8] sm:$0xff] %vm557, %v6139
      %p6172 = scmp.lt.s32.totalorder %s27, 1
      %s6173 = scalar_select %p6172, %s27, 1
      %s6174 = smul.addr %s6173, 32
      %s6175 = smul.addr %s6174, 8
      %s6176 = scalar_lea.vmem %s16, %s6175
      // Predicated region
      $region85: #{tpu_custom_call.1} parent=83 // pred_check
        %p6177 = pneg %p386
      $region86: #{tpu_custom_call.1} parent=83 // pred_check_branch
        %6179 = sbr.rel (%p6177) target = $region88
      $region87: #{tpu_custom_call.1} parent=83 // pred_region
        _
      $region88: #{tpu_custom_call.1} parent=83 // pred_fallthru
        _
    $region84: #{tpu_custom_call.1} parent=5 // pred_fallthru
      _
    %p6180 = scmp.le.s32.totalorder 2, %s22
    // Predicated region
    $region89: #{tpu_custom_call.1} parent=5 // pred_check
      %p6181 = pneg %p6180
    $region90: #{tpu_custom_call.1} parent=5 // pred_check_branch
      %6183 = sbr.rel (%p6181) target = $region92
    $region91: #{tpu_custom_call.1} parent=5 // pred_region
      %s6184 = ssub.s32 %s22, 2
      // Predicated region
      $region93: #{tpu_custom_call.1} parent=91 // pred_check
        %p6185 = pneg %p392
      $region94: #{tpu_custom_call.1} parent=91 // pred_check_branch
        %6187 = sbr.rel (%p6185) target = $region96
      $region95: #{tpu_custom_call.1} parent=91 // pred_region
        %p6188 = scmp.lt.s32.totalorder %s28, 1
        %s6189 = scalar_select %p6188, %s28, 1
        %s6190 = smul.addr %s6189, 32
        %s6191 = smul.addr %s6190, 8
        %s6192 = scalar_lea.vmem %s16, %s6191
      $region96: #{tpu_custom_call.1} parent=91 // pred_fallthru
        _
    $region92: #{tpu_custom_call.1} parent=5 // pred_fallthru
      _
  $region6: #{tpu_custom_call.1} parent=0 // loop_footer
    %s26 = sadd.s32 1, %s22
  $region7: #{tpu_custom_call.1} parent=0 // loop_footer_branch
    %21 = sbr.rel target = $region3
  $region8: #{tpu_custom_call.1} parent=0 // loop_exit
    _

</llo_original>
